<compile_context>
chip_gen: v7x
topology: tpu7x:2x2x1
jax: 0.10.0
libtpu: 0.0.40
codegen_flags: <defaults>
</compile_context>

<pallas_src>
import functools

import numpy as np

import jax
import jax.numpy as jnp
from jax.experimental import pallas as pl
from jax.experimental.pallas import tpu as pltpu


def _r8(v):
    return ((v + 7) // 8) * 8


# ------------------------------ fused kernel --------------------------------

def _make_encoder_kernel(*, stride, n_res, B, meta,
                         Wp0, Rd0, S0, H1, W1,
                         Wp1, S1, L1, Rd1, Rexp1, C1, kw2,
                         Wpf, Sf, Lf, Rdf, Rexpf, C2, Hf, Wf):
    """Builds the fused batched encoder kernel (all geometry is static)."""

    def kernel(x_ref, pw_ref, o_ref, *scratch):
        it = iter(scratch)
        dense1 = next(it)                  # (Rd0, C1)   dense conv1 output
        act1 = next(it)                    # (L1+B*S1, C1) padded geometry-1
        act1j = next(it)                   # (L1+B*S1, kw2*C1) kw-expanded
        dense2 = next(it) if stride == 4 else None
        f = next(it)                       # (Lf+B*Sf, C2) padded final geom
        fj = next(it)                      # (Lf+B*Sf, 3*C2) kw-expanded

        def wmat(name, i):                 # packed conv weight slab, tap i
            off, kr, k, cout = meta[name]
            return pw_ref[pl.ds(off + i * kr, k), 0:cout]

        def bias(name):
            off, c = meta[name]
            return pw_ref[pl.ds(off, 1), 0:c]

        def mrows(name, start, n, c):      # row-mask slice (lane-replicated)
            off, _ = meta[name]
            return pw_ref[pl.ds(off + start, n), 0:c]

        def conv(src_ref, name, kh, base, rows, rowstride):
            acc = None
            for i in range(kh):
                xs = src_ref[pl.ds(base + i * rowstride, rows), :]
                t = jnp.dot(xs, wmat(name, i),
                            preferred_element_type=jnp.float32)
                acc = t if acc is None else acc + t
            return acc

        # ---- conv1: 4x4 / stride 2 / pad 1 (+ReLU); kw merged wrapper-side --
        dense1[...] = jnp.maximum(conv(x_ref, "c1", 4, 0, Rd0, Wp0)
                                  + bias("b1"), 0.0)

        # ---- stride-2 subsample into padded geometry-1 buffer ---------------
        for bb in range(B):
            for ho in range(H1):
                src = bb * S0 + 2 * ho * Wp0
                dst = L1 + bb * S1 + (ho + 1) * Wp1 + 1
                act1[dst:dst + W1, :] = dense1[pl.ds(src, W1, stride=2), :]

        # ---- kw-expansion of act1 (NaN-safe select kills pads / stale rows) -
        for j in range(kw2):
            mj = mrows("m1", L1 + j, Rexp1, C1)
            aj = act1[pl.ds(L1 + j, Rexp1), :]
            act1j[L1:L1 + Rexp1, j * C1:(j + 1) * C1] = jnp.where(
                mj > 0.0, aj, 0.0)

        def expand_f():
            for j in range(3):
                mj = mrows("mf", Lf + j, Rexpf, C2)
                aj = f[pl.ds(Lf + j, Rexpf), :]
                fj[Lf:Lf + Rexpf, j * C2:(j + 1) * C2] = jnp.where(
                    mj > 0.0, aj, 0.0)

        mf = mrows("mf", Lf, Rdf, C2)      # valid-row mask, final geometry

        if stride == 4:
            # ---- conv2: 4x4 / stride 2 / pad 1 (+ReLU) ----------------------
            dense2[...] = jnp.maximum(conv(act1j, "c2", 4, L1, Rd1, Wp1)
                                      + bias("b2"), 0.0)
            for bb in range(B):
                for ho in range(Hf):
                    src = bb * S1 + 2 * ho * Wp1
                    dst = Lf + bb * Sf + (ho + 1) * Wpf + 1
                    f[dst:dst + Wf, :] = dense2[pl.ds(src, Wf, stride=2), :]
            # ---- conv3: 3x3 / stride 1 / pad 1 (no ReLU) --------------------
            expand_f()
            x = conv(fj, "c3", 3, Lf - Wpf - 1, Rdf, Wpf) + bias("b3")
        else:
            # ---- conv2: 3x3 / stride 1 / pad 1 (no ReLU) --------------------
            x = conv(act1j, "c2", 3, L1 - Wp1 - 1, Rdf, Wp1) + bias("b2")
        x = jnp.where(mf > 0.0, x, 0.0)

        # ---- ResnetStack: x += conv1x1(relu(conv3x3(relu(x)))) --------------
        for r in range(n_res):
            f[Lf:Lf + Rdf, :] = jnp.maximum(x, 0.0)
            expand_f()
            t = conv(fj, "ra%d" % r, 3, Lf - Wpf - 1, Rdf, Wpf)
            u = jnp.dot(jnp.maximum(t, 0.0), wmat("rb%d" % r, 0),
                        preferred_element_type=jnp.float32)
            x = jnp.where(mf > 0.0, x + u, 0.0)

        # ---- final ReLU + lane-dense extraction ------------------------------
        f[Lf:Lf + Rdf, :] = jnp.maximum(x, 0.0)
        for bb in range(B):
            for wc in range(Wf):
                src = Lf + bb * Sf + Wpf + 1 + wc
                o_ref[bb, :, wc * C2:(wc + 1) * C2] = \
                    f[pl.ds(src, Hf, stride=Wpf), :]

    return kernel


# ------------------------------ public forward -------------------------------

def _pick_block(n_images, per_image_bytes):
    """Largest divisor B of N keeping the grid >= 2 steps and VMEM small."""
    budget = 6 * 1024 * 1024
    best = 1
    for b in range(1, n_images + 1):
        if n_images % b:
            continue
        if b > 1 and n_images // b < 2:
            continue
        if b * per_image_bytes > budget:
            continue
        best = b
    return best


@functools.partial(jax.jit, static_argnames=("stride",))
def encoder_forward(params, x_nchw, *, stride):
    """Input NCHW (PyTorch convention) -> output NCHW."""
    assert stride in (2, 4)
    x = jnp.transpose(x_nchw, (0, 2, 3, 1)).astype(jnp.float32)   # NHWC
    N, H0, W0, Cin = x.shape
    n_res = len(params["res"])
    C1 = params["conv1_w"].shape[0]
    C2 = params["conv2_w"].shape[0]
    kw2 = 4 if stride == 4 else 3

    # ---- static geometry (python ints): per-image padded-flat layouts -------
    Hp0, Wp0 = H0 + 2, W0 + 2
    R0 = Hp0 * Wp0
    S0 = _r8(R0) + _r8(3 * Wp0 + 16)            # per-image stride (+guard)
    H1, W1 = H0 // 2, W0 // 2
    Hp1, Wp1 = H1 + 2, W1 + 2
    R1 = Hp1 * Wp1
    S1 = _r8(R1) + _r8(3 * Wp1 + 16)
    L1 = _r8(Wp1 + 1)                           # leading guard (centered convs)
    if stride == 4:
        Hf, Wf = H1 // 2, W1 // 2
    else:
        Hf, Wf = H1, W1
    Hpf, Wpf = Hf + 2, Wf + 2
    Rf = Hpf * Wpf
    Sf = _r8(Rf) + _r8(3 * Wpf + 16)
    Lf = _r8(Wpf + 1)

    per_image_bytes = 4 * (S0 * (4 * Cin + C1)
                           + S1 * (C1 * (1 + kw2) + C2)
                           + Sf * 4 * C2)
    B = _pick_block(N, per_image_bytes)
    nblk = N // B

    Rd0 = (B - 1) * S0 + _r8(R0)                # dense-conv row extents
    Rd1 = (B - 1) * S1 + _r8(R1)
    Rdf = (B - 1) * Sf + _r8(Rf)
    Rexp1 = B * S1 - 8                          # kw-expansion row extents
    Rexpf = B * Sf - 8

    # ---- conv1 input: zero-padded, kw-expanded, padded-flat, batched --------
    xp = jnp.pad(x, ((0, 0), (1, 1), (1, 1), (0, 0))).reshape(N, R0, Cin)
    xg = jnp.pad(xp, ((0, 0), (0, 4), (0, 0)))
    xj = jnp.concatenate([xg[:, j:j + R0, :] for j in range(4)], axis=-1)
    xj = jnp.pad(xj, ((0, 0), (0, S0 - R0), (0, 0)))    # per-image tail guard
    xflat = xj.reshape(N * S0, 4 * Cin)

    # ---- pack weights / biases / row masks into one VMEM operand ------------
    def _conv_slab(w_t):          # torch layout (Cout, Cin, KH, KW)
        w_t = w_t.astype(jnp.float32)
        cout, ci, kh, kw = w_t.shape
        wt = jnp.transpose(w_t, (2, 3, 1, 0)).reshape(kh, kw * ci, cout)
        k = kw * ci
        kr = _r8(k)
        slab = jnp.zeros((kh * kr, cout), jnp.float32)
        for i in range(kh):
            slab = slab.at[i * kr:i * kr + k, :].set(wt[i])
        return slab, (kr, k, cout)

    def _row_mask(Hq, Wq, Sq, Lq):
        Hpq, Wpq = Hq + 2, Wq + 2
        m2 = np.zeros((Hpq, Wpq), np.float32)
        m2[1:Hq + 1, 1:Wq + 1] = 1.0
        per = np.zeros((Sq,), np.float32)
        per[:Hpq * Wpq] = m2.reshape(-1)
        vec = np.concatenate([np.zeros((Lq,), np.float32), np.tile(per, B)])
        return jnp.asarray(np.tile(vec[:, None], (1, C2)))

    raw = []                                     # (name, arr2d, extra_meta)
    s, e = _conv_slab(params["conv1_w"]); raw.append(("c1", s, e))
    raw.append(("b1", params["conv1_b"].reshape(1, -1).astype(jnp.float32), (C1,)))
    s, e = _conv_slab(params["conv2_w"]); raw.append(("c2", s, e))
    raw.append(("b2", params["conv2_b"].reshape(1, -1).astype(jnp.float32), (C2,)))
    if stride == 4:
        s, e = _conv_slab(params["conv3_w"]); raw.append(("c3", s, e))
        raw.append(("b3", params["conv3_b"].reshape(1, -1).astype(jnp.float32), (C2,)))
    for r, lp in enumerate(params["res"]):
        s, e = _conv_slab(lp["w1"]); raw.append(("ra%d" % r, s, e))
        s, e = _conv_slab(lp["w2"]); raw.append(("rb%d" % r, s, e))
    raw.append(("m1", _row_mask(H1, W1, S1, L1), (L1 + B * S1,)))
    raw.append(("mf", _row_mask(Hf, Wf, Sf, Lf), (Lf + B * Sf,)))

    lanes = max(a.shape[1] for _, a, _ in raw)
    blocks, meta, off = [], {}, 0
    for name, a, extra in raw:
        rr, cc = a.shape
        rp = _r8(rr)
        blk = jnp.zeros((rp, lanes), jnp.float32).at[:rr, :cc].set(a)
        blocks.append(blk)
        meta[name] = (off,) + extra
        off += rp
    packed = jnp.concatenate(blocks, axis=0)

    kernel = _make_encoder_kernel(
        stride=stride, n_res=n_res, B=B, meta=meta,
        Wp0=Wp0, Rd0=Rd0, S0=S0, H1=H1, W1=W1,
        Wp1=Wp1, S1=S1, L1=L1, Rd1=Rd1, Rexp1=Rexp1, C1=C1, kw2=kw2,
        Wpf=Wpf, Sf=Sf, Lf=Lf, Rdf=Rdf, Rexpf=Rexpf, C2=C2, Hf=Hf, Wf=Wf)

    scratch = [pltpu.VMEM((Rd0, C1), jnp.float32),              # dense conv1
               pltpu.VMEM((L1 + B * S1, C1), jnp.float32),      # act geometry-1
               pltpu.VMEM((L1 + B * S1, kw2 * C1), jnp.float32)]
    if stride == 4:
        scratch.append(pltpu.VMEM((Rd1, C2), jnp.float32))      # dense conv2
    scratch += [pltpu.VMEM((Lf + B * Sf, C2), jnp.float32),     # final geom
                pltpu.VMEM((Lf + B * Sf, 3 * C2), jnp.float32)]

    out = pl.pallas_call(
        kernel,
        out_shape=jax.ShapeDtypeStruct((N, Hf, Wf * C2), jnp.float32),
        grid=(nblk,),
        in_specs=[pl.BlockSpec((B * S0, 4 * Cin), lambda n: (n, 0)),
                  pl.BlockSpec(packed.shape, lambda n: (0, 0))],
        out_specs=pl.BlockSpec((B, Hf, Wf * C2), lambda n: (n, 0, 0)),
        scratch_shapes=scratch,
        compiler_params=pltpu.CompilerParams(
            dimension_semantics=("parallel",),
            vmem_limit_bytes=32 * 1024 * 1024),
    )(xflat, packed)

    out = out.reshape(N, Hf, Wf, C2)
    return jnp.transpose(out, (0, 3, 1, 2))     # -> NCHW


# -------------------------------- parameters --------------------------------

def init_encoder_params(key, in_channels, num_hiddens, num_residual_layers,
                        num_residual_hiddens, stride):
    assert stride in (2, 4)
    keys = jax.random.split(key, 16)
    ki = iter(keys)
    s = 0.05

    def w(k, shape):
        return (s * jax.random.normal(k, shape)).astype(jnp.float32)

    p = {}
    p["conv1_w"] = w(next(ki), (num_hiddens // 2, in_channels, 4, 4))
    p["conv1_b"] = w(next(ki), (num_hiddens // 2,))
    if stride == 4:
        p["conv2_w"] = w(next(ki), (num_hiddens, num_hiddens // 2, 4, 4))
        p["conv2_b"] = w(next(ki), (num_hiddens,))
        p["conv3_w"] = w(next(ki), (num_hiddens, num_hiddens, 3, 3))
        p["conv3_b"] = w(next(ki), (num_hiddens,))
    else:
        p["conv2_w"] = w(next(ki), (num_hiddens, num_hiddens // 2, 3, 3))
        p["conv2_b"] = w(next(ki), (num_hiddens,))

    res = []
    for _ in range(num_residual_layers):
        k1, k2 = jax.random.split(next(ki))
        res.append({
            "w1": w(k1, (num_residual_hiddens, num_hiddens, 3, 3)),  # 3x3 no bias
            "w2": w(k2, (num_hiddens, num_residual_hiddens, 1, 1)),  # 1x1 no bias
        })
    p["res"] = res
    return p


# ---------------------------- pure-JAX reference -----------------------------

def _ref_conv(x, w, b, stride, pad):
    out = jax.lax.conv_general_dilated(
        x, jnp.transpose(w, (2, 3, 1, 0)),
        window_strides=(stride, stride),
        padding=[(pad, pad), (pad, pad)],
        dimension_numbers=("NHWC", "HWIO", "NHWC"))
    return out if b is None else out + b


def encoder_ref(params, x_nchw, stride):
    x = jnp.transpose(x_nchw, (0, 2, 3, 1)).astype(jnp.float32)
    x = jax.nn.relu(_ref_conv(x, params["conv1_w"], params["conv1_b"], 2, 1))
    if stride == 4:
        x = jax.nn.relu(_ref_conv(x, params["conv2_w"], params["conv2_b"], 2, 1))
        x = _ref_conv(x, params["conv3_w"], params["conv3_b"], 1, 1)
    else:
        x = _ref_conv(x, params["conv2_w"], params["conv2_b"], 1, 1)
    for lp in params["res"]:
        t = _ref_conv(jax.nn.relu(x), lp["w1"], None, 1, 1)
        x = x + _ref_conv(jax.nn.relu(t), lp["w2"], None, 1, 0)
    x = jax.nn.relu(x)
    return jnp.transpose(x, (0, 3, 1, 2))


# ----------------------------------- main ------------------------------------

if __name__ == "__main__":
    key = jax.random.PRNGKey(0)
    k_p4, k_p2, k_input = jax.random.split(key, 3)

    in_channels = 4
    num_hiddens = 32
    num_residual_layers = 2
    num_residual_hiddens = 16

    x = jax.random.normal(k_input, (4, in_channels, 16, 16), dtype=jnp.float32)

    # stride-4 encoder (main config); N=4 -> B=2 images per grid step, grid=(2,)
    p4 = init_encoder_params(k_p4, in_channels, num_hiddens,
                             num_residual_layers, num_residual_hiddens, 4)
    out4 = jax.block_until_ready(encoder_forward(p4, x, stride=4))
    ref4 = jax.block_until_ready(encoder_ref(p4, x, 4))
    assert out4.shape == (4, num_hiddens, 4, 4), out4.shape
    assert jnp.allclose(out4, ref4, rtol=1e-4, atol=1e-4), \
        float(jnp.max(jnp.abs(out4 - ref4)))

    # stride-2 encoder (other supported config)
    p2 = init_encoder_params(k_p2, in_channels, num_hiddens,
                             num_residual_layers, num_residual_hiddens, 2)
    out2 = jax.block_until_ready(encoder_forward(p2, x, stride=2))
    ref2 = jax.block_until_ready(encoder_ref(p2, x, 2))
    assert out2.shape == (4, num_hiddens, 8, 8), out2.shape
    assert jnp.allclose(out2, ref2, rtol=1e-4, atol=1e-4), \
        float(jnp.max(jnp.abs(out2 - ref2)))

    # degenerate block size (N=2 -> B=1 per step) must also be correct
    xs = x[:2]
    out4b = jax.block_until_ready(encoder_forward(p4, xs, stride=4))
    ref4b = jax.block_until_ready(encoder_ref(p4, xs, 4))
    assert jnp.allclose(out4b, ref4b, rtol=1e-4, atol=1e-4), \
        float(jnp.max(jnp.abs(out4b - ref4b)))

    print("KERNEL_OK")
</pallas_src>

<mosaic_0001>
module attributes {stable_mosaic.version = 11 : i64} {
  func.func @kernel(%arg0: i32, %arg1: memref<800x16xf32, #tpu.memory_space<vmem>>, %arg2: memref<1728x32xf32, #tpu.memory_space<vmem>>, %arg3: memref<2x4x128xf32, #tpu.memory_space<vmem>>, %arg4: memref<728x16xf32, #tpu.memory_space<vmem>>, %arg5: memref<320x16xf32, #tpu.memory_space<vmem>>, %arg6: memref<320x64xf32, #tpu.memory_space<vmem>>, %arg7: memref<256x32xf32, #tpu.memory_space<vmem>>, %arg8: memref<168x32xf32, #tpu.memory_space<vmem>>, %arg9: memref<168x96xf32, #tpu.memory_space<vmem>>) attributes {dimension_semantics = [#tpu.dimension_semantics<parallel>], iteration_bounds = array<i64: 2>, scalar_prefetch = 0 : i64, scratch_operands = 6 : i64, tpu.core_type = #tpu.core_type<tc>, window_params = [{transform_indices = @transform_0, window_bounds = array<i64: 800, 16>}, {pipeline_mode = #tpu.pipeline_mode<synchronous>, transform_indices = @transform_1, window_bounds = array<i64: 1728, 32>}, {transform_indices = @transform_2, window_bounds = array<i64: 2, 4, 128>}]} {
    %c0 = arith.constant 0 : index
    %c0_0 = arith.constant 0 : index
    %0 = vector.load %arg1[%c0, %c0_0] : memref<800x16xf32, #tpu.memory_space<vmem>>, vector<728x16xf32>
    %c0_1 = arith.constant 0 : index
    %c0_2 = arith.constant 0 : index
    %1 = vector.load %arg2[%c0_1, %c0_2] : memref<1728x32xf32, #tpu.memory_space<vmem>>, vector<16x16xf32>
    %cst = arith.constant dense<0.000000e+00> : vector<728x16xf32>
    %2 = tpu.matmul %0, %1, %cst {dimension_numbers = #tpu.dot_dimension_numbers<[1], [0], [0], [1], [0, 0, 1, 1], [], []>} : vector<728x16xf32>, vector<16x16xf32>, vector<728x16xf32> -> vector<728x16xf32>
    %c18 = arith.constant 18 : index
    %c0_3 = arith.constant 0 : index
    %3 = vector.load %arg1[%c18, %c0_3] : memref<800x16xf32, #tpu.memory_space<vmem>>, vector<728x16xf32>
    %c16 = arith.constant 16 : index
    %c0_4 = arith.constant 0 : index
    %4 = vector.load %arg2[%c16, %c0_4] : memref<1728x32xf32, #tpu.memory_space<vmem>>, vector<16x16xf32>
    %cst_5 = arith.constant dense<0.000000e+00> : vector<728x16xf32>
    %5 = tpu.matmul %3, %4, %cst_5 {dimension_numbers = #tpu.dot_dimension_numbers<[1], [0], [0], [1], [0, 0, 1, 1], [], []>} : vector<728x16xf32>, vector<16x16xf32>, vector<728x16xf32> -> vector<728x16xf32>
    %6 = arith.addf %2, %5 : vector<728x16xf32>
    %c36 = arith.constant 36 : index
    %c0_6 = arith.constant 0 : index
    %7 = vector.load %arg1[%c36, %c0_6] : memref<800x16xf32, #tpu.memory_space<vmem>>, vector<728x16xf32>
    %c32 = arith.constant 32 : index
    %c0_7 = arith.constant 0 : index
    %8 = vector.load %arg2[%c32, %c0_7] : memref<1728x32xf32, #tpu.memory_space<vmem>>, vector<16x16xf32>
    %cst_8 = arith.constant dense<0.000000e+00> : vector<728x16xf32>
    %9 = tpu.matmul %7, %8, %cst_8 {dimension_numbers = #tpu.dot_dimension_numbers<[1], [0], [0], [1], [0, 0, 1, 1], [], []>} : vector<728x16xf32>, vector<16x16xf32>, vector<728x16xf32> -> vector<728x16xf32>
    %10 = arith.addf %6, %9 : vector<728x16xf32>
    %c54 = arith.constant 54 : index
    %c0_9 = arith.constant 0 : index
    %11 = vector.load %arg1[%c54, %c0_9] : memref<800x16xf32, #tpu.memory_space<vmem>>, vector<728x16xf32>
    %c48 = arith.constant 48 : index
    %c0_10 = arith.constant 0 : index
    %12 = vector.load %arg2[%c48, %c0_10] : memref<1728x32xf32, #tpu.memory_space<vmem>>, vector<16x16xf32>
    %cst_11 = arith.constant dense<0.000000e+00> : vector<728x16xf32>
    %13 = tpu.matmul %11, %12, %cst_11 {dimension_numbers = #tpu.dot_dimension_numbers<[1], [0], [0], [1], [0, 0, 1, 1], [], []>} : vector<728x16xf32>, vector<16x16xf32>, vector<728x16xf32> -> vector<728x16xf32>
    %14 = arith.addf %10, %13 : vector<728x16xf32>
    %c64 = arith.constant 64 : index
    %c0_12 = arith.constant 0 : index
    %15 = vector.load %arg2[%c64, %c0_12] : memref<1728x32xf32, #tpu.memory_space<vmem>>, vector<1x16xf32>
    %16 = vector.broadcast %15 : vector<1x16xf32> to vector<728x16xf32>
    %17 = arith.addf %14, %16 : vector<728x16xf32>
    %cst_13 = arith.constant 0.000000e+00 : f32
    %18 = vector.broadcast %cst_13 : f32 to vector<728x16xf32>
    %19 = arith.maximumf %17, %18 : vector<728x16xf32>
    %c0_14 = arith.constant 0 : index
    %c0_15 = arith.constant 0 : index
    %20 = vector.load %arg4[%c0_14, %c0_15] : memref<728x16xf32, #tpu.memory_space<vmem>>, vector<728x16xf32>
    tpu.vector_store %arg4[%c0_14, %c0_15], %19 {strides = array<i32>} : memref<728x16xf32, #tpu.memory_space<vmem>>, vector<728x16xf32>,
    %c0_16 = arith.constant 0 : index
    %c0_17 = arith.constant 0 : index
    %21 = tpu.strided_load %arg4[%c0_16, %c0_17] {strides = array<i32: 2, 1>} : memref<728x16xf32, #tpu.memory_space<vmem>>, vector<8x16xf32>
    %c27 = arith.constant 27 : index
    %c0_18 = arith.constant 0 : index
    %22 = vector.load %arg5[%c27, %c0_18] : memref<320x16xf32, #tpu.memory_space<vmem>>, vector<8x16xf32>
    tpu.vector_store %arg5[%c27, %c0_18], %21 {strides = array<i32>} : memref<320x16xf32, #tpu.memory_space<vmem>>, vector<8x16xf32>,
    %c36_19 = arith.constant 36 : index
    %c0_20 = arith.constant 0 : index
    %23 = tpu.strided_load %arg4[%c36_19, %c0_20] {strides = array<i32: 2, 1>} : memref<728x16xf32, #tpu.memory_space<vmem>>, vector<8x16xf32>
    %c37 = arith.constant 37 : index
    %c0_21 = arith.constant 0 : index
    %24 = vector.load %arg5[%c37, %c0_21] : memref<320x16xf32, #tpu.memory_space<vmem>>, vector<8x16xf32>
    tpu.vector_store %arg5[%c37, %c0_21], %23 {strides = array<i32>} : memref<320x16xf32, #tpu.memory_space<vmem>>, vector<8x16xf32>,
    %c72 = arith.constant 72 : index
    %c0_22 = arith.constant 0 : index
    %25 = tpu.strided_load %arg4[%c72, %c0_22] {strides = array<i32: 2, 1>} : memref<728x16xf32, #tpu.memory_space<vmem>>, vector<8x16xf32>
    %c47 = arith.constant 47 : index
    %c0_23 = arith.constant 0 : index
    %26 = vector.load %arg5[%c47, %c0_23] : memref<320x16xf32, #tpu.memory_space<vmem>>, vector<8x16xf32>
    tpu.vector_store %arg5[%c47, %c0_23], %25 {strides = array<i32>} : memref<320x16xf32, #tpu.memory_space<vmem>>, vector<8x16xf32>,
    %c108 = arith.constant 108 : index
    %c0_24 = arith.constant 0 : index
    %27 = tpu.strided_load %arg4[%c108, %c0_24] {strides = array<i32: 2, 1>} : memref<728x16xf32, #tpu.memory_space<vmem>>, vector<8x16xf32>
    %c57 = arith.constant 57 : index
    %c0_25 = arith.constant 0 : index
    %28 = vector.load %arg5[%c57, %c0_25] : memref<320x16xf32, #tpu.memory_space<vmem>>, vector<8x16xf32>
    tpu.vector_store %arg5[%c57, %c0_25], %27 {strides = array<i32>} : memref<320x16xf32, #tpu.memory_space<vmem>>, vector<8x16xf32>,
    %c144 = arith.constant 144 : index
    %c0_26 = arith.constant 0 : index
    %29 = tpu.strided_load %arg4[%c144, %c0_26] {strides = array<i32: 2, 1>} : memref<728x16xf32, #tpu.memory_space<vmem>>, vector<8x16xf32>
    %c67 = arith.constant 67 : index
    %c0_27 = arith.constant 0 : index
    %30 = vector.load %arg5[%c67, %c0_27] : memref<320x16xf32, #tpu.memory_space<vmem>>, vector<8x16xf32>
    tpu.vector_store %arg5[%c67, %c0_27], %29 {strides = array<i32>} : memref<320x16xf32, #tpu.memory_space<vmem>>, vector<8x16xf32>,
    %c180 = arith.constant 180 : index
    %c0_28 = arith.constant 0 : index
    %31 = tpu.strided_load %arg4[%c180, %c0_28] {strides = array<i32: 2, 1>} : memref<728x16xf32, #tpu.memory_space<vmem>>, vector<8x16xf32>
    %c77 = arith.constant 77 : index
    %c0_29 = arith.constant 0 : index
    %32 = vector.load %arg5[%c77, %c0_29] : memref<320x16xf32, #tpu.memory_space<vmem>>, vector<8x16xf32>
    tpu.vector_store %arg5[%c77, %c0_29], %31 {strides = array<i32>} : memref<320x16xf32, #tpu.memory_space<vmem>>, vector<8x16xf32>,
    %c216 = arith.constant 216 : index
    %c0_30 = arith.constant 0 : index
    %33 = tpu.strided_load %arg4[%c216, %c0_30] {strides = array<i32: 2, 1>} : memref<728x16xf32, #tpu.memory_space<vmem>>, vector<8x16xf32>
    %c87 = arith.constant 87 : index
    %c0_31 = arith.constant 0 : index
    %34 = vector.load %arg5[%c87, %c0_31] : memref<320x16xf32, #tpu.memory_space<vmem>>, vector<8x16xf32>
    tpu.vector_store %arg5[%c87, %c0_31], %33 {strides = array<i32>} : memref<320x16xf32, #tpu.memory_space<vmem>>, vector<8x16xf32>,
    %c252 = arith.constant 252 : index
    %c0_32 = arith.constant 0 : index
    %35 = tpu.strided_load %arg4[%c252, %c0_32] {strides = array<i32: 2, 1>} : memref<728x16xf32, #tpu.memory_space<vmem>>, vector<8x16xf32>
    %c97 = arith.constant 97 : index
    %c0_33 = arith.constant 0 : index
    %36 = vector.load %arg5[%c97, %c0_33] : memref<320x16xf32, #tpu.memory_space<vmem>>, vector<8x16xf32>
    tpu.vector_store %arg5[%c97, %c0_33], %35 {strides = array<i32>} : memref<320x16xf32, #tpu.memory_space<vmem>>, vector<8x16xf32>,
    %c400 = arith.constant 400 : index
    %c0_34 = arith.constant 0 : index
    %37 = tpu.strided_load %arg4[%c400, %c0_34] {strides = array<i32: 2, 1>} : memref<728x16xf32, #tpu.memory_space<vmem>>, vector<8x16xf32>
    %c179 = arith.constant 179 : index
    %c0_35 = arith.constant 0 : index
    %38 = vector.load %arg5[%c179, %c0_35] : memref<320x16xf32, #tpu.memory_space<vmem>>, vector<8x16xf32>
    tpu.vector_store %arg5[%c179, %c0_35], %37 {strides = array<i32>} : memref<320x16xf32, #tpu.memory_space<vmem>>, vector<8x16xf32>,
    %c436 = arith.constant 436 : index
    %c0_36 = arith.constant 0 : index
    %39 = tpu.strided_load %arg4[%c436, %c0_36] {strides = array<i32: 2, 1>} : memref<728x16xf32, #tpu.memory_space<vmem>>, vector<8x16xf32>
    %c189 = arith.constant 189 : index
    %c0_37 = arith.constant 0 : index
    %40 = vector.load %arg5[%c189, %c0_37] : memref<320x16xf32, #tpu.memory_space<vmem>>, vector<8x16xf32>
    tpu.vector_store %arg5[%c189, %c0_37], %39 {strides = array<i32>} : memref<320x16xf32, #tpu.memory_space<vmem>>, vector<8x16xf32>,
    %c472 = arith.constant 472 : index
    %c0_38 = arith.constant 0 : index
    %41 = tpu.strided_load %arg4[%c472, %c0_38] {strides = array<i32: 2, 1>} : memref<728x16xf32, #tpu.memory_space<vmem>>, vector<8x16xf32>
    %c199 = arith.constant 199 : index
    %c0_39 = arith.constant 0 : index
    %42 = vector.load %arg5[%c199, %c0_39] : memref<320x16xf32, #tpu.memory_space<vmem>>, vector<8x16xf32>
    tpu.vector_store %arg5[%c199, %c0_39], %41 {strides = array<i32>} : memref<320x16xf32, #tpu.memory_space<vmem>>, vector<8x16xf32>,
    %c508 = arith.constant 508 : index
    %c0_40 = arith.constant 0 : index
    %43 = tpu.strided_load %arg4[%c508, %c0_40] {strides = array<i32: 2, 1>} : memref<728x16xf32, #tpu.memory_space<vmem>>, vector<8x16xf32>
    %c209 = arith.constant 209 : index
    %c0_41 = arith.constant 0 : index
    %44 = vector.load %arg5[%c209, %c0_41] : memref<320x16xf32, #tpu.memory_space<vmem>>, vector<8x16xf32>
    tpu.vector_store %arg5[%c209, %c0_41], %43 {strides = array<i32>} : memref<320x16xf32, #tpu.memory_space<vmem>>, vector<8x16xf32>,
    %c544 = arith.constant 544 : index
    %c0_42 = arith.constant 0 : index
    %45 = tpu.strided_load %arg4[%c544, %c0_42] {strides = array<i32: 2, 1>} : memref<728x16xf32, #tpu.memory_space<vmem>>, vector<8x16xf32>
    %c219 = arith.constant 219 : index
    %c0_43 = arith.constant 0 : index
    %46 = vector.load %arg5[%c219, %c0_43] : memref<320x16xf32, #tpu.memory_space<vmem>>, vector<8x16xf32>
    tpu.vector_store %arg5[%c219, %c0_43], %45 {strides = array<i32>} : memref<320x16xf32, #tpu.memory_space<vmem>>, vector<8x16xf32>,
    %c580 = arith.constant 580 : index
    %c0_44 = arith.constant 0 : index
    %47 = tpu.strided_load %arg4[%c580, %c0_44] {strides = array<i32: 2, 1>} : memref<728x16xf32, #tpu.memory_space<vmem>>, vector<8x16xf32>
    %c229 = arith.constant 229 : index
    %c0_45 = arith.constant 0 : index
    %48 = vector.load %arg5[%c229, %c0_45] : memref<320x16xf32, #tpu.memory_space<vmem>>, vector<8x16xf32>
    tpu.vector_store %arg5[%c229, %c0_45], %47 {strides = array<i32>} : memref<320x16xf32, #tpu.memory_space<vmem>>, vector<8x16xf32>,
    %c616 = arith.constant 616 : index
    %c0_46 = arith.constant 0 : index
    %49 = tpu.strided_load %arg4[%c616, %c0_46] {strides = array<i32: 2, 1>} : memref<728x16xf32, #tpu.memory_space<vmem>>, vector<8x16xf32>
    %c239 = arith.constant 239 : index
    %c0_47 = arith.constant 0 : index
    %50 = vector.load %arg5[%c239, %c0_47] : memref<320x16xf32, #tpu.memory_space<vmem>>, vector<8x16xf32>
    tpu.vector_store %arg5[%c239, %c0_47], %49 {strides = array<i32>} : memref<320x16xf32, #tpu.memory_space<vmem>>, vector<8x16xf32>,
    %c652 = arith.constant 652 : index
    %c0_48 = arith.constant 0 : index
    %51 = tpu.strided_load %arg4[%c652, %c0_48] {strides = array<i32: 2, 1>} : memref<728x16xf32, #tpu.memory_space<vmem>>, vector<8x16xf32>
    %c249 = arith.constant 249 : index
    %c0_49 = arith.constant 0 : index
    %52 = vector.load %arg5[%c249, %c0_49] : memref<320x16xf32, #tpu.memory_space<vmem>>, vector<8x16xf32>
    tpu.vector_store %arg5[%c249, %c0_49], %51 {strides = array<i32>} : memref<320x16xf32, #tpu.memory_space<vmem>>, vector<8x16xf32>,
    %c1256 = arith.constant 1256 : index
    %c0_50 = arith.constant 0 : index
    %53 = vector.load %arg2[%c1256, %c0_50] : memref<1728x32xf32, #tpu.memory_space<vmem>>, vector<296x16xf32>
    %c16_51 = arith.constant 16 : index
    %c0_52 = arith.constant 0 : index
    %54 = vector.load %arg5[%c16_51, %c0_52] : memref<320x16xf32, #tpu.memory_space<vmem>>, vector<296x16xf32>
    %cst_53 = arith.constant 0.000000e+00 : f32
    %55 = vector.broadcast %cst_53 : f32 to vector<296x16xf32>
    %56 = arith.cmpf ogt, %53, %55 : vector<296x16xf32>
    %cst_54 = arith.constant 0.000000e+00 : f32
    %57 = vector.broadcast %cst_54 : f32 to vector<296x16xf32>
    %58 = arith.select %56, %54, %57 : vector<296x16xi1>, vector<296x16xf32>
    %c16_55 = arith.constant 16 : index
    %c0_56 = arith.constant 0 : index
    %59 = vector.load %arg6[%c16_55, %c0_56] : memref<320x64xf32, #tpu.memory_space<vmem>>, vector<296x16xf32>
    tpu.vector_store %arg6[%c16_55, %c0_56], %58 {strides = array<i32>} : memref<320x64xf32, #tpu.memory_space<vmem>>, vector<296x16xf32>,
    %c1257 = arith.constant 1257 : index
    %c0_57 = arith.constant 0 : index
    %60 = vector.load %arg2[%c1257, %c0_57] : memref<1728x32xf32, #tpu.memory_space<vmem>>, vector<296x16xf32>
    %c17 = arith.constant 17 : index
    %c0_58 = arith.constant 0 : index
    %61 = vector.load %arg5[%c17, %c0_58] : memref<320x16xf32, #tpu.memory_space<vmem>>, vector<296x16xf32>
    %cst_59 = arith.constant 0.000000e+00 : f32
    %62 = vector.broadcast %cst_59 : f32 to vector<296x16xf32>
    %63 = arith.cmpf ogt, %60, %62 : vector<296x16xf32>
    %cst_60 = arith.constant 0.000000e+00 : f32
    %64 = vector.broadcast %cst_60 : f32 to vector<296x16xf32>
    %65 = arith.select %63, %61, %64 : vector<296x16xi1>, vector<296x16xf32>
    %c16_61 = arith.constant 16 : index
    %c16_62 = arith.constant 16 : index
    %66 = vector.load %arg6[%c16_61, %c16_62] : memref<320x64xf32, #tpu.memory_space<vmem>>, vector<296x16xf32>
    tpu.vector_store %arg6[%c16_61, %c16_62], %65 {strides = array<i32>} : memref<320x64xf32, #tpu.memory_space<vmem>>, vector<296x16xf32>,
    %c1258 = arith.constant 1258 : index
    %c0_63 = arith.constant 0 : index
    %67 = vector.load %arg2[%c1258, %c0_63] : memref<1728x32xf32, #tpu.memory_space<vmem>>, vector<296x16xf32>
    %c18_64 = arith.constant 18 : index
    %c0_65 = arith.constant 0 : index
    %68 = vector.load %arg5[%c18_64, %c0_65] : memref<320x16xf32, #tpu.memory_space<vmem>>, vector<296x16xf32>
    %cst_66 = arith.constant 0.000000e+00 : f32
    %69 = vector.broadcast %cst_66 : f32 to vector<296x16xf32>
    %70 = arith.cmpf ogt, %67, %69 : vector<296x16xf32>
    %cst_67 = arith.constant 0.000000e+00 : f32
    %71 = vector.broadcast %cst_67 : f32 to vector<296x16xf32>
    %72 = arith.select %70, %68, %71 : vector<296x16xi1>, vector<296x16xf32>
    %c16_68 = arith.constant 16 : index
    %c32_69 = arith.constant 32 : index
    %73 = vector.load %arg6[%c16_68, %c32_69] : memref<320x64xf32, #tpu.memory_space<vmem>>, vector<296x16xf32>
    tpu.vector_store %arg6[%c16_68, %c32_69], %72 {strides = array<i32>} : memref<320x64xf32, #tpu.memory_space<vmem>>, vector<296x16xf32>,
    %c1259 = arith.constant 1259 : index
    %c0_70 = arith.constant 0 : index
    %74 = vector.load %arg2[%c1259, %c0_70] : memref<1728x32xf32, #tpu.memory_space<vmem>>, vector<296x16xf32>
    %c19 = arith.constant 19 : index
    %c0_71 = arith.constant 0 : index
    %75 = vector.load %arg5[%c19, %c0_71] : memref<320x16xf32, #tpu.memory_space<vmem>>, vector<296x16xf32>
    %cst_72 = arith.constant 0.000000e+00 : f32
    %76 = vector.broadcast %cst_72 : f32 to vector<296x16xf32>
    %77 = arith.cmpf ogt, %74, %76 : vector<296x16xf32>
    %cst_73 = arith.constant 0.000000e+00 : f32
    %78 = vector.broadcast %cst_73 : f32 to vector<296x16xf32>
    %79 = arith.select %77, %75, %78 : vector<296x16xi1>, vector<296x16xf32>
    %c16_74 = arith.constant 16 : index
    %c48_75 = arith.constant 48 : index
    %80 = vector.load %arg6[%c16_74, %c48_75] : memref<320x64xf32, #tpu.memory_space<vmem>>, vector<296x16xf32>
    tpu.vector_store %arg6[%c16_74, %c48_75], %79 {strides = array<i32>} : memref<320x64xf32, #tpu.memory_space<vmem>>, vector<296x16xf32>,
    %c1568 = arith.constant 1568 : index
    %c0_76 = arith.constant 0 : index
    %81 = vector.load %arg2[%c1568, %c0_76] : memref<1728x32xf32, #tpu.memory_space<vmem>>, vector<120x32xf32>
    %c16_77 = arith.constant 16 : index
    %c0_78 = arith.constant 0 : index
    %82 = vector.load %arg6[%c16_77, %c0_78] : memref<320x64xf32, #tpu.memory_space<vmem>>, vector<256x64xf32>
    %c72_79 = arith.constant 72 : index
    %c0_80 = arith.constant 0 : index
    %83 = vector.load %arg2[%c72_79, %c0_80] : memref<1728x32xf32, #tpu.memory_space<vmem>>, vector<64x32xf32>
    %cst_81 = arith.constant dense<0.000000e+00> : vector<256x32xf32>
    %84 = tpu.matmul %82, %83, %cst_81 {dimension_numbers = #tpu.dot_dimension_numbers<[1], [0], [0], [1], [0, 0, 1, 1], [], []>} : vector<256x64xf32>, vector<64x32xf32>, vector<256x32xf32> -> vector<256x32xf32>
    %c26 = arith.constant 26 : index
    %c0_82 = arith.constant 0 : index
    %85 = vector.load %arg6[%c26, %c0_82] : memref<320x64xf32, #tpu.memory_space<vmem>>, vector<256x64xf32>
    %c136 = arith.constant 136 : index
    %c0_83 = arith.constant 0 : index
    %86 = vector.load %arg2[%c136, %c0_83] : memref<1728x32xf32, #tpu.memory_space<vmem>>, vector<64x32xf32>
    %cst_84 = arith.constant dense<0.000000e+00> : vector<256x32xf32>
    %87 = tpu.matmul %85, %86, %cst_84 {dimension_numbers = #tpu.dot_dimension_numbers<[1], [0], [0], [1], [0, 0, 1, 1], [], []>} : vector<256x64xf32>, vector<64x32xf32>, vector<256x32xf32> -> vector<256x32xf32>
    %88 = arith.addf %84, %87 : vector<256x32xf32>
    %c36_85 = arith.constant 36 : index
    %c0_86 = arith.constant 0 : index
    %89 = vector.load %arg6[%c36_85, %c0_86] : memref<320x64xf32, #tpu.memory_space<vmem>>, vector<256x64xf32>
    %c200 = arith.constant 200 : index
    %c0_87 = arith.constant 0 : index
    %90 = vector.load %arg2[%c200, %c0_87] : memref<1728x32xf32, #tpu.memory_space<vmem>>, vector<64x32xf32>
    %cst_88 = arith.constant dense<0.000000e+00> : vector<256x32xf32>
    %91 = tpu.matmul %89, %90, %cst_88 {dimension_numbers = #tpu.dot_dimension_numbers<[1], [0], [0], [1], [0, 0, 1, 1], [], []>} : vector<256x64xf32>, vector<64x32xf32>, vector<256x32xf32> -> vector<256x32xf32>
    %92 = arith.addf %88, %91 : vector<256x32xf32>
    %c46 = arith.constant 46 : index
    %c0_89 = arith.constant 0 : index
    %93 = vector.load %arg6[%c46, %c0_89] : memref<320x64xf32, #tpu.memory_space<vmem>>, vector<256x64xf32>
    %c264 = arith.constant 264 : index
    %c0_90 = arith.constant 0 : index
    %94 = vector.load %arg2[%c264, %c0_90] : memref<1728x32xf32, #tpu.memory_space<vmem>>, vector<64x32xf32>
    %cst_91 = arith.constant dense<0.000000e+00> : vector<256x32xf32>
    %95 = tpu.matmul %93, %94, %cst_91 {dimension_numbers = #tpu.dot_dimension_numbers<[1], [0], [0], [1], [0, 0, 1, 1], [], []>} : vector<256x64xf32>, vector<64x32xf32>, vector<256x32xf32> -> vector<256x32xf32>
    %96 = arith.addf %92, %95 : vector<256x32xf32>
    %c328 = arith.constant 328 : index
    %c0_92 = arith.constant 0 : index
    %97 = vector.load %arg2[%c328, %c0_92] : memref<1728x32xf32, #tpu.memory_space<vmem>>, vector<1x32xf32>
    %98 = vector.broadcast %97 : vector<1x32xf32> to vector<256x32xf32>
    %99 = arith.addf %96, %98 : vector<256x32xf32>
    %cst_93 = arith.constant 0.000000e+00 : f32
    %100 = vector.broadcast %cst_93 : f32 to vector<256x32xf32>
    %101 = arith.maximumf %99, %100 : vector<256x32xf32>
    %c0_94 = arith.constant 0 : index
    %c0_95 = arith.constant 0 : index
    %102 = vector.load %arg7[%c0_94, %c0_95] : memref<256x32xf32, #tpu.memory_space<vmem>>, vector<256x32xf32>
    tpu.vector_store %arg7[%c0_94, %c0_95], %101 {strides = array<i32>} : memref<256x32xf32, #tpu.memory_space<vmem>>, vector<256x32xf32>,
    %c0_96 = arith.constant 0 : index
    %c0_97 = arith.constant 0 : index
    %103 = tpu.strided_load %arg7[%c0_96, %c0_97] {strides = array<i32: 2, 1>} : memref<256x32xf32, #tpu.memory_space<vmem>>, vector<4x32xf32>
    %c15 = arith.constant 15 : index
    %c0_98 = arith.constant 0 : index
    %104 = vector.load %arg8[%c15, %c0_98] : memref<168x32xf32, #tpu.memory_space<vmem>>, vector<4x32xf32>
    tpu.vector_store %arg8[%c15, %c0_98], %103 {strides = array<i32>} : memref<168x32xf32, #tpu.memory_space<vmem>>, vector<4x32xf32>,
    %c20 = arith.constant 20 : index
    %c0_99 = arith.constant 0 : index
    %105 = tpu.strided_load %arg7[%c20, %c0_99] {strides = array<i32: 2, 1>} : memref<256x32xf32, #tpu.memory_space<vmem>>, vector<4x32xf32>
    %c21 = arith.constant 21 : index
    %c0_100 = arith.constant 0 : index
    %106 = vector.load %arg8[%c21, %c0_100] : memref<168x32xf32, #tpu.memory_space<vmem>>, vector<4x32xf32>
    tpu.vector_store %arg8[%c21, %c0_100], %105 {strides = array<i32>} : memref<168x32xf32, #tpu.memory_space<vmem>>, vector<4x32xf32>,
    %c40 = arith.constant 40 : index
    %c0_101 = arith.constant 0 : index
    %107 = tpu.strided_load %arg7[%c40, %c0_101] {strides = array<i32: 2, 1>} : memref<256x32xf32, #tpu.memory_space<vmem>>, vector<4x32xf32>
    %c27_102 = arith.constant 27 : index
    %c0_103 = arith.constant 0 : index
    %108 = vector.load %arg8[%c27_102, %c0_103] : memref<168x32xf32, #tpu.memory_space<vmem>>, vector<4x32xf32>
    tpu.vector_store %arg8[%c27_102, %c0_103], %107 {strides = array<i32>} : memref<168x32xf32, #tpu.memory_space<vmem>>, vector<4x32xf32>,
    %c60 = arith.constant 60 : index
    %c0_104 = arith.constant 0 : index
    %109 = tpu.strided_load %arg7[%c60, %c0_104] {strides = array<i32: 2, 1>} : memref<256x32xf32, #tpu.memory_space<vmem>>, vector<4x32xf32>
    %c33 = arith.constant 33 : index
    %c0_105 = arith.constant 0 : index
    %110 = vector.load %arg8[%c33, %c0_105] : memref<168x32xf32, #tpu.memory_space<vmem>>, vector<4x32xf32>
    tpu.vector_store %arg8[%c33, %c0_105], %109 {strides = array<i32>} : memref<168x32xf32, #tpu.memory_space<vmem>>, vector<4x32xf32>,
    %c152 = arith.constant 152 : index
    %c0_106 = arith.constant 0 : index
    %111 = tpu.strided_load %arg7[%c152, %c0_106] {strides = array<i32: 2, 1>} : memref<256x32xf32, #tpu.memory_space<vmem>>, vector<4x32xf32>
    %c95 = arith.constant 95 : index
    %c0_107 = arith.constant 0 : index
    %112 = vector.load %arg8[%c95, %c0_107] : memref<168x32xf32, #tpu.memory_space<vmem>>, vector<4x32xf32>
    tpu.vector_store %arg8[%c95, %c0_107], %111 {strides = array<i32>} : memref<168x32xf32, #tpu.memory_space<vmem>>, vector<4x32xf32>,
    %c172 = arith.constant 172 : index
    %c0_108 = arith.constant 0 : index
    %113 = tpu.strided_load %arg7[%c172, %c0_108] {strides = array<i32: 2, 1>} : memref<256x32xf32, #tpu.memory_space<vmem>>, vector<4x32xf32>
    %c101 = arith.constant 101 : index
    %c0_109 = arith.constant 0 : index
    %114 = vector.load %arg8[%c101, %c0_109] : memref<168x32xf32, #tpu.memory_space<vmem>>, vector<4x32xf32>
    tpu.vector_store %arg8[%c101, %c0_109], %113 {strides = array<i32>} : memref<168x32xf32, #tpu.memory_space<vmem>>, vector<4x32xf32>,
    %c192 = arith.constant 192 : index
    %c0_110 = arith.constant 0 : index
    %115 = tpu.strided_load %arg7[%c192, %c0_110] {strides = array<i32: 2, 1>} : memref<256x32xf32, #tpu.memory_space<vmem>>, vector<4x32xf32>
    %c107 = arith.constant 107 : index
    %c0_111 = arith.constant 0 : index
    %116 = vector.load %arg8[%c107, %c0_111] : memref<168x32xf32, #tpu.memory_space<vmem>>, vector<4x32xf32>
    tpu.vector_store %arg8[%c107, %c0_111], %115 {strides = array<i32>} : memref<168x32xf32, #tpu.memory_space<vmem>>, vector<4x32xf32>,
    %c212 = arith.constant 212 : index
    %c0_112 = arith.constant 0 : index
    %117 = tpu.strided_load %arg7[%c212, %c0_112] {strides = array<i32: 2, 1>} : memref<256x32xf32, #tpu.memory_space<vmem>>, vector<4x32xf32>
    %c113 = arith.constant 113 : index
    %c0_113 = arith.constant 0 : index
    %118 = vector.load %arg8[%c113, %c0_113] : memref<168x32xf32, #tpu.memory_space<vmem>>, vector<4x32xf32>
    tpu.vector_store %arg8[%c113, %c0_113], %117 {strides = array<i32>} : memref<168x32xf32, #tpu.memory_space<vmem>>, vector<4x32xf32>,
    %c1568_114 = arith.constant 1568 : index
    %c0_115 = arith.constant 0 : index
    %119 = vector.load %arg2[%c1568_114, %c0_115] : memref<1728x32xf32, #tpu.memory_space<vmem>>, vector<152x32xf32>
    %c8 = arith.constant 8 : index
    %c0_116 = arith.constant 0 : index
    %120 = vector.load %arg8[%c8, %c0_116] : memref<168x32xf32, #tpu.memory_space<vmem>>, vector<152x32xf32>
    %cst_117 = arith.constant 0.000000e+00 : f32
    %121 = vector.broadcast %cst_117 : f32 to vector<152x32xf32>
    %122 = arith.cmpf ogt, %119, %121 : vector<152x32xf32>
    %cst_118 = arith.constant 0.000000e+00 : f32
    %123 = vector.broadcast %cst_118 : f32 to vector<152x32xf32>
    %124 = arith.select %122, %120, %123 : vector<152x32xi1>, vector<152x32xf32>
    %c8_119 = arith.constant 8 : index
    %c0_120 = arith.constant 0 : index
    %125 = vector.load %arg9[%c8_119, %c0_120] : memref<168x96xf32, #tpu.memory_space<vmem>>, vector<152x32xf32>
    tpu.vector_store %arg9[%c8_119, %c0_120], %124 {strides = array<i32>} : memref<168x96xf32, #tpu.memory_space<vmem>>, vector<152x32xf32>,
    %c1569 = arith.constant 1569 : index
    %c0_121 = arith.constant 0 : index
    %126 = vector.load %arg2[%c1569, %c0_121] : memref<1728x32xf32, #tpu.memory_space<vmem>>, vector<152x32xf32>
    %c9 = arith.constant 9 : index
    %c0_122 = arith.constant 0 : index
    %127 = vector.load %arg8[%c9, %c0_122] : memref<168x32xf32, #tpu.memory_space<vmem>>, vector<152x32xf32>
    %cst_123 = arith.constant 0.000000e+00 : f32
    %128 = vector.broadcast %cst_123 : f32 to vector<152x32xf32>
    %129 = arith.cmpf ogt, %126, %128 : vector<152x32xf32>
    %cst_124 = arith.constant 0.000000e+00 : f32
    %130 = vector.broadcast %cst_124 : f32 to vector<152x32xf32>
    %131 = arith.select %129, %127, %130 : vector<152x32xi1>, vector<152x32xf32>
    %c8_125 = arith.constant 8 : index
    %c32_126 = arith.constant 32 : index
    %132 = vector.load %arg9[%c8_125, %c32_126] : memref<168x96xf32, #tpu.memory_space<vmem>>, vector<152x32xf32>
    tpu.vector_store %arg9[%c8_125, %c32_126], %131 {strides = array<i32>} : memref<168x96xf32, #tpu.memory_space<vmem>>, vector<152x32xf32>,
    %c1570 = arith.constant 1570 : index
    %c0_127 = arith.constant 0 : index
    %133 = vector.load %arg2[%c1570, %c0_127] : memref<1728x32xf32, #tpu.memory_space<vmem>>, vector<152x32xf32>
    %c10 = arith.constant 10 : index
    %c0_128 = arith.constant 0 : index
    %134 = vector.load %arg8[%c10, %c0_128] : memref<168x32xf32, #tpu.memory_space<vmem>>, vector<152x32xf32>
    %cst_129 = arith.constant 0.000000e+00 : f32
    %135 = vector.broadcast %cst_129 : f32 to vector<152x32xf32>
    %136 = arith.cmpf ogt, %133, %135 : vector<152x32xf32>
    %cst_130 = arith.constant 0.000000e+00 : f32
    %137 = vector.broadcast %cst_130 : f32 to vector<152x32xf32>
    %138 = arith.select %136, %134, %137 : vector<152x32xi1>, vector<152x32xf32>
    %c8_131 = arith.constant 8 : index
    %c64_132 = arith.constant 64 : index
    %139 = vector.load %arg9[%c8_131, %c64_132] : memref<168x96xf32, #tpu.memory_space<vmem>>, vector<152x32xf32>
    tpu.vector_store %arg9[%c8_131, %c64_132], %138 {strides = array<i32>} : memref<168x96xf32, #tpu.memory_space<vmem>>, vector<152x32xf32>,
    %c1 = arith.constant 1 : index
    %c0_133 = arith.constant 0 : index
    %140 = vector.load %arg9[%c1, %c0_133] : memref<168x96xf32, #tpu.memory_space<vmem>>, vector<120x96xf32>
    %c336 = arith.constant 336 : index
    %c0_134 = arith.constant 0 : index
    %141 = vector.load %arg2[%c336, %c0_134] : memref<1728x32xf32, #tpu.memory_space<vmem>>, vector<96x32xf32>
    %cst_135 = arith.constant dense<0.000000e+00> : vector<120x32xf32>
    %142 = tpu.matmul %140, %141, %cst_135 {dimension_numbers = #tpu.dot_dimension_numbers<[1], [0], [0], [1], [0, 0, 1, 1], [], []>} : vector<120x96xf32>, vector<96x32xf32>, vector<120x32xf32> -> vector<120x32xf32>
    %c7 = arith.constant 7 : index
    %c0_136 = arith.constant 0 : index
    %143 = vector.load %arg9[%c7, %c0_136] : memref<168x96xf32, #tpu.memory_space<vmem>>, vector<120x96xf32>
    %c432 = arith.constant 432 : index
    %c0_137 = arith.constant 0 : index
    %144 = vector.load %arg2[%c432, %c0_137] : memref<1728x32xf32, #tpu.memory_space<vmem>>, vector<96x32xf32>
    %cst_138 = arith.constant dense<0.000000e+00> : vector<120x32xf32>
    %145 = tpu.matmul %143, %144, %cst_138 {dimension_numbers = #tpu.dot_dimension_numbers<[1], [0], [0], [1], [0, 0, 1, 1], [], []>} : vector<120x96xf32>, vector<96x32xf32>, vector<120x32xf32> -> vector<120x32xf32>
    %146 = arith.addf %142, %145 : vector<120x32xf32>
    %c13 = arith.constant 13 : index
    %c0_139 = arith.constant 0 : index
    %147 = vector.load %arg9[%c13, %c0_139] : memref<168x96xf32, #tpu.memory_space<vmem>>, vector<120x96xf32>
    %c528 = arith.constant 528 : index
    %c0_140 = arith.constant 0 : index
    %148 = vector.load %arg2[%c528, %c0_140] : memref<1728x32xf32, #tpu.memory_space<vmem>>, vector<96x32xf32>
    %cst_141 = arith.constant dense<0.000000e+00> : vector<120x32xf32>
    %149 = tpu.matmul %147, %148, %cst_141 {dimension_numbers = #tpu.dot_dimension_numbers<[1], [0], [0], [1], [0, 0, 1, 1], [], []>} : vector<120x96xf32>, vector<96x32xf32>, vector<120x32xf32> -> vector<120x32xf32>
    %150 = arith.addf %146, %149 : vector<120x32xf32>
    %c624 = arith.constant 624 : index
    %c0_142 = arith.constant 0 : index
    %151 = vector.load %arg2[%c624, %c0_142] : memref<1728x32xf32, #tpu.memory_space<vmem>>, vector<1x32xf32>
    %152 = vector.broadcast %151 : vector<1x32xf32> to vector<120x32xf32>
    %153 = arith.addf %150, %152 : vector<120x32xf32>
    %cst_143 = arith.constant 0.000000e+00 : f32
    %154 = vector.broadcast %cst_143 : f32 to vector<120x32xf32>
    %155 = arith.cmpf ogt, %81, %154 : vector<120x32xf32>
    %cst_144 = arith.constant 0.000000e+00 : f32
    %156 = vector.broadcast %cst_144 : f32 to vector<120x32xf32>
    %157 = arith.select %155, %153, %156 : vector<120x32xi1>, vector<120x32xf32>
    %cst_145 = arith.constant 0.000000e+00 : f32
    %158 = vector.broadcast %cst_145 : f32 to vector<120x32xf32>
    %159 = arith.maximumf %157, %158 : vector<120x32xf32>
    %c8_146 = arith.constant 8 : index
    %c0_147 = arith.constant 0 : index
    %160 = vector.load %arg8[%c8_146, %c0_147] : memref<168x32xf32, #tpu.memory_space<vmem>>, vector<120x32xf32>
    tpu.vector_store %arg8[%c8_146, %c0_147], %159 {strides = array<i32>} : memref<168x32xf32, #tpu.memory_space<vmem>>, vector<120x32xf32>,
    %c1568_148 = arith.constant 1568 : index
    %c0_149 = arith.constant 0 : index
    %161 = vector.load %arg2[%c1568_148, %c0_149] : memref<1728x32xf32, #tpu.memory_space<vmem>>, vector<152x32xf32>
    %c8_150 = arith.constant 8 : index
    %c0_151 = arith.constant 0 : index
    %162 = vector.load %arg8[%c8_150, %c0_151] : memref<168x32xf32, #tpu.memory_space<vmem>>, vector<152x32xf32>
    %cst_152 = arith.constant 0.000000e+00 : f32
    %163 = vector.broadcast %cst_152 : f32 to vector<152x32xf32>
    %164 = arith.cmpf ogt, %161, %163 : vector<152x32xf32>
    %cst_153 = arith.constant 0.000000e+00 : f32
    %165 = vector.broadcast %cst_153 : f32 to vector<152x32xf32>
    %166 = arith.select %164, %162, %165 : vector<152x32xi1>, vector<152x32xf32>
    %c8_154 = arith.constant 8 : index
    %c0_155 = arith.constant 0 : index
    %167 = vector.load %arg9[%c8_154, %c0_155] : memref<168x96xf32, #tpu.memory_space<vmem>>, vector<152x32xf32>
    tpu.vector_store %arg9[%c8_154, %c0_155], %166 {strides = array<i32>} : memref<168x96xf32, #tpu.memory_space<vmem>>, vector<152x32xf32>,
    %c1569_156 = arith.constant 1569 : index
    %c0_157 = arith.constant 0 : index
    %168 = vector.load %arg2[%c1569_156, %c0_157] : memref<1728x32xf32, #tpu.memory_space<vmem>>, vector<152x32xf32>
    %c9_158 = arith.constant 9 : index
    %c0_159 = arith.constant 0 : index
    %169 = vector.load %arg8[%c9_158, %c0_159] : memref<168x32xf32, #tpu.memory_space<vmem>>, vector<152x32xf32>
    %cst_160 = arith.constant 0.000000e+00 : f32
    %170 = vector.broadcast %cst_160 : f32 to vector<152x32xf32>
    %171 = arith.cmpf ogt, %168, %170 : vector<152x32xf32>
    %cst_161 = arith.constant 0.000000e+00 : f32
    %172 = vector.broadcast %cst_161 : f32 to vector<152x32xf32>
    %173 = arith.select %171, %169, %172 : vector<152x32xi1>, vector<152x32xf32>
    %c8_162 = arith.constant 8 : index
    %c32_163 = arith.constant 32 : index
    %174 = vector.load %arg9[%c8_162, %c32_163] : memref<168x96xf32, #tpu.memory_space<vmem>>, vector<152x32xf32>
    tpu.vector_store %arg9[%c8_162, %c32_163], %173 {strides = array<i32>} : memref<168x96xf32, #tpu.memory_space<vmem>>, vector<152x32xf32>,
    %c1570_164 = arith.constant 1570 : index
    %c0_165 = arith.constant 0 : index
    %175 = vector.load %arg2[%c1570_164, %c0_165] : memref<1728x32xf32, #tpu.memory_space<vmem>>, vector<152x32xf32>
    %c10_166 = arith.constant 10 : index
    %c0_167 = arith.constant 0 : index
    %176 = vector.load %arg8[%c10_166, %c0_167] : memref<168x32xf32, #tpu.memory_space<vmem>>, vector<152x32xf32>
    %cst_168 = arith.constant 0.000000e+00 : f32
    %177 = vector.broadcast %cst_168 : f32 to vector<152x32xf32>
    %178 = arith.cmpf ogt, %175, %177 : vector<152x32xf32>
    %cst_169 = arith.constant 0.000000e+00 : f32
    %179 = vector.broadcast %cst_169 : f32 to vector<152x32xf32>
    %180 = arith.select %178, %176, %179 : vector<152x32xi1>, vector<152x32xf32>
    %c8_170 = arith.constant 8 : index
    %c64_171 = arith.constant 64 : index
    %181 = vector.load %arg9[%c8_170, %c64_171] : memref<168x96xf32, #tpu.memory_space<vmem>>, vector<152x32xf32>
    tpu.vector_store %arg9[%c8_170, %c64_171], %180 {strides = array<i32>} : memref<168x96xf32, #tpu.memory_space<vmem>>, vector<152x32xf32>,
    %c1_172 = arith.constant 1 : index
    %c0_173 = arith.constant 0 : index
    %182 = vector.load %arg9[%c1_172, %c0_173] : memref<168x96xf32, #tpu.memory_space<vmem>>, vector<120x96xf32>
    %c632 = arith.constant 632 : index
    %c0_174 = arith.constant 0 : index
    %183 = vector.load %arg2[%c632, %c0_174] : memref<1728x32xf32, #tpu.memory_space<vmem>>, vector<96x16xf32>
    %cst_175 = arith.constant dense<0.000000e+00> : vector<120x16xf32>
    %184 = tpu.matmul %182, %183, %cst_175 {dimension_numbers = #tpu.dot_dimension_numbers<[1], [0], [0], [1], [0, 0, 1, 1], [], []>} : vector<120x96xf32>, vector<96x16xf32>, vector<120x16xf32> -> vector<120x16xf32>
    %c7_176 = arith.constant 7 : index
    %c0_177 = arith.constant 0 : index
    %185 = vector.load %arg9[%c7_176, %c0_177] : memref<168x96xf32, #tpu.memory_space<vmem>>, vector<120x96xf32>
    %c728 = arith.constant 728 : index
    %c0_178 = arith.constant 0 : index
    %186 = vector.load %arg2[%c728, %c0_178] : memref<1728x32xf32, #tpu.memory_space<vmem>>, vector<96x16xf32>
    %cst_179 = arith.constant dense<0.000000e+00> : vector<120x16xf32>
    %187 = tpu.matmul %185, %186, %cst_179 {dimension_numbers = #tpu.dot_dimension_numbers<[1], [0], [0], [1], [0, 0, 1, 1], [], []>} : vector<120x96xf32>, vector<96x16xf32>, vector<120x16xf32> -> vector<120x16xf32>
    %188 = arith.addf %184, %187 : vector<120x16xf32>
    %c13_180 = arith.constant 13 : index
    %c0_181 = arith.constant 0 : index
    %189 = vector.load %arg9[%c13_180, %c0_181] : memref<168x96xf32, #tpu.memory_space<vmem>>, vector<120x96xf32>
    %c824 = arith.constant 824 : index
    %c0_182 = arith.constant 0 : index
    %190 = vector.load %arg2[%c824, %c0_182] : memref<1728x32xf32, #tpu.memory_space<vmem>>, vector<96x16xf32>
    %cst_183 = arith.constant dense<0.000000e+00> : vector<120x16xf32>
    %191 = tpu.matmul %189, %190, %cst_183 {dimension_numbers = #tpu.dot_dimension_numbers<[1], [0], [0], [1], [0, 0, 1, 1], [], []>} : vector<120x96xf32>, vector<96x16xf32>, vector<120x16xf32> -> vector<120x16xf32>
    %192 = arith.addf %188, %191 : vector<120x16xf32>
    %cst_184 = arith.constant 0.000000e+00 : f32
    %193 = vector.broadcast %cst_184 : f32 to vector<120x16xf32>
    %194 = arith.maximumf %192, %193 : vector<120x16xf32>
    %c920 = arith.constant 920 : index
    %c0_185 = arith.constant 0 : index
    %195 = vector.load %arg2[%c920, %c0_185] : memref<1728x32xf32, #tpu.memory_space<vmem>>, vector<16x32xf32>
    %cst_186 = arith.constant dense<0.000000e+00> : vector<120x32xf32>
    %196 = tpu.matmul %194, %195, %cst_186 {dimension_numbers = #tpu.dot_dimension_numbers<[1], [0], [0], [1], [0, 0, 1, 1], [], []>} : vector<120x16xf32>, vector<16x32xf32>, vector<120x32xf32> -> vector<120x32xf32>
    %cst_187 = arith.constant 0.000000e+00 : f32
    %197 = vector.broadcast %cst_187 : f32 to vector<120x32xf32>
    %198 = arith.cmpf ogt, %81, %197 : vector<120x32xf32>
    %199 = arith.addf %157, %196 : vector<120x32xf32>
    %cst_188 = arith.constant 0.000000e+00 : f32
    %200 = vector.broadcast %cst_188 : f32 to vector<120x32xf32>
    %201 = arith.select %198, %199, %200 : vector<120x32xi1>, vector<120x32xf32>
    %cst_189 = arith.constant 0.000000e+00 : f32
    %202 = vector.broadcast %cst_189 : f32 to vector<120x32xf32>
    %203 = arith.maximumf %201, %202 : vector<120x32xf32>
    %c8_190 = arith.constant 8 : index
    %c0_191 = arith.constant 0 : index
    %204 = vector.load %arg8[%c8_190, %c0_191] : memref<168x32xf32, #tpu.memory_space<vmem>>, vector<120x32xf32>
    tpu.vector_store %arg8[%c8_190, %c0_191], %203 {strides = array<i32>} : memref<168x32xf32, #tpu.memory_space<vmem>>, vector<120x32xf32>,
    %c1568_192 = arith.constant 1568 : index
    %c0_193 = arith.constant 0 : index
    %205 = vector.load %arg2[%c1568_192, %c0_193] : memref<1728x32xf32, #tpu.memory_space<vmem>>, vector<152x32xf32>
    %c8_194 = arith.constant 8 : index
    %c0_195 = arith.constant 0 : index
    %206 = vector.load %arg8[%c8_194, %c0_195] : memref<168x32xf32, #tpu.memory_space<vmem>>, vector<152x32xf32>
    %cst_196 = arith.constant 0.000000e+00 : f32
    %207 = vector.broadcast %cst_196 : f32 to vector<152x32xf32>
    %208 = arith.cmpf ogt, %205, %207 : vector<152x32xf32>
    %cst_197 = arith.constant 0.000000e+00 : f32
    %209 = vector.broadcast %cst_197 : f32 to vector<152x32xf32>
    %210 = arith.select %208, %206, %209 : vector<152x32xi1>, vector<152x32xf32>
    %c8_198 = arith.constant 8 : index
    %c0_199 = arith.constant 0 : index
    %211 = vector.load %arg9[%c8_198, %c0_199] : memref<168x96xf32, #tpu.memory_space<vmem>>, vector<152x32xf32>
    tpu.vector_store %arg9[%c8_198, %c0_199], %210 {strides = array<i32>} : memref<168x96xf32, #tpu.memory_space<vmem>>, vector<152x32xf32>,
    %c1569_200 = arith.constant 1569 : index
    %c0_201 = arith.constant 0 : index
    %212 = vector.load %arg2[%c1569_200, %c0_201] : memref<1728x32xf32, #tpu.memory_space<vmem>>, vector<152x32xf32>
    %c9_202 = arith.constant 9 : index
    %c0_203 = arith.constant 0 : index
    %213 = vector.load %arg8[%c9_202, %c0_203] : memref<168x32xf32, #tpu.memory_space<vmem>>, vector<152x32xf32>
    %cst_204 = arith.constant 0.000000e+00 : f32
    %214 = vector.broadcast %cst_204 : f32 to vector<152x32xf32>
    %215 = arith.cmpf ogt, %212, %214 : vector<152x32xf32>
    %cst_205 = arith.constant 0.000000e+00 : f32
    %216 = vector.broadcast %cst_205 : f32 to vector<152x32xf32>
    %217 = arith.select %215, %213, %216 : vector<152x32xi1>, vector<152x32xf32>
    %c8_206 = arith.constant 8 : index
    %c32_207 = arith.constant 32 : index
    %218 = vector.load %arg9[%c8_206, %c32_207] : memref<168x96xf32, #tpu.memory_space<vmem>>, vector<152x32xf32>
    tpu.vector_store %arg9[%c8_206, %c32_207], %217 {strides = array<i32>} : memref<168x96xf32, #tpu.memory_space<vmem>>, vector<152x32xf32>,
    %c1570_208 = arith.constant 1570 : index
    %c0_209 = arith.constant 0 : index
    %219 = vector.load %arg2[%c1570_208, %c0_209] : memref<1728x32xf32, #tpu.memory_space<vmem>>, vector<152x32xf32>
    %c10_210 = arith.constant 10 : index
    %c0_211 = arith.constant 0 : index
    %220 = vector.load %arg8[%c10_210, %c0_211] : memref<168x32xf32, #tpu.memory_space<vmem>>, vector<152x32xf32>
    %cst_212 = arith.constant 0.000000e+00 : f32
    %221 = vector.broadcast %cst_212 : f32 to vector<152x32xf32>
    %222 = arith.cmpf ogt, %219, %221 : vector<152x32xf32>
    %cst_213 = arith.constant 0.000000e+00 : f32
    %223 = vector.broadcast %cst_213 : f32 to vector<152x32xf32>
    %224 = arith.select %222, %220, %223 : vector<152x32xi1>, vector<152x32xf32>
    %c8_214 = arith.constant 8 : index
    %c64_215 = arith.constant 64 : index
    %225 = vector.load %arg9[%c8_214, %c64_215] : memref<168x96xf32, #tpu.memory_space<vmem>>, vector<152x32xf32>
    tpu.vector_store %arg9[%c8_214, %c64_215], %224 {strides = array<i32>} : memref<168x96xf32, #tpu.memory_space<vmem>>, vector<152x32xf32>,
    %c1_216 = arith.constant 1 : index
    %c0_217 = arith.constant 0 : index
    %226 = vector.load %arg9[%c1_216, %c0_217] : memref<168x96xf32, #tpu.memory_space<vmem>>, vector<120x96xf32>
    %c936 = arith.constant 936 : index
    %c0_218 = arith.constant 0 : index
    %227 = vector.load %arg2[%c936, %c0_218] : memref<1728x32xf32, #tpu.memory_space<vmem>>, vector<96x16xf32>
    %cst_219 = arith.constant dense<0.000000e+00> : vector<120x16xf32>
    %228 = tpu.matmul %226, %227, %cst_219 {dimension_numbers = #tpu.dot_dimension_numbers<[1], [0], [0], [1], [0, 0, 1, 1], [], []>} : vector<120x96xf32>, vector<96x16xf32>, vector<120x16xf32> -> vector<120x16xf32>
    %c7_220 = arith.constant 7 : index
    %c0_221 = arith.constant 0 : index
    %229 = vector.load %arg9[%c7_220, %c0_221] : memref<168x96xf32, #tpu.memory_space<vmem>>, vector<120x96xf32>
    %c1032 = arith.constant 1032 : index
    %c0_222 = arith.constant 0 : index
    %230 = vector.load %arg2[%c1032, %c0_222] : memref<1728x32xf32, #tpu.memory_space<vmem>>, vector<96x16xf32>
    %cst_223 = arith.constant dense<0.000000e+00> : vector<120x16xf32>
    %231 = tpu.matmul %229, %230, %cst_223 {dimension_numbers = #tpu.dot_dimension_numbers<[1], [0], [0], [1], [0, 0, 1, 1], [], []>} : vector<120x96xf32>, vector<96x16xf32>, vector<120x16xf32> -> vector<120x16xf32>
    %232 = arith.addf %228, %231 : vector<120x16xf32>
    %c13_224 = arith.constant 13 : index
    %c0_225 = arith.constant 0 : index
    %233 = vector.load %arg9[%c13_224, %c0_225] : memref<168x96xf32, #tpu.memory_space<vmem>>, vector<120x96xf32>
    %c1128 = arith.constant 1128 : index
    %c0_226 = arith.constant 0 : index
    %234 = vector.load %arg2[%c1128, %c0_226] : memref<1728x32xf32, #tpu.memory_space<vmem>>, vector<96x16xf32>
    %cst_227 = arith.constant dense<0.000000e+00> : vector<120x16xf32>
    %235 = tpu.matmul %233, %234, %cst_227 {dimension_numbers = #tpu.dot_dimension_numbers<[1], [0], [0], [1], [0, 0, 1, 1], [], []>} : vector<120x96xf32>, vector<96x16xf32>, vector<120x16xf32> -> vector<120x16xf32>
    %236 = arith.addf %232, %235 : vector<120x16xf32>
    %cst_228 = arith.constant 0.000000e+00 : f32
    %237 = vector.broadcast %cst_228 : f32 to vector<120x16xf32>
    %238 = arith.maximumf %236, %237 : vector<120x16xf32>
    %c1224 = arith.constant 1224 : index
    %c0_229 = arith.constant 0 : index
    %239 = vector.load %arg2[%c1224, %c0_229] : memref<1728x32xf32, #tpu.memory_space<vmem>>, vector<16x32xf32>
    %cst_230 = arith.constant dense<0.000000e+00> : vector<120x32xf32>
    %240 = tpu.matmul %238, %239, %cst_230 {dimension_numbers = #tpu.dot_dimension_numbers<[1], [0], [0], [1], [0, 0, 1, 1], [], []>} : vector<120x16xf32>, vector<16x32xf32>, vector<120x32xf32> -> vector<120x32xf32>
    %cst_231 = arith.constant 0.000000e+00 : f32
    %241 = vector.broadcast %cst_231 : f32 to vector<120x32xf32>
    %242 = arith.cmpf ogt, %81, %241 : vector<120x32xf32>
    %243 = arith.addf %201, %240 : vector<120x32xf32>
    %cst_232 = arith.constant 0.000000e+00 : f32
    %244 = vector.broadcast %cst_232 : f32 to vector<120x32xf32>
    %245 = arith.select %242, %243, %244 : vector<120x32xi1>, vector<120x32xf32>
    %cst_233 = arith.constant 0.000000e+00 : f32
    %246 = vector.broadcast %cst_233 : f32 to vector<120x32xf32>
    %247 = arith.maximumf %245, %246 : vector<120x32xf32>
    %c8_234 = arith.constant 8 : index
    %c0_235 = arith.constant 0 : index
    %248 = vector.load %arg8[%c8_234, %c0_235] : memref<168x32xf32, #tpu.memory_space<vmem>>, vector<120x32xf32>
    tpu.vector_store %arg8[%c8_234, %c0_235], %247 {strides = array<i32>} : memref<168x32xf32, #tpu.memory_space<vmem>>, vector<120x32xf32>,
    %c15_236 = arith.constant 15 : index
    %c0_237 = arith.constant 0 : index
    %249 = tpu.strided_load %arg8[%c15_236, %c0_237] {strides = array<i32: 6, 1>} : memref<168x32xf32, #tpu.memory_space<vmem>>, vector<4x32xf32>
    %c0_238 = arith.constant 0 : index
    %c0_239 = arith.constant 0 : index
    %c0_240 = arith.constant 0 : index
    %250 = vector.load %arg3[%c0_238, %c0_239, %c0_240] : memref<2x4x128xf32, #tpu.memory_space<vmem>>, vector<1x4x32xf32>
    %251 = vector.shape_cast %250 : vector<1x4x32xf32> to vector<4x32xf32>
    %252 = vector.shape_cast %249 : vector<4x32xf32> to vector<1x4x32xf32>
    tpu.vector_store %arg3[%c0_238, %c0_239, %c0_240], %252 {strides = array<i32>} : memref<2x4x128xf32, #tpu.memory_space<vmem>>, vector<1x4x32xf32>,
    %c16_241 = arith.constant 16 : index
    %c0_242 = arith.constant 0 : index
    %253 = tpu.strided_load %arg8[%c16_241, %c0_242] {strides = array<i32: 6, 1>} : memref<168x32xf32, #tpu.memory_space<vmem>>, vector<4x32xf32>
    %c0_243 = arith.constant 0 : index
    %c0_244 = arith.constant 0 : index
    %c32_245 = arith.constant 32 : index
    %254 = vector.load %arg3[%c0_243, %c0_244, %c32_245] : memref<2x4x128xf32, #tpu.memory_space<vmem>>, vector<1x4x32xf32>
    %255 = vector.shape_cast %254 : vector<1x4x32xf32> to vector<4x32xf32>
    %256 = vector.shape_cast %253 : vector<4x32xf32> to vector<1x4x32xf32>
    tpu.vector_store %arg3[%c0_243, %c0_244, %c32_245], %256 {strides = array<i32>} : memref<2x4x128xf32, #tpu.memory_space<vmem>>, vector<1x4x32xf32>,
    %c17_246 = arith.constant 17 : index
    %c0_247 = arith.constant 0 : index
    %257 = tpu.strided_load %arg8[%c17_246, %c0_247] {strides = array<i32: 6, 1>} : memref<168x32xf32, #tpu.memory_space<vmem>>, vector<4x32xf32>
    %c0_248 = arith.constant 0 : index
    %c0_249 = arith.constant 0 : index
    %c64_250 = arith.constant 64 : index
    %258 = vector.load %arg3[%c0_248, %c0_249, %c64_250] : memref<2x4x128xf32, #tpu.memory_space<vmem>>, vector<1x4x32xf32>
    %259 = vector.shape_cast %258 : vector<1x4x32xf32> to vector<4x32xf32>
    %260 = vector.shape_cast %257 : vector<4x32xf32> to vector<1x4x32xf32>
    tpu.vector_store %arg3[%c0_248, %c0_249, %c64_250], %260 {strides = array<i32>} : memref<2x4x128xf32, #tpu.memory_space<vmem>>, vector<1x4x32xf32>,
    %c18_251 = arith.constant 18 : index
    %c0_252 = arith.constant 0 : index
    %261 = tpu.strided_load %arg8[%c18_251, %c0_252] {strides = array<i32: 6, 1>} : memref<168x32xf32, #tpu.memory_space<vmem>>, vector<4x32xf32>
    %c0_253 = arith.constant 0 : index
    %c0_254 = arith.constant 0 : index
    %c96 = arith.constant 96 : index
    %262 = vector.load %arg3[%c0_253, %c0_254, %c96] : memref<2x4x128xf32, #tpu.memory_space<vmem>>, vector<1x4x32xf32>
    %263 = vector.shape_cast %262 : vector<1x4x32xf32> to vector<4x32xf32>
    %264 = vector.shape_cast %261 : vector<4x32xf32> to vector<1x4x32xf32>
    tpu.vector_store %arg3[%c0_253, %c0_254, %c96], %264 {strides = array<i32>} : memref<2x4x128xf32, #tpu.memory_space<vmem>>, vector<1x4x32xf32>,
    %c95_255 = arith.constant 95 : index
    %c0_256 = arith.constant 0 : index
    %265 = tpu.strided_load %arg8[%c95_255, %c0_256] {strides = array<i32: 6, 1>} : memref<168x32xf32, #tpu.memory_space<vmem>>, vector<4x32xf32>
    %c1_257 = arith.constant 1 : index
    %c0_258 = arith.constant 0 : index
    %c0_259 = arith.constant 0 : index
    %266 = vector.load %arg3[%c1_257, %c0_258, %c0_259] : memref<2x4x128xf32, #tpu.memory_space<vmem>>, vector<1x4x32xf32>
    %267 = vector.shape_cast %266 : vector<1x4x32xf32> to vector<4x32xf32>
    %268 = vector.shape_cast %265 : vector<4x32xf32> to vector<1x4x32xf32>
    tpu.vector_store %arg3[%c1_257, %c0_258, %c0_259], %268 {strides = array<i32>} : memref<2x4x128xf32, #tpu.memory_space<vmem>>, vector<1x4x32xf32>,
    %c96_260 = arith.constant 96 : index
    %c0_261 = arith.constant 0 : index
    %269 = tpu.strided_load %arg8[%c96_260, %c0_261] {strides = array<i32: 6, 1>} : memref<168x32xf32, #tpu.memory_space<vmem>>, vector<4x32xf32>
    %c1_262 = arith.constant 1 : index
    %c0_263 = arith.constant 0 : index
    %c32_264 = arith.constant 32 : index
    %270 = vector.load %arg3[%c1_262, %c0_263, %c32_264] : memref<2x4x128xf32, #tpu.memory_space<vmem>>, vector<1x4x32xf32>
    %271 = vector.shape_cast %270 : vector<1x4x32xf32> to vector<4x32xf32>
    %272 = vector.shape_cast %269 : vector<4x32xf32> to vector<1x4x32xf32>
    tpu.vector_store %arg3[%c1_262, %c0_263, %c32_264], %272 {strides = array<i32>} : memref<2x4x128xf32, #tpu.memory_space<vmem>>, vector<1x4x32xf32>,
    %c97_265 = arith.constant 97 : index
    %c0_266 = arith.constant 0 : index
    %273 = tpu.strided_load %arg8[%c97_265, %c0_266] {strides = array<i32: 6, 1>} : memref<168x32xf32, #tpu.memory_space<vmem>>, vector<4x32xf32>
    %c1_267 = arith.constant 1 : index
    %c0_268 = arith.constant 0 : index
    %c64_269 = arith.constant 64 : index
    %274 = vector.load %arg3[%c1_267, %c0_268, %c64_269] : memref<2x4x128xf32, #tpu.memory_space<vmem>>, vector<1x4x32xf32>
    %275 = vector.shape_cast %274 : vector<1x4x32xf32> to vector<4x32xf32>
    %276 = vector.shape_cast %273 : vector<4x32xf32> to vector<1x4x32xf32>
    tpu.vector_store %arg3[%c1_267, %c0_268, %c64_269], %276 {strides = array<i32>} : memref<2x4x128xf32, #tpu.memory_space<vmem>>, vector<1x4x32xf32>,
    %c98 = arith.constant 98 : index
    %c0_270 = arith.constant 0 : index
    %277 = tpu.strided_load %arg8[%c98, %c0_270] {strides = array<i32: 6, 1>} : memref<168x32xf32, #tpu.memory_space<vmem>>, vector<4x32xf32>
    %c1_271 = arith.constant 1 : index
    %c0_272 = arith.constant 0 : index
    %c96_273 = arith.constant 96 : index
    %278 = vector.load %arg3[%c1_271, %c0_272, %c96_273] : memref<2x4x128xf32, #tpu.memory_space<vmem>>, vector<1x4x32xf32>
    %279 = vector.shape_cast %278 : vector<1x4x32xf32> to vector<4x32xf32>
    %280 = vector.shape_cast %277 : vector<4x32xf32> to vector<1x4x32xf32>
    tpu.vector_store %arg3[%c1_271, %c0_272, %c96_273], %280 {strides = array<i32>} : memref<2x4x128xf32, #tpu.memory_space<vmem>>, vector<1x4x32xf32>,
    return
  }
  func.func @transform_0(%arg0: i32) -> (i32, i32) {
    %c0_i32 = arith.constant 0 : i32
    %c0_i32_0 = arith.constant 0 : i32
    return %arg0, %c0_i32 : i32, i32
  }
  func.func @transform_1(%arg0: i32) -> (i32, i32) {
    %c0_i32 = arith.constant 0 : i32
    %c0_i32_0 = arith.constant 0 : i32
    %c0_i32_1 = arith.constant 0 : i32
    return %c0_i32, %c0_i32_0 : i32, i32
  }
  func.func @transform_2(%arg0: i32) -> (i32, i32, i32) {
    %c0_i32 = arith.constant 0 : i32
    %c0_i32_0 = arith.constant 0 : i32
    %c0_i32_1 = arith.constant 0 : i32
    return %arg0, %c0_i32, %c0_i32_0 : i32, i32, i32
  }
}

</mosaic_0001>

<llo_original>
// kernel: encoder_forward.1
$region0: #{encoder_forward.1}
  #allocation0 [shape = 'u32[]', space=smem, size = 0x4, offset = 0x4, fixed_abs, tag = 'smem constant byte address 0x4 - core index']
  #allocation1 [shape = 'u32[144,128]{1,0:T(1,128)}', space=vmem, size = 0x12000, scoped, tag = 'internal scratch']
  #allocation2 [shape = 'f32[728,16]{1,0:T(8,128)}', space=vmem, size = 0x5b000, scoped, tag = 'scratch operand']
  #allocation3 [shape = 'f32[320,16]{1,0:T(8,128)}', space=vmem, size = 0x28000, scoped, tag = 'scratch operand']
  #allocation4 [shape = 'f32[320,64]{1,0:T(8,128)}', space=vmem, size = 0x28000, scoped, tag = 'scratch operand']
  #allocation5 [shape = 'f32[256,32]{1,0:T(8,128)}', space=vmem, size = 0x20000, scoped, tag = 'scratch operand']
  #allocation6 [shape = 'f32[168,32]{1,0:T(8,128)}', space=vmem, size = 0x15000, scoped, tag = 'scratch operand']
  #allocation7 [shape = 'f32[168,96]{1,0:T(8,128)}', space=vmem, size = 0x15000, scoped, tag = 'scratch operand']
  %s0 = inlined_call_operand.vmem [shape: f32[1600,16], index: 0, kind: input, shape index: {}]
  %s1 = inlined_call_operand.vmem [shape: f32[1728,32], index: 1, kind: input, shape index: {}]
  %s2 = inlined_call_operand.vmem [shape: f32[4,4,128], index: 2, kind: output, shape index: {}]
  %s3 = sld [smem:[#allocation0]]
  $region41: #{encoder_forward.1} parent=0
    _
  %s5 = ssub.s32 1, %s3
  %s6 = scalar_select 0, %s5, %s3
  loop: start=0, step=1, limit=4
  $region2: #{encoder_forward.1} parent=0 // loop_pre_header
    _
  $region3: #{encoder_forward.1} parent=0 // loop_header
    %s8 = sphi 0, %s12
    %p9 = scmp.ge.s32.totalorder %s8, 4
    %s18 = sphi 0, %s20
    %s21 = sphi 0, %s18
    %s22 = sphi 0, %s21
    %s38 = sphi 0, %s22
    %s42 = sphi 0, %s42
    %s44 = sphi 0, %s42
    %s45 = sphi 0, %s44
    %s59 = sphi 0, %s45
    %s65 = sphi 0, %s67
    %s68 = sphi 0, %s65
    %s69 = sphi 0, %s68
    %s85 = sphi 0, %s69
  $region4: #{encoder_forward.1} parent=0 // loop_header_branch
    %11 = sbr.rel (%p9) target = $region8
  $region5: #{encoder_forward.1} parent=0 // loop_body
    %s13 = ssub.s32 %s8, 1
    %s14 = ssub.s32 %s8, 2
    %s15 = sadd.s32 %s8, 1
    %s16 = ssub.s32 %s8, %s15
    %p17 = scmp.eq.s32.totalorder %s16, 0
    %s19 = sadd.s32 %s18, 1
    %s20 = scalar_select %p17, %s18, %s19
    %p23 = pneg %p17
    %p24 = scmp.eq.s32.totalorder %s8, 1
    %p25 = por %p23, %p24
    %p26 = scmp.ne.s32.totalorder %s18, %s21
    %p27 = scmp.eq.s32.totalorder %s8, 0
    %p28 = por %p26, %p27
    %p29 = scmp.ne.s32.totalorder %s18, %s21
    %p30 = scmp.eq.s32.totalorder %s13, 1
    %p31 = por %p29, %p30
    %p32 = scmp.ne.s32.totalorder %s21, %s22
    %p33 = scmp.eq.s32.totalorder %s13, 0
    %p34 = por %p32, %p33
    %p35 = scmp.ne.s32.totalorder %s21, %s22
    %p36 = scmp.eq.s32.totalorder %s14, 1
    %p37 = por %p35, %p36
    %p39 = scmp.ne.s32.totalorder %s22, %s38
    %p40 = scmp.eq.s32.totalorder %s14, 0
    %p41 = por %p39, %p40
    %s43 = sadd.s32 %s42, 1
    %p46 = scmp.eq.s32.totalorder %s8, 1
    %p47 = scmp.ne.s32.totalorder %s42, %s44
    %p48 = scmp.eq.s32.totalorder %s8, 0
    %p49 = por %p47, %p48
    %p50 = scmp.ne.s32.totalorder %s42, %s44
    %p51 = scmp.eq.s32.totalorder %s13, 1
    %p52 = por %p50, %p51
    %p53 = scmp.ne.s32.totalorder %s44, %s45
    %p54 = scmp.eq.s32.totalorder %s13, 0
    %p55 = por %p53, %p54
    %p56 = scmp.ne.s32.totalorder %s44, %s45
    %p57 = scmp.eq.s32.totalorder %s14, 1
    %p58 = por %p56, %p57
    %p60 = scmp.ne.s32.totalorder %s45, %s59
    %p61 = scmp.eq.s32.totalorder %s14, 0
    %p62 = por %p60, %p61
    %s63 = ssub.s32 %s8, %s15
    %p64 = scmp.eq.s32.totalorder %s63, 0
    %s66 = sadd.s32 %s65, 1
    %s67 = scalar_select %p64, %s65, %s66
    %p70 = pneg %p64
    %p71 = scmp.eq.s32.totalorder %s8, 1
    %p72 = por %p70, %p71
    %p73 = scmp.ne.s32.totalorder %s65, %s68
    %p74 = scmp.eq.s32.totalorder %s8, 0
    %p75 = por %p73, %p74
    %p76 = scmp.ne.s32.totalorder %s65, %s68
    %p77 = scmp.eq.s32.totalorder %s13, 1
    %p78 = por %p76, %p77
    %p79 = scmp.ne.s32.totalorder %s68, %s69
    %p80 = scmp.eq.s32.totalorder %s13, 0
    %p81 = por %p79, %p80
    %p82 = scmp.ne.s32.totalorder %s68, %s69
    %p83 = scmp.eq.s32.totalorder %s14, 1
    %p84 = por %p82, %p83
    %p86 = scmp.ne.s32.totalorder %s69, %s85
    %p87 = scmp.eq.s32.totalorder %s14, 0
    %p88 = por %p86, %p87
    %p89 = scmp.le.s32.totalorder 1, %s8
    %p90 = scmp.lt.s32.totalorder %s8, 3
    %p91 = pnand %p89, %p90
    %p92 = pneg %p91
    // Predicated region
    $region9: #{encoder_forward.1} parent=5 // pred_check
      _
    $region10: #{encoder_forward.1} parent=5 // pred_check_branch
      %94 = sbr.rel (%p91) target = $region12
    $region11: #{encoder_forward.1} parent=5 // pred_region
      %s95 = ssub.s32 %s8, 1
      // Predicated region
      $region13: #{encoder_forward.1} parent=11 // pred_check
        %p96 = pneg %p55
      $region14: #{encoder_forward.1} parent=11 // pred_check_branch
        %98 = sbr.rel (%p96) target = $region16
      $region15: #{encoder_forward.1} parent=11 // pred_region
        _
      $region16: #{encoder_forward.1} parent=11 // pred_fallthru
        _
    $region12: #{encoder_forward.1} parent=5 // pred_fallthru
      _
    %p99 = scmp.lt.s32.totalorder %s8, 2
    // Predicated region
    $region17: #{encoder_forward.1} parent=5 // pred_check
      %p100 = pneg %p99
    $region18: #{encoder_forward.1} parent=5 // pred_check_branch
      %102 = sbr.rel (%p100) target = $region20
    $region19: #{encoder_forward.1} parent=5 // pred_region
      // Predicated region
      $region21: #{encoder_forward.1} parent=19 // pred_check
        %p103 = pneg %p28
      $region22: #{encoder_forward.1} parent=19 // pred_check_branch
        %105 = sbr.rel (%p103) target = $region24
      $region23: #{encoder_forward.1} parent=19 // pred_region
        %s106 = smul.u32 100, %s8
        %p107 = scmp.lt.s32.totalorder %s106, 199
        %s108 = scalar_select %p107, %s106, 199
        %s109 = smul.addr %s108, 8
        %s110 = scalar_lea.vmem %s0, %s109
        %s111 = smul.u32 100, %s8
      $region24: #{encoder_forward.1} parent=19 // pred_fallthru
        _
    $region20: #{encoder_forward.1} parent=5 // pred_fallthru
      _
    %p112 = scmp.le.s32.totalorder 1, %s8
    %p113 = scmp.lt.s32.totalorder %s8, 3
    %p114 = pnand %p112, %p113
    %p115 = pneg %p114
    // Predicated region
    $region25: #{encoder_forward.1} parent=5 // pred_check
      _
    $region26: #{encoder_forward.1} parent=5 // pred_check_branch
      %117 = sbr.rel (%p114) target = $region28
    $region27: #{encoder_forward.1} parent=5 // pred_region
      %s118 = ssub.s32 %s8, 1
      %s119 = smul.u32 100, %s13
      %p120 = scmp.lt.s32.totalorder %s119, 199
      %s121 = scalar_select %p120, %s119, 199
      %s122 = smul.addr %s121, 8
      %s123 = scalar_lea.vmem %s0, %s122
      %p124 = pneg %p34
      %p125 = pneg %p31
      %p126 = pneg %p55
      %p127 = pneg %p52
      %p128 = pneg %p81
      %p129 = pneg %p78
      %s130 = smul.u32 2, %s13
      %p131 = scmp.lt.s32.totalorder %s130, 3
      %s132 = scalar_select %p131, %s130, 3
      %s133 = smul.addr %s132, 4
      %s134 = scalar_lea.vmem %s2, %s133
      %s135 = smul.u32 100, %s13
      %p136 = scmp.lt.s32.totalorder %s135, 199
      %s137 = scalar_select %p136, %s135, 199
      %s138 = smul.addr %s137, 8
      %s139 = scalar_lea.vmem %s0, %s138
      %s140 = smul.u32 100, %s13
      %s141 = smul.u32 2, %s13
      %p142 = scmp.lt.s32.totalorder %s141, 3
      %s143 = scalar_select %p142, %s141, 3
      %s144 = smul.addr %s143, 4
      %s145 = scalar_lea.vmem %s2, %s144
      %s146 = smul.u32 2, %s13
      %v147 = vld [vmem:[%s139] sm:$0xff]
      %v148 = vld [vmem:[%s139 + $0x8] sm:$0xff]
      %v149 = vld [vmem:[%s139 + $0x10] sm:$0xff]
      %v150 = vld [vmem:[%s139 + $0x18] sm:$0xff]
      %v151 = vld [vmem:[%s139 + $0x20] sm:$0xff]
      %v152 = vld [vmem:[%s139 + $0x28] sm:$0xff]
      %v153 = vld [vmem:[%s139 + $0x30] sm:$0xff]
      %v154 = vld [vmem:[%s139 + $0x38] sm:$0xff]
      %v155 = vld [vmem:[%s139 + $0x40] sm:$0xff]
      %v156 = vld [vmem:[%s139 + $0x48] sm:$0xff]
      %v157 = vld [vmem:[%s139 + $0x50] sm:$0xff]
      %v158 = vld [vmem:[%s139 + $0x58] sm:$0xff]
      %v159 = vld [vmem:[%s139 + $0x60] sm:$0xff]
      %v160 = vld [vmem:[%s139 + $0x68] sm:$0xff]
      %v161 = vld [vmem:[%s139 + $0x70] sm:$0xff]
      %v162 = vld [vmem:[%s139 + $0x78] sm:$0xff]
      %v163 = vld [vmem:[%s139 + $0x80] sm:$0xff]
      %v164 = vld [vmem:[%s139 + $0x88] sm:$0xff]
      %v165 = vld [vmem:[%s139 + $0x90] sm:$0xff]
      %v166 = vld [vmem:[%s139 + $0x98] sm:$0xff]
      %v167 = vld [vmem:[%s139 + $0xa0] sm:$0xff]
      %v168 = vld [vmem:[%s139 + $0xa8] sm:$0xff]
      %v169 = vld [vmem:[%s139 + $0xb0] sm:$0xff]
      %v170 = vld [vmem:[%s139 + $0xb8] sm:$0xff]
      %v171 = vld [vmem:[%s139 + $0xc0] sm:$0xff]
      %v172 = vld [vmem:[%s139 + $0xc8] sm:$0xff]
      %v173 = vld [vmem:[%s139 + $0xd0] sm:$0xff]
      %v174 = vld [vmem:[%s139 + $0xd8] sm:$0xff]
      %v175 = vld [vmem:[%s139 + $0xe0] sm:$0xff]
      %v176 = vld [vmem:[%s139 + $0xe8] sm:$0xff]
      %v177 = vld [vmem:[%s139 + $0xf0] sm:$0xff]
      %v178 = vld [vmem:[%s139 + $0xf8] sm:$0xff]
      %v179 = vld [vmem:[%s139 + $0x100] sm:$0xff]
      %v180 = vld [vmem:[%s139 + $0x108] sm:$0xff]
      %v181 = vld [vmem:[%s139 + $0x110] sm:$0xff]
      %v182 = vld [vmem:[%s139 + $0x118] sm:$0xff]
      %v183 = vld [vmem:[%s139 + $0x120] sm:$0xff]
      %v184 = vld [vmem:[%s139 + $0x128] sm:$0xff]
      %v185 = vld [vmem:[%s139 + $0x130] sm:$0xff]
      %v186 = vld [vmem:[%s139 + $0x138] sm:$0xff]
      %v187 = vld [vmem:[%s139 + $0x140] sm:$0xff]
      %v188 = vld [vmem:[%s139 + $0x148] sm:$0xff]
      %v189 = vld [vmem:[%s139 + $0x150] sm:$0xff]
      %v190 = vld [vmem:[%s139 + $0x158] sm:$0xff]
      %v191 = vld [vmem:[%s139 + $0x160] sm:$0xff]
      %v192 = vld [vmem:[%s139 + $0x168] sm:$0xff]
      %v193 = vld [vmem:[%s139 + $0x170] sm:$0xff]
      %v194 = vld [vmem:[%s139 + $0x178] sm:$0xff]
      %v195 = vld [vmem:[%s139 + $0x180] sm:$0xff]
      %v196 = vld [vmem:[%s139 + $0x188] sm:$0xff]
      %v197 = vld [vmem:[%s139 + $0x190] sm:$0xff]
      %v198 = vld [vmem:[%s139 + $0x198] sm:$0xff]
      %v199 = vld [vmem:[%s139 + $0x1a0] sm:$0xff]
      %v200 = vld [vmem:[%s139 + $0x1a8] sm:$0xff]
      %v201 = vld [vmem:[%s139 + $0x1b0] sm:$0xff]
      %v202 = vld [vmem:[%s139 + $0x1b8] sm:$0xff]
      %v203 = vld [vmem:[%s139 + $0x1c0] sm:$0xff]
      %v204 = vld [vmem:[%s139 + $0x1c8] sm:$0xff]
      %v205 = vld [vmem:[%s139 + $0x1d0] sm:$0xff]
      %v206 = vld [vmem:[%s139 + $0x1d8] sm:$0xff]
      %v207 = vld [vmem:[%s139 + $0x1e0] sm:$0xff]
      %v208 = vld [vmem:[%s139 + $0x1e8] sm:$0xff]
      %v209 = vld [vmem:[%s139 + $0x1f0] sm:$0xff]
      %v210 = vld [vmem:[%s139 + $0x1f8] sm:$0xff]
      %v211 = vld [vmem:[%s139 + $0x200] sm:$0xff]
      %v212 = vld [vmem:[%s139 + $0x208] sm:$0xff]
      %v213 = vld [vmem:[%s139 + $0x210] sm:$0xff]
      %v214 = vld [vmem:[%s139 + $0x218] sm:$0xff]
      %v215 = vld [vmem:[%s139 + $0x220] sm:$0xff]
      %v216 = vld [vmem:[%s139 + $0x228] sm:$0xff]
      %v217 = vld [vmem:[%s139 + $0x230] sm:$0xff]
      %v218 = vld [vmem:[%s139 + $0x238] sm:$0xff]
      %v219 = vld [vmem:[%s139 + $0x240] sm:$0xff]
      %v220 = vld [vmem:[%s139 + $0x248] sm:$0xff]
      %v221 = vld [vmem:[%s139 + $0x250] sm:$0xff]
      %v222 = vld [vmem:[%s139 + $0x258] sm:$0xff]
      %v223 = vld [vmem:[%s139 + $0x260] sm:$0xff]
      %v224 = vld [vmem:[%s139 + $0x268] sm:$0xff]
      %v225 = vld [vmem:[%s139 + $0x270] sm:$0xff]
      %v226 = vld [vmem:[%s139 + $0x278] sm:$0xff]
      %v227 = vld [vmem:[%s139 + $0x280] sm:$0xff]
      %v228 = vld [vmem:[%s139 + $0x288] sm:$0xff]
      %v229 = vld [vmem:[%s139 + $0x290] sm:$0xff]
      %v230 = vld [vmem:[%s139 + $0x298] sm:$0xff]
      %v231 = vld [vmem:[%s139 + $0x2a0] sm:$0xff]
      %v232 = vld [vmem:[%s139 + $0x2a8] sm:$0xff]
      %v233 = vld [vmem:[%s139 + $0x2b0] sm:$0xff]
      %v234 = vld [vmem:[%s139 + $0x2b8] sm:$0xff]
      %v235 = vld [vmem:[%s139 + $0x2c0] sm:$0xff]
      %v236 = vld [vmem:[%s139 + $0x2c8] sm:$0xff]
      %v237 = vld [vmem:[%s139 + $0x2d0] sm:$0xff]
      %v238 = vld [vmem:[%s1] sm:$0xff]
      %v239 = vld [vmem:[%s1 + $0x8] sm:$0xff]
      %v240 = vld [vmem:[%s139 + $0x12] sm:$0xff]
      %v241 = vld [vmem:[%s139 + $0x1a] sm:$0xff]
      %v242 = vld [vmem:[%s139 + $0x22] sm:$0xff]
      %v243 = vld [vmem:[%s139 + $0x2a] sm:$0xff]
      %v244 = vld [vmem:[%s139 + $0x32] sm:$0xff]
      %v245 = vld [vmem:[%s139 + $0x3a] sm:$0xff]
      %v246 = vld [vmem:[%s139 + $0x42] sm:$0xff]
      %v247 = vld [vmem:[%s139 + $0x4a] sm:$0xff]
      %v248 = vld [vmem:[%s139 + $0x52] sm:$0xff]
      %v249 = vld [vmem:[%s139 + $0x5a] sm:$0xff]
      %v250 = vld [vmem:[%s139 + $0x62] sm:$0xff]
      %v251 = vld [vmem:[%s139 + $0x6a] sm:$0xff]
      %v252 = vld [vmem:[%s139 + $0x72] sm:$0xff]
      %v253 = vld [vmem:[%s139 + $0x7a] sm:$0xff]
      %v254 = vld [vmem:[%s139 + $0x82] sm:$0xff]
      %v255 = vld [vmem:[%s139 + $0x8a] sm:$0xff]
      %v256 = vld [vmem:[%s139 + $0x92] sm:$0xff]
      %v257 = vld [vmem:[%s139 + $0x9a] sm:$0xff]
      %v258 = vld [vmem:[%s139 + $0xa2] sm:$0xff]
      %v259 = vld [vmem:[%s139 + $0xaa] sm:$0xff]
      %v260 = vld [vmem:[%s139 + $0xb2] sm:$0xff]
      %v261 = vld [vmem:[%s139 + $0xba] sm:$0xff]
      %v262 = vld [vmem:[%s139 + $0xc2] sm:$0xff]
      %v263 = vld [vmem:[%s139 + $0xca] sm:$0xff]
      %v264 = vld [vmem:[%s139 + $0xd2] sm:$0xff]
      %v265 = vld [vmem:[%s139 + $0xda] sm:$0xff]
      %v266 = vld [vmem:[%s139 + $0xe2] sm:$0xff]
      %v267 = vld [vmem:[%s139 + $0xea] sm:$0xff]
      %v268 = vld [vmem:[%s139 + $0xf2] sm:$0xff]
      %v269 = vld [vmem:[%s139 + $0xfa] sm:$0xff]
      %v270 = vld [vmem:[%s139 + $0x102] sm:$0xff]
      %v271 = vld [vmem:[%s139 + $0x10a] sm:$0xff]
      %v272 = vld [vmem:[%s139 + $0x112] sm:$0xff]
      %v273 = vld [vmem:[%s139 + $0x11a] sm:$0xff]
      %v274 = vld [vmem:[%s139 + $0x122] sm:$0xff]
      %v275 = vld [vmem:[%s139 + $0x12a] sm:$0xff]
      %v276 = vld [vmem:[%s139 + $0x132] sm:$0xff]
      %v277 = vld [vmem:[%s139 + $0x13a] sm:$0xff]
      %v278 = vld [vmem:[%s139 + $0x142] sm:$0xff]
      %v279 = vld [vmem:[%s139 + $0x14a] sm:$0xff]
      %v280 = vld [vmem:[%s139 + $0x152] sm:$0xff]
      %v281 = vld [vmem:[%s139 + $0x15a] sm:$0xff]
      %v282 = vld [vmem:[%s139 + $0x162] sm:$0xff]
      %v283 = vld [vmem:[%s139 + $0x16a] sm:$0xff]
      %v284 = vld [vmem:[%s139 + $0x172] sm:$0xff]
      %v285 = vld [vmem:[%s139 + $0x17a] sm:$0xff]
      %v286 = vld [vmem:[%s139 + $0x182] sm:$0xff]
      %v287 = vld [vmem:[%s139 + $0x18a] sm:$0xff]
      %v288 = vld [vmem:[%s139 + $0x192] sm:$0xff]
      %v289 = vld [vmem:[%s139 + $0x19a] sm:$0xff]
      %v290 = vld [vmem:[%s139 + $0x1a2] sm:$0xff]
      %v291 = vld [vmem:[%s139 + $0x1aa] sm:$0xff]
      %v292 = vld [vmem:[%s139 + $0x1b2] sm:$0xff]
      %v293 = vld [vmem:[%s139 + $0x1ba] sm:$0xff]
      %v294 = vld [vmem:[%s139 + $0x1c2] sm:$0xff]
      %v295 = vld [vmem:[%s139 + $0x1ca] sm:$0xff]
      %v296 = vld [vmem:[%s139 + $0x1d2] sm:$0xff]
      %v297 = vld [vmem:[%s139 + $0x1da] sm:$0xff]
      %v298 = vld [vmem:[%s139 + $0x1e2] sm:$0xff]
      %v299 = vld [vmem:[%s139 + $0x1ea] sm:$0xff]
      %v300 = vld [vmem:[%s139 + $0x1f2] sm:$0xff]
      %v301 = vld [vmem:[%s139 + $0x1fa] sm:$0xff]
      %v302 = vld [vmem:[%s139 + $0x202] sm:$0xff]
      %v303 = vld [vmem:[%s139 + $0x20a] sm:$0xff]
      %v304 = vld [vmem:[%s139 + $0x212] sm:$0xff]
      %v305 = vld [vmem:[%s139 + $0x21a] sm:$0xff]
      %v306 = vld [vmem:[%s139 + $0x222] sm:$0xff]
      %v307 = vld [vmem:[%s139 + $0x22a] sm:$0xff]
      %v308 = vld [vmem:[%s139 + $0x232] sm:$0xff]
      %v309 = vld [vmem:[%s139 + $0x23a] sm:$0xff]
      %v310 = vld [vmem:[%s139 + $0x242] sm:$0xff]
      %v311 = vld [vmem:[%s139 + $0x24a] sm:$0xff]
      %v312 = vld [vmem:[%s139 + $0x252] sm:$0xff]
      %v313 = vld [vmem:[%s139 + $0x25a] sm:$0xff]
      %v314 = vld [vmem:[%s139 + $0x262] sm:$0xff]
      %v315 = vld [vmem:[%s139 + $0x26a] sm:$0xff]
      %v316 = vld [vmem:[%s139 + $0x272] sm:$0xff]
      %v317 = vld [vmem:[%s139 + $0x27a] sm:$0xff]
      %v318 = vld [vmem:[%s139 + $0x282] sm:$0xff]
      %v319 = vld [vmem:[%s139 + $0x28a] sm:$0xff]
      %v320 = vld [vmem:[%s139 + $0x292] sm:$0xff]
      %v321 = vld [vmem:[%s139 + $0x29a] sm:$0xff]
      %v322 = vld [vmem:[%s139 + $0x2a2] sm:$0xff]
      %v323 = vld [vmem:[%s139 + $0x2aa] sm:$0xff]
      %v324 = vld [vmem:[%s139 + $0x2b2] sm:$0xff]
      %v325 = vld [vmem:[%s139 + $0x2ba] sm:$0xff]
      %v326 = vld [vmem:[%s139 + $0x2c2] sm:$0xff]
      %v327 = vld [vmem:[%s139 + $0x2ca] sm:$0xff]
      %v328 = vld [vmem:[%s139 + $0x2d2] sm:$0xff]
      %v329 = vld [vmem:[%s139 + $0x2da] sm:$0xff]
      %v330 = vld [vmem:[%s139 + $0x2e2] sm:$0xff]
      %v331 = vld [vmem:[%s1 + $0x10] sm:$0xff]
      %v332 = vld [vmem:[%s1 + $0x18] sm:$0xff]
      %vm333 = vcmask 130048
      %v335 = vsel %vm333, %v240, 0
      %v338 = vsel %vm333, %v241, 0
      %v341 = vsel %vm333, %v242, 0
      %v344 = vsel %vm333, %v243, 0
      %v347 = vsel %vm333, %v244, 0
      %v350 = vsel %vm333, %v245, 0
      %v353 = vsel %vm333, %v246, 0
      %v356 = vsel %vm333, %v247, 0
      %v359 = vsel %vm333, %v248, 0
      %v362 = vsel %vm333, %v249, 0
      %v365 = vsel %vm333, %v250, 0
      %v368 = vsel %vm333, %v251, 0
      %v371 = vsel %vm333, %v252, 0
      %v374 = vsel %vm333, %v253, 0
      %v377 = vsel %vm333, %v254, 0
      %v380 = vsel %vm333, %v255, 0
      %v383 = vsel %vm333, %v256, 0
      %v386 = vsel %vm333, %v257, 0
      %v389 = vsel %vm333, %v258, 0
      %v392 = vsel %vm333, %v259, 0
      %v395 = vsel %vm333, %v260, 0
      %v398 = vsel %vm333, %v261, 0
      %v401 = vsel %vm333, %v262, 0
      %v404 = vsel %vm333, %v263, 0
      %v407 = vsel %vm333, %v264, 0
      %v410 = vsel %vm333, %v265, 0
      %v413 = vsel %vm333, %v266, 0
      %v416 = vsel %vm333, %v267, 0
      %v419 = vsel %vm333, %v268, 0
      %v422 = vsel %vm333, %v269, 0
      %v425 = vsel %vm333, %v270, 0
      %v428 = vsel %vm333, %v271, 0
      %v431 = vsel %vm333, %v272, 0
      %v434 = vsel %vm333, %v273, 0
      %v437 = vsel %vm333, %v274, 0
      %v440 = vsel %vm333, %v275, 0
      %v443 = vsel %vm333, %v276, 0
      %v446 = vsel %vm333, %v277, 0
      %v449 = vsel %vm333, %v278, 0
      %v452 = vsel %vm333, %v279, 0
      %v455 = vsel %vm333, %v280, 0
      %v458 = vsel %vm333, %v281, 0
      %v461 = vsel %vm333, %v282, 0
      %v464 = vsel %vm333, %v283, 0
      %v467 = vsel %vm333, %v284, 0
      %v470 = vsel %vm333, %v285, 0
      %v473 = vsel %vm333, %v286, 0
      %v476 = vsel %vm333, %v287, 0
      %v479 = vsel %vm333, %v288, 0
      %v482 = vsel %vm333, %v289, 0
      %v485 = vsel %vm333, %v290, 0
      %v488 = vsel %vm333, %v291, 0
      %v491 = vsel %vm333, %v292, 0
      %v494 = vsel %vm333, %v293, 0
      %v497 = vsel %vm333, %v294, 0
      %v500 = vsel %vm333, %v295, 0
      %v503 = vsel %vm333, %v296, 0
      %v506 = vsel %vm333, %v297, 0
      %v509 = vsel %vm333, %v298, 0
      %v512 = vsel %vm333, %v299, 0
      %v515 = vsel %vm333, %v300, 0
      %v518 = vsel %vm333, %v301, 0
      %v521 = vsel %vm333, %v302, 0
      %v524 = vsel %vm333, %v303, 0
      %v527 = vsel %vm333, %v304, 0
      %v530 = vsel %vm333, %v305, 0
      %v533 = vsel %vm333, %v306, 0
      %v536 = vsel %vm333, %v307, 0
      %v539 = vsel %vm333, %v308, 0
      %v542 = vsel %vm333, %v309, 0
      %v545 = vsel %vm333, %v310, 0
      %v548 = vsel %vm333, %v311, 0
      %v551 = vsel %vm333, %v312, 0
      %v554 = vsel %vm333, %v313, 0
      %v557 = vsel %vm333, %v314, 0
      %v560 = vsel %vm333, %v315, 0
      %v563 = vsel %vm333, %v316, 0
      %v566 = vsel %vm333, %v317, 0
      %v569 = vsel %vm333, %v318, 0
      %v572 = vsel %vm333, %v319, 0
      %v575 = vsel %vm333, %v320, 0
      %v578 = vsel %vm333, %v321, 0
      %v581 = vsel %vm333, %v322, 0
      %v584 = vsel %vm333, %v323, 0
      %v587 = vsel %vm333, %v324, 0
      %v590 = vsel %vm333, %v325, 0
      %v593 = vsel %vm333, %v326, 0
      %v596 = vsel %vm333, %v327, 0
      %v599 = vsel %vm333, %v328, 0
      %v602 = vsel %vm333, %v329, 0
      %v605 = vsel %vm333, %v330, 0
      %607 = vmatprep.subr.mxu0 0.0
      %608 = vmatpush1.msra.mxu0 %v331
      %609 = vmatprep.subr.mxu0 0.0
      %610 = vmatpush1.msra.mxu0 %v332
      %611 = vmatprep.subr.mxu0 0.0
      %612 = vmatpush1.msra.mxu0 0.0
      %613 = vmatprep.subr.mxu0 0.0
      %614 = vmatpush1.msra.mxu0 0.0
      %615 = vmatprep.subr.mxu0 0.0
      %616 = vmatpush1.msra.mxu0 0.0
      %617 = vmatprep.subr.mxu0 0.0
      %618 = vmatpush1.msra.mxu0 0.0
      %619 = vmatprep.subr.mxu0 0.0
      %620 = vmatpush1.msra.mxu0 0.0
      %621 = vmatprep.subr.mxu0 0.0
      %622 = vmatpush1.msra.mxu0 0.0
      %623 = vmatprep.subr.mxu0 0.0
      %624 = vmatpush1.msra.mxu0 0.0
      %625 = vmatprep.subr.mxu0 0.0
      %626 = vmatpush1.msra.mxu0 0.0
      %627 = vmatprep.subr.mxu0 0.0
      %628 = vmatpush1.msra.mxu0 0.0
      %629 = vmatprep.subr.mxu0 0.0
      %630 = vmatpush1.msra.mxu0 0.0
      %631 = vmatprep.subr.mxu0 0.0
      %632 = vmatpush1.msra.mxu0 0.0
      %633 = vmatprep.subr.mxu0 0.0
      %634 = vmatpush1.msra.mxu0 0.0
      %635 = vmatprep.subr.mxu0 0.0
      %636 = vmatpush1.msra.mxu0 0.0
      %637 = vmatprep.subr.mxu0 0.0
      %638 = vmatpush1.msra.mxu0 0.0
      %639 = vmatprep.subr.mxu0 0.0
      %640 = vmatpush1.msra.mxu0 0.0
      %641 = vmatprep.subr.mxu0 0.0
      %642 = vmatpush1.msra.mxu0 0.0
      %643 = vmatprep.subr.mxu0 0.0
      %644 = vmatpush1.msra.mxu0 0.0
      %645 = vmatprep.subr.mxu0 0.0
      %646 = vmatpush1.msra.mxu0 0.0
      %647 = vmatprep.subr.mxu0 0.0
      %648 = vmatpush1.msra.mxu0 0.0
      %649 = vmatprep.subr.mxu0 0.0
      %650 = vmatpush1.msra.mxu0 0.0
      %651 = vmatprep.subr.mxu0 0.0
      %652 = vmatpush1.msra.mxu0 0.0
      %653 = vmatprep.subr.mxu0 0.0
      %654 = vmatpush1.msra.mxu0 0.0
      %655 = vmatprep.subr.mxu0 0.0
      %656 = vmatpush1.msra.mxu0 0.0
      %657 = vmatprep.subr.mxu0 0.0
      %658 = vmatpush1.msra.mxu0 0.0
      %659 = vmatprep.subr.mxu0 0.0
      %660 = vmatpush1.msra.mxu0 0.0
      %661 = vmatprep.subr.mxu0 0.0
      %662 = vmatpush1.msra.mxu0 0.0
      %663 = vmatprep.subr.mxu0 0.0
      %664 = vmatpush1.msra.mxu0 0.0
      %665 = vmatprep.subr.mxu0 0.0
      %666 = vmatpush1.msra.mxu0 0.0
      %667 = vmatprep.subr.mxu0 0.0
      %668 = vmatpush1.msra.mxu0 0.0
      %669 = vmatprep.subr.mxu0 0.0
      %670 = vmatpush1.msra.mxu0 0.0
      %671 = vmatprep.mubr.f32.mxu0 0.0
      %672 = vmatmul.mubr.f32.gmra.mrb[0].mxu0 %v335
      %v673 = vpop.f32.mrb[0].mxu0
      %v674 = vadd.f32 0.0, %v673
      %v675 = vpop.f32.mrb[0].mxu0
      %676 = vmatprep.mubr.f32.mxu0 0.0
      %677 = vmatmul.mubr.f32.gmra.mrb[0].mxu0 %v338
      %v678 = vpop.f32.mrb[0].mxu0
      %v679 = vadd.f32 0.0, %v678
      %v680 = vpop.f32.mrb[0].mxu0
      %681 = vmatprep.mubr.f32.mxu0 0.0
      %682 = vmatmul.mubr.f32.gmra.mrb[0].mxu0 %v341
      %v683 = vpop.f32.mrb[0].mxu0
      %v684 = vadd.f32 0.0, %v683
      %v685 = vpop.f32.mrb[0].mxu0
      %686 = vmatprep.mubr.f32.mxu0 0.0
      %687 = vmatmul.mubr.f32.gmra.mrb[0].mxu0 %v344
      %v688 = vpop.f32.mrb[0].mxu0
      %v689 = vadd.f32 0.0, %v688
      %v690 = vpop.f32.mrb[0].mxu0
      %691 = vmatprep.mubr.f32.mxu0 0.0
      %692 = vmatmul.mubr.f32.gmra.mrb[0].mxu0 %v347
      %v693 = vpop.f32.mrb[0].mxu0
      %v694 = vadd.f32 0.0, %v693
      %v695 = vpop.f32.mrb[0].mxu0
      %696 = vmatprep.mubr.f32.mxu0 0.0
      %697 = vmatmul.mubr.f32.gmra.mrb[0].mxu0 %v350
      %v698 = vpop.f32.mrb[0].mxu0
      %v699 = vadd.f32 0.0, %v698
      %v700 = vpop.f32.mrb[0].mxu0
      %701 = vmatprep.mubr.f32.mxu0 0.0
      %702 = vmatmul.mubr.f32.gmra.mrb[0].mxu0 %v353
      %v703 = vpop.f32.mrb[0].mxu0
      %v704 = vadd.f32 0.0, %v703
      %v705 = vpop.f32.mrb[0].mxu0
      %706 = vmatprep.mubr.f32.mxu0 0.0
      %707 = vmatmul.mubr.f32.gmra.mrb[0].mxu0 %v356
      %v708 = vpop.f32.mrb[0].mxu0
      %v709 = vadd.f32 0.0, %v708
      %v710 = vpop.f32.mrb[0].mxu0
      %711 = vmatprep.mubr.f32.mxu0 0.0
      %712 = vmatmul.mubr.f32.gmra.mrb[0].mxu0 %v359
      %v713 = vpop.f32.mrb[0].mxu0
      %v714 = vadd.f32 0.0, %v713
      %v715 = vpop.f32.mrb[0].mxu0
      %716 = vmatprep.mubr.f32.mxu0 0.0
      %717 = vmatmul.mubr.f32.gmra.mrb[0].mxu0 %v362
      %v718 = vpop.f32.mrb[0].mxu0
      %v719 = vadd.f32 0.0, %v718
      %v720 = vpop.f32.mrb[0].mxu0
      %721 = vmatprep.mubr.f32.mxu0 0.0
      %722 = vmatmul.mubr.f32.gmra.mrb[0].mxu0 %v365
      %v723 = vpop.f32.mrb[0].mxu0
      %v724 = vadd.f32 0.0, %v723
      %v725 = vpop.f32.mrb[0].mxu0
      %726 = vmatprep.mubr.f32.mxu0 0.0
      %727 = vmatmul.mubr.f32.gmra.mrb[0].mxu0 %v368
      %v728 = vpop.f32.mrb[0].mxu0
      %v729 = vadd.f32 0.0, %v728
      %v730 = vpop.f32.mrb[0].mxu0
      %731 = vmatprep.mubr.f32.mxu0 0.0
      %732 = vmatmul.mubr.f32.gmra.mrb[0].mxu0 %v371
      %v733 = vpop.f32.mrb[0].mxu0
      %v734 = vadd.f32 0.0, %v733
      %v735 = vpop.f32.mrb[0].mxu0
      %736 = vmatprep.mubr.f32.mxu0 0.0
      %737 = vmatmul.mubr.f32.gmra.mrb[0].mxu0 %v374
      %v738 = vpop.f32.mrb[0].mxu0
      %v739 = vadd.f32 0.0, %v738
      %v740 = vpop.f32.mrb[0].mxu0
      %741 = vmatprep.mubr.f32.mxu0 0.0
      %742 = vmatmul.mubr.f32.gmra.mrb[0].mxu0 %v377
      %v743 = vpop.f32.mrb[0].mxu0
      %v744 = vadd.f32 0.0, %v743
      %v745 = vpop.f32.mrb[0].mxu0
      %746 = vmatprep.mubr.f32.mxu0 0.0
      %747 = vmatmul.mubr.f32.gmra.mrb[0].mxu0 %v380
      %v748 = vpop.f32.mrb[0].mxu0
      %v749 = vadd.f32 0.0, %v748
      %v750 = vpop.f32.mrb[0].mxu0
      %751 = vmatprep.mubr.f32.mxu0 0.0
      %752 = vmatmul.mubr.f32.gmra.mrb[0].mxu0 %v383
      %v753 = vpop.f32.mrb[0].mxu0
      %v754 = vadd.f32 0.0, %v753
      %v755 = vpop.f32.mrb[0].mxu0
      %756 = vmatprep.mubr.f32.mxu0 0.0
      %757 = vmatmul.mubr.f32.gmra.mrb[0].mxu0 %v386
      %v758 = vpop.f32.mrb[0].mxu0
      %v759 = vadd.f32 0.0, %v758
      %v760 = vpop.f32.mrb[0].mxu0
      %761 = vmatprep.mubr.f32.mxu0 0.0
      %762 = vmatmul.mubr.f32.gmra.mrb[0].mxu0 %v389
      %v763 = vpop.f32.mrb[0].mxu0
      %v764 = vadd.f32 0.0, %v763
      %v765 = vpop.f32.mrb[0].mxu0
      %766 = vmatprep.mubr.f32.mxu0 0.0
      %767 = vmatmul.mubr.f32.gmra.mrb[0].mxu0 %v392
      %v768 = vpop.f32.mrb[0].mxu0
      %v769 = vadd.f32 0.0, %v768
      %v770 = vpop.f32.mrb[0].mxu0
      %771 = vmatprep.mubr.f32.mxu0 0.0
      %772 = vmatmul.mubr.f32.gmra.mrb[0].mxu0 %v395
      %v773 = vpop.f32.mrb[0].mxu0
      %v774 = vadd.f32 0.0, %v773
      %v775 = vpop.f32.mrb[0].mxu0
      %776 = vmatprep.mubr.f32.mxu0 0.0
      %777 = vmatmul.mubr.f32.gmra.mrb[0].mxu0 %v398
      %v778 = vpop.f32.mrb[0].mxu0
      %v779 = vadd.f32 0.0, %v778
      %v780 = vpop.f32.mrb[0].mxu0
      %781 = vmatprep.mubr.f32.mxu0 0.0
      %782 = vmatmul.mubr.f32.gmra.mrb[0].mxu0 %v401
      %v783 = vpop.f32.mrb[0].mxu0
      %v784 = vadd.f32 0.0, %v783
      %v785 = vpop.f32.mrb[0].mxu0
      %786 = vmatprep.mubr.f32.mxu0 0.0
      %787 = vmatmul.mubr.f32.gmra.mrb[0].mxu0 %v404
      %v788 = vpop.f32.mrb[0].mxu0
      %v789 = vadd.f32 0.0, %v788
      %v790 = vpop.f32.mrb[0].mxu0
      %791 = vmatprep.mubr.f32.mxu0 0.0
      %792 = vmatmul.mubr.f32.gmra.mrb[0].mxu0 %v407
      %v793 = vpop.f32.mrb[0].mxu0
      %v794 = vadd.f32 0.0, %v793
      %v795 = vpop.f32.mrb[0].mxu0
      %796 = vmatprep.mubr.f32.mxu0 0.0
      %797 = vmatmul.mubr.f32.gmra.mrb[0].mxu0 %v410
      %v798 = vpop.f32.mrb[0].mxu0
      %v799 = vadd.f32 0.0, %v798
      %v800 = vpop.f32.mrb[0].mxu0
      %801 = vmatprep.mubr.f32.mxu0 0.0
      %802 = vmatmul.mubr.f32.gmra.mrb[0].mxu0 %v413
      %v803 = vpop.f32.mrb[0].mxu0
      %v804 = vadd.f32 0.0, %v803
      %v805 = vpop.f32.mrb[0].mxu0
      %806 = vmatprep.mubr.f32.mxu0 0.0
      %807 = vmatmul.mubr.f32.gmra.mrb[0].mxu0 %v416
      %v808 = vpop.f32.mrb[0].mxu0
      %v809 = vadd.f32 0.0, %v808
      %v810 = vpop.f32.mrb[0].mxu0
      %811 = vmatprep.mubr.f32.mxu0 0.0
      %812 = vmatmul.mubr.f32.gmra.mrb[0].mxu0 %v419
      %v813 = vpop.f32.mrb[0].mxu0
      %v814 = vadd.f32 0.0, %v813
      %v815 = vpop.f32.mrb[0].mxu0
      %816 = vmatprep.mubr.f32.mxu0 0.0
      %817 = vmatmul.mubr.f32.gmra.mrb[0].mxu0 %v422
      %v818 = vpop.f32.mrb[0].mxu0
      %v819 = vadd.f32 0.0, %v818
      %v820 = vpop.f32.mrb[0].mxu0
      %821 = vmatprep.mubr.f32.mxu0 0.0
      %822 = vmatmul.mubr.f32.gmra.mrb[0].mxu0 %v425
      %v823 = vpop.f32.mrb[0].mxu0
      %v824 = vadd.f32 0.0, %v823
      %v825 = vpop.f32.mrb[0].mxu0
      %826 = vmatprep.mubr.f32.mxu0 0.0
      %827 = vmatmul.mubr.f32.gmra.mrb[0].mxu0 %v428
      %v828 = vpop.f32.mrb[0].mxu0
      %v829 = vadd.f32 0.0, %v828
      %v830 = vpop.f32.mrb[0].mxu0
      %831 = vmatprep.mubr.f32.mxu0 0.0
      %832 = vmatmul.mubr.f32.gmra.mrb[0].mxu0 %v431
      %v833 = vpop.f32.mrb[0].mxu0
      %v834 = vadd.f32 0.0, %v833
      %v835 = vpop.f32.mrb[0].mxu0
      %836 = vmatprep.mubr.f32.mxu0 0.0
      %837 = vmatmul.mubr.f32.gmra.mrb[0].mxu0 %v434
      %v838 = vpop.f32.mrb[0].mxu0
      %v839 = vadd.f32 0.0, %v838
      %v840 = vpop.f32.mrb[0].mxu0
      %841 = vmatprep.mubr.f32.mxu0 0.0
      %842 = vmatmul.mubr.f32.gmra.mrb[0].mxu0 %v437
      %v843 = vpop.f32.mrb[0].mxu0
      %v844 = vadd.f32 0.0, %v843
      %v845 = vpop.f32.mrb[0].mxu0
      %846 = vmatprep.mubr.f32.mxu0 0.0
      %847 = vmatmul.mubr.f32.gmra.mrb[0].mxu0 %v440
      %v848 = vpop.f32.mrb[0].mxu0
      %v849 = vadd.f32 0.0, %v848
      %v850 = vpop.f32.mrb[0].mxu0
      %851 = vmatprep.mubr.f32.mxu0 0.0
      %852 = vmatmul.mubr.f32.gmra.mrb[0].mxu0 %v443
      %v853 = vpop.f32.mrb[0].mxu0
      %v854 = vadd.f32 0.0, %v853
      %v855 = vpop.f32.mrb[0].mxu0
      %856 = vmatprep.mubr.f32.mxu0 0.0
      %857 = vmatmul.mubr.f32.gmra.mrb[0].mxu0 %v446
      %v858 = vpop.f32.mrb[0].mxu0
      %v859 = vadd.f32 0.0, %v858
      %v860 = vpop.f32.mrb[0].mxu0
      %861 = vmatprep.mubr.f32.mxu0 0.0
      %862 = vmatmul.mubr.f32.gmra.mrb[0].mxu0 %v449
      %v863 = vpop.f32.mrb[0].mxu0
      %v864 = vadd.f32 0.0, %v863
      %v865 = vpop.f32.mrb[0].mxu0
      %866 = vmatprep.mubr.f32.mxu0 0.0
      %867 = vmatmul.mubr.f32.gmra.mrb[0].mxu0 %v452
      %v868 = vpop.f32.mrb[0].mxu0
      %v869 = vadd.f32 0.0, %v868
      %v870 = vpop.f32.mrb[0].mxu0
      %871 = vmatprep.mubr.f32.mxu0 0.0
      %872 = vmatmul.mubr.f32.gmra.mrb[0].mxu0 %v455
      %v873 = vpop.f32.mrb[0].mxu0
      %v874 = vadd.f32 0.0, %v873
      %v875 = vpop.f32.mrb[0].mxu0
      %876 = vmatprep.mubr.f32.mxu0 0.0
      %877 = vmatmul.mubr.f32.gmra.mrb[0].mxu0 %v458
      %v878 = vpop.f32.mrb[0].mxu0
      %v879 = vadd.f32 0.0, %v878
      %v880 = vpop.f32.mrb[0].mxu0
      %881 = vmatprep.mubr.f32.mxu0 0.0
      %882 = vmatmul.mubr.f32.gmra.mrb[0].mxu0 %v461
      %v883 = vpop.f32.mrb[0].mxu0
      %v884 = vadd.f32 0.0, %v883
      %v885 = vpop.f32.mrb[0].mxu0
      %886 = vmatprep.mubr.f32.mxu0 0.0
      %887 = vmatmul.mubr.f32.gmra.mrb[0].mxu0 %v464
      %v888 = vpop.f32.mrb[0].mxu0
      %v889 = vadd.f32 0.0, %v888
      %v890 = vpop.f32.mrb[0].mxu0
      %891 = vmatprep.mubr.f32.mxu0 0.0
      %892 = vmatmul.mubr.f32.gmra.mrb[0].mxu0 %v467
      %v893 = vpop.f32.mrb[0].mxu0
      %v894 = vadd.f32 0.0, %v893
      %v895 = vpop.f32.mrb[0].mxu0
      %896 = vmatprep.mubr.f32.mxu0 0.0
      %897 = vmatmul.mubr.f32.gmra.mrb[0].mxu0 %v470
      %v898 = vpop.f32.mrb[0].mxu0
      %v899 = vadd.f32 0.0, %v898
      %v900 = vpop.f32.mrb[0].mxu0
      %901 = vmatprep.mubr.f32.mxu0 0.0
      %902 = vmatmul.mubr.f32.gmra.mrb[0].mxu0 %v473
      %v903 = vpop.f32.mrb[0].mxu0
      %v904 = vadd.f32 0.0, %v903
      %v905 = vpop.f32.mrb[0].mxu0
      %906 = vmatprep.mubr.f32.mxu0 0.0
      %907 = vmatmul.mubr.f32.gmra.mrb[0].mxu0 %v476
      %v908 = vpop.f32.mrb[0].mxu0
      %v909 = vadd.f32 0.0, %v908
      %v910 = vpop.f32.mrb[0].mxu0
      %911 = vmatprep.mubr.f32.mxu0 0.0
      %912 = vmatmul.mubr.f32.gmra.mrb[0].mxu0 %v479
      %v913 = vpop.f32.mrb[0].mxu0
      %v914 = vadd.f32 0.0, %v913
      %v915 = vpop.f32.mrb[0].mxu0
      %916 = vmatprep.mubr.f32.mxu0 0.0
      %917 = vmatmul.mubr.f32.gmra.mrb[0].mxu0 %v482
      %v918 = vpop.f32.mrb[0].mxu0
      %v919 = vadd.f32 0.0, %v918
      %v920 = vpop.f32.mrb[0].mxu0
      %921 = vmatprep.mubr.f32.mxu0 0.0
      %922 = vmatmul.mubr.f32.gmra.mrb[0].mxu0 %v485
      %v923 = vpop.f32.mrb[0].mxu0
      %v924 = vadd.f32 0.0, %v923
      %v925 = vpop.f32.mrb[0].mxu0
      %926 = vmatprep.mubr.f32.mxu0 0.0
      %927 = vmatmul.mubr.f32.gmra.mrb[0].mxu0 %v488
      %v928 = vpop.f32.mrb[0].mxu0
      %v929 = vadd.f32 0.0, %v928
      %v930 = vpop.f32.mrb[0].mxu0
      %931 = vmatprep.mubr.f32.mxu0 0.0
      %932 = vmatmul.mubr.f32.gmra.mrb[0].mxu0 %v491
      %v933 = vpop.f32.mrb[0].mxu0
      %v934 = vadd.f32 0.0, %v933
      %v935 = vpop.f32.mrb[0].mxu0
      %936 = vmatprep.mubr.f32.mxu0 0.0
      %937 = vmatmul.mubr.f32.gmra.mrb[0].mxu0 %v494
      %v938 = vpop.f32.mrb[0].mxu0
      %v939 = vadd.f32 0.0, %v938
      %v940 = vpop.f32.mrb[0].mxu0
      %941 = vmatprep.mubr.f32.mxu0 0.0
      %942 = vmatmul.mubr.f32.gmra.mrb[0].mxu0 %v497
      %v943 = vpop.f32.mrb[0].mxu0
      %v944 = vadd.f32 0.0, %v943
      %v945 = vpop.f32.mrb[0].mxu0
      %946 = vmatprep.mubr.f32.mxu0 0.0
      %947 = vmatmul.mubr.f32.gmra.mrb[0].mxu0 %v500
      %v948 = vpop.f32.mrb[0].mxu0
      %v949 = vadd.f32 0.0, %v948
      %v950 = vpop.f32.mrb[0].mxu0
      %951 = vmatprep.mubr.f32.mxu0 0.0
      %952 = vmatmul.mubr.f32.gmra.mrb[0].mxu0 %v503
      %v953 = vpop.f32.mrb[0].mxu0
      %v954 = vadd.f32 0.0, %v953
      %v955 = vpop.f32.mrb[0].mxu0
      %956 = vmatprep.mubr.f32.mxu0 0.0
      %957 = vmatmul.mubr.f32.gmra.mrb[0].mxu0 %v506
      %v958 = vpop.f32.mrb[0].mxu0
      %v959 = vadd.f32 0.0, %v958
      %v960 = vpop.f32.mrb[0].mxu0
      %961 = vmatprep.mubr.f32.mxu0 0.0
      %962 = vmatmul.mubr.f32.gmra.mrb[0].mxu0 %v509
      %v963 = vpop.f32.mrb[0].mxu0
      %v964 = vadd.f32 0.0, %v963
      %v965 = vpop.f32.mrb[0].mxu0
      %966 = vmatprep.mubr.f32.mxu0 0.0
      %967 = vmatmul.mubr.f32.gmra.mrb[0].mxu0 %v512
      %v968 = vpop.f32.mrb[0].mxu0
      %v969 = vadd.f32 0.0, %v968
      %v970 = vpop.f32.mrb[0].mxu0
      %971 = vmatprep.mubr.f32.mxu0 0.0
      %972 = vmatmul.mubr.f32.gmra.mrb[0].mxu0 %v515
      %v973 = vpop.f32.mrb[0].mxu0
      %v974 = vadd.f32 0.0, %v973
      %v975 = vpop.f32.mrb[0].mxu0
      %976 = vmatprep.mubr.f32.mxu0 0.0
      %977 = vmatmul.mubr.f32.gmra.mrb[0].mxu0 %v518
      %v978 = vpop.f32.mrb[0].mxu0
      %v979 = vadd.f32 0.0, %v978
      %v980 = vpop.f32.mrb[0].mxu0
      %981 = vmatprep.mubr.f32.mxu0 0.0
      %982 = vmatmul.mubr.f32.gmra.mrb[0].mxu0 %v521
      %v983 = vpop.f32.mrb[0].mxu0
      %v984 = vadd.f32 0.0, %v983
      %v985 = vpop.f32.mrb[0].mxu0
      %986 = vmatprep.mubr.f32.mxu0 0.0
      %987 = vmatmul.mubr.f32.gmra.mrb[0].mxu0 %v524
      %v988 = vpop.f32.mrb[0].mxu0
      %v989 = vadd.f32 0.0, %v988
      %v990 = vpop.f32.mrb[0].mxu0
      %991 = vmatprep.mubr.f32.mxu0 0.0
      %992 = vmatmul.mubr.f32.gmra.mrb[0].mxu0 %v527
      %v993 = vpop.f32.mrb[0].mxu0
      %v994 = vadd.f32 0.0, %v993
      %v995 = vpop.f32.mrb[0].mxu0
      %996 = vmatprep.mubr.f32.mxu0 0.0
      %997 = vmatmul.mubr.f32.gmra.mrb[0].mxu0 %v530
      %v998 = vpop.f32.mrb[0].mxu0
      %v999 = vadd.f32 0.0, %v998
      %v1000 = vpop.f32.mrb[0].mxu0
      %1001 = vmatprep.mubr.f32.mxu0 0.0
      %1002 = vmatmul.mubr.f32.gmra.mrb[0].mxu0 %v533
      %v1003 = vpop.f32.mrb[0].mxu0
      %v1004 = vadd.f32 0.0, %v1003
      %v1005 = vpop.f32.mrb[0].mxu0
      %1006 = vmatprep.mubr.f32.mxu0 0.0
      %1007 = vmatmul.mubr.f32.gmra.mrb[0].mxu0 %v536
      %v1008 = vpop.f32.mrb[0].mxu0
      %v1009 = vadd.f32 0.0, %v1008
      %v1010 = vpop.f32.mrb[0].mxu0
      %1011 = vmatprep.mubr.f32.mxu0 0.0
      %1012 = vmatmul.mubr.f32.gmra.mrb[0].mxu0 %v539
      %v1013 = vpop.f32.mrb[0].mxu0
      %v1014 = vadd.f32 0.0, %v1013
      %v1015 = vpop.f32.mrb[0].mxu0
      %1016 = vmatprep.mubr.f32.mxu0 0.0
      %1017 = vmatmul.mubr.f32.gmra.mrb[0].mxu0 %v542
      %v1018 = vpop.f32.mrb[0].mxu0
      %v1019 = vadd.f32 0.0, %v1018
      %v1020 = vpop.f32.mrb[0].mxu0
      %1021 = vmatprep.mubr.f32.mxu0 0.0
      %1022 = vmatmul.mubr.f32.gmra.mrb[0].mxu0 %v545
      %v1023 = vpop.f32.mrb[0].mxu0
      %v1024 = vadd.f32 0.0, %v1023
      %v1025 = vpop.f32.mrb[0].mxu0
      %1026 = vmatprep.mubr.f32.mxu0 0.0
      %1027 = vmatmul.mubr.f32.gmra.mrb[0].mxu0 %v548
      %v1028 = vpop.f32.mrb[0].mxu0
      %v1029 = vadd.f32 0.0, %v1028
      %v1030 = vpop.f32.mrb[0].mxu0
      %1031 = vmatprep.mubr.f32.mxu0 0.0
      %1032 = vmatmul.mubr.f32.gmra.mrb[0].mxu0 %v551
      %v1033 = vpop.f32.mrb[0].mxu0
      %v1034 = vadd.f32 0.0, %v1033
      %v1035 = vpop.f32.mrb[0].mxu0
      %1036 = vmatprep.mubr.f32.mxu0 0.0
      %1037 = vmatmul.mubr.f32.gmra.mrb[0].mxu0 %v554
      %v1038 = vpop.f32.mrb[0].mxu0
      %v1039 = vadd.f32 0.0, %v1038
      %v1040 = vpop.f32.mrb[0].mxu0
      %1041 = vmatprep.mubr.f32.mxu0 0.0
      %1042 = vmatmul.mubr.f32.gmra.mrb[0].mxu0 %v557
      %v1043 = vpop.f32.mrb[0].mxu0
      %v1044 = vadd.f32 0.0, %v1043
      %v1045 = vpop.f32.mrb[0].mxu0
      %1046 = vmatprep.mubr.f32.mxu0 0.0
      %1047 = vmatmul.mubr.f32.gmra.mrb[0].mxu0 %v560
      %v1048 = vpop.f32.mrb[0].mxu0
      %v1049 = vadd.f32 0.0, %v1048
      %v1050 = vpop.f32.mrb[0].mxu0
      %1051 = vmatprep.mubr.f32.mxu0 0.0
      %1052 = vmatmul.mubr.f32.gmra.mrb[0].mxu0 %v563
      %v1053 = vpop.f32.mrb[0].mxu0
      %v1054 = vadd.f32 0.0, %v1053
      %v1055 = vpop.f32.mrb[0].mxu0
      %1056 = vmatprep.mubr.f32.mxu0 0.0
      %1057 = vmatmul.mubr.f32.gmra.mrb[0].mxu0 %v566
      %v1058 = vpop.f32.mrb[0].mxu0
      %v1059 = vadd.f32 0.0, %v1058
      %v1060 = vpop.f32.mrb[0].mxu0
      %1061 = vmatprep.mubr.f32.mxu0 0.0
      %1062 = vmatmul.mubr.f32.gmra.mrb[0].mxu0 %v569
      %v1063 = vpop.f32.mrb[0].mxu0
      %v1064 = vadd.f32 0.0, %v1063
      %v1065 = vpop.f32.mrb[0].mxu0
      %1066 = vmatprep.mubr.f32.mxu0 0.0
      %1067 = vmatmul.mubr.f32.gmra.mrb[0].mxu0 %v572
      %v1068 = vpop.f32.mrb[0].mxu0
      %v1069 = vadd.f32 0.0, %v1068
      %v1070 = vpop.f32.mrb[0].mxu0
      %1071 = vmatprep.mubr.f32.mxu0 0.0
      %1072 = vmatmul.mubr.f32.gmra.mrb[0].mxu0 %v575
      %v1073 = vpop.f32.mrb[0].mxu0
      %v1074 = vadd.f32 0.0, %v1073
      %v1075 = vpop.f32.mrb[0].mxu0
      %1076 = vmatprep.mubr.f32.mxu0 0.0
      %1077 = vmatmul.mubr.f32.gmra.mrb[0].mxu0 %v578
      %v1078 = vpop.f32.mrb[0].mxu0
      %v1079 = vadd.f32 0.0, %v1078
      %v1080 = vpop.f32.mrb[0].mxu0
      %1081 = vmatprep.mubr.f32.mxu0 0.0
      %1082 = vmatmul.mubr.f32.gmra.mrb[0].mxu0 %v581
      %v1083 = vpop.f32.mrb[0].mxu0
      %v1084 = vadd.f32 0.0, %v1083
      %v1085 = vpop.f32.mrb[0].mxu0
      %1086 = vmatprep.mubr.f32.mxu0 0.0
      %1087 = vmatmul.mubr.f32.gmra.mrb[0].mxu0 %v584
      %v1088 = vpop.f32.mrb[0].mxu0
      %v1089 = vadd.f32 0.0, %v1088
      %v1090 = vpop.f32.mrb[0].mxu0
      %1091 = vmatprep.mubr.f32.mxu0 0.0
      %1092 = vmatmul.mubr.f32.gmra.mrb[0].mxu0 %v587
      %v1093 = vpop.f32.mrb[0].mxu0
      %v1094 = vadd.f32 0.0, %v1093
      %v1095 = vpop.f32.mrb[0].mxu0
      %1096 = vmatprep.mubr.f32.mxu0 0.0
      %1097 = vmatmul.mubr.f32.gmra.mrb[0].mxu0 %v590
      %v1098 = vpop.f32.mrb[0].mxu0
      %v1099 = vadd.f32 0.0, %v1098
      %v1100 = vpop.f32.mrb[0].mxu0
      %1101 = vmatprep.mubr.f32.mxu0 0.0
      %1102 = vmatmul.mubr.f32.gmra.mrb[0].mxu0 %v593
      %v1103 = vpop.f32.mrb[0].mxu0
      %v1104 = vadd.f32 0.0, %v1103
      %v1105 = vpop.f32.mrb[0].mxu0
      %1106 = vmatprep.mubr.f32.mxu0 0.0
      %1107 = vmatmul.mubr.f32.gmra.mrb[0].mxu0 %v596
      %v1108 = vpop.f32.mrb[0].mxu0
      %v1109 = vadd.f32 0.0, %v1108
      %v1110 = vpop.f32.mrb[0].mxu0
      %1111 = vmatprep.mubr.f32.mxu0 0.0
      %1112 = vmatmul.mubr.f32.gmra.mrb[0].mxu0 %v599
      %v1113 = vpop.f32.mrb[0].mxu0
      %v1114 = vadd.f32 0.0, %v1113
      %v1115 = vpop.f32.mrb[0].mxu0
      %1116 = vmatprep.mubr.f32.mxu0 0.0
      %1117 = vmatmul.mubr.f32.gmra.mrb[0].mxu0 %v602
      %v1118 = vpop.f32.mrb[0].mxu0
      %v1119 = vadd.f32 0.0, %v1118
      %v1120 = vpop.f32.mrb[0].mxu0
      %1121 = vmatprep.mubr.f32.mxu0 0.0
      %1122 = vmatmul.mubr.f32.gmra.mrb[0].mxu0 %v605
      %v1123 = vpop.f32.mrb[0].mxu0
      %v1124 = vadd.f32 0.0, %v1123
      %v1125 = vpop.f32.mrb[0].mxu0
      %1126 = vdwg.mxu0
      %v1128 = vsel %vm333, %v147, 0
      %v1131 = vsel %vm333, %v148, 0
      %v1134 = vsel %vm333, %v149, 0
      %v1137 = vsel %vm333, %v150, 0
      %v1140 = vsel %vm333, %v151, 0
      %v1143 = vsel %vm333, %v152, 0
      %v1146 = vsel %vm333, %v153, 0
      %v1149 = vsel %vm333, %v154, 0
      %v1152 = vsel %vm333, %v155, 0
      %v1155 = vsel %vm333, %v156, 0
      %v1158 = vsel %vm333, %v157, 0
      %v1161 = vsel %vm333, %v158, 0
      %v1164 = vsel %vm333, %v159, 0
      %v1167 = vsel %vm333, %v160, 0
      %v1170 = vsel %vm333, %v161, 0
      %v1173 = vsel %vm333, %v162, 0
      %v1176 = vsel %vm333, %v163, 0
      %v1179 = vsel %vm333, %v164, 0
      %v1182 = vsel %vm333, %v165, 0
      %v1185 = vsel %vm333, %v166, 0
      %v1188 = vsel %vm333, %v167, 0
      %v1191 = vsel %vm333, %v168, 0
      %v1194 = vsel %vm333, %v169, 0
      %v1197 = vsel %vm333, %v170, 0
      %v1200 = vsel %vm333, %v171, 0
      %v1203 = vsel %vm333, %v172, 0
      %v1206 = vsel %vm333, %v173, 0
      %v1209 = vsel %vm333, %v174, 0
      %v1212 = vsel %vm333, %v175, 0
      %v1215 = vsel %vm333, %v176, 0
      %v1218 = vsel %vm333, %v177, 0
      %v1221 = vsel %vm333, %v178, 0
      %v1224 = vsel %vm333, %v179, 0
      %v1227 = vsel %vm333, %v180, 0
      %v1230 = vsel %vm333, %v181, 0
      %v1233 = vsel %vm333, %v182, 0
      %v1236 = vsel %vm333, %v183, 0
      %v1239 = vsel %vm333, %v184, 0
      %v1242 = vsel %vm333, %v185, 0
      %v1245 = vsel %vm333, %v186, 0
      %v1248 = vsel %vm333, %v187, 0
      %v1251 = vsel %vm333, %v188, 0
      %v1254 = vsel %vm333, %v189, 0
      %v1257 = vsel %vm333, %v190, 0
      %v1260 = vsel %vm333, %v191, 0
      %v1263 = vsel %vm333, %v192, 0
      %v1266 = vsel %vm333, %v193, 0
      %v1269 = vsel %vm333, %v194, 0
      %v1272 = vsel %vm333, %v195, 0
      %v1275 = vsel %vm333, %v196, 0
      %v1278 = vsel %vm333, %v197, 0
      %v1281 = vsel %vm333, %v198, 0
      %v1284 = vsel %vm333, %v199, 0
      %v1287 = vsel %vm333, %v200, 0
      %v1290 = vsel %vm333, %v201, 0
      %v1293 = vsel %vm333, %v202, 0
      %v1296 = vsel %vm333, %v203, 0
      %v1299 = vsel %vm333, %v204, 0
      %v1302 = vsel %vm333, %v205, 0
      %v1305 = vsel %vm333, %v206, 0
      %v1308 = vsel %vm333, %v207, 0
      %v1311 = vsel %vm333, %v208, 0
      %v1314 = vsel %vm333, %v209, 0
      %v1317 = vsel %vm333, %v210, 0
      %v1320 = vsel %vm333, %v211, 0
      %v1323 = vsel %vm333, %v212, 0
      %v1326 = vsel %vm333, %v213, 0
      %v1329 = vsel %vm333, %v214, 0
      %v1332 = vsel %vm333, %v215, 0
      %v1335 = vsel %vm333, %v216, 0
      %v1338 = vsel %vm333, %v217, 0
      %v1341 = vsel %vm333, %v218, 0
      %v1344 = vsel %vm333, %v219, 0
      %v1347 = vsel %vm333, %v220, 0
      %v1350 = vsel %vm333, %v221, 0
      %v1353 = vsel %vm333, %v222, 0
      %v1356 = vsel %vm333, %v223, 0
      %v1359 = vsel %vm333, %v224, 0
      %v1362 = vsel %vm333, %v225, 0
      %v1365 = vsel %vm333, %v226, 0
      %v1368 = vsel %vm333, %v227, 0
      %v1371 = vsel %vm333, %v228, 0
      %v1374 = vsel %vm333, %v229, 0
      %v1377 = vsel %vm333, %v230, 0
      %v1380 = vsel %vm333, %v231, 0
      %v1383 = vsel %vm333, %v232, 0
      %v1386 = vsel %vm333, %v233, 0
      %v1389 = vsel %vm333, %v234, 0
      %v1392 = vsel %vm333, %v235, 0
      %v1395 = vsel %vm333, %v236, 0
      %v1398 = vsel %vm333, %v237, 0
      %1400 = vmatprep.subr.mxu0 0.0
      %1401 = vmatpush1.msra.mxu0 %v238
      %1402 = vmatprep.subr.mxu0 0.0
      %1403 = vmatpush1.msra.mxu0 %v239
      %1404 = vmatprep.subr.mxu0 0.0
      %1405 = vmatpush1.msra.mxu0 0.0
      %1406 = vmatprep.subr.mxu0 0.0
      %1407 = vmatpush1.msra.mxu0 0.0
      %1408 = vmatprep.subr.mxu0 0.0
      %1409 = vmatpush1.msra.mxu0 0.0
      %1410 = vmatprep.subr.mxu0 0.0
      %1411 = vmatpush1.msra.mxu0 0.0
      %1412 = vmatprep.subr.mxu0 0.0
      %1413 = vmatpush1.msra.mxu0 0.0
      %1414 = vmatprep.subr.mxu0 0.0
      %1415 = vmatpush1.msra.mxu0 0.0
      %1416 = vmatprep.subr.mxu0 0.0
      %1417 = vmatpush1.msra.mxu0 0.0
      %1418 = vmatprep.subr.mxu0 0.0
      %1419 = vmatpush1.msra.mxu0 0.0
      %1420 = vmatprep.subr.mxu0 0.0
      %1421 = vmatpush1.msra.mxu0 0.0
      %1422 = vmatprep.subr.mxu0 0.0
      %1423 = vmatpush1.msra.mxu0 0.0
      %1424 = vmatprep.subr.mxu0 0.0
      %1425 = vmatpush1.msra.mxu0 0.0
      %1426 = vmatprep.subr.mxu0 0.0
      %1427 = vmatpush1.msra.mxu0 0.0
      %1428 = vmatprep.subr.mxu0 0.0
      %1429 = vmatpush1.msra.mxu0 0.0
      %1430 = vmatprep.subr.mxu0 0.0
      %1431 = vmatpush1.msra.mxu0 0.0
      %1432 = vmatprep.subr.mxu0 0.0
      %1433 = vmatpush1.msra.mxu0 0.0
      %1434 = vmatprep.subr.mxu0 0.0
      %1435 = vmatpush1.msra.mxu0 0.0
      %1436 = vmatprep.subr.mxu0 0.0
      %1437 = vmatpush1.msra.mxu0 0.0
      %1438 = vmatprep.subr.mxu0 0.0
      %1439 = vmatpush1.msra.mxu0 0.0
      %1440 = vmatprep.subr.mxu0 0.0
      %1441 = vmatpush1.msra.mxu0 0.0
      %1442 = vmatprep.subr.mxu0 0.0
      %1443 = vmatpush1.msra.mxu0 0.0
      %1444 = vmatprep.subr.mxu0 0.0
      %1445 = vmatpush1.msra.mxu0 0.0
      %1446 = vmatprep.subr.mxu0 0.0
      %1447 = vmatpush1.msra.mxu0 0.0
      %1448 = vmatprep.subr.mxu0 0.0
      %1449 = vmatpush1.msra.mxu0 0.0
      %1450 = vmatprep.subr.mxu0 0.0
      %1451 = vmatpush1.msra.mxu0 0.0
      %1452 = vmatprep.subr.mxu0 0.0
      %1453 = vmatpush1.msra.mxu0 0.0
      %1454 = vmatprep.subr.mxu0 0.0
      %1455 = vmatpush1.msra.mxu0 0.0
      %1456 = vmatprep.subr.mxu0 0.0
      %1457 = vmatpush1.msra.mxu0 0.0
      %1458 = vmatprep.subr.mxu0 0.0
      %1459 = vmatpush1.msra.mxu0 0.0
      %1460 = vmatprep.subr.mxu0 0.0
      %1461 = vmatpush1.msra.mxu0 0.0
      %1462 = vmatprep.subr.mxu0 0.0
      %1463 = vmatpush1.msra.mxu0 0.0
      %1464 = vmatprep.mubr.f32.mxu0 0.0
      %1465 = vmatmul.mubr.f32.gmra.mrb[0].mxu0 %v1128
      %v1466 = vpop.f32.mrb[0].mxu0
      %v1467 = vadd.f32 %v674, %v1466
      %v1468 = vpop.f32.mrb[0].mxu0
      %1469 = vmatprep.mubr.f32.mxu0 0.0
      %1470 = vmatmul.mubr.f32.gmra.mrb[0].mxu0 %v1131
      %v1471 = vpop.f32.mrb[0].mxu0
      %v1472 = vadd.f32 %v679, %v1471
      %v1473 = vpop.f32.mrb[0].mxu0
      %1474 = vmatprep.mubr.f32.mxu0 0.0
      %1475 = vmatmul.mubr.f32.gmra.mrb[0].mxu0 %v1134
      %v1476 = vpop.f32.mrb[0].mxu0
      %v1477 = vadd.f32 %v684, %v1476
      %v1478 = vpop.f32.mrb[0].mxu0
      %1479 = vmatprep.mubr.f32.mxu0 0.0
      %1480 = vmatmul.mubr.f32.gmra.mrb[0].mxu0 %v1137
      %v1481 = vpop.f32.mrb[0].mxu0
      %v1482 = vadd.f32 %v689, %v1481
      %v1483 = vpop.f32.mrb[0].mxu0
      %1484 = vmatprep.mubr.f32.mxu0 0.0
      %1485 = vmatmul.mubr.f32.gmra.mrb[0].mxu0 %v1140
      %v1486 = vpop.f32.mrb[0].mxu0
      %v1487 = vadd.f32 %v694, %v1486
      %v1488 = vpop.f32.mrb[0].mxu0
      %1489 = vmatprep.mubr.f32.mxu0 0.0
      %1490 = vmatmul.mubr.f32.gmra.mrb[0].mxu0 %v1143
      %v1491 = vpop.f32.mrb[0].mxu0
      %v1492 = vadd.f32 %v699, %v1491
      %v1493 = vpop.f32.mrb[0].mxu0
      %1494 = vmatprep.mubr.f32.mxu0 0.0
      %1495 = vmatmul.mubr.f32.gmra.mrb[0].mxu0 %v1146
      %v1496 = vpop.f32.mrb[0].mxu0
      %v1497 = vadd.f32 %v704, %v1496
      %v1498 = vpop.f32.mrb[0].mxu0
      %1499 = vmatprep.mubr.f32.mxu0 0.0
      %1500 = vmatmul.mubr.f32.gmra.mrb[0].mxu0 %v1149
      %v1501 = vpop.f32.mrb[0].mxu0
      %v1502 = vadd.f32 %v709, %v1501
      %v1503 = vpop.f32.mrb[0].mxu0
      %1504 = vmatprep.mubr.f32.mxu0 0.0
      %1505 = vmatmul.mubr.f32.gmra.mrb[0].mxu0 %v1152
      %v1506 = vpop.f32.mrb[0].mxu0
      %v1507 = vadd.f32 %v714, %v1506
      %v1508 = vpop.f32.mrb[0].mxu0
      %1509 = vmatprep.mubr.f32.mxu0 0.0
      %1510 = vmatmul.mubr.f32.gmra.mrb[0].mxu0 %v1155
      %v1511 = vpop.f32.mrb[0].mxu0
      %v1512 = vadd.f32 %v719, %v1511
      %v1513 = vpop.f32.mrb[0].mxu0
      %1514 = vmatprep.mubr.f32.mxu0 0.0
      %1515 = vmatmul.mubr.f32.gmra.mrb[0].mxu0 %v1158
      %v1516 = vpop.f32.mrb[0].mxu0
      %v1517 = vadd.f32 %v724, %v1516
      %v1518 = vpop.f32.mrb[0].mxu0
      %1519 = vmatprep.mubr.f32.mxu0 0.0
      %1520 = vmatmul.mubr.f32.gmra.mrb[0].mxu0 %v1161
      %v1521 = vpop.f32.mrb[0].mxu0
      %v1522 = vadd.f32 %v729, %v1521
      %v1523 = vpop.f32.mrb[0].mxu0
      %1524 = vmatprep.mubr.f32.mxu0 0.0
      %1525 = vmatmul.mubr.f32.gmra.mrb[0].mxu0 %v1164
      %v1526 = vpop.f32.mrb[0].mxu0
      %v1527 = vadd.f32 %v734, %v1526
      %v1528 = vpop.f32.mrb[0].mxu0
      %1529 = vmatprep.mubr.f32.mxu0 0.0
      %1530 = vmatmul.mubr.f32.gmra.mrb[0].mxu0 %v1167
      %v1531 = vpop.f32.mrb[0].mxu0
      %v1532 = vadd.f32 %v739, %v1531
      %v1533 = vpop.f32.mrb[0].mxu0
      %1534 = vmatprep.mubr.f32.mxu0 0.0
      %1535 = vmatmul.mubr.f32.gmra.mrb[0].mxu0 %v1170
      %v1536 = vpop.f32.mrb[0].mxu0
      %v1537 = vadd.f32 %v744, %v1536
      %v1538 = vpop.f32.mrb[0].mxu0
      %1539 = vmatprep.mubr.f32.mxu0 0.0
      %1540 = vmatmul.mubr.f32.gmra.mrb[0].mxu0 %v1173
      %v1541 = vpop.f32.mrb[0].mxu0
      %v1542 = vadd.f32 %v749, %v1541
      %v1543 = vpop.f32.mrb[0].mxu0
      %1544 = vmatprep.mubr.f32.mxu0 0.0
      %1545 = vmatmul.mubr.f32.gmra.mrb[0].mxu0 %v1176
      %v1546 = vpop.f32.mrb[0].mxu0
      %v1547 = vadd.f32 %v754, %v1546
      %v1548 = vpop.f32.mrb[0].mxu0
      %1549 = vmatprep.mubr.f32.mxu0 0.0
      %1550 = vmatmul.mubr.f32.gmra.mrb[0].mxu0 %v1179
      %v1551 = vpop.f32.mrb[0].mxu0
      %v1552 = vadd.f32 %v759, %v1551
      %v1553 = vpop.f32.mrb[0].mxu0
      %1554 = vmatprep.mubr.f32.mxu0 0.0
      %1555 = vmatmul.mubr.f32.gmra.mrb[0].mxu0 %v1182
      %v1556 = vpop.f32.mrb[0].mxu0
      %v1557 = vadd.f32 %v764, %v1556
      %v1558 = vpop.f32.mrb[0].mxu0
      %1559 = vmatprep.mubr.f32.mxu0 0.0
      %1560 = vmatmul.mubr.f32.gmra.mrb[0].mxu0 %v1185
      %v1561 = vpop.f32.mrb[0].mxu0
      %v1562 = vadd.f32 %v769, %v1561
      %v1563 = vpop.f32.mrb[0].mxu0
      %1564 = vmatprep.mubr.f32.mxu0 0.0
      %1565 = vmatmul.mubr.f32.gmra.mrb[0].mxu0 %v1188
      %v1566 = vpop.f32.mrb[0].mxu0
      %v1567 = vadd.f32 %v774, %v1566
      %v1568 = vpop.f32.mrb[0].mxu0
      %1569 = vmatprep.mubr.f32.mxu0 0.0
      %1570 = vmatmul.mubr.f32.gmra.mrb[0].mxu0 %v1191
      %v1571 = vpop.f32.mrb[0].mxu0
      %v1572 = vadd.f32 %v779, %v1571
      %v1573 = vpop.f32.mrb[0].mxu0
      %1574 = vmatprep.mubr.f32.mxu0 0.0
      %1575 = vmatmul.mubr.f32.gmra.mrb[0].mxu0 %v1194
      %v1576 = vpop.f32.mrb[0].mxu0
      %v1577 = vadd.f32 %v784, %v1576
      %v1578 = vpop.f32.mrb[0].mxu0
      %1579 = vmatprep.mubr.f32.mxu0 0.0
      %1580 = vmatmul.mubr.f32.gmra.mrb[0].mxu0 %v1197
      %v1581 = vpop.f32.mrb[0].mxu0
      %v1582 = vadd.f32 %v789, %v1581
      %v1583 = vpop.f32.mrb[0].mxu0
      %1584 = vmatprep.mubr.f32.mxu0 0.0
      %1585 = vmatmul.mubr.f32.gmra.mrb[0].mxu0 %v1200
      %v1586 = vpop.f32.mrb[0].mxu0
      %v1587 = vadd.f32 %v794, %v1586
      %v1588 = vpop.f32.mrb[0].mxu0
      %1589 = vmatprep.mubr.f32.mxu0 0.0
      %1590 = vmatmul.mubr.f32.gmra.mrb[0].mxu0 %v1203
      %v1591 = vpop.f32.mrb[0].mxu0
      %v1592 = vadd.f32 %v799, %v1591
      %v1593 = vpop.f32.mrb[0].mxu0
      %1594 = vmatprep.mubr.f32.mxu0 0.0
      %1595 = vmatmul.mubr.f32.gmra.mrb[0].mxu0 %v1206
      %v1596 = vpop.f32.mrb[0].mxu0
      %v1597 = vadd.f32 %v804, %v1596
      %v1598 = vpop.f32.mrb[0].mxu0
      %1599 = vmatprep.mubr.f32.mxu0 0.0
      %1600 = vmatmul.mubr.f32.gmra.mrb[0].mxu0 %v1209
      %v1601 = vpop.f32.mrb[0].mxu0
      %v1602 = vadd.f32 %v809, %v1601
      %v1603 = vpop.f32.mrb[0].mxu0
      %1604 = vmatprep.mubr.f32.mxu0 0.0
      %1605 = vmatmul.mubr.f32.gmra.mrb[0].mxu0 %v1212
      %v1606 = vpop.f32.mrb[0].mxu0
      %v1607 = vadd.f32 %v814, %v1606
      %v1608 = vpop.f32.mrb[0].mxu0
      %1609 = vmatprep.mubr.f32.mxu0 0.0
      %1610 = vmatmul.mubr.f32.gmra.mrb[0].mxu0 %v1215
      %v1611 = vpop.f32.mrb[0].mxu0
      %v1612 = vadd.f32 %v819, %v1611
      %v1613 = vpop.f32.mrb[0].mxu0
      %1614 = vmatprep.mubr.f32.mxu0 0.0
      %1615 = vmatmul.mubr.f32.gmra.mrb[0].mxu0 %v1218
      %v1616 = vpop.f32.mrb[0].mxu0
      %v1617 = vadd.f32 %v824, %v1616
      %v1618 = vpop.f32.mrb[0].mxu0
      %1619 = vmatprep.mubr.f32.mxu0 0.0
      %1620 = vmatmul.mubr.f32.gmra.mrb[0].mxu0 %v1221
      %v1621 = vpop.f32.mrb[0].mxu0
      %v1622 = vadd.f32 %v829, %v1621
      %v1623 = vpop.f32.mrb[0].mxu0
      %1624 = vmatprep.mubr.f32.mxu0 0.0
      %1625 = vmatmul.mubr.f32.gmra.mrb[0].mxu0 %v1224
      %v1626 = vpop.f32.mrb[0].mxu0
      %v1627 = vadd.f32 %v834, %v1626
      %v1628 = vpop.f32.mrb[0].mxu0
      %1629 = vmatprep.mubr.f32.mxu0 0.0
      %1630 = vmatmul.mubr.f32.gmra.mrb[0].mxu0 %v1227
      %v1631 = vpop.f32.mrb[0].mxu0
      %v1632 = vadd.f32 %v839, %v1631
      %v1633 = vpop.f32.mrb[0].mxu0
      %1634 = vmatprep.mubr.f32.mxu0 0.0
      %1635 = vmatmul.mubr.f32.gmra.mrb[0].mxu0 %v1230
      %v1636 = vpop.f32.mrb[0].mxu0
      %v1637 = vadd.f32 %v844, %v1636
      %v1638 = vpop.f32.mrb[0].mxu0
      %1639 = vmatprep.mubr.f32.mxu0 0.0
      %1640 = vmatmul.mubr.f32.gmra.mrb[0].mxu0 %v1233
      %v1641 = vpop.f32.mrb[0].mxu0
      %v1642 = vadd.f32 %v849, %v1641
      %v1643 = vpop.f32.mrb[0].mxu0
      %1644 = vmatprep.mubr.f32.mxu0 0.0
      %1645 = vmatmul.mubr.f32.gmra.mrb[0].mxu0 %v1236
      %v1646 = vpop.f32.mrb[0].mxu0
      %v1647 = vadd.f32 %v854, %v1646
      %v1648 = vpop.f32.mrb[0].mxu0
      %1649 = vmatprep.mubr.f32.mxu0 0.0
      %1650 = vmatmul.mubr.f32.gmra.mrb[0].mxu0 %v1239
      %v1651 = vpop.f32.mrb[0].mxu0
      %v1652 = vadd.f32 %v859, %v1651
      %v1653 = vpop.f32.mrb[0].mxu0
      %1654 = vmatprep.mubr.f32.mxu0 0.0
      %1655 = vmatmul.mubr.f32.gmra.mrb[0].mxu0 %v1242
      %v1656 = vpop.f32.mrb[0].mxu0
      %v1657 = vadd.f32 %v864, %v1656
      %v1658 = vpop.f32.mrb[0].mxu0
      %1659 = vmatprep.mubr.f32.mxu0 0.0
      %1660 = vmatmul.mubr.f32.gmra.mrb[0].mxu0 %v1245
      %v1661 = vpop.f32.mrb[0].mxu0
      %v1662 = vadd.f32 %v869, %v1661
      %v1663 = vpop.f32.mrb[0].mxu0
      %1664 = vmatprep.mubr.f32.mxu0 0.0
      %1665 = vmatmul.mubr.f32.gmra.mrb[0].mxu0 %v1248
      %v1666 = vpop.f32.mrb[0].mxu0
      %v1667 = vadd.f32 %v874, %v1666
      %v1668 = vpop.f32.mrb[0].mxu0
      %1669 = vmatprep.mubr.f32.mxu0 0.0
      %1670 = vmatmul.mubr.f32.gmra.mrb[0].mxu0 %v1251
      %v1671 = vpop.f32.mrb[0].mxu0
      %v1672 = vadd.f32 %v879, %v1671
      %v1673 = vpop.f32.mrb[0].mxu0
      %1674 = vmatprep.mubr.f32.mxu0 0.0
      %1675 = vmatmul.mubr.f32.gmra.mrb[0].mxu0 %v1254
      %v1676 = vpop.f32.mrb[0].mxu0
      %v1677 = vadd.f32 %v884, %v1676
      %v1678 = vpop.f32.mrb[0].mxu0
      %1679 = vmatprep.mubr.f32.mxu0 0.0
      %1680 = vmatmul.mubr.f32.gmra.mrb[0].mxu0 %v1257
      %v1681 = vpop.f32.mrb[0].mxu0
      %v1682 = vadd.f32 %v889, %v1681
      %v1683 = vpop.f32.mrb[0].mxu0
      %1684 = vmatprep.mubr.f32.mxu0 0.0
      %1685 = vmatmul.mubr.f32.gmra.mrb[0].mxu0 %v1260
      %v1686 = vpop.f32.mrb[0].mxu0
      %v1687 = vadd.f32 %v894, %v1686
      %v1688 = vpop.f32.mrb[0].mxu0
      %1689 = vmatprep.mubr.f32.mxu0 0.0
      %1690 = vmatmul.mubr.f32.gmra.mrb[0].mxu0 %v1263
      %v1691 = vpop.f32.mrb[0].mxu0
      %v1692 = vadd.f32 %v899, %v1691
      %v1693 = vpop.f32.mrb[0].mxu0
      %1694 = vmatprep.mubr.f32.mxu0 0.0
      %1695 = vmatmul.mubr.f32.gmra.mrb[0].mxu0 %v1266
      %v1696 = vpop.f32.mrb[0].mxu0
      %v1697 = vadd.f32 %v904, %v1696
      %v1698 = vpop.f32.mrb[0].mxu0
      %1699 = vmatprep.mubr.f32.mxu0 0.0
      %1700 = vmatmul.mubr.f32.gmra.mrb[0].mxu0 %v1269
      %v1701 = vpop.f32.mrb[0].mxu0
      %v1702 = vadd.f32 %v909, %v1701
      %v1703 = vpop.f32.mrb[0].mxu0
      %1704 = vmatprep.mubr.f32.mxu0 0.0
      %1705 = vmatmul.mubr.f32.gmra.mrb[0].mxu0 %v1272
      %v1706 = vpop.f32.mrb[0].mxu0
      %v1707 = vadd.f32 %v914, %v1706
      %v1708 = vpop.f32.mrb[0].mxu0
      %1709 = vmatprep.mubr.f32.mxu0 0.0
      %1710 = vmatmul.mubr.f32.gmra.mrb[0].mxu0 %v1275
      %v1711 = vpop.f32.mrb[0].mxu0
      %v1712 = vadd.f32 %v919, %v1711
      %v1713 = vpop.f32.mrb[0].mxu0
      %1714 = vmatprep.mubr.f32.mxu0 0.0
      %1715 = vmatmul.mubr.f32.gmra.mrb[0].mxu0 %v1278
      %v1716 = vpop.f32.mrb[0].mxu0
      %v1717 = vadd.f32 %v924, %v1716
      %v1718 = vpop.f32.mrb[0].mxu0
      %1719 = vmatprep.mubr.f32.mxu0 0.0
      %1720 = vmatmul.mubr.f32.gmra.mrb[0].mxu0 %v1281
      %v1721 = vpop.f32.mrb[0].mxu0
      %v1722 = vadd.f32 %v929, %v1721
      %v1723 = vpop.f32.mrb[0].mxu0
      %1724 = vmatprep.mubr.f32.mxu0 0.0
      %1725 = vmatmul.mubr.f32.gmra.mrb[0].mxu0 %v1284
      %v1726 = vpop.f32.mrb[0].mxu0
      %v1727 = vadd.f32 %v934, %v1726
      %v1728 = vpop.f32.mrb[0].mxu0
      %1729 = vmatprep.mubr.f32.mxu0 0.0
      %1730 = vmatmul.mubr.f32.gmra.mrb[0].mxu0 %v1287
      %v1731 = vpop.f32.mrb[0].mxu0
      %v1732 = vadd.f32 %v939, %v1731
      %v1733 = vpop.f32.mrb[0].mxu0
      %1734 = vmatprep.mubr.f32.mxu0 0.0
      %1735 = vmatmul.mubr.f32.gmra.mrb[0].mxu0 %v1290
      %v1736 = vpop.f32.mrb[0].mxu0
      %v1737 = vadd.f32 %v944, %v1736
      %v1738 = vpop.f32.mrb[0].mxu0
      %1739 = vmatprep.mubr.f32.mxu0 0.0
      %1740 = vmatmul.mubr.f32.gmra.mrb[0].mxu0 %v1293
      %v1741 = vpop.f32.mrb[0].mxu0
      %v1742 = vadd.f32 %v949, %v1741
      %v1743 = vpop.f32.mrb[0].mxu0
      %1744 = vmatprep.mubr.f32.mxu0 0.0
      %1745 = vmatmul.mubr.f32.gmra.mrb[0].mxu0 %v1296
      %v1746 = vpop.f32.mrb[0].mxu0
      %v1747 = vadd.f32 %v954, %v1746
      %v1748 = vpop.f32.mrb[0].mxu0
      %1749 = vmatprep.mubr.f32.mxu0 0.0
      %1750 = vmatmul.mubr.f32.gmra.mrb[0].mxu0 %v1299
      %v1751 = vpop.f32.mrb[0].mxu0
      %v1752 = vadd.f32 %v959, %v1751
      %v1753 = vpop.f32.mrb[0].mxu0
      %1754 = vmatprep.mubr.f32.mxu0 0.0
      %1755 = vmatmul.mubr.f32.gmra.mrb[0].mxu0 %v1302
      %v1756 = vpop.f32.mrb[0].mxu0
      %v1757 = vadd.f32 %v964, %v1756
      %v1758 = vpop.f32.mrb[0].mxu0
      %1759 = vmatprep.mubr.f32.mxu0 0.0
      %1760 = vmatmul.mubr.f32.gmra.mrb[0].mxu0 %v1305
      %v1761 = vpop.f32.mrb[0].mxu0
      %v1762 = vadd.f32 %v969, %v1761
      %v1763 = vpop.f32.mrb[0].mxu0
      %1764 = vmatprep.mubr.f32.mxu0 0.0
      %1765 = vmatmul.mubr.f32.gmra.mrb[0].mxu0 %v1308
      %v1766 = vpop.f32.mrb[0].mxu0
      %v1767 = vadd.f32 %v974, %v1766
      %v1768 = vpop.f32.mrb[0].mxu0
      %1769 = vmatprep.mubr.f32.mxu0 0.0
      %1770 = vmatmul.mubr.f32.gmra.mrb[0].mxu0 %v1311
      %v1771 = vpop.f32.mrb[0].mxu0
      %v1772 = vadd.f32 %v979, %v1771
      %v1773 = vpop.f32.mrb[0].mxu0
      %1774 = vmatprep.mubr.f32.mxu0 0.0
      %1775 = vmatmul.mubr.f32.gmra.mrb[0].mxu0 %v1314
      %v1776 = vpop.f32.mrb[0].mxu0
      %v1777 = vadd.f32 %v984, %v1776
      %v1778 = vpop.f32.mrb[0].mxu0
      %1779 = vmatprep.mubr.f32.mxu0 0.0
      %1780 = vmatmul.mubr.f32.gmra.mrb[0].mxu0 %v1317
      %v1781 = vpop.f32.mrb[0].mxu0
      %v1782 = vadd.f32 %v989, %v1781
      %v1783 = vpop.f32.mrb[0].mxu0
      %1784 = vmatprep.mubr.f32.mxu0 0.0
      %1785 = vmatmul.mubr.f32.gmra.mrb[0].mxu0 %v1320
      %v1786 = vpop.f32.mrb[0].mxu0
      %v1787 = vadd.f32 %v994, %v1786
      %v1788 = vpop.f32.mrb[0].mxu0
      %1789 = vmatprep.mubr.f32.mxu0 0.0
      %1790 = vmatmul.mubr.f32.gmra.mrb[0].mxu0 %v1323
      %v1791 = vpop.f32.mrb[0].mxu0
      %v1792 = vadd.f32 %v999, %v1791
      %v1793 = vpop.f32.mrb[0].mxu0
      %1794 = vmatprep.mubr.f32.mxu0 0.0
      %1795 = vmatmul.mubr.f32.gmra.mrb[0].mxu0 %v1326
      %v1796 = vpop.f32.mrb[0].mxu0
      %v1797 = vadd.f32 %v1004, %v1796
      %v1798 = vpop.f32.mrb[0].mxu0
      %1799 = vmatprep.mubr.f32.mxu0 0.0
      %1800 = vmatmul.mubr.f32.gmra.mrb[0].mxu0 %v1329
      %v1801 = vpop.f32.mrb[0].mxu0
      %v1802 = vadd.f32 %v1009, %v1801
      %v1803 = vpop.f32.mrb[0].mxu0
      %1804 = vmatprep.mubr.f32.mxu0 0.0
      %1805 = vmatmul.mubr.f32.gmra.mrb[0].mxu0 %v1332
      %v1806 = vpop.f32.mrb[0].mxu0
      %v1807 = vadd.f32 %v1014, %v1806
      %v1808 = vpop.f32.mrb[0].mxu0
      %1809 = vmatprep.mubr.f32.mxu0 0.0
      %1810 = vmatmul.mubr.f32.gmra.mrb[0].mxu0 %v1335
      %v1811 = vpop.f32.mrb[0].mxu0
      %v1812 = vadd.f32 %v1019, %v1811
      %v1813 = vpop.f32.mrb[0].mxu0
      %1814 = vmatprep.mubr.f32.mxu0 0.0
      %1815 = vmatmul.mubr.f32.gmra.mrb[0].mxu0 %v1338
      %v1816 = vpop.f32.mrb[0].mxu0
      %v1817 = vadd.f32 %v1024, %v1816
      %v1818 = vpop.f32.mrb[0].mxu0
      %1819 = vmatprep.mubr.f32.mxu0 0.0
      %1820 = vmatmul.mubr.f32.gmra.mrb[0].mxu0 %v1341
      %v1821 = vpop.f32.mrb[0].mxu0
      %v1822 = vadd.f32 %v1029, %v1821
      %v1823 = vpop.f32.mrb[0].mxu0
      %1824 = vmatprep.mubr.f32.mxu0 0.0
      %1825 = vmatmul.mubr.f32.gmra.mrb[0].mxu0 %v1344
      %v1826 = vpop.f32.mrb[0].mxu0
      %v1827 = vadd.f32 %v1034, %v1826
      %v1828 = vpop.f32.mrb[0].mxu0
      %1829 = vmatprep.mubr.f32.mxu0 0.0
      %1830 = vmatmul.mubr.f32.gmra.mrb[0].mxu0 %v1347
      %v1831 = vpop.f32.mrb[0].mxu0
      %v1832 = vadd.f32 %v1039, %v1831
      %v1833 = vpop.f32.mrb[0].mxu0
      %1834 = vmatprep.mubr.f32.mxu0 0.0
      %1835 = vmatmul.mubr.f32.gmra.mrb[0].mxu0 %v1350
      %v1836 = vpop.f32.mrb[0].mxu0
      %v1837 = vadd.f32 %v1044, %v1836
      %v1838 = vpop.f32.mrb[0].mxu0
      %1839 = vmatprep.mubr.f32.mxu0 0.0
      %1840 = vmatmul.mubr.f32.gmra.mrb[0].mxu0 %v1353
      %v1841 = vpop.f32.mrb[0].mxu0
      %v1842 = vadd.f32 %v1049, %v1841
      %v1843 = vpop.f32.mrb[0].mxu0
      %1844 = vmatprep.mubr.f32.mxu0 0.0
      %1845 = vmatmul.mubr.f32.gmra.mrb[0].mxu0 %v1356
      %v1846 = vpop.f32.mrb[0].mxu0
      %v1847 = vadd.f32 %v1054, %v1846
      %v1848 = vpop.f32.mrb[0].mxu0
      %1849 = vmatprep.mubr.f32.mxu0 0.0
      %1850 = vmatmul.mubr.f32.gmra.mrb[0].mxu0 %v1359
      %v1851 = vpop.f32.mrb[0].mxu0
      %v1852 = vadd.f32 %v1059, %v1851
      %v1853 = vpop.f32.mrb[0].mxu0
      %1854 = vmatprep.mubr.f32.mxu0 0.0
      %1855 = vmatmul.mubr.f32.gmra.mrb[0].mxu0 %v1362
      %v1856 = vpop.f32.mrb[0].mxu0
      %v1857 = vadd.f32 %v1064, %v1856
      %v1858 = vpop.f32.mrb[0].mxu0
      %1859 = vmatprep.mubr.f32.mxu0 0.0
      %1860 = vmatmul.mubr.f32.gmra.mrb[0].mxu0 %v1365
      %v1861 = vpop.f32.mrb[0].mxu0
      %v1862 = vadd.f32 %v1069, %v1861
      %v1863 = vpop.f32.mrb[0].mxu0
      %1864 = vmatprep.mubr.f32.mxu0 0.0
      %1865 = vmatmul.mubr.f32.gmra.mrb[0].mxu0 %v1368
      %v1866 = vpop.f32.mrb[0].mxu0
      %v1867 = vadd.f32 %v1074, %v1866
      %v1868 = vpop.f32.mrb[0].mxu0
      %1869 = vmatprep.mubr.f32.mxu0 0.0
      %1870 = vmatmul.mubr.f32.gmra.mrb[0].mxu0 %v1371
      %v1871 = vpop.f32.mrb[0].mxu0
      %v1872 = vadd.f32 %v1079, %v1871
      %v1873 = vpop.f32.mrb[0].mxu0
      %1874 = vmatprep.mubr.f32.mxu0 0.0
      %1875 = vmatmul.mubr.f32.gmra.mrb[0].mxu0 %v1374
      %v1876 = vpop.f32.mrb[0].mxu0
      %v1877 = vadd.f32 %v1084, %v1876
      %v1878 = vpop.f32.mrb[0].mxu0
      %1879 = vmatprep.mubr.f32.mxu0 0.0
      %1880 = vmatmul.mubr.f32.gmra.mrb[0].mxu0 %v1377
      %v1881 = vpop.f32.mrb[0].mxu0
      %v1882 = vadd.f32 %v1089, %v1881
      %v1883 = vpop.f32.mrb[0].mxu0
      %1884 = vmatprep.mubr.f32.mxu0 0.0
      %1885 = vmatmul.mubr.f32.gmra.mrb[0].mxu0 %v1380
      %v1886 = vpop.f32.mrb[0].mxu0
      %v1887 = vadd.f32 %v1094, %v1886
      %v1888 = vpop.f32.mrb[0].mxu0
      %1889 = vmatprep.mubr.f32.mxu0 0.0
      %1890 = vmatmul.mubr.f32.gmra.mrb[0].mxu0 %v1383
      %v1891 = vpop.f32.mrb[0].mxu0
      %v1892 = vadd.f32 %v1099, %v1891
      %v1893 = vpop.f32.mrb[0].mxu0
      %1894 = vmatprep.mubr.f32.mxu0 0.0
      %1895 = vmatmul.mubr.f32.gmra.mrb[0].mxu0 %v1386
      %v1896 = vpop.f32.mrb[0].mxu0
      %v1897 = vadd.f32 %v1104, %v1896
      %v1898 = vpop.f32.mrb[0].mxu0
      %1899 = vmatprep.mubr.f32.mxu0 0.0
      %1900 = vmatmul.mubr.f32.gmra.mrb[0].mxu0 %v1389
      %v1901 = vpop.f32.mrb[0].mxu0
      %v1902 = vadd.f32 %v1109, %v1901
      %v1903 = vpop.f32.mrb[0].mxu0
      %1904 = vmatprep.mubr.f32.mxu0 0.0
      %1905 = vmatmul.mubr.f32.gmra.mrb[0].mxu0 %v1392
      %v1906 = vpop.f32.mrb[0].mxu0
      %v1907 = vadd.f32 %v1114, %v1906
      %v1908 = vpop.f32.mrb[0].mxu0
      %1909 = vmatprep.mubr.f32.mxu0 0.0
      %1910 = vmatmul.mubr.f32.gmra.mrb[0].mxu0 %v1395
      %v1911 = vpop.f32.mrb[0].mxu0
      %v1912 = vadd.f32 %v1119, %v1911
      %v1913 = vpop.f32.mrb[0].mxu0
      %1914 = vmatprep.mubr.f32.mxu0 0.0
      %1915 = vmatmul.mubr.f32.gmra.mrb[0].mxu0 %v1398
      %v1916 = vpop.f32.mrb[0].mxu0
      %v1917 = vadd.f32 %v1124, %v1916
      %v1918 = vpop.f32.mrb[0].mxu0
      %1919 = vdwg.mxu0
      %v1920 = vld [vmem:[%s139 + $0x24] sm:$0xff]
      %v1921 = vld [vmem:[%s139 + $0x2c] sm:$0xff]
      %v1922 = vld [vmem:[%s139 + $0x34] sm:$0xff]
      %v1923 = vld [vmem:[%s139 + $0x3c] sm:$0xff]
      %v1924 = vld [vmem:[%s139 + $0x44] sm:$0xff]
      %v1925 = vld [vmem:[%s139 + $0x4c] sm:$0xff]
      %v1926 = vld [vmem:[%s139 + $0x54] sm:$0xff]
      %v1927 = vld [vmem:[%s139 + $0x5c] sm:$0xff]
      %v1928 = vld [vmem:[%s139 + $0x64] sm:$0xff]
      %v1929 = vld [vmem:[%s139 + $0x6c] sm:$0xff]
      %v1930 = vld [vmem:[%s139 + $0x74] sm:$0xff]
      %v1931 = vld [vmem:[%s139 + $0x7c] sm:$0xff]
      %v1932 = vld [vmem:[%s139 + $0x84] sm:$0xff]
      %v1933 = vld [vmem:[%s139 + $0x8c] sm:$0xff]
      %v1934 = vld [vmem:[%s139 + $0x94] sm:$0xff]
      %v1935 = vld [vmem:[%s139 + $0x9c] sm:$0xff]
      %v1936 = vld [vmem:[%s139 + $0xa4] sm:$0xff]
      %v1937 = vld [vmem:[%s139 + $0xac] sm:$0xff]
      %v1938 = vld [vmem:[%s139 + $0xb4] sm:$0xff]
      %v1939 = vld [vmem:[%s139 + $0xbc] sm:$0xff]
      %v1940 = vld [vmem:[%s139 + $0xc4] sm:$0xff]
      %v1941 = vld [vmem:[%s139 + $0xcc] sm:$0xff]
      %v1942 = vld [vmem:[%s139 + $0xd4] sm:$0xff]
      %v1943 = vld [vmem:[%s139 + $0xdc] sm:$0xff]
      %v1944 = vld [vmem:[%s139 + $0xe4] sm:$0xff]
      %v1945 = vld [vmem:[%s139 + $0xec] sm:$0xff]
      %v1946 = vld [vmem:[%s139 + $0xf4] sm:$0xff]
      %v1947 = vld [vmem:[%s139 + $0xfc] sm:$0xff]
      %v1948 = vld [vmem:[%s139 + $0x104] sm:$0xff]
      %v1949 = vld [vmem:[%s139 + $0x10c] sm:$0xff]
      %v1950 = vld [vmem:[%s139 + $0x114] sm:$0xff]
      %v1951 = vld [vmem:[%s139 + $0x11c] sm:$0xff]
      %v1952 = vld [vmem:[%s139 + $0x124] sm:$0xff]
      %v1953 = vld [vmem:[%s139 + $0x12c] sm:$0xff]
      %v1954 = vld [vmem:[%s139 + $0x134] sm:$0xff]
      %v1955 = vld [vmem:[%s139 + $0x13c] sm:$0xff]
      %v1956 = vld [vmem:[%s139 + $0x144] sm:$0xff]
      %v1957 = vld [vmem:[%s139 + $0x14c] sm:$0xff]
      %v1958 = vld [vmem:[%s139 + $0x154] sm:$0xff]
      %v1959 = vld [vmem:[%s139 + $0x15c] sm:$0xff]
      %v1960 = vld [vmem:[%s139 + $0x164] sm:$0xff]
      %v1961 = vld [vmem:[%s139 + $0x16c] sm:$0xff]
      %v1962 = vld [vmem:[%s139 + $0x174] sm:$0xff]
      %v1963 = vld [vmem:[%s139 + $0x17c] sm:$0xff]
      %v1964 = vld [vmem:[%s139 + $0x184] sm:$0xff]
      %v1965 = vld [vmem:[%s139 + $0x18c] sm:$0xff]
      %v1966 = vld [vmem:[%s139 + $0x194] sm:$0xff]
      %v1967 = vld [vmem:[%s139 + $0x19c] sm:$0xff]
      %v1968 = vld [vmem:[%s139 + $0x1a4] sm:$0xff]
      %v1969 = vld [vmem:[%s139 + $0x1ac] sm:$0xff]
      %v1970 = vld [vmem:[%s139 + $0x1b4] sm:$0xff]
      %v1971 = vld [vmem:[%s139 + $0x1bc] sm:$0xff]
      %v1972 = vld [vmem:[%s139 + $0x1c4] sm:$0xff]
      %v1973 = vld [vmem:[%s139 + $0x1cc] sm:$0xff]
      %v1974 = vld [vmem:[%s139 + $0x1d4] sm:$0xff]
      %v1975 = vld [vmem:[%s139 + $0x1dc] sm:$0xff]
      %v1976 = vld [vmem:[%s139 + $0x1e4] sm:$0xff]
      %v1977 = vld [vmem:[%s139 + $0x1ec] sm:$0xff]
      %v1978 = vld [vmem:[%s139 + $0x1f4] sm:$0xff]
      %v1979 = vld [vmem:[%s139 + $0x1fc] sm:$0xff]
      %v1980 = vld [vmem:[%s139 + $0x204] sm:$0xff]
      %v1981 = vld [vmem:[%s139 + $0x20c] sm:$0xff]
      %v1982 = vld [vmem:[%s139 + $0x214] sm:$0xff]
      %v1983 = vld [vmem:[%s139 + $0x21c] sm:$0xff]
      %v1984 = vld [vmem:[%s139 + $0x224] sm:$0xff]
      %v1985 = vld [vmem:[%s139 + $0x22c] sm:$0xff]
      %v1986 = vld [vmem:[%s139 + $0x234] sm:$0xff]
      %v1987 = vld [vmem:[%s139 + $0x23c] sm:$0xff]
      %v1988 = vld [vmem:[%s139 + $0x244] sm:$0xff]
      %v1989 = vld [vmem:[%s139 + $0x24c] sm:$0xff]
      %v1990 = vld [vmem:[%s139 + $0x254] sm:$0xff]
      %v1991 = vld [vmem:[%s139 + $0x25c] sm:$0xff]
      %v1992 = vld [vmem:[%s139 + $0x264] sm:$0xff]
      %v1993 = vld [vmem:[%s139 + $0x26c] sm:$0xff]
      %v1994 = vld [vmem:[%s139 + $0x274] sm:$0xff]
      %v1995 = vld [vmem:[%s139 + $0x27c] sm:$0xff]
      %v1996 = vld [vmem:[%s139 + $0x284] sm:$0xff]
      %v1997 = vld [vmem:[%s139 + $0x28c] sm:$0xff]
      %v1998 = vld [vmem:[%s139 + $0x294] sm:$0xff]
      %v1999 = vld [vmem:[%s139 + $0x29c] sm:$0xff]
      %v2000 = vld [vmem:[%s139 + $0x2a4] sm:$0xff]
      %v2001 = vld [vmem:[%s139 + $0x2ac] sm:$0xff]
      %v2002 = vld [vmem:[%s139 + $0x2b4] sm:$0xff]
      %v2003 = vld [vmem:[%s139 + $0x2bc] sm:$0xff]
      %v2004 = vld [vmem:[%s139 + $0x2c4] sm:$0xff]
      %v2005 = vld [vmem:[%s139 + $0x2cc] sm:$0xff]
      %v2006 = vld [vmem:[%s139 + $0x2d4] sm:$0xff]
      %v2007 = vld [vmem:[%s139 + $0x2dc] sm:$0xff]
      %v2008 = vld [vmem:[%s139 + $0x2e4] sm:$0xff]
      %v2009 = vld [vmem:[%s139 + $0x2ec] sm:$0xff]
      %v2010 = vld [vmem:[%s139 + $0x2f4] sm:$0xff]
      %v2011 = vld [vmem:[%s1 + $0x20] sm:$0xff]
      %v2012 = vld [vmem:[%s1 + $0x28] sm:$0xff]
      %v2014 = vsel %vm333, %v1920, 0
      %v2017 = vsel %vm333, %v1921, 0
      %v2020 = vsel %vm333, %v1922, 0
      %v2023 = vsel %vm333, %v1923, 0
      %v2026 = vsel %vm333, %v1924, 0
      %v2029 = vsel %vm333, %v1925, 0
      %v2032 = vsel %vm333, %v1926, 0
      %v2035 = vsel %vm333, %v1927, 0
      %v2038 = vsel %vm333, %v1928, 0
      %v2041 = vsel %vm333, %v1929, 0
      %v2044 = vsel %vm333, %v1930, 0
      %v2047 = vsel %vm333, %v1931, 0
      %v2050 = vsel %vm333, %v1932, 0
      %v2053 = vsel %vm333, %v1933, 0
      %v2056 = vsel %vm333, %v1934, 0
      %v2059 = vsel %vm333, %v1935, 0
      %v2062 = vsel %vm333, %v1936, 0
      %v2065 = vsel %vm333, %v1937, 0
      %v2068 = vsel %vm333, %v1938, 0
      %v2071 = vsel %vm333, %v1939, 0
      %v2074 = vsel %vm333, %v1940, 0
      %v2077 = vsel %vm333, %v1941, 0
      %v2080 = vsel %vm333, %v1942, 0
      %v2083 = vsel %vm333, %v1943, 0
      %v2086 = vsel %vm333, %v1944, 0
      %v2089 = vsel %vm333, %v1945, 0
      %v2092 = vsel %vm333, %v1946, 0
      %v2095 = vsel %vm333, %v1947, 0
      %v2098 = vsel %vm333, %v1948, 0
      %v2101 = vsel %vm333, %v1949, 0
      %v2104 = vsel %vm333, %v1950, 0
      %v2107 = vsel %vm333, %v1951, 0
      %v2110 = vsel %vm333, %v1952, 0
      %v2113 = vsel %vm333, %v1953, 0
      %v2116 = vsel %vm333, %v1954, 0
      %v2119 = vsel %vm333, %v1955, 0
      %v2122 = vsel %vm333, %v1956, 0
      %v2125 = vsel %vm333, %v1957, 0
      %v2128 = vsel %vm333, %v1958, 0
      %v2131 = vsel %vm333, %v1959, 0
      %v2134 = vsel %vm333, %v1960, 0
      %v2137 = vsel %vm333, %v1961, 0
      %v2140 = vsel %vm333, %v1962, 0
      %v2143 = vsel %vm333, %v1963, 0
      %v2146 = vsel %vm333, %v1964, 0
      %v2149 = vsel %vm333, %v1965, 0
      %v2152 = vsel %vm333, %v1966, 0
      %v2155 = vsel %vm333, %v1967, 0
      %v2158 = vsel %vm333, %v1968, 0
      %v2161 = vsel %vm333, %v1969, 0
      %v2164 = vsel %vm333, %v1970, 0
      %v2167 = vsel %vm333, %v1971, 0
      %v2170 = vsel %vm333, %v1972, 0
      %v2173 = vsel %vm333, %v1973, 0
      %v2176 = vsel %vm333, %v1974, 0
      %v2179 = vsel %vm333, %v1975, 0
      %v2182 = vsel %vm333, %v1976, 0
      %v2185 = vsel %vm333, %v1977, 0
      %v2188 = vsel %vm333, %v1978, 0
      %v2191 = vsel %vm333, %v1979, 0
      %v2194 = vsel %vm333, %v1980, 0
      %v2197 = vsel %vm333, %v1981, 0
      %v2200 = vsel %vm333, %v1982, 0
      %v2203 = vsel %vm333, %v1983, 0
      %v2206 = vsel %vm333, %v1984, 0
      %v2209 = vsel %vm333, %v1985, 0
      %v2212 = vsel %vm333, %v1986, 0
      %v2215 = vsel %vm333, %v1987, 0
      %v2218 = vsel %vm333, %v1988, 0
      %v2221 = vsel %vm333, %v1989, 0
      %v2224 = vsel %vm333, %v1990, 0
      %v2227 = vsel %vm333, %v1991, 0
      %v2230 = vsel %vm333, %v1992, 0
      %v2233 = vsel %vm333, %v1993, 0
      %v2236 = vsel %vm333, %v1994, 0
      %v2239 = vsel %vm333, %v1995, 0
      %v2242 = vsel %vm333, %v1996, 0
      %v2245 = vsel %vm333, %v1997, 0
      %v2248 = vsel %vm333, %v1998, 0
      %v2251 = vsel %vm333, %v1999, 0
      %v2254 = vsel %vm333, %v2000, 0
      %v2257 = vsel %vm333, %v2001, 0
      %v2260 = vsel %vm333, %v2002, 0
      %v2263 = vsel %vm333, %v2003, 0
      %v2266 = vsel %vm333, %v2004, 0
      %v2269 = vsel %vm333, %v2005, 0
      %v2272 = vsel %vm333, %v2006, 0
      %v2275 = vsel %vm333, %v2007, 0
      %v2278 = vsel %vm333, %v2008, 0
      %v2281 = vsel %vm333, %v2009, 0
      %v2284 = vsel %vm333, %v2010, 0
      %2286 = vmatprep.subr.mxu0 0.0
      %2287 = vmatpush1.msra.mxu0 %v2011
      %2288 = vmatprep.subr.mxu0 0.0
      %2289 = vmatpush1.msra.mxu0 %v2012
      %2290 = vmatprep.subr.mxu0 0.0
      %2291 = vmatpush1.msra.mxu0 0.0
      %2292 = vmatprep.subr.mxu0 0.0
      %2293 = vmatpush1.msra.mxu0 0.0
      %2294 = vmatprep.subr.mxu0 0.0
      %2295 = vmatpush1.msra.mxu0 0.0
      %2296 = vmatprep.subr.mxu0 0.0
      %2297 = vmatpush1.msra.mxu0 0.0
      %2298 = vmatprep.subr.mxu0 0.0
      %2299 = vmatpush1.msra.mxu0 0.0
      %2300 = vmatprep.subr.mxu0 0.0
      %2301 = vmatpush1.msra.mxu0 0.0
      %2302 = vmatprep.subr.mxu0 0.0
      %2303 = vmatpush1.msra.mxu0 0.0
      %2304 = vmatprep.subr.mxu0 0.0
      %2305 = vmatpush1.msra.mxu0 0.0
      %2306 = vmatprep.subr.mxu0 0.0
      %2307 = vmatpush1.msra.mxu0 0.0
      %2308 = vmatprep.subr.mxu0 0.0
      %2309 = vmatpush1.msra.mxu0 0.0
      %2310 = vmatprep.subr.mxu0 0.0
      %2311 = vmatpush1.msra.mxu0 0.0
      %2312 = vmatprep.subr.mxu0 0.0
      %2313 = vmatpush1.msra.mxu0 0.0
      %2314 = vmatprep.subr.mxu0 0.0
      %2315 = vmatpush1.msra.mxu0 0.0
      %2316 = vmatprep.subr.mxu0 0.0
      %2317 = vmatpush1.msra.mxu0 0.0
      %2318 = vmatprep.subr.mxu0 0.0
      %2319 = vmatpush1.msra.mxu0 0.0
      %2320 = vmatprep.subr.mxu0 0.0
      %2321 = vmatpush1.msra.mxu0 0.0
      %2322 = vmatprep.subr.mxu0 0.0
      %2323 = vmatpush1.msra.mxu0 0.0
      %2324 = vmatprep.subr.mxu0 0.0
      %2325 = vmatpush1.msra.mxu0 0.0
      %2326 = vmatprep.subr.mxu0 0.0
      %2327 = vmatpush1.msra.mxu0 0.0
      %2328 = vmatprep.subr.mxu0 0.0
      %2329 = vmatpush1.msra.mxu0 0.0
      %2330 = vmatprep.subr.mxu0 0.0
      %2331 = vmatpush1.msra.mxu0 0.0
      %2332 = vmatprep.subr.mxu0 0.0
      %2333 = vmatpush1.msra.mxu0 0.0
      %2334 = vmatprep.subr.mxu0 0.0
      %2335 = vmatpush1.msra.mxu0 0.0
      %2336 = vmatprep.subr.mxu0 0.0
      %2337 = vmatpush1.msra.mxu0 0.0
      %2338 = vmatprep.subr.mxu0 0.0
      %2339 = vmatpush1.msra.mxu0 0.0
      %2340 = vmatprep.subr.mxu0 0.0
      %2341 = vmatpush1.msra.mxu0 0.0
      %2342 = vmatprep.subr.mxu0 0.0
      %2343 = vmatpush1.msra.mxu0 0.0
      %2344 = vmatprep.subr.mxu0 0.0
      %2345 = vmatpush1.msra.mxu0 0.0
      %2346 = vmatprep.subr.mxu0 0.0
      %2347 = vmatpush1.msra.mxu0 0.0
      %2348 = vmatprep.subr.mxu0 0.0
      %2349 = vmatpush1.msra.mxu0 0.0
      %2350 = vmatprep.mubr.f32.mxu0 0.0
      %2351 = vmatmul.mubr.f32.gmra.mrb[0].mxu0 %v2014
      %v2352 = vpop.f32.mrb[0].mxu0
      %v2353 = vadd.f32 0.0, %v2352
      %v2354 = vpop.f32.mrb[0].mxu0
      %2355 = vmatprep.mubr.f32.mxu0 0.0
      %2356 = vmatmul.mubr.f32.gmra.mrb[0].mxu0 %v2017
      %v2357 = vpop.f32.mrb[0].mxu0
      %v2358 = vadd.f32 0.0, %v2357
      %v2359 = vpop.f32.mrb[0].mxu0
      %2360 = vmatprep.mubr.f32.mxu0 0.0
      %2361 = vmatmul.mubr.f32.gmra.mrb[0].mxu0 %v2020
      %v2362 = vpop.f32.mrb[0].mxu0
      %v2363 = vadd.f32 0.0, %v2362
      %v2364 = vpop.f32.mrb[0].mxu0
      %2365 = vmatprep.mubr.f32.mxu0 0.0
      %2366 = vmatmul.mubr.f32.gmra.mrb[0].mxu0 %v2023
      %v2367 = vpop.f32.mrb[0].mxu0
      %v2368 = vadd.f32 0.0, %v2367
      %v2369 = vpop.f32.mrb[0].mxu0
      %2370 = vmatprep.mubr.f32.mxu0 0.0
      %2371 = vmatmul.mubr.f32.gmra.mrb[0].mxu0 %v2026
      %v2372 = vpop.f32.mrb[0].mxu0
      %v2373 = vadd.f32 0.0, %v2372
      %v2374 = vpop.f32.mrb[0].mxu0
      %2375 = vmatprep.mubr.f32.mxu0 0.0
      %2376 = vmatmul.mubr.f32.gmra.mrb[0].mxu0 %v2029
      %v2377 = vpop.f32.mrb[0].mxu0
      %v2378 = vadd.f32 0.0, %v2377
      %v2379 = vpop.f32.mrb[0].mxu0
      %2380 = vmatprep.mubr.f32.mxu0 0.0
      %2381 = vmatmul.mubr.f32.gmra.mrb[0].mxu0 %v2032
      %v2382 = vpop.f32.mrb[0].mxu0
      %v2383 = vadd.f32 0.0, %v2382
      %v2384 = vpop.f32.mrb[0].mxu0
      %2385 = vmatprep.mubr.f32.mxu0 0.0
      %2386 = vmatmul.mubr.f32.gmra.mrb[0].mxu0 %v2035
      %v2387 = vpop.f32.mrb[0].mxu0
      %v2388 = vadd.f32 0.0, %v2387
      %v2389 = vpop.f32.mrb[0].mxu0
      %2390 = vmatprep.mubr.f32.mxu0 0.0
      %2391 = vmatmul.mubr.f32.gmra.mrb[0].mxu0 %v2038
      %v2392 = vpop.f32.mrb[0].mxu0
      %v2393 = vadd.f32 0.0, %v2392
      %v2394 = vpop.f32.mrb[0].mxu0
      %2395 = vmatprep.mubr.f32.mxu0 0.0
      %2396 = vmatmul.mubr.f32.gmra.mrb[0].mxu0 %v2041
      %v2397 = vpop.f32.mrb[0].mxu0
      %v2398 = vadd.f32 0.0, %v2397
      %v2399 = vpop.f32.mrb[0].mxu0
      %2400 = vmatprep.mubr.f32.mxu0 0.0
      %2401 = vmatmul.mubr.f32.gmra.mrb[0].mxu0 %v2044
      %v2402 = vpop.f32.mrb[0].mxu0
      %v2403 = vadd.f32 0.0, %v2402
      %v2404 = vpop.f32.mrb[0].mxu0
      %2405 = vmatprep.mubr.f32.mxu0 0.0
      %2406 = vmatmul.mubr.f32.gmra.mrb[0].mxu0 %v2047
      %v2407 = vpop.f32.mrb[0].mxu0
      %v2408 = vadd.f32 0.0, %v2407
      %v2409 = vpop.f32.mrb[0].mxu0
      %2410 = vmatprep.mubr.f32.mxu0 0.0
      %2411 = vmatmul.mubr.f32.gmra.mrb[0].mxu0 %v2050
      %v2412 = vpop.f32.mrb[0].mxu0
      %v2413 = vadd.f32 0.0, %v2412
      %v2414 = vpop.f32.mrb[0].mxu0
      %2415 = vmatprep.mubr.f32.mxu0 0.0
      %2416 = vmatmul.mubr.f32.gmra.mrb[0].mxu0 %v2053
      %v2417 = vpop.f32.mrb[0].mxu0
      %v2418 = vadd.f32 0.0, %v2417
      %v2419 = vpop.f32.mrb[0].mxu0
      %2420 = vmatprep.mubr.f32.mxu0 0.0
      %2421 = vmatmul.mubr.f32.gmra.mrb[0].mxu0 %v2056
      %v2422 = vpop.f32.mrb[0].mxu0
      %v2423 = vadd.f32 0.0, %v2422
      %v2424 = vpop.f32.mrb[0].mxu0
      %2425 = vmatprep.mubr.f32.mxu0 0.0
      %2426 = vmatmul.mubr.f32.gmra.mrb[0].mxu0 %v2059
      %v2427 = vpop.f32.mrb[0].mxu0
      %v2428 = vadd.f32 0.0, %v2427
      %v2429 = vpop.f32.mrb[0].mxu0
      %2430 = vmatprep.mubr.f32.mxu0 0.0
      %2431 = vmatmul.mubr.f32.gmra.mrb[0].mxu0 %v2062
      %v2432 = vpop.f32.mrb[0].mxu0
      %v2433 = vadd.f32 0.0, %v2432
      %v2434 = vpop.f32.mrb[0].mxu0
      %2435 = vmatprep.mubr.f32.mxu0 0.0
      %2436 = vmatmul.mubr.f32.gmra.mrb[0].mxu0 %v2065
      %v2437 = vpop.f32.mrb[0].mxu0
      %v2438 = vadd.f32 0.0, %v2437
      %v2439 = vpop.f32.mrb[0].mxu0
      %2440 = vmatprep.mubr.f32.mxu0 0.0
      %2441 = vmatmul.mubr.f32.gmra.mrb[0].mxu0 %v2068
      %v2442 = vpop.f32.mrb[0].mxu0
      %v2443 = vadd.f32 0.0, %v2442
      %v2444 = vpop.f32.mrb[0].mxu0
      %2445 = vmatprep.mubr.f32.mxu0 0.0
      %2446 = vmatmul.mubr.f32.gmra.mrb[0].mxu0 %v2071
      %v2447 = vpop.f32.mrb[0].mxu0
      %v2448 = vadd.f32 0.0, %v2447
      %v2449 = vpop.f32.mrb[0].mxu0
      %2450 = vmatprep.mubr.f32.mxu0 0.0
      %2451 = vmatmul.mubr.f32.gmra.mrb[0].mxu0 %v2074
      %v2452 = vpop.f32.mrb[0].mxu0
      %v2453 = vadd.f32 0.0, %v2452
      %v2454 = vpop.f32.mrb[0].mxu0
      %2455 = vmatprep.mubr.f32.mxu0 0.0
      %2456 = vmatmul.mubr.f32.gmra.mrb[0].mxu0 %v2077
      %v2457 = vpop.f32.mrb[0].mxu0
      %v2458 = vadd.f32 0.0, %v2457
      %v2459 = vpop.f32.mrb[0].mxu0
      %2460 = vmatprep.mubr.f32.mxu0 0.0
      %2461 = vmatmul.mubr.f32.gmra.mrb[0].mxu0 %v2080
      %v2462 = vpop.f32.mrb[0].mxu0
      %v2463 = vadd.f32 0.0, %v2462
      %v2464 = vpop.f32.mrb[0].mxu0
      %2465 = vmatprep.mubr.f32.mxu0 0.0
      %2466 = vmatmul.mubr.f32.gmra.mrb[0].mxu0 %v2083
      %v2467 = vpop.f32.mrb[0].mxu0
      %v2468 = vadd.f32 0.0, %v2467
      %v2469 = vpop.f32.mrb[0].mxu0
      %2470 = vmatprep.mubr.f32.mxu0 0.0
      %2471 = vmatmul.mubr.f32.gmra.mrb[0].mxu0 %v2086
      %v2472 = vpop.f32.mrb[0].mxu0
      %v2473 = vadd.f32 0.0, %v2472
      %v2474 = vpop.f32.mrb[0].mxu0
      %2475 = vmatprep.mubr.f32.mxu0 0.0
      %2476 = vmatmul.mubr.f32.gmra.mrb[0].mxu0 %v2089
      %v2477 = vpop.f32.mrb[0].mxu0
      %v2478 = vadd.f32 0.0, %v2477
      %v2479 = vpop.f32.mrb[0].mxu0
      %2480 = vmatprep.mubr.f32.mxu0 0.0
      %2481 = vmatmul.mubr.f32.gmra.mrb[0].mxu0 %v2092
      %v2482 = vpop.f32.mrb[0].mxu0
      %v2483 = vadd.f32 0.0, %v2482
      %v2484 = vpop.f32.mrb[0].mxu0
      %2485 = vmatprep.mubr.f32.mxu0 0.0
      %2486 = vmatmul.mubr.f32.gmra.mrb[0].mxu0 %v2095
      %v2487 = vpop.f32.mrb[0].mxu0
      %v2488 = vadd.f32 0.0, %v2487
      %v2489 = vpop.f32.mrb[0].mxu0
      %2490 = vmatprep.mubr.f32.mxu0 0.0
      %2491 = vmatmul.mubr.f32.gmra.mrb[0].mxu0 %v2098
      %v2492 = vpop.f32.mrb[0].mxu0
      %v2493 = vadd.f32 0.0, %v2492
      %v2494 = vpop.f32.mrb[0].mxu0
      %2495 = vmatprep.mubr.f32.mxu0 0.0
      %2496 = vmatmul.mubr.f32.gmra.mrb[0].mxu0 %v2101
      %v2497 = vpop.f32.mrb[0].mxu0
      %v2498 = vadd.f32 0.0, %v2497
      %v2499 = vpop.f32.mrb[0].mxu0
      %2500 = vmatprep.mubr.f32.mxu0 0.0
      %2501 = vmatmul.mubr.f32.gmra.mrb[0].mxu0 %v2104
      %v2502 = vpop.f32.mrb[0].mxu0
      %v2503 = vadd.f32 0.0, %v2502
      %v2504 = vpop.f32.mrb[0].mxu0
      %2505 = vmatprep.mubr.f32.mxu0 0.0
      %2506 = vmatmul.mubr.f32.gmra.mrb[0].mxu0 %v2107
      %v2507 = vpop.f32.mrb[0].mxu0
      %v2508 = vadd.f32 0.0, %v2507
      %v2509 = vpop.f32.mrb[0].mxu0
      %2510 = vmatprep.mubr.f32.mxu0 0.0
      %2511 = vmatmul.mubr.f32.gmra.mrb[0].mxu0 %v2110
      %v2512 = vpop.f32.mrb[0].mxu0
      %v2513 = vadd.f32 0.0, %v2512
      %v2514 = vpop.f32.mrb[0].mxu0
      %2515 = vmatprep.mubr.f32.mxu0 0.0
      %2516 = vmatmul.mubr.f32.gmra.mrb[0].mxu0 %v2113
      %v2517 = vpop.f32.mrb[0].mxu0
      %v2518 = vadd.f32 0.0, %v2517
      %v2519 = vpop.f32.mrb[0].mxu0
      %2520 = vmatprep.mubr.f32.mxu0 0.0
      %2521 = vmatmul.mubr.f32.gmra.mrb[0].mxu0 %v2116
      %v2522 = vpop.f32.mrb[0].mxu0
      %v2523 = vadd.f32 0.0, %v2522
      %v2524 = vpop.f32.mrb[0].mxu0
      %2525 = vmatprep.mubr.f32.mxu0 0.0
      %2526 = vmatmul.mubr.f32.gmra.mrb[0].mxu0 %v2119
      %v2527 = vpop.f32.mrb[0].mxu0
      %v2528 = vadd.f32 0.0, %v2527
      %v2529 = vpop.f32.mrb[0].mxu0
      %2530 = vmatprep.mubr.f32.mxu0 0.0
      %2531 = vmatmul.mubr.f32.gmra.mrb[0].mxu0 %v2122
      %v2532 = vpop.f32.mrb[0].mxu0
      %v2533 = vadd.f32 0.0, %v2532
      %v2534 = vpop.f32.mrb[0].mxu0
      %2535 = vmatprep.mubr.f32.mxu0 0.0
      %2536 = vmatmul.mubr.f32.gmra.mrb[0].mxu0 %v2125
      %v2537 = vpop.f32.mrb[0].mxu0
      %v2538 = vadd.f32 0.0, %v2537
      %v2539 = vpop.f32.mrb[0].mxu0
      %2540 = vmatprep.mubr.f32.mxu0 0.0
      %2541 = vmatmul.mubr.f32.gmra.mrb[0].mxu0 %v2128
      %v2542 = vpop.f32.mrb[0].mxu0
      %v2543 = vadd.f32 0.0, %v2542
      %v2544 = vpop.f32.mrb[0].mxu0
      %2545 = vmatprep.mubr.f32.mxu0 0.0
      %2546 = vmatmul.mubr.f32.gmra.mrb[0].mxu0 %v2131
      %v2547 = vpop.f32.mrb[0].mxu0
      %v2548 = vadd.f32 0.0, %v2547
      %v2549 = vpop.f32.mrb[0].mxu0
      %2550 = vmatprep.mubr.f32.mxu0 0.0
      %2551 = vmatmul.mubr.f32.gmra.mrb[0].mxu0 %v2134
      %v2552 = vpop.f32.mrb[0].mxu0
      %v2553 = vadd.f32 0.0, %v2552
      %v2554 = vpop.f32.mrb[0].mxu0
      %2555 = vmatprep.mubr.f32.mxu0 0.0
      %2556 = vmatmul.mubr.f32.gmra.mrb[0].mxu0 %v2137
      %v2557 = vpop.f32.mrb[0].mxu0
      %v2558 = vadd.f32 0.0, %v2557
      %v2559 = vpop.f32.mrb[0].mxu0
      %2560 = vmatprep.mubr.f32.mxu0 0.0
      %2561 = vmatmul.mubr.f32.gmra.mrb[0].mxu0 %v2140
      %v2562 = vpop.f32.mrb[0].mxu0
      %v2563 = vadd.f32 0.0, %v2562
      %v2564 = vpop.f32.mrb[0].mxu0
      %2565 = vmatprep.mubr.f32.mxu0 0.0
      %2566 = vmatmul.mubr.f32.gmra.mrb[0].mxu0 %v2143
      %v2567 = vpop.f32.mrb[0].mxu0
      %v2568 = vadd.f32 0.0, %v2567
      %v2569 = vpop.f32.mrb[0].mxu0
      %2570 = vmatprep.mubr.f32.mxu0 0.0
      %2571 = vmatmul.mubr.f32.gmra.mrb[0].mxu0 %v2146
      %v2572 = vpop.f32.mrb[0].mxu0
      %v2573 = vadd.f32 0.0, %v2572
      %v2574 = vpop.f32.mrb[0].mxu0
      %2575 = vmatprep.mubr.f32.mxu0 0.0
      %2576 = vmatmul.mubr.f32.gmra.mrb[0].mxu0 %v2149
      %v2577 = vpop.f32.mrb[0].mxu0
      %v2578 = vadd.f32 0.0, %v2577
      %v2579 = vpop.f32.mrb[0].mxu0
      %2580 = vmatprep.mubr.f32.mxu0 0.0
      %2581 = vmatmul.mubr.f32.gmra.mrb[0].mxu0 %v2152
      %v2582 = vpop.f32.mrb[0].mxu0
      %v2583 = vadd.f32 0.0, %v2582
      %v2584 = vpop.f32.mrb[0].mxu0
      %2585 = vmatprep.mubr.f32.mxu0 0.0
      %2586 = vmatmul.mubr.f32.gmra.mrb[0].mxu0 %v2155
      %v2587 = vpop.f32.mrb[0].mxu0
      %v2588 = vadd.f32 0.0, %v2587
      %v2589 = vpop.f32.mrb[0].mxu0
      %2590 = vmatprep.mubr.f32.mxu0 0.0
      %2591 = vmatmul.mubr.f32.gmra.mrb[0].mxu0 %v2158
      %v2592 = vpop.f32.mrb[0].mxu0
      %v2593 = vadd.f32 0.0, %v2592
      %v2594 = vpop.f32.mrb[0].mxu0
      %2595 = vmatprep.mubr.f32.mxu0 0.0
      %2596 = vmatmul.mubr.f32.gmra.mrb[0].mxu0 %v2161
      %v2597 = vpop.f32.mrb[0].mxu0
      %v2598 = vadd.f32 0.0, %v2597
      %v2599 = vpop.f32.mrb[0].mxu0
      %2600 = vmatprep.mubr.f32.mxu0 0.0
      %2601 = vmatmul.mubr.f32.gmra.mrb[0].mxu0 %v2164
      %v2602 = vpop.f32.mrb[0].mxu0
      %v2603 = vadd.f32 0.0, %v2602
      %v2604 = vpop.f32.mrb[0].mxu0
      %2605 = vmatprep.mubr.f32.mxu0 0.0
      %2606 = vmatmul.mubr.f32.gmra.mrb[0].mxu0 %v2167
      %v2607 = vpop.f32.mrb[0].mxu0
      %v2608 = vadd.f32 0.0, %v2607
      %v2609 = vpop.f32.mrb[0].mxu0
      %2610 = vmatprep.mubr.f32.mxu0 0.0
      %2611 = vmatmul.mubr.f32.gmra.mrb[0].mxu0 %v2170
      %v2612 = vpop.f32.mrb[0].mxu0
      %v2613 = vadd.f32 0.0, %v2612
      %v2614 = vpop.f32.mrb[0].mxu0
      %2615 = vmatprep.mubr.f32.mxu0 0.0
      %2616 = vmatmul.mubr.f32.gmra.mrb[0].mxu0 %v2173
      %v2617 = vpop.f32.mrb[0].mxu0
      %v2618 = vadd.f32 0.0, %v2617
      %v2619 = vpop.f32.mrb[0].mxu0
      %2620 = vmatprep.mubr.f32.mxu0 0.0
      %2621 = vmatmul.mubr.f32.gmra.mrb[0].mxu0 %v2176
      %v2622 = vpop.f32.mrb[0].mxu0
      %v2623 = vadd.f32 0.0, %v2622
      %v2624 = vpop.f32.mrb[0].mxu0
      %2625 = vmatprep.mubr.f32.mxu0 0.0
      %2626 = vmatmul.mubr.f32.gmra.mrb[0].mxu0 %v2179
      %v2627 = vpop.f32.mrb[0].mxu0
      %v2628 = vadd.f32 0.0, %v2627
      %v2629 = vpop.f32.mrb[0].mxu0
      %2630 = vmatprep.mubr.f32.mxu0 0.0
      %2631 = vmatmul.mubr.f32.gmra.mrb[0].mxu0 %v2182
      %v2632 = vpop.f32.mrb[0].mxu0
      %v2633 = vadd.f32 0.0, %v2632
      %v2634 = vpop.f32.mrb[0].mxu0
      %2635 = vmatprep.mubr.f32.mxu0 0.0
      %2636 = vmatmul.mubr.f32.gmra.mrb[0].mxu0 %v2185
      %v2637 = vpop.f32.mrb[0].mxu0
      %v2638 = vadd.f32 0.0, %v2637
      %v2639 = vpop.f32.mrb[0].mxu0
      %2640 = vmatprep.mubr.f32.mxu0 0.0
      %2641 = vmatmul.mubr.f32.gmra.mrb[0].mxu0 %v2188
      %v2642 = vpop.f32.mrb[0].mxu0
      %v2643 = vadd.f32 0.0, %v2642
      %v2644 = vpop.f32.mrb[0].mxu0
      %2645 = vmatprep.mubr.f32.mxu0 0.0
      %2646 = vmatmul.mubr.f32.gmra.mrb[0].mxu0 %v2191
      %v2647 = vpop.f32.mrb[0].mxu0
      %v2648 = vadd.f32 0.0, %v2647
      %v2649 = vpop.f32.mrb[0].mxu0
      %2650 = vmatprep.mubr.f32.mxu0 0.0
      %2651 = vmatmul.mubr.f32.gmra.mrb[0].mxu0 %v2194
      %v2652 = vpop.f32.mrb[0].mxu0
      %v2653 = vadd.f32 0.0, %v2652
      %v2654 = vpop.f32.mrb[0].mxu0
      %2655 = vmatprep.mubr.f32.mxu0 0.0
      %2656 = vmatmul.mubr.f32.gmra.mrb[0].mxu0 %v2197
      %v2657 = vpop.f32.mrb[0].mxu0
      %v2658 = vadd.f32 0.0, %v2657
      %v2659 = vpop.f32.mrb[0].mxu0
      %2660 = vmatprep.mubr.f32.mxu0 0.0
      %2661 = vmatmul.mubr.f32.gmra.mrb[0].mxu0 %v2200
      %v2662 = vpop.f32.mrb[0].mxu0
      %v2663 = vadd.f32 0.0, %v2662
      %v2664 = vpop.f32.mrb[0].mxu0
      %2665 = vmatprep.mubr.f32.mxu0 0.0
      %2666 = vmatmul.mubr.f32.gmra.mrb[0].mxu0 %v2203
      %v2667 = vpop.f32.mrb[0].mxu0
      %v2668 = vadd.f32 0.0, %v2667
      %v2669 = vpop.f32.mrb[0].mxu0
      %2670 = vmatprep.mubr.f32.mxu0 0.0
      %2671 = vmatmul.mubr.f32.gmra.mrb[0].mxu0 %v2206
      %v2672 = vpop.f32.mrb[0].mxu0
      %v2673 = vadd.f32 0.0, %v2672
      %v2674 = vpop.f32.mrb[0].mxu0
      %2675 = vmatprep.mubr.f32.mxu0 0.0
      %2676 = vmatmul.mubr.f32.gmra.mrb[0].mxu0 %v2209
      %v2677 = vpop.f32.mrb[0].mxu0
      %v2678 = vadd.f32 0.0, %v2677
      %v2679 = vpop.f32.mrb[0].mxu0
      %2680 = vmatprep.mubr.f32.mxu0 0.0
      %2681 = vmatmul.mubr.f32.gmra.mrb[0].mxu0 %v2212
      %v2682 = vpop.f32.mrb[0].mxu0
      %v2683 = vadd.f32 0.0, %v2682
      %v2684 = vpop.f32.mrb[0].mxu0
      %2685 = vmatprep.mubr.f32.mxu0 0.0
      %2686 = vmatmul.mubr.f32.gmra.mrb[0].mxu0 %v2215
      %v2687 = vpop.f32.mrb[0].mxu0
      %v2688 = vadd.f32 0.0, %v2687
      %v2689 = vpop.f32.mrb[0].mxu0
      %2690 = vmatprep.mubr.f32.mxu0 0.0
      %2691 = vmatmul.mubr.f32.gmra.mrb[0].mxu0 %v2218
      %v2692 = vpop.f32.mrb[0].mxu0
      %v2693 = vadd.f32 0.0, %v2692
      %v2694 = vpop.f32.mrb[0].mxu0
      %2695 = vmatprep.mubr.f32.mxu0 0.0
      %2696 = vmatmul.mubr.f32.gmra.mrb[0].mxu0 %v2221
      %v2697 = vpop.f32.mrb[0].mxu0
      %v2698 = vadd.f32 0.0, %v2697
      %v2699 = vpop.f32.mrb[0].mxu0
      %2700 = vmatprep.mubr.f32.mxu0 0.0
      %2701 = vmatmul.mubr.f32.gmra.mrb[0].mxu0 %v2224
      %v2702 = vpop.f32.mrb[0].mxu0
      %v2703 = vadd.f32 0.0, %v2702
      %v2704 = vpop.f32.mrb[0].mxu0
      %2705 = vmatprep.mubr.f32.mxu0 0.0
      %2706 = vmatmul.mubr.f32.gmra.mrb[0].mxu0 %v2227
      %v2707 = vpop.f32.mrb[0].mxu0
      %v2708 = vadd.f32 0.0, %v2707
      %v2709 = vpop.f32.mrb[0].mxu0
      %2710 = vmatprep.mubr.f32.mxu0 0.0
      %2711 = vmatmul.mubr.f32.gmra.mrb[0].mxu0 %v2230
      %v2712 = vpop.f32.mrb[0].mxu0
      %v2713 = vadd.f32 0.0, %v2712
      %v2714 = vpop.f32.mrb[0].mxu0
      %2715 = vmatprep.mubr.f32.mxu0 0.0
      %2716 = vmatmul.mubr.f32.gmra.mrb[0].mxu0 %v2233
      %v2717 = vpop.f32.mrb[0].mxu0
      %v2718 = vadd.f32 0.0, %v2717
      %v2719 = vpop.f32.mrb[0].mxu0
      %2720 = vmatprep.mubr.f32.mxu0 0.0
      %2721 = vmatmul.mubr.f32.gmra.mrb[0].mxu0 %v2236
      %v2722 = vpop.f32.mrb[0].mxu0
      %v2723 = vadd.f32 0.0, %v2722
      %v2724 = vpop.f32.mrb[0].mxu0
      %2725 = vmatprep.mubr.f32.mxu0 0.0
      %2726 = vmatmul.mubr.f32.gmra.mrb[0].mxu0 %v2239
      %v2727 = vpop.f32.mrb[0].mxu0
      %v2728 = vadd.f32 0.0, %v2727
      %v2729 = vpop.f32.mrb[0].mxu0
      %2730 = vmatprep.mubr.f32.mxu0 0.0
      %2731 = vmatmul.mubr.f32.gmra.mrb[0].mxu0 %v2242
      %v2732 = vpop.f32.mrb[0].mxu0
      %v2733 = vadd.f32 0.0, %v2732
      %v2734 = vpop.f32.mrb[0].mxu0
      %2735 = vmatprep.mubr.f32.mxu0 0.0
      %2736 = vmatmul.mubr.f32.gmra.mrb[0].mxu0 %v2245
      %v2737 = vpop.f32.mrb[0].mxu0
      %v2738 = vadd.f32 0.0, %v2737
      %v2739 = vpop.f32.mrb[0].mxu0
      %2740 = vmatprep.mubr.f32.mxu0 0.0
      %2741 = vmatmul.mubr.f32.gmra.mrb[0].mxu0 %v2248
      %v2742 = vpop.f32.mrb[0].mxu0
      %v2743 = vadd.f32 0.0, %v2742
      %v2744 = vpop.f32.mrb[0].mxu0
      %2745 = vmatprep.mubr.f32.mxu0 0.0
      %2746 = vmatmul.mubr.f32.gmra.mrb[0].mxu0 %v2251
      %v2747 = vpop.f32.mrb[0].mxu0
      %v2748 = vadd.f32 0.0, %v2747
      %v2749 = vpop.f32.mrb[0].mxu0
      %2750 = vmatprep.mubr.f32.mxu0 0.0
      %2751 = vmatmul.mubr.f32.gmra.mrb[0].mxu0 %v2254
      %v2752 = vpop.f32.mrb[0].mxu0
      %v2753 = vadd.f32 0.0, %v2752
      %v2754 = vpop.f32.mrb[0].mxu0
      %2755 = vmatprep.mubr.f32.mxu0 0.0
      %2756 = vmatmul.mubr.f32.gmra.mrb[0].mxu0 %v2257
      %v2757 = vpop.f32.mrb[0].mxu0
      %v2758 = vadd.f32 0.0, %v2757
      %v2759 = vpop.f32.mrb[0].mxu0
      %2760 = vmatprep.mubr.f32.mxu0 0.0
      %2761 = vmatmul.mubr.f32.gmra.mrb[0].mxu0 %v2260
      %v2762 = vpop.f32.mrb[0].mxu0
      %v2763 = vadd.f32 0.0, %v2762
      %v2764 = vpop.f32.mrb[0].mxu0
      %2765 = vmatprep.mubr.f32.mxu0 0.0
      %2766 = vmatmul.mubr.f32.gmra.mrb[0].mxu0 %v2263
      %v2767 = vpop.f32.mrb[0].mxu0
      %v2768 = vadd.f32 0.0, %v2767
      %v2769 = vpop.f32.mrb[0].mxu0
      %2770 = vmatprep.mubr.f32.mxu0 0.0
      %2771 = vmatmul.mubr.f32.gmra.mrb[0].mxu0 %v2266
      %v2772 = vpop.f32.mrb[0].mxu0
      %v2773 = vadd.f32 0.0, %v2772
      %v2774 = vpop.f32.mrb[0].mxu0
      %2775 = vmatprep.mubr.f32.mxu0 0.0
      %2776 = vmatmul.mubr.f32.gmra.mrb[0].mxu0 %v2269
      %v2777 = vpop.f32.mrb[0].mxu0
      %v2778 = vadd.f32 0.0, %v2777
      %v2779 = vpop.f32.mrb[0].mxu0
      %2780 = vmatprep.mubr.f32.mxu0 0.0
      %2781 = vmatmul.mubr.f32.gmra.mrb[0].mxu0 %v2272
      %v2782 = vpop.f32.mrb[0].mxu0
      %v2783 = vadd.f32 0.0, %v2782
      %v2784 = vpop.f32.mrb[0].mxu0
      %2785 = vmatprep.mubr.f32.mxu0 0.0
      %2786 = vmatmul.mubr.f32.gmra.mrb[0].mxu0 %v2275
      %v2787 = vpop.f32.mrb[0].mxu0
      %v2788 = vadd.f32 0.0, %v2787
      %v2789 = vpop.f32.mrb[0].mxu0
      %2790 = vmatprep.mubr.f32.mxu0 0.0
      %2791 = vmatmul.mubr.f32.gmra.mrb[0].mxu0 %v2278
      %v2792 = vpop.f32.mrb[0].mxu0
      %v2793 = vadd.f32 0.0, %v2792
      %v2794 = vpop.f32.mrb[0].mxu0
      %2795 = vmatprep.mubr.f32.mxu0 0.0
      %2796 = vmatmul.mubr.f32.gmra.mrb[0].mxu0 %v2281
      %v2797 = vpop.f32.mrb[0].mxu0
      %v2798 = vadd.f32 0.0, %v2797
      %v2799 = vpop.f32.mrb[0].mxu0
      %2800 = vmatprep.mubr.f32.mxu0 0.0
      %2801 = vmatmul.mubr.f32.gmra.mrb[0].mxu0 %v2284
      %v2802 = vpop.f32.mrb[0].mxu0
      %v2803 = vadd.f32 0.0, %v2802
      %v2804 = vpop.f32.mrb[0].mxu0
      %2805 = vdwg.mxu0
      %v2806 = vadd.f32 %v1467, %v2353
      %v2807 = vadd.f32 %v1472, %v2358
      %v2808 = vadd.f32 %v1477, %v2363
      %v2809 = vadd.f32 %v1482, %v2368
      %v2810 = vadd.f32 %v1487, %v2373
      %v2811 = vadd.f32 %v1492, %v2378
      %v2812 = vadd.f32 %v1497, %v2383
      %v2813 = vadd.f32 %v1502, %v2388
      %v2814 = vadd.f32 %v1507, %v2393
      %v2815 = vadd.f32 %v1512, %v2398
      %v2816 = vadd.f32 %v1517, %v2403
      %v2817 = vadd.f32 %v1522, %v2408
      %v2818 = vadd.f32 %v1527, %v2413
      %v2819 = vadd.f32 %v1532, %v2418
      %v2820 = vadd.f32 %v1537, %v2423
      %v2821 = vadd.f32 %v1542, %v2428
      %v2822 = vadd.f32 %v1547, %v2433
      %v2823 = vadd.f32 %v1552, %v2438
      %v2824 = vadd.f32 %v1557, %v2443
      %v2825 = vadd.f32 %v1562, %v2448
      %v2826 = vadd.f32 %v1567, %v2453
      %v2827 = vadd.f32 %v1572, %v2458
      %v2828 = vadd.f32 %v1577, %v2463
      %v2829 = vadd.f32 %v1582, %v2468
      %v2830 = vadd.f32 %v1587, %v2473
      %v2831 = vadd.f32 %v1592, %v2478
      %v2832 = vadd.f32 %v1597, %v2483
      %v2833 = vadd.f32 %v1602, %v2488
      %v2834 = vadd.f32 %v1607, %v2493
      %v2835 = vadd.f32 %v1612, %v2498
      %v2836 = vadd.f32 %v1617, %v2503
      %v2837 = vadd.f32 %v1622, %v2508
      %v2838 = vadd.f32 %v1627, %v2513
      %v2839 = vadd.f32 %v1632, %v2518
      %v2840 = vadd.f32 %v1637, %v2523
      %v2841 = vadd.f32 %v1642, %v2528
      %v2842 = vadd.f32 %v1647, %v2533
      %v2843 = vadd.f32 %v1652, %v2538
      %v2844 = vadd.f32 %v1657, %v2543
      %v2845 = vadd.f32 %v1662, %v2548
      %v2846 = vadd.f32 %v1667, %v2553
      %v2847 = vadd.f32 %v1672, %v2558
      %v2848 = vadd.f32 %v1677, %v2563
      %v2849 = vadd.f32 %v1682, %v2568
      %v2850 = vadd.f32 %v1687, %v2573
      %v2851 = vadd.f32 %v1692, %v2578
      %v2852 = vadd.f32 %v1697, %v2583
      %v2853 = vadd.f32 %v1702, %v2588
      %v2854 = vadd.f32 %v1707, %v2593
      %v2855 = vadd.f32 %v1712, %v2598
      %v2856 = vadd.f32 %v1717, %v2603
      %v2857 = vadd.f32 %v1722, %v2608
      %v2858 = vadd.f32 %v1727, %v2613
      %v2859 = vadd.f32 %v1732, %v2618
      %v2860 = vadd.f32 %v1737, %v2623
      %v2861 = vadd.f32 %v1742, %v2628
      %v2862 = vadd.f32 %v1747, %v2633
      %v2863 = vadd.f32 %v1752, %v2638
      %v2864 = vadd.f32 %v1757, %v2643
      %v2865 = vadd.f32 %v1762, %v2648
      %v2866 = vadd.f32 %v1767, %v2653
      %v2867 = vadd.f32 %v1772, %v2658
      %v2868 = vadd.f32 %v1777, %v2663
      %v2869 = vadd.f32 %v1782, %v2668
      %v2870 = vadd.f32 %v1787, %v2673
      %v2871 = vadd.f32 %v1792, %v2678
      %v2872 = vadd.f32 %v1797, %v2683
      %v2873 = vadd.f32 %v1802, %v2688
      %v2874 = vadd.f32 %v1807, %v2693
      %v2875 = vadd.f32 %v1812, %v2698
      %v2876 = vadd.f32 %v1817, %v2703
      %v2877 = vadd.f32 %v1822, %v2708
      %v2878 = vadd.f32 %v1827, %v2713
      %v2879 = vadd.f32 %v1832, %v2718
      %v2880 = vadd.f32 %v1837, %v2723
      %v2881 = vadd.f32 %v1842, %v2728
      %v2882 = vadd.f32 %v1847, %v2733
      %v2883 = vadd.f32 %v1852, %v2738
      %v2884 = vadd.f32 %v1857, %v2743
      %v2885 = vadd.f32 %v1862, %v2748
      %v2886 = vadd.f32 %v1867, %v2753
      %v2887 = vadd.f32 %v1872, %v2758
      %v2888 = vadd.f32 %v1877, %v2763
      %v2889 = vadd.f32 %v1882, %v2768
      %v2890 = vadd.f32 %v1887, %v2773
      %v2891 = vadd.f32 %v1892, %v2778
      %v2892 = vadd.f32 %v1897, %v2783
      %v2893 = vadd.f32 %v1902, %v2788
      %v2894 = vadd.f32 %v1907, %v2793
      %v2895 = vadd.f32 %v1912, %v2798
      %v2896 = vadd.f32 %v1917, %v2803
      %v2897 = vld [vmem:[%s139 + $0x36] sm:$0xff]
      %v2898 = vld [vmem:[%s139 + $0x3e] sm:$0xff]
      %v2899 = vld [vmem:[%s139 + $0x46] sm:$0xff]
      %v2900 = vld [vmem:[%s139 + $0x4e] sm:$0xff]
      %v2901 = vld [vmem:[%s139 + $0x56] sm:$0xff]
      %v2902 = vld [vmem:[%s139 + $0x5e] sm:$0xff]
      %v2903 = vld [vmem:[%s139 + $0x66] sm:$0xff]
      %v2904 = vld [vmem:[%s139 + $0x6e] sm:$0xff]
      %v2905 = vld [vmem:[%s139 + $0x76] sm:$0xff]
      %v2906 = vld [vmem:[%s139 + $0x7e] sm:$0xff]
      %v2907 = vld [vmem:[%s139 + $0x86] sm:$0xff]
      %v2908 = vld [vmem:[%s139 + $0x8e] sm:$0xff]
      %v2909 = vld [vmem:[%s139 + $0x96] sm:$0xff]
      %v2910 = vld [vmem:[%s139 + $0x9e] sm:$0xff]
      %v2911 = vld [vmem:[%s139 + $0xa6] sm:$0xff]
      %v2912 = vld [vmem:[%s139 + $0xae] sm:$0xff]
      %v2913 = vld [vmem:[%s139 + $0xb6] sm:$0xff]
      %v2914 = vld [vmem:[%s139 + $0xbe] sm:$0xff]
      %v2915 = vld [vmem:[%s139 + $0xc6] sm:$0xff]
      %v2916 = vld [vmem:[%s139 + $0xce] sm:$0xff]
      %v2917 = vld [vmem:[%s139 + $0xd6] sm:$0xff]
      %v2918 = vld [vmem:[%s139 + $0xde] sm:$0xff]
      %v2919 = vld [vmem:[%s139 + $0xe6] sm:$0xff]
      %v2920 = vld [vmem:[%s139 + $0xee] sm:$0xff]
      %v2921 = vld [vmem:[%s139 + $0xf6] sm:$0xff]
      %v2922 = vld [vmem:[%s139 + $0xfe] sm:$0xff]
      %v2923 = vld [vmem:[%s139 + $0x106] sm:$0xff]
      %v2924 = vld [vmem:[%s139 + $0x10e] sm:$0xff]
      %v2925 = vld [vmem:[%s139 + $0x116] sm:$0xff]
      %v2926 = vld [vmem:[%s139 + $0x11e] sm:$0xff]
      %v2927 = vld [vmem:[%s139 + $0x126] sm:$0xff]
      %v2928 = vld [vmem:[%s139 + $0x12e] sm:$0xff]
      %v2929 = vld [vmem:[%s139 + $0x136] sm:$0xff]
      %v2930 = vld [vmem:[%s139 + $0x13e] sm:$0xff]
      %v2931 = vld [vmem:[%s139 + $0x146] sm:$0xff]
      %v2932 = vld [vmem:[%s139 + $0x14e] sm:$0xff]
      %v2933 = vld [vmem:[%s139 + $0x156] sm:$0xff]
      %v2934 = vld [vmem:[%s139 + $0x15e] sm:$0xff]
      %v2935 = vld [vmem:[%s139 + $0x166] sm:$0xff]
      %v2936 = vld [vmem:[%s139 + $0x16e] sm:$0xff]
      %v2937 = vld [vmem:[%s139 + $0x176] sm:$0xff]
      %v2938 = vld [vmem:[%s139 + $0x17e] sm:$0xff]
      %v2939 = vld [vmem:[%s139 + $0x186] sm:$0xff]
      %v2940 = vld [vmem:[%s139 + $0x18e] sm:$0xff]
      %v2941 = vld [vmem:[%s139 + $0x196] sm:$0xff]
      %v2942 = vld [vmem:[%s139 + $0x19e] sm:$0xff]
      %v2943 = vld [vmem:[%s139 + $0x1a6] sm:$0xff]
      %v2944 = vld [vmem:[%s139 + $0x1ae] sm:$0xff]
      %v2945 = vld [vmem:[%s139 + $0x1b6] sm:$0xff]
      %v2946 = vld [vmem:[%s139 + $0x1be] sm:$0xff]
      %v2947 = vld [vmem:[%s139 + $0x1c6] sm:$0xff]
      %v2948 = vld [vmem:[%s139 + $0x1ce] sm:$0xff]
      %v2949 = vld [vmem:[%s139 + $0x1d6] sm:$0xff]
      %v2950 = vld [vmem:[%s139 + $0x1de] sm:$0xff]
      %v2951 = vld [vmem:[%s139 + $0x1e6] sm:$0xff]
      %v2952 = vld [vmem:[%s139 + $0x1ee] sm:$0xff]
      %v2953 = vld [vmem:[%s139 + $0x1f6] sm:$0xff]
      %v2954 = vld [vmem:[%s139 + $0x1fe] sm:$0xff]
      %v2955 = vld [vmem:[%s139 + $0x206] sm:$0xff]
      %v2956 = vld [vmem:[%s139 + $0x20e] sm:$0xff]
      %v2957 = vld [vmem:[%s139 + $0x216] sm:$0xff]
      %v2958 = vld [vmem:[%s139 + $0x21e] sm:$0xff]
      %v2959 = vld [vmem:[%s139 + $0x226] sm:$0xff]
      %v2960 = vld [vmem:[%s139 + $0x22e] sm:$0xff]
      %v2961 = vld [vmem:[%s139 + $0x236] sm:$0xff]
      %v2962 = vld [vmem:[%s139 + $0x23e] sm:$0xff]
      %v2963 = vld [vmem:[%s139 + $0x246] sm:$0xff]
      %v2964 = vld [vmem:[%s139 + $0x24e] sm:$0xff]
      %v2965 = vld [vmem:[%s139 + $0x256] sm:$0xff]
      %v2966 = vld [vmem:[%s139 + $0x25e] sm:$0xff]
      %v2967 = vld [vmem:[%s139 + $0x266] sm:$0xff]
      %v2968 = vld [vmem:[%s139 + $0x26e] sm:$0xff]
      %v2969 = vld [vmem:[%s139 + $0x276] sm:$0xff]
      %v2970 = vld [vmem:[%s139 + $0x27e] sm:$0xff]
      %v2971 = vld [vmem:[%s139 + $0x286] sm:$0xff]
      %v2972 = vld [vmem:[%s139 + $0x28e] sm:$0xff]
      %v2973 = vld [vmem:[%s139 + $0x296] sm:$0xff]
      %v2974 = vld [vmem:[%s139 + $0x29e] sm:$0xff]
      %v2975 = vld [vmem:[%s139 + $0x2a6] sm:$0xff]
      %v2976 = vld [vmem:[%s139 + $0x2ae] sm:$0xff]
      %v2977 = vld [vmem:[%s139 + $0x2b6] sm:$0xff]
      %v2978 = vld [vmem:[%s139 + $0x2be] sm:$0xff]
      %v2979 = vld [vmem:[%s139 + $0x2c6] sm:$0xff]
      %v2980 = vld [vmem:[%s139 + $0x2ce] sm:$0xff]
      %v2981 = vld [vmem:[%s139 + $0x2d6] sm:$0xff]
      %v2982 = vld [vmem:[%s139 + $0x2de] sm:$0xff]
      %v2983 = vld [vmem:[%s139 + $0x2e6] sm:$0xff]
      %v2984 = vld [vmem:[%s139 + $0x2ee] sm:$0xff]
      %v2985 = vld [vmem:[%s139 + $0x2f6] sm:$0xff]
      %v2986 = vld [vmem:[%s139 + $0x2fe] sm:$0xff]
      %v2987 = vld [vmem:[%s139 + $0x306] sm:$0xff]
      %v2988 = vld [vmem:[%s1 + $0x30] sm:$0xff]
      %v2989 = vld [vmem:[%s1 + $0x38] sm:$0xff]
      %v2991 = vsel %vm333, %v2897, 0
      %v2994 = vsel %vm333, %v2898, 0
      %v2997 = vsel %vm333, %v2899, 0
      %v3000 = vsel %vm333, %v2900, 0
      %v3003 = vsel %vm333, %v2901, 0
      %v3006 = vsel %vm333, %v2902, 0
      %v3009 = vsel %vm333, %v2903, 0
      %v3012 = vsel %vm333, %v2904, 0
      %v3015 = vsel %vm333, %v2905, 0
      %v3018 = vsel %vm333, %v2906, 0
      %v3021 = vsel %vm333, %v2907, 0
      %v3024 = vsel %vm333, %v2908, 0
      %v3027 = vsel %vm333, %v2909, 0
      %v3030 = vsel %vm333, %v2910, 0
      %v3033 = vsel %vm333, %v2911, 0
      %v3036 = vsel %vm333, %v2912, 0
      %v3039 = vsel %vm333, %v2913, 0
      %v3042 = vsel %vm333, %v2914, 0
      %v3045 = vsel %vm333, %v2915, 0
      %v3048 = vsel %vm333, %v2916, 0
      %v3051 = vsel %vm333, %v2917, 0
      %v3054 = vsel %vm333, %v2918, 0
      %v3057 = vsel %vm333, %v2919, 0
      %v3060 = vsel %vm333, %v2920, 0
      %v3063 = vsel %vm333, %v2921, 0
      %v3066 = vsel %vm333, %v2922, 0
      %v3069 = vsel %vm333, %v2923, 0
      %v3072 = vsel %vm333, %v2924, 0
      %v3075 = vsel %vm333, %v2925, 0
      %v3078 = vsel %vm333, %v2926, 0
      %v3081 = vsel %vm333, %v2927, 0
      %v3084 = vsel %vm333, %v2928, 0
      %v3087 = vsel %vm333, %v2929, 0
      %v3090 = vsel %vm333, %v2930, 0
      %v3093 = vsel %vm333, %v2931, 0
      %v3096 = vsel %vm333, %v2932, 0
      %v3099 = vsel %vm333, %v2933, 0
      %v3102 = vsel %vm333, %v2934, 0
      %v3105 = vsel %vm333, %v2935, 0
      %v3108 = vsel %vm333, %v2936, 0
      %v3111 = vsel %vm333, %v2937, 0
      %v3114 = vsel %vm333, %v2938, 0
      %v3117 = vsel %vm333, %v2939, 0
      %v3120 = vsel %vm333, %v2940, 0
      %v3123 = vsel %vm333, %v2941, 0
      %v3126 = vsel %vm333, %v2942, 0
      %v3129 = vsel %vm333, %v2943, 0
      %v3132 = vsel %vm333, %v2944, 0
      %v3135 = vsel %vm333, %v2945, 0
      %v3138 = vsel %vm333, %v2946, 0
      %v3141 = vsel %vm333, %v2947, 0
      %v3144 = vsel %vm333, %v2948, 0
      %v3147 = vsel %vm333, %v2949, 0
      %v3150 = vsel %vm333, %v2950, 0
      %v3153 = vsel %vm333, %v2951, 0
      %v3156 = vsel %vm333, %v2952, 0
      %v3159 = vsel %vm333, %v2953, 0
      %v3162 = vsel %vm333, %v2954, 0
      %v3165 = vsel %vm333, %v2955, 0
      %v3168 = vsel %vm333, %v2956, 0
      %v3171 = vsel %vm333, %v2957, 0
      %v3174 = vsel %vm333, %v2958, 0
      %v3177 = vsel %vm333, %v2959, 0
      %v3180 = vsel %vm333, %v2960, 0
      %v3183 = vsel %vm333, %v2961, 0
      %v3186 = vsel %vm333, %v2962, 0
      %v3189 = vsel %vm333, %v2963, 0
      %v3192 = vsel %vm333, %v2964, 0
      %v3195 = vsel %vm333, %v2965, 0
      %v3198 = vsel %vm333, %v2966, 0
      %v3201 = vsel %vm333, %v2967, 0
      %v3204 = vsel %vm333, %v2968, 0
      %v3207 = vsel %vm333, %v2969, 0
      %v3210 = vsel %vm333, %v2970, 0
      %v3213 = vsel %vm333, %v2971, 0
      %v3216 = vsel %vm333, %v2972, 0
      %v3219 = vsel %vm333, %v2973, 0
      %v3222 = vsel %vm333, %v2974, 0
      %v3225 = vsel %vm333, %v2975, 0
      %v3228 = vsel %vm333, %v2976, 0
      %v3231 = vsel %vm333, %v2977, 0
      %v3234 = vsel %vm333, %v2978, 0
      %v3237 = vsel %vm333, %v2979, 0
      %v3240 = vsel %vm333, %v2980, 0
      %v3243 = vsel %vm333, %v2981, 0
      %v3246 = vsel %vm333, %v2982, 0
      %v3249 = vsel %vm333, %v2983, 0
      %v3252 = vsel %vm333, %v2984, 0
      %v3255 = vsel %vm333, %v2985, 0
      %v3258 = vsel %vm333, %v2986, 0
      %v3261 = vsel %vm333, %v2987, 0
      %3263 = vmatprep.subr.mxu0 0.0
      %3264 = vmatpush1.msra.mxu0 %v2988
      %3265 = vmatprep.subr.mxu0 0.0
      %3266 = vmatpush1.msra.mxu0 %v2989
      %3267 = vmatprep.subr.mxu0 0.0
      %3268 = vmatpush1.msra.mxu0 0.0
      %3269 = vmatprep.subr.mxu0 0.0
      %3270 = vmatpush1.msra.mxu0 0.0
      %3271 = vmatprep.subr.mxu0 0.0
      %3272 = vmatpush1.msra.mxu0 0.0
      %3273 = vmatprep.subr.mxu0 0.0
      %3274 = vmatpush1.msra.mxu0 0.0
      %3275 = vmatprep.subr.mxu0 0.0
      %3276 = vmatpush1.msra.mxu0 0.0
      %3277 = vmatprep.subr.mxu0 0.0
      %3278 = vmatpush1.msra.mxu0 0.0
      %3279 = vmatprep.subr.mxu0 0.0
      %3280 = vmatpush1.msra.mxu0 0.0
      %3281 = vmatprep.subr.mxu0 0.0
      %3282 = vmatpush1.msra.mxu0 0.0
      %3283 = vmatprep.subr.mxu0 0.0
      %3284 = vmatpush1.msra.mxu0 0.0
      %3285 = vmatprep.subr.mxu0 0.0
      %3286 = vmatpush1.msra.mxu0 0.0
      %3287 = vmatprep.subr.mxu0 0.0
      %3288 = vmatpush1.msra.mxu0 0.0
      %3289 = vmatprep.subr.mxu0 0.0
      %3290 = vmatpush1.msra.mxu0 0.0
      %3291 = vmatprep.subr.mxu0 0.0
      %3292 = vmatpush1.msra.mxu0 0.0
      %3293 = vmatprep.subr.mxu0 0.0
      %3294 = vmatpush1.msra.mxu0 0.0
      %3295 = vmatprep.subr.mxu0 0.0
      %3296 = vmatpush1.msra.mxu0 0.0
      %3297 = vmatprep.subr.mxu0 0.0
      %3298 = vmatpush1.msra.mxu0 0.0
      %3299 = vmatprep.subr.mxu0 0.0
      %3300 = vmatpush1.msra.mxu0 0.0
      %3301 = vmatprep.subr.mxu0 0.0
      %3302 = vmatpush1.msra.mxu0 0.0
      %3303 = vmatprep.subr.mxu0 0.0
      %3304 = vmatpush1.msra.mxu0 0.0
      %3305 = vmatprep.subr.mxu0 0.0
      %3306 = vmatpush1.msra.mxu0 0.0
      %3307 = vmatprep.subr.mxu0 0.0
      %3308 = vmatpush1.msra.mxu0 0.0
      %3309 = vmatprep.subr.mxu0 0.0
      %3310 = vmatpush1.msra.mxu0 0.0
      %3311 = vmatprep.subr.mxu0 0.0
      %3312 = vmatpush1.msra.mxu0 0.0
      %3313 = vmatprep.subr.mxu0 0.0
      %3314 = vmatpush1.msra.mxu0 0.0
      %3315 = vmatprep.subr.mxu0 0.0
      %3316 = vmatpush1.msra.mxu0 0.0
      %3317 = vmatprep.subr.mxu0 0.0
      %3318 = vmatpush1.msra.mxu0 0.0
      %3319 = vmatprep.subr.mxu0 0.0
      %3320 = vmatpush1.msra.mxu0 0.0
      %3321 = vmatprep.subr.mxu0 0.0
      %3322 = vmatpush1.msra.mxu0 0.0
      %3323 = vmatprep.subr.mxu0 0.0
      %3324 = vmatpush1.msra.mxu0 0.0
      %3325 = vmatprep.subr.mxu0 0.0
      %3326 = vmatpush1.msra.mxu0 0.0
      %3327 = vmatprep.mubr.f32.mxu0 0.0
      %3328 = vmatmul.mubr.f32.gmra.mrb[0].mxu0 %v2991
      %v3329 = vpop.f32.mrb[0].mxu0
      %v3330 = vadd.f32 0.0, %v3329
      %v3331 = vpop.f32.mrb[0].mxu0
      %3332 = vmatprep.mubr.f32.mxu0 0.0
      %3333 = vmatmul.mubr.f32.gmra.mrb[0].mxu0 %v2994
      %v3334 = vpop.f32.mrb[0].mxu0
      %v3335 = vadd.f32 0.0, %v3334
      %v3336 = vpop.f32.mrb[0].mxu0
      %3337 = vmatprep.mubr.f32.mxu0 0.0
      %3338 = vmatmul.mubr.f32.gmra.mrb[0].mxu0 %v2997
      %v3339 = vpop.f32.mrb[0].mxu0
      %v3340 = vadd.f32 0.0, %v3339
      %v3341 = vpop.f32.mrb[0].mxu0
      %3342 = vmatprep.mubr.f32.mxu0 0.0
      %3343 = vmatmul.mubr.f32.gmra.mrb[0].mxu0 %v3000
      %v3344 = vpop.f32.mrb[0].mxu0
      %v3345 = vadd.f32 0.0, %v3344
      %v3346 = vpop.f32.mrb[0].mxu0
      %3347 = vmatprep.mubr.f32.mxu0 0.0
      %3348 = vmatmul.mubr.f32.gmra.mrb[0].mxu0 %v3003
      %v3349 = vpop.f32.mrb[0].mxu0
      %v3350 = vadd.f32 0.0, %v3349
      %v3351 = vpop.f32.mrb[0].mxu0
      %3352 = vmatprep.mubr.f32.mxu0 0.0
      %3353 = vmatmul.mubr.f32.gmra.mrb[0].mxu0 %v3006
      %v3354 = vpop.f32.mrb[0].mxu0
      %v3355 = vadd.f32 0.0, %v3354
      %v3356 = vpop.f32.mrb[0].mxu0
      %3357 = vmatprep.mubr.f32.mxu0 0.0
      %3358 = vmatmul.mubr.f32.gmra.mrb[0].mxu0 %v3009
      %v3359 = vpop.f32.mrb[0].mxu0
      %v3360 = vadd.f32 0.0, %v3359
      %v3361 = vpop.f32.mrb[0].mxu0
      %3362 = vmatprep.mubr.f32.mxu0 0.0
      %3363 = vmatmul.mubr.f32.gmra.mrb[0].mxu0 %v3012
      %v3364 = vpop.f32.mrb[0].mxu0
      %v3365 = vadd.f32 0.0, %v3364
      %v3366 = vpop.f32.mrb[0].mxu0
      %3367 = vmatprep.mubr.f32.mxu0 0.0
      %3368 = vmatmul.mubr.f32.gmra.mrb[0].mxu0 %v3015
      %v3369 = vpop.f32.mrb[0].mxu0
      %v3370 = vadd.f32 0.0, %v3369
      %v3371 = vpop.f32.mrb[0].mxu0
      %3372 = vmatprep.mubr.f32.mxu0 0.0
      %3373 = vmatmul.mubr.f32.gmra.mrb[0].mxu0 %v3018
      %v3374 = vpop.f32.mrb[0].mxu0
      %v3375 = vadd.f32 0.0, %v3374
      %v3376 = vpop.f32.mrb[0].mxu0
      %3377 = vmatprep.mubr.f32.mxu0 0.0
      %3378 = vmatmul.mubr.f32.gmra.mrb[0].mxu0 %v3021
      %v3379 = vpop.f32.mrb[0].mxu0
      %v3380 = vadd.f32 0.0, %v3379
      %v3381 = vpop.f32.mrb[0].mxu0
      %3382 = vmatprep.mubr.f32.mxu0 0.0
      %3383 = vmatmul.mubr.f32.gmra.mrb[0].mxu0 %v3024
      %v3384 = vpop.f32.mrb[0].mxu0
      %v3385 = vadd.f32 0.0, %v3384
      %v3386 = vpop.f32.mrb[0].mxu0
      %3387 = vmatprep.mubr.f32.mxu0 0.0
      %3388 = vmatmul.mubr.f32.gmra.mrb[0].mxu0 %v3027
      %v3389 = vpop.f32.mrb[0].mxu0
      %v3390 = vadd.f32 0.0, %v3389
      %v3391 = vpop.f32.mrb[0].mxu0
      %3392 = vmatprep.mubr.f32.mxu0 0.0
      %3393 = vmatmul.mubr.f32.gmra.mrb[0].mxu0 %v3030
      %v3394 = vpop.f32.mrb[0].mxu0
      %v3395 = vadd.f32 0.0, %v3394
      %v3396 = vpop.f32.mrb[0].mxu0
      %3397 = vmatprep.mubr.f32.mxu0 0.0
      %3398 = vmatmul.mubr.f32.gmra.mrb[0].mxu0 %v3033
      %v3399 = vpop.f32.mrb[0].mxu0
      %v3400 = vadd.f32 0.0, %v3399
      %v3401 = vpop.f32.mrb[0].mxu0
      %3402 = vmatprep.mubr.f32.mxu0 0.0
      %3403 = vmatmul.mubr.f32.gmra.mrb[0].mxu0 %v3036
      %v3404 = vpop.f32.mrb[0].mxu0
      %v3405 = vadd.f32 0.0, %v3404
      %v3406 = vpop.f32.mrb[0].mxu0
      %3407 = vmatprep.mubr.f32.mxu0 0.0
      %3408 = vmatmul.mubr.f32.gmra.mrb[0].mxu0 %v3039
      %v3409 = vpop.f32.mrb[0].mxu0
      %v3410 = vadd.f32 0.0, %v3409
      %v3411 = vpop.f32.mrb[0].mxu0
      %3412 = vmatprep.mubr.f32.mxu0 0.0
      %3413 = vmatmul.mubr.f32.gmra.mrb[0].mxu0 %v3042
      %v3414 = vpop.f32.mrb[0].mxu0
      %v3415 = vadd.f32 0.0, %v3414
      %v3416 = vpop.f32.mrb[0].mxu0
      %3417 = vmatprep.mubr.f32.mxu0 0.0
      %3418 = vmatmul.mubr.f32.gmra.mrb[0].mxu0 %v3045
      %v3419 = vpop.f32.mrb[0].mxu0
      %v3420 = vadd.f32 0.0, %v3419
      %v3421 = vpop.f32.mrb[0].mxu0
      %3422 = vmatprep.mubr.f32.mxu0 0.0
      %3423 = vmatmul.mubr.f32.gmra.mrb[0].mxu0 %v3048
      %v3424 = vpop.f32.mrb[0].mxu0
      %v3425 = vadd.f32 0.0, %v3424
      %v3426 = vpop.f32.mrb[0].mxu0
      %3427 = vmatprep.mubr.f32.mxu0 0.0
      %3428 = vmatmul.mubr.f32.gmra.mrb[0].mxu0 %v3051
      %v3429 = vpop.f32.mrb[0].mxu0
      %v3430 = vadd.f32 0.0, %v3429
      %v3431 = vpop.f32.mrb[0].mxu0
      %3432 = vmatprep.mubr.f32.mxu0 0.0
      %3433 = vmatmul.mubr.f32.gmra.mrb[0].mxu0 %v3054
      %v3434 = vpop.f32.mrb[0].mxu0
      %v3435 = vadd.f32 0.0, %v3434
      %v3436 = vpop.f32.mrb[0].mxu0
      %3437 = vmatprep.mubr.f32.mxu0 0.0
      %3438 = vmatmul.mubr.f32.gmra.mrb[0].mxu0 %v3057
      %v3439 = vpop.f32.mrb[0].mxu0
      %v3440 = vadd.f32 0.0, %v3439
      %v3441 = vpop.f32.mrb[0].mxu0
      %3442 = vmatprep.mubr.f32.mxu0 0.0
      %3443 = vmatmul.mubr.f32.gmra.mrb[0].mxu0 %v3060
      %v3444 = vpop.f32.mrb[0].mxu0
      %v3445 = vadd.f32 0.0, %v3444
      %v3446 = vpop.f32.mrb[0].mxu0
      %3447 = vmatprep.mubr.f32.mxu0 0.0
      %3448 = vmatmul.mubr.f32.gmra.mrb[0].mxu0 %v3063
      %v3449 = vpop.f32.mrb[0].mxu0
      %v3450 = vadd.f32 0.0, %v3449
      %v3451 = vpop.f32.mrb[0].mxu0
      %3452 = vmatprep.mubr.f32.mxu0 0.0
      %3453 = vmatmul.mubr.f32.gmra.mrb[0].mxu0 %v3066
      %v3454 = vpop.f32.mrb[0].mxu0
      %v3455 = vadd.f32 0.0, %v3454
      %v3456 = vpop.f32.mrb[0].mxu0
      %3457 = vmatprep.mubr.f32.mxu0 0.0
      %3458 = vmatmul.mubr.f32.gmra.mrb[0].mxu0 %v3069
      %v3459 = vpop.f32.mrb[0].mxu0
      %v3460 = vadd.f32 0.0, %v3459
      %v3461 = vpop.f32.mrb[0].mxu0
      %3462 = vmatprep.mubr.f32.mxu0 0.0
      %3463 = vmatmul.mubr.f32.gmra.mrb[0].mxu0 %v3072
      %v3464 = vpop.f32.mrb[0].mxu0
      %v3465 = vadd.f32 0.0, %v3464
      %v3466 = vpop.f32.mrb[0].mxu0
      %3467 = vmatprep.mubr.f32.mxu0 0.0
      %3468 = vmatmul.mubr.f32.gmra.mrb[0].mxu0 %v3075
      %v3469 = vpop.f32.mrb[0].mxu0
      %v3470 = vadd.f32 0.0, %v3469
      %v3471 = vpop.f32.mrb[0].mxu0
      %3472 = vmatprep.mubr.f32.mxu0 0.0
      %3473 = vmatmul.mubr.f32.gmra.mrb[0].mxu0 %v3078
      %v3474 = vpop.f32.mrb[0].mxu0
      %v3475 = vadd.f32 0.0, %v3474
      %v3476 = vpop.f32.mrb[0].mxu0
      %3477 = vmatprep.mubr.f32.mxu0 0.0
      %3478 = vmatmul.mubr.f32.gmra.mrb[0].mxu0 %v3081
      %v3479 = vpop.f32.mrb[0].mxu0
      %v3480 = vadd.f32 0.0, %v3479
      %v3481 = vpop.f32.mrb[0].mxu0
      %3482 = vmatprep.mubr.f32.mxu0 0.0
      %3483 = vmatmul.mubr.f32.gmra.mrb[0].mxu0 %v3084
      %v3484 = vpop.f32.mrb[0].mxu0
      %v3485 = vadd.f32 0.0, %v3484
      %v3486 = vpop.f32.mrb[0].mxu0
      %3487 = vmatprep.mubr.f32.mxu0 0.0
      %3488 = vmatmul.mubr.f32.gmra.mrb[0].mxu0 %v3087
      %v3489 = vpop.f32.mrb[0].mxu0
      %v3490 = vadd.f32 0.0, %v3489
      %v3491 = vpop.f32.mrb[0].mxu0
      %3492 = vmatprep.mubr.f32.mxu0 0.0
      %3493 = vmatmul.mubr.f32.gmra.mrb[0].mxu0 %v3090
      %v3494 = vpop.f32.mrb[0].mxu0
      %v3495 = vadd.f32 0.0, %v3494
      %v3496 = vpop.f32.mrb[0].mxu0
      %3497 = vmatprep.mubr.f32.mxu0 0.0
      %3498 = vmatmul.mubr.f32.gmra.mrb[0].mxu0 %v3093
      %v3499 = vpop.f32.mrb[0].mxu0
      %v3500 = vadd.f32 0.0, %v3499
      %v3501 = vpop.f32.mrb[0].mxu0
      %3502 = vmatprep.mubr.f32.mxu0 0.0
      %3503 = vmatmul.mubr.f32.gmra.mrb[0].mxu0 %v3096
      %v3504 = vpop.f32.mrb[0].mxu0
      %v3505 = vadd.f32 0.0, %v3504
      %v3506 = vpop.f32.mrb[0].mxu0
      %3507 = vmatprep.mubr.f32.mxu0 0.0
      %3508 = vmatmul.mubr.f32.gmra.mrb[0].mxu0 %v3099
      %v3509 = vpop.f32.mrb[0].mxu0
      %v3510 = vadd.f32 0.0, %v3509
      %v3511 = vpop.f32.mrb[0].mxu0
      %3512 = vmatprep.mubr.f32.mxu0 0.0
      %3513 = vmatmul.mubr.f32.gmra.mrb[0].mxu0 %v3102
      %v3514 = vpop.f32.mrb[0].mxu0
      %v3515 = vadd.f32 0.0, %v3514
      %v3516 = vpop.f32.mrb[0].mxu0
      %3517 = vmatprep.mubr.f32.mxu0 0.0
      %3518 = vmatmul.mubr.f32.gmra.mrb[0].mxu0 %v3105
      %v3519 = vpop.f32.mrb[0].mxu0
      %v3520 = vadd.f32 0.0, %v3519
      %v3521 = vpop.f32.mrb[0].mxu0
      %3522 = vmatprep.mubr.f32.mxu0 0.0
      %3523 = vmatmul.mubr.f32.gmra.mrb[0].mxu0 %v3108
      %v3524 = vpop.f32.mrb[0].mxu0
      %v3525 = vadd.f32 0.0, %v3524
      %v3526 = vpop.f32.mrb[0].mxu0
      %3527 = vmatprep.mubr.f32.mxu0 0.0
      %3528 = vmatmul.mubr.f32.gmra.mrb[0].mxu0 %v3111
      %v3529 = vpop.f32.mrb[0].mxu0
      %v3530 = vadd.f32 0.0, %v3529
      %v3531 = vpop.f32.mrb[0].mxu0
      %3532 = vmatprep.mubr.f32.mxu0 0.0
      %3533 = vmatmul.mubr.f32.gmra.mrb[0].mxu0 %v3114
      %v3534 = vpop.f32.mrb[0].mxu0
      %v3535 = vadd.f32 0.0, %v3534
      %v3536 = vpop.f32.mrb[0].mxu0
      %3537 = vmatprep.mubr.f32.mxu0 0.0
      %3538 = vmatmul.mubr.f32.gmra.mrb[0].mxu0 %v3117
      %v3539 = vpop.f32.mrb[0].mxu0
      %v3540 = vadd.f32 0.0, %v3539
      %v3541 = vpop.f32.mrb[0].mxu0
      %3542 = vmatprep.mubr.f32.mxu0 0.0
      %3543 = vmatmul.mubr.f32.gmra.mrb[0].mxu0 %v3120
      %v3544 = vpop.f32.mrb[0].mxu0
      %v3545 = vadd.f32 0.0, %v3544
      %v3546 = vpop.f32.mrb[0].mxu0
      %3547 = vmatprep.mubr.f32.mxu0 0.0
      %3548 = vmatmul.mubr.f32.gmra.mrb[0].mxu0 %v3123
      %v3549 = vpop.f32.mrb[0].mxu0
      %v3550 = vadd.f32 0.0, %v3549
      %v3551 = vpop.f32.mrb[0].mxu0
      %3552 = vmatprep.mubr.f32.mxu0 0.0
      %3553 = vmatmul.mubr.f32.gmra.mrb[0].mxu0 %v3126
      %v3554 = vpop.f32.mrb[0].mxu0
      %v3555 = vadd.f32 0.0, %v3554
      %v3556 = vpop.f32.mrb[0].mxu0
      %3557 = vmatprep.mubr.f32.mxu0 0.0
      %3558 = vmatmul.mubr.f32.gmra.mrb[0].mxu0 %v3129
      %v3559 = vpop.f32.mrb[0].mxu0
      %v3560 = vadd.f32 0.0, %v3559
      %v3561 = vpop.f32.mrb[0].mxu0
      %3562 = vmatprep.mubr.f32.mxu0 0.0
      %3563 = vmatmul.mubr.f32.gmra.mrb[0].mxu0 %v3132
      %v3564 = vpop.f32.mrb[0].mxu0
      %v3565 = vadd.f32 0.0, %v3564
      %v3566 = vpop.f32.mrb[0].mxu0
      %3567 = vmatprep.mubr.f32.mxu0 0.0
      %3568 = vmatmul.mubr.f32.gmra.mrb[0].mxu0 %v3135
      %v3569 = vpop.f32.mrb[0].mxu0
      %v3570 = vadd.f32 0.0, %v3569
      %v3571 = vpop.f32.mrb[0].mxu0
      %3572 = vmatprep.mubr.f32.mxu0 0.0
      %3573 = vmatmul.mubr.f32.gmra.mrb[0].mxu0 %v3138
      %v3574 = vpop.f32.mrb[0].mxu0
      %v3575 = vadd.f32 0.0, %v3574
      %v3576 = vpop.f32.mrb[0].mxu0
      %3577 = vmatprep.mubr.f32.mxu0 0.0
      %3578 = vmatmul.mubr.f32.gmra.mrb[0].mxu0 %v3141
      %v3579 = vpop.f32.mrb[0].mxu0
      %v3580 = vadd.f32 0.0, %v3579
      %v3581 = vpop.f32.mrb[0].mxu0
      %3582 = vmatprep.mubr.f32.mxu0 0.0
      %3583 = vmatmul.mubr.f32.gmra.mrb[0].mxu0 %v3144
      %v3584 = vpop.f32.mrb[0].mxu0
      %v3585 = vadd.f32 0.0, %v3584
      %v3586 = vpop.f32.mrb[0].mxu0
      %3587 = vmatprep.mubr.f32.mxu0 0.0
      %3588 = vmatmul.mubr.f32.gmra.mrb[0].mxu0 %v3147
      %v3589 = vpop.f32.mrb[0].mxu0
      %v3590 = vadd.f32 0.0, %v3589
      %v3591 = vpop.f32.mrb[0].mxu0
      %3592 = vmatprep.mubr.f32.mxu0 0.0
      %3593 = vmatmul.mubr.f32.gmra.mrb[0].mxu0 %v3150
      %v3594 = vpop.f32.mrb[0].mxu0
      %v3595 = vadd.f32 0.0, %v3594
      %v3596 = vpop.f32.mrb[0].mxu0
      %3597 = vmatprep.mubr.f32.mxu0 0.0
      %3598 = vmatmul.mubr.f32.gmra.mrb[0].mxu0 %v3153
      %v3599 = vpop.f32.mrb[0].mxu0
      %v3600 = vadd.f32 0.0, %v3599
      %v3601 = vpop.f32.mrb[0].mxu0
      %3602 = vmatprep.mubr.f32.mxu0 0.0
      %3603 = vmatmul.mubr.f32.gmra.mrb[0].mxu0 %v3156
      %v3604 = vpop.f32.mrb[0].mxu0
      %v3605 = vadd.f32 0.0, %v3604
      %v3606 = vpop.f32.mrb[0].mxu0
      %3607 = vmatprep.mubr.f32.mxu0 0.0
      %3608 = vmatmul.mubr.f32.gmra.mrb[0].mxu0 %v3159
      %v3609 = vpop.f32.mrb[0].mxu0
      %v3610 = vadd.f32 0.0, %v3609
      %v3611 = vpop.f32.mrb[0].mxu0
      %3612 = vmatprep.mubr.f32.mxu0 0.0
      %3613 = vmatmul.mubr.f32.gmra.mrb[0].mxu0 %v3162
      %v3614 = vpop.f32.mrb[0].mxu0
      %v3615 = vadd.f32 0.0, %v3614
      %v3616 = vpop.f32.mrb[0].mxu0
      %3617 = vmatprep.mubr.f32.mxu0 0.0
      %3618 = vmatmul.mubr.f32.gmra.mrb[0].mxu0 %v3165
      %v3619 = vpop.f32.mrb[0].mxu0
      %v3620 = vadd.f32 0.0, %v3619
      %v3621 = vpop.f32.mrb[0].mxu0
      %3622 = vmatprep.mubr.f32.mxu0 0.0
      %3623 = vmatmul.mubr.f32.gmra.mrb[0].mxu0 %v3168
      %v3624 = vpop.f32.mrb[0].mxu0
      %v3625 = vadd.f32 0.0, %v3624
      %v3626 = vpop.f32.mrb[0].mxu0
      %3627 = vmatprep.mubr.f32.mxu0 0.0
      %3628 = vmatmul.mubr.f32.gmra.mrb[0].mxu0 %v3171
      %v3629 = vpop.f32.mrb[0].mxu0
      %v3630 = vadd.f32 0.0, %v3629
      %v3631 = vpop.f32.mrb[0].mxu0
      %3632 = vmatprep.mubr.f32.mxu0 0.0
      %3633 = vmatmul.mubr.f32.gmra.mrb[0].mxu0 %v3174
      %v3634 = vpop.f32.mrb[0].mxu0
      %v3635 = vadd.f32 0.0, %v3634
      %v3636 = vpop.f32.mrb[0].mxu0
      %3637 = vmatprep.mubr.f32.mxu0 0.0
      %3638 = vmatmul.mubr.f32.gmra.mrb[0].mxu0 %v3177
      %v3639 = vpop.f32.mrb[0].mxu0
      %v3640 = vadd.f32 0.0, %v3639
      %v3641 = vpop.f32.mrb[0].mxu0
      %3642 = vmatprep.mubr.f32.mxu0 0.0
      %3643 = vmatmul.mubr.f32.gmra.mrb[0].mxu0 %v3180
      %v3644 = vpop.f32.mrb[0].mxu0
      %v3645 = vadd.f32 0.0, %v3644
      %v3646 = vpop.f32.mrb[0].mxu0
      %3647 = vmatprep.mubr.f32.mxu0 0.0
      %3648 = vmatmul.mubr.f32.gmra.mrb[0].mxu0 %v3183
      %v3649 = vpop.f32.mrb[0].mxu0
      %v3650 = vadd.f32 0.0, %v3649
      %v3651 = vpop.f32.mrb[0].mxu0
      %3652 = vmatprep.mubr.f32.mxu0 0.0
      %3653 = vmatmul.mubr.f32.gmra.mrb[0].mxu0 %v3186
      %v3654 = vpop.f32.mrb[0].mxu0
      %v3655 = vadd.f32 0.0, %v3654
      %v3656 = vpop.f32.mrb[0].mxu0
      %3657 = vmatprep.mubr.f32.mxu0 0.0
      %3658 = vmatmul.mubr.f32.gmra.mrb[0].mxu0 %v3189
      %v3659 = vpop.f32.mrb[0].mxu0
      %v3660 = vadd.f32 0.0, %v3659
      %v3661 = vpop.f32.mrb[0].mxu0
      %3662 = vmatprep.mubr.f32.mxu0 0.0
      %3663 = vmatmul.mubr.f32.gmra.mrb[0].mxu0 %v3192
      %v3664 = vpop.f32.mrb[0].mxu0
      %v3665 = vadd.f32 0.0, %v3664
      %v3666 = vpop.f32.mrb[0].mxu0
      %3667 = vmatprep.mubr.f32.mxu0 0.0
      %3668 = vmatmul.mubr.f32.gmra.mrb[0].mxu0 %v3195
      %v3669 = vpop.f32.mrb[0].mxu0
      %v3670 = vadd.f32 0.0, %v3669
      %v3671 = vpop.f32.mrb[0].mxu0
      %3672 = vmatprep.mubr.f32.mxu0 0.0
      %3673 = vmatmul.mubr.f32.gmra.mrb[0].mxu0 %v3198
      %v3674 = vpop.f32.mrb[0].mxu0
      %v3675 = vadd.f32 0.0, %v3674
      %v3676 = vpop.f32.mrb[0].mxu0
      %3677 = vmatprep.mubr.f32.mxu0 0.0
      %3678 = vmatmul.mubr.f32.gmra.mrb[0].mxu0 %v3201
      %v3679 = vpop.f32.mrb[0].mxu0
      %v3680 = vadd.f32 0.0, %v3679
      %v3681 = vpop.f32.mrb[0].mxu0
      %3682 = vmatprep.mubr.f32.mxu0 0.0
      %3683 = vmatmul.mubr.f32.gmra.mrb[0].mxu0 %v3204
      %v3684 = vpop.f32.mrb[0].mxu0
      %v3685 = vadd.f32 0.0, %v3684
      %v3686 = vpop.f32.mrb[0].mxu0
      %3687 = vmatprep.mubr.f32.mxu0 0.0
      %3688 = vmatmul.mubr.f32.gmra.mrb[0].mxu0 %v3207
      %v3689 = vpop.f32.mrb[0].mxu0
      %v3690 = vadd.f32 0.0, %v3689
      %v3691 = vpop.f32.mrb[0].mxu0
      %3692 = vmatprep.mubr.f32.mxu0 0.0
      %3693 = vmatmul.mubr.f32.gmra.mrb[0].mxu0 %v3210
      %v3694 = vpop.f32.mrb[0].mxu0
      %v3695 = vadd.f32 0.0, %v3694
      %v3696 = vpop.f32.mrb[0].mxu0
      %3697 = vmatprep.mubr.f32.mxu0 0.0
      %3698 = vmatmul.mubr.f32.gmra.mrb[0].mxu0 %v3213
      %v3699 = vpop.f32.mrb[0].mxu0
      %v3700 = vadd.f32 0.0, %v3699
      %v3701 = vpop.f32.mrb[0].mxu0
      %3702 = vmatprep.mubr.f32.mxu0 0.0
      %3703 = vmatmul.mubr.f32.gmra.mrb[0].mxu0 %v3216
      %v3704 = vpop.f32.mrb[0].mxu0
      %v3705 = vadd.f32 0.0, %v3704
      %v3706 = vpop.f32.mrb[0].mxu0
      %3707 = vmatprep.mubr.f32.mxu0 0.0
      %3708 = vmatmul.mubr.f32.gmra.mrb[0].mxu0 %v3219
      %v3709 = vpop.f32.mrb[0].mxu0
      %v3710 = vadd.f32 0.0, %v3709
      %v3711 = vpop.f32.mrb[0].mxu0
      %3712 = vmatprep.mubr.f32.mxu0 0.0
      %3713 = vmatmul.mubr.f32.gmra.mrb[0].mxu0 %v3222
      %v3714 = vpop.f32.mrb[0].mxu0
      %v3715 = vadd.f32 0.0, %v3714
      %v3716 = vpop.f32.mrb[0].mxu0
      %3717 = vmatprep.mubr.f32.mxu0 0.0
      %3718 = vmatmul.mubr.f32.gmra.mrb[0].mxu0 %v3225
      %v3719 = vpop.f32.mrb[0].mxu0
      %v3720 = vadd.f32 0.0, %v3719
      %v3721 = vpop.f32.mrb[0].mxu0
      %3722 = vmatprep.mubr.f32.mxu0 0.0
      %3723 = vmatmul.mubr.f32.gmra.mrb[0].mxu0 %v3228
      %v3724 = vpop.f32.mrb[0].mxu0
      %v3725 = vadd.f32 0.0, %v3724
      %v3726 = vpop.f32.mrb[0].mxu0
      %3727 = vmatprep.mubr.f32.mxu0 0.0
      %3728 = vmatmul.mubr.f32.gmra.mrb[0].mxu0 %v3231
      %v3729 = vpop.f32.mrb[0].mxu0
      %v3730 = vadd.f32 0.0, %v3729
      %v3731 = vpop.f32.mrb[0].mxu0
      %3732 = vmatprep.mubr.f32.mxu0 0.0
      %3733 = vmatmul.mubr.f32.gmra.mrb[0].mxu0 %v3234
      %v3734 = vpop.f32.mrb[0].mxu0
      %v3735 = vadd.f32 0.0, %v3734
      %v3736 = vpop.f32.mrb[0].mxu0
      %3737 = vmatprep.mubr.f32.mxu0 0.0
      %3738 = vmatmul.mubr.f32.gmra.mrb[0].mxu0 %v3237
      %v3739 = vpop.f32.mrb[0].mxu0
      %v3740 = vadd.f32 0.0, %v3739
      %v3741 = vpop.f32.mrb[0].mxu0
      %3742 = vmatprep.mubr.f32.mxu0 0.0
      %3743 = vmatmul.mubr.f32.gmra.mrb[0].mxu0 %v3240
      %v3744 = vpop.f32.mrb[0].mxu0
      %v3745 = vadd.f32 0.0, %v3744
      %v3746 = vpop.f32.mrb[0].mxu0
      %3747 = vmatprep.mubr.f32.mxu0 0.0
      %3748 = vmatmul.mubr.f32.gmra.mrb[0].mxu0 %v3243
      %v3749 = vpop.f32.mrb[0].mxu0
      %v3750 = vadd.f32 0.0, %v3749
      %v3751 = vpop.f32.mrb[0].mxu0
      %3752 = vmatprep.mubr.f32.mxu0 0.0
      %3753 = vmatmul.mubr.f32.gmra.mrb[0].mxu0 %v3246
      %v3754 = vpop.f32.mrb[0].mxu0
      %v3755 = vadd.f32 0.0, %v3754
      %v3756 = vpop.f32.mrb[0].mxu0
      %3757 = vmatprep.mubr.f32.mxu0 0.0
      %3758 = vmatmul.mubr.f32.gmra.mrb[0].mxu0 %v3249
      %v3759 = vpop.f32.mrb[0].mxu0
      %v3760 = vadd.f32 0.0, %v3759
      %v3761 = vpop.f32.mrb[0].mxu0
      %3762 = vmatprep.mubr.f32.mxu0 0.0
      %3763 = vmatmul.mubr.f32.gmra.mrb[0].mxu0 %v3252
      %v3764 = vpop.f32.mrb[0].mxu0
      %v3765 = vadd.f32 0.0, %v3764
      %v3766 = vpop.f32.mrb[0].mxu0
      %3767 = vmatprep.mubr.f32.mxu0 0.0
      %3768 = vmatmul.mubr.f32.gmra.mrb[0].mxu0 %v3255
      %v3769 = vpop.f32.mrb[0].mxu0
      %v3770 = vadd.f32 0.0, %v3769
      %v3771 = vpop.f32.mrb[0].mxu0
      %3772 = vmatprep.mubr.f32.mxu0 0.0
      %3773 = vmatmul.mubr.f32.gmra.mrb[0].mxu0 %v3258
      %v3774 = vpop.f32.mrb[0].mxu0
      %v3775 = vadd.f32 0.0, %v3774
      %v3776 = vpop.f32.mrb[0].mxu0
      %3777 = vmatprep.mubr.f32.mxu0 0.0
      %3778 = vmatmul.mubr.f32.gmra.mrb[0].mxu0 %v3261
      %v3779 = vpop.f32.mrb[0].mxu0
      %v3780 = vadd.f32 0.0, %v3779
      %v3781 = vpop.f32.mrb[0].mxu0
      %3782 = vdwg.mxu0
      %v3783 = vadd.f32 %v2806, %v3330
      %v3784 = vadd.f32 %v2807, %v3335
      %v3785 = vadd.f32 %v2808, %v3340
      %v3786 = vadd.f32 %v2809, %v3345
      %v3787 = vadd.f32 %v2810, %v3350
      %v3788 = vadd.f32 %v2811, %v3355
      %v3789 = vadd.f32 %v2812, %v3360
      %v3790 = vadd.f32 %v2813, %v3365
      %v3791 = vadd.f32 %v2814, %v3370
      %v3792 = vadd.f32 %v2815, %v3375
      %v3793 = vadd.f32 %v2816, %v3380
      %v3794 = vadd.f32 %v2817, %v3385
      %v3795 = vadd.f32 %v2818, %v3390
      %v3796 = vadd.f32 %v2819, %v3395
      %v3797 = vadd.f32 %v2820, %v3400
      %v3798 = vadd.f32 %v2821, %v3405
      %v3799 = vadd.f32 %v2822, %v3410
      %v3800 = vadd.f32 %v2823, %v3415
      %v3801 = vadd.f32 %v2824, %v3420
      %v3802 = vadd.f32 %v2825, %v3425
      %v3803 = vadd.f32 %v2826, %v3430
      %v3804 = vadd.f32 %v2827, %v3435
      %v3805 = vadd.f32 %v2828, %v3440
      %v3806 = vadd.f32 %v2829, %v3445
      %v3807 = vadd.f32 %v2830, %v3450
      %v3808 = vadd.f32 %v2831, %v3455
      %v3809 = vadd.f32 %v2832, %v3460
      %v3810 = vadd.f32 %v2833, %v3465
      %v3811 = vadd.f32 %v2834, %v3470
      %v3812 = vadd.f32 %v2835, %v3475
      %v3813 = vadd.f32 %v2836, %v3480
      %v3814 = vadd.f32 %v2837, %v3485
      %v3815 = vadd.f32 %v2838, %v3490
      %v3816 = vadd.f32 %v2839, %v3495
      %v3817 = vadd.f32 %v2840, %v3500
      %v3818 = vadd.f32 %v2841, %v3505
      %v3819 = vadd.f32 %v2842, %v3510
      %v3820 = vadd.f32 %v2843, %v3515
      %v3821 = vadd.f32 %v2844, %v3520
      %v3822 = vadd.f32 %v2845, %v3525
      %v3823 = vadd.f32 %v2846, %v3530
      %v3824 = vadd.f32 %v2847, %v3535
      %v3825 = vadd.f32 %v2848, %v3540
      %v3826 = vadd.f32 %v2849, %v3545
      %v3827 = vadd.f32 %v2850, %v3550
      %v3828 = vadd.f32 %v2851, %v3555
      %v3829 = vadd.f32 %v2852, %v3560
      %v3830 = vadd.f32 %v2853, %v3565
      %v3831 = vadd.f32 %v2854, %v3570
      %v3832 = vadd.f32 %v2855, %v3575
      %v3833 = vadd.f32 %v2856, %v3580
      %v3834 = vadd.f32 %v2857, %v3585
      %v3835 = vadd.f32 %v2858, %v3590
      %v3836 = vadd.f32 %v2859, %v3595
      %v3837 = vadd.f32 %v2860, %v3600
      %v3838 = vadd.f32 %v2861, %v3605
      %v3839 = vadd.f32 %v2862, %v3610
      %v3840 = vadd.f32 %v2863, %v3615
      %v3841 = vadd.f32 %v2864, %v3620
      %v3842 = vadd.f32 %v2865, %v3625
      %v3843 = vadd.f32 %v2866, %v3630
      %v3844 = vadd.f32 %v2867, %v3635
      %v3845 = vadd.f32 %v2868, %v3640
      %v3846 = vadd.f32 %v2869, %v3645
      %v3847 = vadd.f32 %v2870, %v3650
      %v3848 = vadd.f32 %v2871, %v3655
      %v3849 = vadd.f32 %v2872, %v3660
      %v3850 = vadd.f32 %v2873, %v3665
      %v3851 = vadd.f32 %v2874, %v3670
      %v3852 = vadd.f32 %v2875, %v3675
      %v3853 = vadd.f32 %v2876, %v3680
      %v3854 = vadd.f32 %v2877, %v3685
      %v3855 = vadd.f32 %v2878, %v3690
      %v3856 = vadd.f32 %v2879, %v3695
      %v3857 = vadd.f32 %v2880, %v3700
      %v3858 = vadd.f32 %v2881, %v3705
      %v3859 = vadd.f32 %v2882, %v3710
      %v3860 = vadd.f32 %v2883, %v3715
      %v3861 = vadd.f32 %v2884, %v3720
      %v3862 = vadd.f32 %v2885, %v3725
      %v3863 = vadd.f32 %v2886, %v3730
      %v3864 = vadd.f32 %v2887, %v3735
      %v3865 = vadd.f32 %v2888, %v3740
      %v3866 = vadd.f32 %v2889, %v3745
      %v3867 = vadd.f32 %v2890, %v3750
      %v3868 = vadd.f32 %v2891, %v3755
      %v3869 = vadd.f32 %v2892, %v3760
      %v3870 = vadd.f32 %v2893, %v3765
      %v3871 = vadd.f32 %v2894, %v3770
      %v3872 = vadd.f32 %v2895, %v3775
      %v3873 = vadd.f32 %v2896, %v3780
      %v3874 = vld [vmem:[%s1 + $0x40] sm:$0x1]
      %v3875 = vlaneseq
      %v3876 = vshrl.u32 %v3875, 7
      %v3877 = vsub.s32 0, %v3876
      %v3878 = vrot.slane %v3874, %v3877
      %v3879 = vadd.f32 %v3783, %v3878
      %v3880 = vadd.f32 %v3784, %v3878
      %v3881 = vadd.f32 %v3785, %v3878
      %v3882 = vadd.f32 %v3786, %v3878
      %v3883 = vadd.f32 %v3787, %v3878
      %v3884 = vadd.f32 %v3788, %v3878
      %v3885 = vadd.f32 %v3789, %v3878
      %v3886 = vadd.f32 %v3790, %v3878
      %v3887 = vadd.f32 %v3791, %v3878
      %v3888 = vadd.f32 %v3792, %v3878
      %v3889 = vadd.f32 %v3793, %v3878
      %v3890 = vadd.f32 %v3794, %v3878
      %v3891 = vadd.f32 %v3795, %v3878
      %v3892 = vadd.f32 %v3796, %v3878
      %v3893 = vadd.f32 %v3797, %v3878
      %v3894 = vadd.f32 %v3798, %v3878
      %v3895 = vadd.f32 %v3799, %v3878
      %v3896 = vadd.f32 %v3800, %v3878
      %v3897 = vadd.f32 %v3801, %v3878
      %v3898 = vadd.f32 %v3802, %v3878
      %v3899 = vadd.f32 %v3803, %v3878
      %v3900 = vadd.f32 %v3804, %v3878
      %v3901 = vadd.f32 %v3805, %v3878
      %v3902 = vadd.f32 %v3806, %v3878
      %v3903 = vadd.f32 %v3807, %v3878
      %v3904 = vadd.f32 %v3808, %v3878
      %v3905 = vadd.f32 %v3809, %v3878
      %v3906 = vadd.f32 %v3810, %v3878
      %v3907 = vadd.f32 %v3811, %v3878
      %v3908 = vadd.f32 %v3812, %v3878
      %v3909 = vadd.f32 %v3813, %v3878
      %v3910 = vadd.f32 %v3814, %v3878
      %v3911 = vadd.f32 %v3815, %v3878
      %v3912 = vadd.f32 %v3816, %v3878
      %v3913 = vadd.f32 %v3817, %v3878
      %v3914 = vadd.f32 %v3818, %v3878
      %v3915 = vadd.f32 %v3819, %v3878
      %v3916 = vadd.f32 %v3820, %v3878
      %v3917 = vadd.f32 %v3821, %v3878
      %v3918 = vadd.f32 %v3822, %v3878
      %v3919 = vadd.f32 %v3823, %v3878
      %v3920 = vadd.f32 %v3824, %v3878
      %v3921 = vadd.f32 %v3825, %v3878
      %v3922 = vadd.f32 %v3826, %v3878
      %v3923 = vadd.f32 %v3827, %v3878
      %v3924 = vadd.f32 %v3828, %v3878
      %v3925 = vadd.f32 %v3829, %v3878
      %v3926 = vadd.f32 %v3830, %v3878
      %v3927 = vadd.f32 %v3831, %v3878
      %v3928 = vadd.f32 %v3832, %v3878
      %v3929 = vadd.f32 %v3833, %v3878
      %v3930 = vadd.f32 %v3834, %v3878
      %v3931 = vadd.f32 %v3835, %v3878
      %v3932 = vadd.f32 %v3836, %v3878
      %v3933 = vadd.f32 %v3837, %v3878
      %v3934 = vadd.f32 %v3838, %v3878
      %v3935 = vadd.f32 %v3839, %v3878
      %v3936 = vadd.f32 %v3840, %v3878
      %v3937 = vadd.f32 %v3841, %v3878
      %v3938 = vadd.f32 %v3842, %v3878
      %v3939 = vadd.f32 %v3843, %v3878
      %v3940 = vadd.f32 %v3844, %v3878
      %v3941 = vadd.f32 %v3845, %v3878
      %v3942 = vadd.f32 %v3846, %v3878
      %v3943 = vadd.f32 %v3847, %v3878
      %v3944 = vadd.f32 %v3848, %v3878
      %v3945 = vadd.f32 %v3849, %v3878
      %v3946 = vadd.f32 %v3850, %v3878
      %v3947 = vadd.f32 %v3851, %v3878
      %v3948 = vadd.f32 %v3852, %v3878
      %v3949 = vadd.f32 %v3853, %v3878
      %v3950 = vadd.f32 %v3854, %v3878
      %v3951 = vadd.f32 %v3855, %v3878
      %v3952 = vadd.f32 %v3856, %v3878
      %v3953 = vadd.f32 %v3857, %v3878
      %v3954 = vadd.f32 %v3858, %v3878
      %v3955 = vadd.f32 %v3859, %v3878
      %v3956 = vadd.f32 %v3860, %v3878
      %v3957 = vadd.f32 %v3861, %v3878
      %v3958 = vadd.f32 %v3862, %v3878
      %v3959 = vadd.f32 %v3863, %v3878
      %v3960 = vadd.f32 %v3864, %v3878
      %v3961 = vadd.f32 %v3865, %v3878
      %v3962 = vadd.f32 %v3866, %v3878
      %v3963 = vadd.f32 %v3867, %v3878
      %v3964 = vadd.f32 %v3868, %v3878
      %v3965 = vadd.f32 %v3869, %v3878
      %v3966 = vadd.f32 %v3870, %v3878
      %v3967 = vadd.f32 %v3871, %v3878
      %v3968 = vadd.f32 %v3872, %v3878
      %v3969 = vadd.f32 %v3873, %v3878
      %v3970 = vmax.f32 %v3879, 0.0
      %v3971 = vmax.f32 %v3880, 0.0
      %v3972 = vmax.f32 %v3881, 0.0
      %v3973 = vmax.f32 %v3882, 0.0
      %v3974 = vmax.f32 %v3883, 0.0
      %v3975 = vmax.f32 %v3884, 0.0
      %v3976 = vmax.f32 %v3885, 0.0
      %v3977 = vmax.f32 %v3886, 0.0
      %v3978 = vmax.f32 %v3887, 0.0
      %v3979 = vmax.f32 %v3888, 0.0
      %v3980 = vmax.f32 %v3889, 0.0
      %v3981 = vmax.f32 %v3890, 0.0
      %v3982 = vmax.f32 %v3891, 0.0
      %v3983 = vmax.f32 %v3892, 0.0
      %v3984 = vmax.f32 %v3893, 0.0
      %v3985 = vmax.f32 %v3894, 0.0
      %v3986 = vmax.f32 %v3895, 0.0
      %v3987 = vmax.f32 %v3896, 0.0
      %v3988 = vmax.f32 %v3897, 0.0
      %v3989 = vmax.f32 %v3898, 0.0
      %v3990 = vmax.f32 %v3899, 0.0
      %v3991 = vmax.f32 %v3900, 0.0
      %v3992 = vmax.f32 %v3901, 0.0
      %v3993 = vmax.f32 %v3902, 0.0
      %v3994 = vmax.f32 %v3903, 0.0
      %v3995 = vmax.f32 %v3904, 0.0
      %v3996 = vmax.f32 %v3905, 0.0
      %v3997 = vmax.f32 %v3906, 0.0
      %v3998 = vmax.f32 %v3907, 0.0
      %v3999 = vmax.f32 %v3908, 0.0
      %v4000 = vmax.f32 %v3909, 0.0
      %v4001 = vmax.f32 %v3910, 0.0
      %v4002 = vmax.f32 %v3911, 0.0
      %v4003 = vmax.f32 %v3912, 0.0
      %v4004 = vmax.f32 %v3913, 0.0
      %v4005 = vmax.f32 %v3914, 0.0
      %v4006 = vmax.f32 %v3915, 0.0
      %v4007 = vmax.f32 %v3916, 0.0
      %v4008 = vmax.f32 %v3917, 0.0
      %v4009 = vmax.f32 %v3918, 0.0
      %v4010 = vmax.f32 %v3919, 0.0
      %v4011 = vmax.f32 %v3920, 0.0
      %v4012 = vmax.f32 %v3921, 0.0
      %v4013 = vmax.f32 %v3922, 0.0
      %v4014 = vmax.f32 %v3923, 0.0
      %v4015 = vmax.f32 %v3924, 0.0
      %v4016 = vmax.f32 %v3925, 0.0
      %v4017 = vmax.f32 %v3926, 0.0
      %v4018 = vmax.f32 %v3927, 0.0
      %v4019 = vmax.f32 %v3928, 0.0
      %v4020 = vmax.f32 %v3929, 0.0
      %v4021 = vmax.f32 %v3930, 0.0
      %v4022 = vmax.f32 %v3931, 0.0
      %v4023 = vmax.f32 %v3932, 0.0
      %v4024 = vmax.f32 %v3933, 0.0
      %v4025 = vmax.f32 %v3934, 0.0
      %v4026 = vmax.f32 %v3935, 0.0
      %v4027 = vmax.f32 %v3936, 0.0
      %v4028 = vmax.f32 %v3937, 0.0
      %v4029 = vmax.f32 %v3938, 0.0
      %v4030 = vmax.f32 %v3939, 0.0
      %v4031 = vmax.f32 %v3940, 0.0
      %v4032 = vmax.f32 %v3941, 0.0
      %v4033 = vmax.f32 %v3942, 0.0
      %v4034 = vmax.f32 %v3943, 0.0
      %v4035 = vmax.f32 %v3944, 0.0
      %v4036 = vmax.f32 %v3945, 0.0
      %v4037 = vmax.f32 %v3946, 0.0
      %v4038 = vmax.f32 %v3947, 0.0
      %v4039 = vmax.f32 %v3948, 0.0
      %v4040 = vmax.f32 %v3949, 0.0
      %v4041 = vmax.f32 %v3950, 0.0
      %v4042 = vmax.f32 %v3951, 0.0
      %v4043 = vmax.f32 %v3952, 0.0
      %v4044 = vmax.f32 %v3953, 0.0
      %v4045 = vmax.f32 %v3954, 0.0
      %v4046 = vmax.f32 %v3955, 0.0
      %v4047 = vmax.f32 %v3956, 0.0
      %v4048 = vmax.f32 %v3957, 0.0
      %v4049 = vmax.f32 %v3958, 0.0
      %v4050 = vmax.f32 %v3959, 0.0
      %v4051 = vmax.f32 %v3960, 0.0
      %v4052 = vmax.f32 %v3961, 0.0
      %v4053 = vmax.f32 %v3962, 0.0
      %v4054 = vmax.f32 %v3963, 0.0
      %v4055 = vmax.f32 %v3964, 0.0
      %v4056 = vmax.f32 %v3965, 0.0
      %v4057 = vmax.f32 %v3966, 0.0
      %v4058 = vmax.f32 %v3967, 0.0
      %v4059 = vmax.f32 %v3968, 0.0
      %v4060 = vmax.f32 %v3969, 0.0
      %4061 = vst.msk [vmem:[#allocation2] sm:$0xff] %vm333, %v3970
      %4062 = vst.msk [vmem:[#allocation2 + $0x8] sm:$0xff] %vm333, %v3971
      %4063 = vst.msk [vmem:[#allocation2 + $0x10] sm:$0xff] %vm333, %v3972
      %4064 = vst.msk [vmem:[#allocation2 + $0x18] sm:$0xff] %vm333, %v3973
      %4065 = vst.msk [vmem:[#allocation2 + $0x20] sm:$0xff] %vm333, %v3974
      %4066 = vst.msk [vmem:[#allocation2 + $0x28] sm:$0xff] %vm333, %v3975
      %4067 = vst.msk [vmem:[#allocation2 + $0x30] sm:$0xff] %vm333, %v3976
      %4068 = vst.msk [vmem:[#allocation2 + $0x38] sm:$0xff] %vm333, %v3977
      %4069 = vst.msk [vmem:[#allocation2 + $0x40] sm:$0xff] %vm333, %v3978
      %4070 = vst.msk [vmem:[#allocation2 + $0x48] sm:$0xff] %vm333, %v3979
      %4071 = vst.msk [vmem:[#allocation2 + $0x50] sm:$0xff] %vm333, %v3980
      %4072 = vst.msk [vmem:[#allocation2 + $0x58] sm:$0xff] %vm333, %v3981
      %4073 = vst.msk [vmem:[#allocation2 + $0x60] sm:$0xff] %vm333, %v3982
      %4074 = vst.msk [vmem:[#allocation2 + $0x68] sm:$0xff] %vm333, %v3983
      %4075 = vst.msk [vmem:[#allocation2 + $0x70] sm:$0xff] %vm333, %v3984
      %4076 = vst.msk [vmem:[#allocation2 + $0x78] sm:$0xff] %vm333, %v3985
      %4077 = vst.msk [vmem:[#allocation2 + $0x80] sm:$0xff] %vm333, %v3986
      %4078 = vst.msk [vmem:[#allocation2 + $0x88] sm:$0xff] %vm333, %v3987
      %4079 = vst.msk [vmem:[#allocation2 + $0x90] sm:$0xff] %vm333, %v3988
      %4080 = vst.msk [vmem:[#allocation2 + $0x98] sm:$0xff] %vm333, %v3989
      %4081 = vst.msk [vmem:[#allocation2 + $0xa0] sm:$0xff] %vm333, %v3990
      %4082 = vst.msk [vmem:[#allocation2 + $0xa8] sm:$0xff] %vm333, %v3991
      %4083 = vst.msk [vmem:[#allocation2 + $0xb0] sm:$0xff] %vm333, %v3992
      %4084 = vst.msk [vmem:[#allocation2 + $0xb8] sm:$0xff] %vm333, %v3993
      %4085 = vst.msk [vmem:[#allocation2 + $0xc0] sm:$0xff] %vm333, %v3994
      %4086 = vst.msk [vmem:[#allocation2 + $0xc8] sm:$0xff] %vm333, %v3995
      %4087 = vst.msk [vmem:[#allocation2 + $0xd0] sm:$0xff] %vm333, %v3996
      %4088 = vst.msk [vmem:[#allocation2 + $0xd8] sm:$0xff] %vm333, %v3997
      %4089 = vst.msk [vmem:[#allocation2 + $0xe0] sm:$0xff] %vm333, %v3998
      %4090 = vst.msk [vmem:[#allocation2 + $0xe8] sm:$0xff] %vm333, %v3999
      %4091 = vst.msk [vmem:[#allocation2 + $0xf0] sm:$0xff] %vm333, %v4000
      %4092 = vst.msk [vmem:[#allocation2 + $0xf8] sm:$0xff] %vm333, %v4001
      %4093 = vst.msk [vmem:[#allocation2 + $0x100] sm:$0xff] %vm333, %v4002
      %4094 = vst.msk [vmem:[#allocation2 + $0x108] sm:$0xff] %vm333, %v4003
      %4095 = vst.msk [vmem:[#allocation2 + $0x110] sm:$0xff] %vm333, %v4004
      %4096 = vst.msk [vmem:[#allocation2 + $0x118] sm:$0xff] %vm333, %v4005
      %4097 = vst.msk [vmem:[#allocation2 + $0x120] sm:$0xff] %vm333, %v4006
      %4098 = vst.msk [vmem:[#allocation2 + $0x128] sm:$0xff] %vm333, %v4007
      %4099 = vst.msk [vmem:[#allocation2 + $0x130] sm:$0xff] %vm333, %v4008
      %4100 = vst.msk [vmem:[#allocation2 + $0x138] sm:$0xff] %vm333, %v4009
      %4101 = vst.msk [vmem:[#allocation2 + $0x140] sm:$0xff] %vm333, %v4010
      %4102 = vst.msk [vmem:[#allocation2 + $0x148] sm:$0xff] %vm333, %v4011
      %4103 = vst.msk [vmem:[#allocation2 + $0x150] sm:$0xff] %vm333, %v4012
      %4104 = vst.msk [vmem:[#allocation2 + $0x158] sm:$0xff] %vm333, %v4013
      %4105 = vst.msk [vmem:[#allocation2 + $0x160] sm:$0xff] %vm333, %v4014
      %4106 = vst.msk [vmem:[#allocation2 + $0x168] sm:$0xff] %vm333, %v4015
      %4107 = vst.msk [vmem:[#allocation2 + $0x170] sm:$0xff] %vm333, %v4016
      %4108 = vst.msk [vmem:[#allocation2 + $0x178] sm:$0xff] %vm333, %v4017
      %4109 = vst.msk [vmem:[#allocation2 + $0x180] sm:$0xff] %vm333, %v4018
      %4110 = vst.msk [vmem:[#allocation2 + $0x188] sm:$0xff] %vm333, %v4019
      %4111 = vst.msk [vmem:[#allocation2 + $0x190] sm:$0xff] %vm333, %v4020
      %4112 = vst.msk [vmem:[#allocation2 + $0x198] sm:$0xff] %vm333, %v4021
      %4113 = vst.msk [vmem:[#allocation2 + $0x1a0] sm:$0xff] %vm333, %v4022
      %4114 = vst.msk [vmem:[#allocation2 + $0x1a8] sm:$0xff] %vm333, %v4023
      %4115 = vst.msk [vmem:[#allocation2 + $0x1b0] sm:$0xff] %vm333, %v4024
      %4116 = vst.msk [vmem:[#allocation2 + $0x1b8] sm:$0xff] %vm333, %v4025
      %4117 = vst.msk [vmem:[#allocation2 + $0x1c0] sm:$0xff] %vm333, %v4026
      %4118 = vst.msk [vmem:[#allocation2 + $0x1c8] sm:$0xff] %vm333, %v4027
      %4119 = vst.msk [vmem:[#allocation2 + $0x1d0] sm:$0xff] %vm333, %v4028
      %4120 = vst.msk [vmem:[#allocation2 + $0x1d8] sm:$0xff] %vm333, %v4029
      %4121 = vst.msk [vmem:[#allocation2 + $0x1e0] sm:$0xff] %vm333, %v4030
      %4122 = vst.msk [vmem:[#allocation2 + $0x1e8] sm:$0xff] %vm333, %v4031
      %4123 = vst.msk [vmem:[#allocation2 + $0x1f0] sm:$0xff] %vm333, %v4032
      %4124 = vst.msk [vmem:[#allocation2 + $0x1f8] sm:$0xff] %vm333, %v4033
      %4125 = vst.msk [vmem:[#allocation2 + $0x200] sm:$0xff] %vm333, %v4034
      %4126 = vst.msk [vmem:[#allocation2 + $0x208] sm:$0xff] %vm333, %v4035
      %4127 = vst.msk [vmem:[#allocation2 + $0x210] sm:$0xff] %vm333, %v4036
      %4128 = vst.msk [vmem:[#allocation2 + $0x218] sm:$0xff] %vm333, %v4037
      %4129 = vst.msk [vmem:[#allocation2 + $0x220] sm:$0xff] %vm333, %v4038
      %4130 = vst.msk [vmem:[#allocation2 + $0x228] sm:$0xff] %vm333, %v4039
      %4131 = vst.msk [vmem:[#allocation2 + $0x230] sm:$0xff] %vm333, %v4040
      %4132 = vst.msk [vmem:[#allocation2 + $0x238] sm:$0xff] %vm333, %v4041
      %4133 = vst.msk [vmem:[#allocation2 + $0x240] sm:$0xff] %vm333, %v4042
      %4134 = vst.msk [vmem:[#allocation2 + $0x248] sm:$0xff] %vm333, %v4043
      %4135 = vst.msk [vmem:[#allocation2 + $0x250] sm:$0xff] %vm333, %v4044
      %4136 = vst.msk [vmem:[#allocation2 + $0x258] sm:$0xff] %vm333, %v4045
      %4137 = vst.msk [vmem:[#allocation2 + $0x260] sm:$0xff] %vm333, %v4046
      %4138 = vst.msk [vmem:[#allocation2 + $0x268] sm:$0xff] %vm333, %v4047
      %4139 = vst.msk [vmem:[#allocation2 + $0x270] sm:$0xff] %vm333, %v4048
      %4140 = vst.msk [vmem:[#allocation2 + $0x278] sm:$0xff] %vm333, %v4049
      %4141 = vst.msk [vmem:[#allocation2 + $0x280] sm:$0xff] %vm333, %v4050
      %4142 = vst.msk [vmem:[#allocation2 + $0x288] sm:$0xff] %vm333, %v4051
      %4143 = vst.msk [vmem:[#allocation2 + $0x290] sm:$0xff] %vm333, %v4052
      %4144 = vst.msk [vmem:[#allocation2 + $0x298] sm:$0xff] %vm333, %v4053
      %4145 = vst.msk [vmem:[#allocation2 + $0x2a0] sm:$0xff] %vm333, %v4054
      %4146 = vst.msk [vmem:[#allocation2 + $0x2a8] sm:$0xff] %vm333, %v4055
      %4147 = vst.msk [vmem:[#allocation2 + $0x2b0] sm:$0xff] %vm333, %v4056
      %4148 = vst.msk [vmem:[#allocation2 + $0x2b8] sm:$0xff] %vm333, %v4057
      %4149 = vst.msk [vmem:[#allocation2 + $0x2c0] sm:$0xff] %vm333, %v4058
      %4150 = vst.msk [vmem:[#allocation2 + $0x2c8] sm:$0xff] %vm333, %v4059
      %4151 = vst.msk [vmem:[#allocation2 + $0x2d0] sm:$0xff] %vm333, %v4060
      %v4152 = vld [vmem:[#allocation2] ss:$2 sm:$0xff]
      %4153 = vst.msk [vmem:[#allocation3 + $0x1b] sm:$0xff] %vm333, %v4152
      %s4154 = scalar_lea.vmem [#allocation2], 36
      %v4155 = vld [vmem:[%s4154] ss:$2 sm:$0xff]
      %4156 = vst.msk [vmem:[#allocation3 + $0x25] sm:$0xff] %vm333, %v4155
      %s4157 = scalar_lea.vmem [#allocation2], 72
      %v4158 = vld [vmem:[%s4157] ss:$2 sm:$0xff]
      %4159 = vst.msk [vmem:[#allocation3 + $0x2f] sm:$0xff] %vm333, %v4158
      %s4160 = scalar_lea.vmem [#allocation2], 108
      %v4161 = vld [vmem:[%s4160] ss:$2 sm:$0xff]
      %4162 = vst.msk [vmem:[#allocation3 + $0x39] sm:$0xff] %vm333, %v4161
      %s4163 = scalar_lea.vmem [#allocation2], 144
      %v4164 = vld [vmem:[%s4163] ss:$2 sm:$0xff]
      %4165 = vst.msk [vmem:[#allocation3 + $0x43] sm:$0xff] %vm333, %v4164
      %s4166 = scalar_lea.vmem [#allocation2], 180
      %v4167 = vld [vmem:[%s4166] ss:$2 sm:$0xff]
      %4168 = vst.msk [vmem:[#allocation3 + $0x4d] sm:$0xff] %vm333, %v4167
      %s4169 = scalar_lea.vmem [#allocation2], 216
      %v4170 = vld [vmem:[%s4169] ss:$2 sm:$0xff]
      %4171 = vst.msk [vmem:[#allocation3 + $0x57] sm:$0xff] %vm333, %v4170
      %s4172 = scalar_lea.vmem [#allocation2], 252
      %v4173 = vld [vmem:[%s4172] ss:$2 sm:$0xff]
      %4174 = vst.msk [vmem:[#allocation3 + $0x61] sm:$0xff] %vm333, %v4173
      %s4175 = scalar_lea.vmem [#allocation2], 400
      %v4176 = vld [vmem:[%s4175] ss:$2 sm:$0xff]
      %4177 = vst.msk [vmem:[#allocation3 + $0xb3] sm:$0xff] %vm333, %v4176
      %s4178 = scalar_lea.vmem [#allocation2], 436
      %v4179 = vld [vmem:[%s4178] ss:$2 sm:$0xff]
      %4180 = vst.msk [vmem:[#allocation3 + $0xbd] sm:$0xff] %vm333, %v4179
      %s4181 = scalar_lea.vmem [#allocation2], 472
      %v4182 = vld [vmem:[%s4181] ss:$2 sm:$0xff]
      %4183 = vst.msk [vmem:[#allocation3 + $0xc7] sm:$0xff] %vm333, %v4182
      %s4184 = scalar_lea.vmem [#allocation2], 508
      %v4185 = vld [vmem:[%s4184] ss:$2 sm:$0xff]
      %4186 = vst.msk [vmem:[#allocation3 + $0xd1] sm:$0xff] %vm333, %v4185
      %s4187 = scalar_lea.vmem [#allocation2], 544
      %v4188 = vld [vmem:[%s4187] ss:$2 sm:$0xff]
      %4189 = vst.msk [vmem:[#allocation3 + $0xdb] sm:$0xff] %vm333, %v4188
      %s4190 = scalar_lea.vmem [#allocation2], 580
      %v4191 = vld [vmem:[%s4190] ss:$2 sm:$0xff]
      %4192 = vst.msk [vmem:[#allocation3 + $0xe5] sm:$0xff] %vm333, %v4191
      %s4193 = scalar_lea.vmem [#allocation2], 616
      %v4194 = vld [vmem:[%s4193] ss:$2 sm:$0xff]
      %4195 = vst.msk [vmem:[#allocation3 + $0xef] sm:$0xff] %vm333, %v4194
      %s4196 = scalar_lea.vmem [#allocation2], 652
      %v4197 = vld [vmem:[%s4196] ss:$2 sm:$0xff]
      %4198 = vst.msk [vmem:[#allocation3 + $0xf9] sm:$0xff] %vm333, %v4197
      %v4199 = vld [vmem:[%s1 + $0x4e8] sm:$0xff]
      %v4200 = vld [vmem:[%s1 + $0x4f0] sm:$0xff]
      %v4201 = vld [vmem:[%s1 + $0x4f8] sm:$0xff]
      %v4202 = vld [vmem:[%s1 + $0x500] sm:$0xff]
      %v4203 = vld [vmem:[%s1 + $0x508] sm:$0xff]
      %v4204 = vld [vmem:[%s1 + $0x510] sm:$0xff]
      %v4205 = vld [vmem:[%s1 + $0x518] sm:$0xff]
      %v4206 = vld [vmem:[%s1 + $0x520] sm:$0xff]
      %v4207 = vld [vmem:[%s1 + $0x528] sm:$0xff]
      %v4208 = vld [vmem:[%s1 + $0x530] sm:$0xff]
      %v4209 = vld [vmem:[%s1 + $0x538] sm:$0xff]
      %v4210 = vld [vmem:[%s1 + $0x540] sm:$0xff]
      %v4211 = vld [vmem:[%s1 + $0x548] sm:$0xff]
      %v4212 = vld [vmem:[%s1 + $0x550] sm:$0xff]
      %v4213 = vld [vmem:[%s1 + $0x558] sm:$0xff]
      %v4214 = vld [vmem:[%s1 + $0x560] sm:$0xff]
      %v4215 = vld [vmem:[%s1 + $0x568] sm:$0xff]
      %v4216 = vld [vmem:[%s1 + $0x570] sm:$0xff]
      %v4217 = vld [vmem:[%s1 + $0x578] sm:$0xff]
      %v4218 = vld [vmem:[%s1 + $0x580] sm:$0xff]
      %v4219 = vld [vmem:[%s1 + $0x588] sm:$0xff]
      %v4220 = vld [vmem:[%s1 + $0x590] sm:$0xff]
      %v4221 = vld [vmem:[%s1 + $0x598] sm:$0xff]
      %v4222 = vld [vmem:[%s1 + $0x5a0] sm:$0xff]
      %v4223 = vld [vmem:[%s1 + $0x5a8] sm:$0xff]
      %v4224 = vld [vmem:[%s1 + $0x5b0] sm:$0xff]
      %v4225 = vld [vmem:[%s1 + $0x5b8] sm:$0xff]
      %v4226 = vld [vmem:[%s1 + $0x5c0] sm:$0xff]
      %v4227 = vld [vmem:[%s1 + $0x5c8] sm:$0xff]
      %v4228 = vld [vmem:[%s1 + $0x5d0] sm:$0xff]
      %v4229 = vld [vmem:[%s1 + $0x5d8] sm:$0xff]
      %v4230 = vld [vmem:[%s1 + $0x5e0] sm:$0xff]
      %v4231 = vld [vmem:[%s1 + $0x5e8] sm:$0xff]
      %v4232 = vld [vmem:[%s1 + $0x5f0] sm:$0xff]
      %v4233 = vld [vmem:[%s1 + $0x5f8] sm:$0xff]
      %v4234 = vld [vmem:[%s1 + $0x600] sm:$0xff]
      %v4235 = vld [vmem:[%s1 + $0x608] sm:$0xff]
      %v4236 = vld [vmem:[#allocation3 + $0x10] sm:$0xff]
      %v4237 = vld [vmem:[#allocation3 + $0x18] sm:$0xff]
      %v4238 = vld [vmem:[#allocation3 + $0x20] sm:$0xff]
      %v4239 = vld [vmem:[#allocation3 + $0x28] sm:$0xff]
      %v4240 = vld [vmem:[#allocation3 + $0x30] sm:$0xff]
      %v4241 = vld [vmem:[#allocation3 + $0x38] sm:$0xff]
      %v4242 = vld [vmem:[#allocation3 + $0x40] sm:$0xff]
      %v4243 = vld [vmem:[#allocation3 + $0x48] sm:$0xff]
      %v4244 = vld [vmem:[#allocation3 + $0x50] sm:$0xff]
      %v4245 = vld [vmem:[#allocation3 + $0x58] sm:$0xff]
      %v4246 = vld [vmem:[#allocation3 + $0x60] sm:$0xff]
      %v4247 = vld [vmem:[#allocation3 + $0x68] sm:$0xff]
      %v4248 = vld [vmem:[#allocation3 + $0x70] sm:$0xff]
      %v4249 = vld [vmem:[#allocation3 + $0x78] sm:$0xff]
      %v4250 = vld [vmem:[#allocation3 + $0x80] sm:$0xff]
      %v4251 = vld [vmem:[#allocation3 + $0x88] sm:$0xff]
      %v4252 = vld [vmem:[#allocation3 + $0x90] sm:$0xff]
      %v4253 = vld [vmem:[#allocation3 + $0x98] sm:$0xff]
      %v4254 = vld [vmem:[#allocation3 + $0xa0] sm:$0xff]
      %v4255 = vld [vmem:[#allocation3 + $0xa8] sm:$0xff]
      %v4256 = vld [vmem:[#allocation3 + $0xb0] sm:$0xff]
      %v4257 = vld [vmem:[#allocation3 + $0xb8] sm:$0xff]
      %v4258 = vld [vmem:[#allocation3 + $0xc0] sm:$0xff]
      %v4259 = vld [vmem:[#allocation3 + $0xc8] sm:$0xff]
      %v4260 = vld [vmem:[#allocation3 + $0xd0] sm:$0xff]
      %v4261 = vld [vmem:[#allocation3 + $0xd8] sm:$0xff]
      %v4262 = vld [vmem:[#allocation3 + $0xe0] sm:$0xff]
      %v4263 = vld [vmem:[#allocation3 + $0xe8] sm:$0xff]
      %v4264 = vld [vmem:[#allocation3 + $0xf0] sm:$0xff]
      %v4265 = vld [vmem:[#allocation3 + $0xf8] sm:$0xff]
      %v4266 = vld [vmem:[#allocation3 + $0x100] sm:$0xff]
      %v4267 = vld [vmem:[#allocation3 + $0x108] sm:$0xff]
      %v4268 = vld [vmem:[#allocation3 + $0x110] sm:$0xff]
      %v4269 = vld [vmem:[#allocation3 + $0x118] sm:$0xff]
      %v4270 = vld [vmem:[#allocation3 + $0x120] sm:$0xff]
      %v4271 = vld [vmem:[#allocation3 + $0x128] sm:$0xff]
      %v4272 = vld [vmem:[#allocation3 + $0x130] sm:$0xff]
      %vm4273 = vcmp.gt.f32.partialorder %v4199, 0.0
      %vm4274 = vcmp.gt.f32.partialorder %v4200, 0.0
      %vm4275 = vcmp.gt.f32.partialorder %v4201, 0.0
      %vm4276 = vcmp.gt.f32.partialorder %v4202, 0.0
      %vm4277 = vcmp.gt.f32.partialorder %v4203, 0.0
      %vm4278 = vcmp.gt.f32.partialorder %v4204, 0.0
      %vm4279 = vcmp.gt.f32.partialorder %v4205, 0.0
      %vm4280 = vcmp.gt.f32.partialorder %v4206, 0.0
      %vm4281 = vcmp.gt.f32.partialorder %v4207, 0.0
      %vm4282 = vcmp.gt.f32.partialorder %v4208, 0.0
      %vm4283 = vcmp.gt.f32.partialorder %v4209, 0.0
      %vm4284 = vcmp.gt.f32.partialorder %v4210, 0.0
      %vm4285 = vcmp.gt.f32.partialorder %v4211, 0.0
      %vm4286 = vcmp.gt.f32.partialorder %v4212, 0.0
      %vm4287 = vcmp.gt.f32.partialorder %v4213, 0.0
      %vm4288 = vcmp.gt.f32.partialorder %v4214, 0.0
      %vm4289 = vcmp.gt.f32.partialorder %v4215, 0.0
      %vm4290 = vcmp.gt.f32.partialorder %v4216, 0.0
      %vm4291 = vcmp.gt.f32.partialorder %v4217, 0.0
      %vm4292 = vcmp.gt.f32.partialorder %v4218, 0.0
      %vm4293 = vcmp.gt.f32.partialorder %v4219, 0.0
      %vm4294 = vcmp.gt.f32.partialorder %v4220, 0.0
      %vm4295 = vcmp.gt.f32.partialorder %v4221, 0.0
      %vm4296 = vcmp.gt.f32.partialorder %v4222, 0.0
      %vm4297 = vcmp.gt.f32.partialorder %v4223, 0.0
      %vm4298 = vcmp.gt.f32.partialorder %v4224, 0.0
      %vm4299 = vcmp.gt.f32.partialorder %v4225, 0.0
      %vm4300 = vcmp.gt.f32.partialorder %v4226, 0.0
      %vm4301 = vcmp.gt.f32.partialorder %v4227, 0.0
      %vm4302 = vcmp.gt.f32.partialorder %v4228, 0.0
      %vm4303 = vcmp.gt.f32.partialorder %v4229, 0.0
      %vm4304 = vcmp.gt.f32.partialorder %v4230, 0.0
      %vm4305 = vcmp.gt.f32.partialorder %v4231, 0.0
      %vm4306 = vcmp.gt.f32.partialorder %v4232, 0.0
      %vm4307 = vcmp.gt.f32.partialorder %v4233, 0.0
      %vm4308 = vcmp.gt.f32.partialorder %v4234, 0.0
      %vm4309 = vcmp.gt.f32.partialorder %v4235, 0.0
      %v4310 = vsel %vm4273, %v4236, 0.0
      %v4311 = vsel %vm4274, %v4237, 0.0
      %v4312 = vsel %vm4275, %v4238, 0.0
      %v4313 = vsel %vm4276, %v4239, 0.0
      %v4314 = vsel %vm4277, %v4240, 0.0
      %v4315 = vsel %vm4278, %v4241, 0.0
      %v4316 = vsel %vm4279, %v4242, 0.0
      %v4317 = vsel %vm4280, %v4243, 0.0
      %v4318 = vsel %vm4281, %v4244, 0.0
      %v4319 = vsel %vm4282, %v4245, 0.0
      %v4320 = vsel %vm4283, %v4246, 0.0
      %v4321 = vsel %vm4284, %v4247, 0.0
      %v4322 = vsel %vm4285, %v4248, 0.0
      %v4323 = vsel %vm4286, %v4249, 0.0
      %v4324 = vsel %vm4287, %v4250, 0.0
      %v4325 = vsel %vm4288, %v4251, 0.0
      %v4326 = vsel %vm4289, %v4252, 0.0
      %v4327 = vsel %vm4290, %v4253, 0.0
      %v4328 = vsel %vm4291, %v4254, 0.0
      %v4329 = vsel %vm4292, %v4255, 0.0
      %v4330 = vsel %vm4293, %v4256, 0.0
      %v4331 = vsel %vm4294, %v4257, 0.0
      %v4332 = vsel %vm4295, %v4258, 0.0
      %v4333 = vsel %vm4296, %v4259, 0.0
      %v4334 = vsel %vm4297, %v4260, 0.0
      %v4335 = vsel %vm4298, %v4261, 0.0
      %v4336 = vsel %vm4299, %v4262, 0.0
      %v4337 = vsel %vm4300, %v4263, 0.0
      %v4338 = vsel %vm4301, %v4264, 0.0
      %v4339 = vsel %vm4302, %v4265, 0.0
      %v4340 = vsel %vm4303, %v4266, 0.0
      %v4341 = vsel %vm4304, %v4267, 0.0
      %v4342 = vsel %vm4305, %v4268, 0.0
      %v4343 = vsel %vm4306, %v4269, 0.0
      %v4344 = vsel %vm4307, %v4270, 0.0
      %v4345 = vsel %vm4308, %v4271, 0.0
      %v4346 = vsel %vm4309, %v4272, 0.0
      %4347 = vst.msk [vmem:[#allocation4 + $0x10] sm:$0xff] %vm333, %v4310
      %4348 = vst.msk [vmem:[#allocation4 + $0x18] sm:$0xff] %vm333, %v4311
      %4349 = vst.msk [vmem:[#allocation4 + $0x20] sm:$0xff] %vm333, %v4312
      %4350 = vst.msk [vmem:[#allocation4 + $0x28] sm:$0xff] %vm333, %v4313
      %4351 = vst.msk [vmem:[#allocation4 + $0x30] sm:$0xff] %vm333, %v4314
      %4352 = vst.msk [vmem:[#allocation4 + $0x38] sm:$0xff] %vm333, %v4315
      %4353 = vst.msk [vmem:[#allocation4 + $0x40] sm:$0xff] %vm333, %v4316
      %4354 = vst.msk [vmem:[#allocation4 + $0x48] sm:$0xff] %vm333, %v4317
      %4355 = vst.msk [vmem:[#allocation4 + $0x50] sm:$0xff] %vm333, %v4318
      %4356 = vst.msk [vmem:[#allocation4 + $0x58] sm:$0xff] %vm333, %v4319
      %4357 = vst.msk [vmem:[#allocation4 + $0x60] sm:$0xff] %vm333, %v4320
      %4358 = vst.msk [vmem:[#allocation4 + $0x68] sm:$0xff] %vm333, %v4321
      %4359 = vst.msk [vmem:[#allocation4 + $0x70] sm:$0xff] %vm333, %v4322
      %4360 = vst.msk [vmem:[#allocation4 + $0x78] sm:$0xff] %vm333, %v4323
      %4361 = vst.msk [vmem:[#allocation4 + $0x80] sm:$0xff] %vm333, %v4324
      %4362 = vst.msk [vmem:[#allocation4 + $0x88] sm:$0xff] %vm333, %v4325
      %4363 = vst.msk [vmem:[#allocation4 + $0x90] sm:$0xff] %vm333, %v4326
      %4364 = vst.msk [vmem:[#allocation4 + $0x98] sm:$0xff] %vm333, %v4327
      %4365 = vst.msk [vmem:[#allocation4 + $0xa0] sm:$0xff] %vm333, %v4328
      %4366 = vst.msk [vmem:[#allocation4 + $0xa8] sm:$0xff] %vm333, %v4329
      %4367 = vst.msk [vmem:[#allocation4 + $0xb0] sm:$0xff] %vm333, %v4330
      %4368 = vst.msk [vmem:[#allocation4 + $0xb8] sm:$0xff] %vm333, %v4331
      %4369 = vst.msk [vmem:[#allocation4 + $0xc0] sm:$0xff] %vm333, %v4332
      %4370 = vst.msk [vmem:[#allocation4 + $0xc8] sm:$0xff] %vm333, %v4333
      %4371 = vst.msk [vmem:[#allocation4 + $0xd0] sm:$0xff] %vm333, %v4334
      %4372 = vst.msk [vmem:[#allocation4 + $0xd8] sm:$0xff] %vm333, %v4335
      %4373 = vst.msk [vmem:[#allocation4 + $0xe0] sm:$0xff] %vm333, %v4336
      %4374 = vst.msk [vmem:[#allocation4 + $0xe8] sm:$0xff] %vm333, %v4337
      %4375 = vst.msk [vmem:[#allocation4 + $0xf0] sm:$0xff] %vm333, %v4338
      %4376 = vst.msk [vmem:[#allocation4 + $0xf8] sm:$0xff] %vm333, %v4339
      %4377 = vst.msk [vmem:[#allocation4 + $0x100] sm:$0xff] %vm333, %v4340
      %4378 = vst.msk [vmem:[#allocation4 + $0x108] sm:$0xff] %vm333, %v4341
      %4379 = vst.msk [vmem:[#allocation4 + $0x110] sm:$0xff] %vm333, %v4342
      %4380 = vst.msk [vmem:[#allocation4 + $0x118] sm:$0xff] %vm333, %v4343
      %4381 = vst.msk [vmem:[#allocation4 + $0x120] sm:$0xff] %vm333, %v4344
      %4382 = vst.msk [vmem:[#allocation4 + $0x128] sm:$0xff] %vm333, %v4345
      %4383 = vst.msk [vmem:[#allocation4 + $0x130] sm:$0xff] %vm333, %v4346
      %v4384 = vld [vmem:[%s1 + $0x4e9] sm:$0xff]
      %v4385 = vld [vmem:[%s1 + $0x4f1] sm:$0xff]
      %v4386 = vld [vmem:[%s1 + $0x4f9] sm:$0xff]
      %v4387 = vld [vmem:[%s1 + $0x501] sm:$0xff]
      %v4388 = vld [vmem:[%s1 + $0x509] sm:$0xff]
      %v4389 = vld [vmem:[%s1 + $0x511] sm:$0xff]
      %v4390 = vld [vmem:[%s1 + $0x519] sm:$0xff]
      %v4391 = vld [vmem:[%s1 + $0x521] sm:$0xff]
      %v4392 = vld [vmem:[%s1 + $0x529] sm:$0xff]
      %v4393 = vld [vmem:[%s1 + $0x531] sm:$0xff]
      %v4394 = vld [vmem:[%s1 + $0x539] sm:$0xff]
      %v4395 = vld [vmem:[%s1 + $0x541] sm:$0xff]
      %v4396 = vld [vmem:[%s1 + $0x549] sm:$0xff]
      %v4397 = vld [vmem:[%s1 + $0x551] sm:$0xff]
      %v4398 = vld [vmem:[%s1 + $0x559] sm:$0xff]
      %v4399 = vld [vmem:[%s1 + $0x561] sm:$0xff]
      %v4400 = vld [vmem:[%s1 + $0x569] sm:$0xff]
      %v4401 = vld [vmem:[%s1 + $0x571] sm:$0xff]
      %v4402 = vld [vmem:[%s1 + $0x579] sm:$0xff]
      %v4403 = vld [vmem:[%s1 + $0x581] sm:$0xff]
      %v4404 = vld [vmem:[%s1 + $0x589] sm:$0xff]
      %v4405 = vld [vmem:[%s1 + $0x591] sm:$0xff]
      %v4406 = vld [vmem:[%s1 + $0x599] sm:$0xff]
      %v4407 = vld [vmem:[%s1 + $0x5a1] sm:$0xff]
      %v4408 = vld [vmem:[%s1 + $0x5a9] sm:$0xff]
      %v4409 = vld [vmem:[%s1 + $0x5b1] sm:$0xff]
      %v4410 = vld [vmem:[%s1 + $0x5b9] sm:$0xff]
      %v4411 = vld [vmem:[%s1 + $0x5c1] sm:$0xff]
      %v4412 = vld [vmem:[%s1 + $0x5c9] sm:$0xff]
      %v4413 = vld [vmem:[%s1 + $0x5d1] sm:$0xff]
      %v4414 = vld [vmem:[%s1 + $0x5d9] sm:$0xff]
      %v4415 = vld [vmem:[%s1 + $0x5e1] sm:$0xff]
      %v4416 = vld [vmem:[%s1 + $0x5e9] sm:$0xff]
      %v4417 = vld [vmem:[%s1 + $0x5f1] sm:$0xff]
      %v4418 = vld [vmem:[%s1 + $0x5f9] sm:$0xff]
      %v4419 = vld [vmem:[%s1 + $0x601] sm:$0xff]
      %v4420 = vld [vmem:[%s1 + $0x609] sm:$0xff]
      %v4421 = vld [vmem:[#allocation3 + $0x11] sm:$0xff]
      %v4422 = vld [vmem:[#allocation3 + $0x19] sm:$0xff]
      %v4423 = vld [vmem:[#allocation3 + $0x21] sm:$0xff]
      %v4424 = vld [vmem:[#allocation3 + $0x29] sm:$0xff]
      %v4425 = vld [vmem:[#allocation3 + $0x31] sm:$0xff]
      %v4426 = vld [vmem:[#allocation3 + $0x39] sm:$0xff]
      %v4427 = vld [vmem:[#allocation3 + $0x41] sm:$0xff]
      %v4428 = vld [vmem:[#allocation3 + $0x49] sm:$0xff]
      %v4429 = vld [vmem:[#allocation3 + $0x51] sm:$0xff]
      %v4430 = vld [vmem:[#allocation3 + $0x59] sm:$0xff]
      %v4431 = vld [vmem:[#allocation3 + $0x61] sm:$0xff]
      %v4432 = vld [vmem:[#allocation3 + $0x69] sm:$0xff]
      %v4433 = vld [vmem:[#allocation3 + $0x71] sm:$0xff]
      %v4434 = vld [vmem:[#allocation3 + $0x79] sm:$0xff]
      %v4435 = vld [vmem:[#allocation3 + $0x81] sm:$0xff]
      %v4436 = vld [vmem:[#allocation3 + $0x89] sm:$0xff]
      %v4437 = vld [vmem:[#allocation3 + $0x91] sm:$0xff]
      %v4438 = vld [vmem:[#allocation3 + $0x99] sm:$0xff]
      %v4439 = vld [vmem:[#allocation3 + $0xa1] sm:$0xff]
      %v4440 = vld [vmem:[#allocation3 + $0xa9] sm:$0xff]
      %v4441 = vld [vmem:[#allocation3 + $0xb1] sm:$0xff]
      %v4442 = vld [vmem:[#allocation3 + $0xb9] sm:$0xff]
      %v4443 = vld [vmem:[#allocation3 + $0xc1] sm:$0xff]
      %v4444 = vld [vmem:[#allocation3 + $0xc9] sm:$0xff]
      %v4445 = vld [vmem:[#allocation3 + $0xd1] sm:$0xff]
      %v4446 = vld [vmem:[#allocation3 + $0xd9] sm:$0xff]
      %v4447 = vld [vmem:[#allocation3 + $0xe1] sm:$0xff]
      %v4448 = vld [vmem:[#allocation3 + $0xe9] sm:$0xff]
      %v4449 = vld [vmem:[#allocation3 + $0xf1] sm:$0xff]
      %v4450 = vld [vmem:[#allocation3 + $0xf9] sm:$0xff]
      %v4451 = vld [vmem:[#allocation3 + $0x101] sm:$0xff]
      %v4452 = vld [vmem:[#allocation3 + $0x109] sm:$0xff]
      %v4453 = vld [vmem:[#allocation3 + $0x111] sm:$0xff]
      %v4454 = vld [vmem:[#allocation3 + $0x119] sm:$0xff]
      %v4455 = vld [vmem:[#allocation3 + $0x121] sm:$0xff]
      %v4456 = vld [vmem:[#allocation3 + $0x129] sm:$0xff]
      %v4457 = vld [vmem:[#allocation3 + $0x131] sm:$0xff]
      %vm4458 = vcmp.gt.f32.partialorder %v4384, 0.0
      %vm4459 = vcmp.gt.f32.partialorder %v4385, 0.0
      %vm4460 = vcmp.gt.f32.partialorder %v4386, 0.0
      %vm4461 = vcmp.gt.f32.partialorder %v4387, 0.0
      %vm4462 = vcmp.gt.f32.partialorder %v4388, 0.0
      %vm4463 = vcmp.gt.f32.partialorder %v4389, 0.0
      %vm4464 = vcmp.gt.f32.partialorder %v4390, 0.0
      %vm4465 = vcmp.gt.f32.partialorder %v4391, 0.0
      %vm4466 = vcmp.gt.f32.partialorder %v4392, 0.0
      %vm4467 = vcmp.gt.f32.partialorder %v4393, 0.0
      %vm4468 = vcmp.gt.f32.partialorder %v4394, 0.0
      %vm4469 = vcmp.gt.f32.partialorder %v4395, 0.0
      %vm4470 = vcmp.gt.f32.partialorder %v4396, 0.0
      %vm4471 = vcmp.gt.f32.partialorder %v4397, 0.0
      %vm4472 = vcmp.gt.f32.partialorder %v4398, 0.0
      %vm4473 = vcmp.gt.f32.partialorder %v4399, 0.0
      %vm4474 = vcmp.gt.f32.partialorder %v4400, 0.0
      %vm4475 = vcmp.gt.f32.partialorder %v4401, 0.0
      %vm4476 = vcmp.gt.f32.partialorder %v4402, 0.0
      %vm4477 = vcmp.gt.f32.partialorder %v4403, 0.0
      %vm4478 = vcmp.gt.f32.partialorder %v4404, 0.0
      %vm4479 = vcmp.gt.f32.partialorder %v4405, 0.0
      %vm4480 = vcmp.gt.f32.partialorder %v4406, 0.0
      %vm4481 = vcmp.gt.f32.partialorder %v4407, 0.0
      %vm4482 = vcmp.gt.f32.partialorder %v4408, 0.0
      %vm4483 = vcmp.gt.f32.partialorder %v4409, 0.0
      %vm4484 = vcmp.gt.f32.partialorder %v4410, 0.0
      %vm4485 = vcmp.gt.f32.partialorder %v4411, 0.0
      %vm4486 = vcmp.gt.f32.partialorder %v4412, 0.0
      %vm4487 = vcmp.gt.f32.partialorder %v4413, 0.0
      %vm4488 = vcmp.gt.f32.partialorder %v4414, 0.0
      %vm4489 = vcmp.gt.f32.partialorder %v4415, 0.0
      %vm4490 = vcmp.gt.f32.partialorder %v4416, 0.0
      %vm4491 = vcmp.gt.f32.partialorder %v4417, 0.0
      %vm4492 = vcmp.gt.f32.partialorder %v4418, 0.0
      %vm4493 = vcmp.gt.f32.partialorder %v4419, 0.0
      %vm4494 = vcmp.gt.f32.partialorder %v4420, 0.0
      %v4495 = vsel %vm4458, %v4421, 0.0
      %v4496 = vsel %vm4459, %v4422, 0.0
      %v4497 = vsel %vm4460, %v4423, 0.0
      %v4498 = vsel %vm4461, %v4424, 0.0
      %v4499 = vsel %vm4462, %v4425, 0.0
      %v4500 = vsel %vm4463, %v4426, 0.0
      %v4501 = vsel %vm4464, %v4427, 0.0
      %v4502 = vsel %vm4465, %v4428, 0.0
      %v4503 = vsel %vm4466, %v4429, 0.0
      %v4504 = vsel %vm4467, %v4430, 0.0
      %v4505 = vsel %vm4468, %v4431, 0.0
      %v4506 = vsel %vm4469, %v4432, 0.0
      %v4507 = vsel %vm4470, %v4433, 0.0
      %v4508 = vsel %vm4471, %v4434, 0.0
      %v4509 = vsel %vm4472, %v4435, 0.0
      %v4510 = vsel %vm4473, %v4436, 0.0
      %v4511 = vsel %vm4474, %v4437, 0.0
      %v4512 = vsel %vm4475, %v4438, 0.0
      %v4513 = vsel %vm4476, %v4439, 0.0
      %v4514 = vsel %vm4477, %v4440, 0.0
      %v4515 = vsel %vm4478, %v4441, 0.0
      %v4516 = vsel %vm4479, %v4442, 0.0
      %v4517 = vsel %vm4480, %v4443, 0.0
      %v4518 = vsel %vm4481, %v4444, 0.0
      %v4519 = vsel %vm4482, %v4445, 0.0
      %v4520 = vsel %vm4483, %v4446, 0.0
      %v4521 = vsel %vm4484, %v4447, 0.0
      %v4522 = vsel %vm4485, %v4448, 0.0
      %v4523 = vsel %vm4486, %v4449, 0.0
      %v4524 = vsel %vm4487, %v4450, 0.0
      %v4525 = vsel %vm4488, %v4451, 0.0
      %v4526 = vsel %vm4489, %v4452, 0.0
      %v4527 = vsel %vm4490, %v4453, 0.0
      %v4528 = vsel %vm4491, %v4454, 0.0
      %v4529 = vsel %vm4492, %v4455, 0.0
      %v4530 = vsel %vm4493, %v4456, 0.0
      %v4531 = vsel %vm4494, %v4457, 0.0
      %4569 = vrot.lane.b32.xlu0 %v4495, 16
      %v4570 = vpop.permute.xlu0 %4569
      %4571 = vrot.lane.b32.xlu0 %v4496, 16
      %v4572 = vpop.permute.xlu0 %4571
      %4573 = vrot.lane.b32.xlu0 %v4497, 16
      %v4574 = vpop.permute.xlu0 %4573
      %4575 = vrot.lane.b32.xlu0 %v4498, 16
      %v4576 = vpop.permute.xlu0 %4575
      %4577 = vrot.lane.b32.xlu0 %v4499, 16
      %v4578 = vpop.permute.xlu0 %4577
      %4579 = vrot.lane.b32.xlu0 %v4500, 16
      %v4580 = vpop.permute.xlu0 %4579
      %4581 = vrot.lane.b32.xlu0 %v4501, 16
      %v4582 = vpop.permute.xlu0 %4581
      %4583 = vrot.lane.b32.xlu0 %v4502, 16
      %v4584 = vpop.permute.xlu0 %4583
      %4585 = vrot.lane.b32.xlu0 %v4503, 16
      %v4586 = vpop.permute.xlu0 %4585
      %4587 = vrot.lane.b32.xlu0 %v4504, 16
      %v4588 = vpop.permute.xlu0 %4587
      %4589 = vrot.lane.b32.xlu0 %v4505, 16
      %v4590 = vpop.permute.xlu0 %4589
      %4591 = vrot.lane.b32.xlu0 %v4506, 16
      %v4592 = vpop.permute.xlu0 %4591
      %4593 = vrot.lane.b32.xlu0 %v4507, 16
      %v4594 = vpop.permute.xlu0 %4593
      %4595 = vrot.lane.b32.xlu0 %v4508, 16
      %v4596 = vpop.permute.xlu0 %4595
      %4597 = vrot.lane.b32.xlu0 %v4509, 16
      %v4598 = vpop.permute.xlu0 %4597
      %4599 = vrot.lane.b32.xlu0 %v4510, 16
      %v4600 = vpop.permute.xlu0 %4599
      %4601 = vrot.lane.b32.xlu0 %v4511, 16
      %v4602 = vpop.permute.xlu0 %4601
      %4603 = vrot.lane.b32.xlu0 %v4512, 16
      %v4604 = vpop.permute.xlu0 %4603
      %4605 = vrot.lane.b32.xlu0 %v4513, 16
      %v4606 = vpop.permute.xlu0 %4605
      %4607 = vrot.lane.b32.xlu0 %v4514, 16
      %v4608 = vpop.permute.xlu0 %4607
      %4609 = vrot.lane.b32.xlu0 %v4515, 16
      %v4610 = vpop.permute.xlu0 %4609
      %4611 = vrot.lane.b32.xlu0 %v4516, 16
      %v4612 = vpop.permute.xlu0 %4611
      %4613 = vrot.lane.b32.xlu0 %v4517, 16
      %v4614 = vpop.permute.xlu0 %4613
      %4615 = vrot.lane.b32.xlu0 %v4518, 16
      %v4616 = vpop.permute.xlu0 %4615
      %4617 = vrot.lane.b32.xlu0 %v4519, 16
      %v4618 = vpop.permute.xlu0 %4617
      %4619 = vrot.lane.b32.xlu0 %v4520, 16
      %v4620 = vpop.permute.xlu0 %4619
      %4621 = vrot.lane.b32.xlu0 %v4521, 16
      %v4622 = vpop.permute.xlu0 %4621
      %4623 = vrot.lane.b32.xlu0 %v4522, 16
      %v4624 = vpop.permute.xlu0 %4623
      %4625 = vrot.lane.b32.xlu0 %v4523, 16
      %v4626 = vpop.permute.xlu0 %4625
      %4627 = vrot.lane.b32.xlu0 %v4524, 16
      %v4628 = vpop.permute.xlu0 %4627
      %4629 = vrot.lane.b32.xlu0 %v4525, 16
      %v4630 = vpop.permute.xlu0 %4629
      %4631 = vrot.lane.b32.xlu0 %v4526, 16
      %v4632 = vpop.permute.xlu0 %4631
      %4633 = vrot.lane.b32.xlu0 %v4527, 16
      %v4634 = vpop.permute.xlu0 %4633
      %4635 = vrot.lane.b32.xlu0 %v4528, 16
      %v4636 = vpop.permute.xlu0 %4635
      %4637 = vrot.lane.b32.xlu0 %v4529, 16
      %v4638 = vpop.permute.xlu0 %4637
      %4639 = vrot.lane.b32.xlu0 %v4530, 16
      %v4640 = vpop.permute.xlu0 %4639
      %4641 = vrot.lane.b32.xlu0 %v4531, 16
      %v4642 = vpop.permute.xlu0 %4641
      %vm4680 = vcmask 261248
      %4681 = vst.msk [vmem:[#allocation4 + $0x10] sm:$0xff] %vm4680, %v4570
      %4682 = vst.msk [vmem:[#allocation4 + $0x18] sm:$0xff] %vm4680, %v4572
      %4683 = vst.msk [vmem:[#allocation4 + $0x20] sm:$0xff] %vm4680, %v4574
      %4684 = vst.msk [vmem:[#allocation4 + $0x28] sm:$0xff] %vm4680, %v4576
      %4685 = vst.msk [vmem:[#allocation4 + $0x30] sm:$0xff] %vm4680, %v4578
      %4686 = vst.msk [vmem:[#allocation4 + $0x38] sm:$0xff] %vm4680, %v4580
      %4687 = vst.msk [vmem:[#allocation4 + $0x40] sm:$0xff] %vm4680, %v4582
      %4688 = vst.msk [vmem:[#allocation4 + $0x48] sm:$0xff] %vm4680, %v4584
      %4689 = vst.msk [vmem:[#allocation4 + $0x50] sm:$0xff] %vm4680, %v4586
      %4690 = vst.msk [vmem:[#allocation4 + $0x58] sm:$0xff] %vm4680, %v4588
      %4691 = vst.msk [vmem:[#allocation4 + $0x60] sm:$0xff] %vm4680, %v4590
      %4692 = vst.msk [vmem:[#allocation4 + $0x68] sm:$0xff] %vm4680, %v4592
      %4693 = vst.msk [vmem:[#allocation4 + $0x70] sm:$0xff] %vm4680, %v4594
      %4694 = vst.msk [vmem:[#allocation4 + $0x78] sm:$0xff] %vm4680, %v4596
      %4695 = vst.msk [vmem:[#allocation4 + $0x80] sm:$0xff] %vm4680, %v4598
      %4696 = vst.msk [vmem:[#allocation4 + $0x88] sm:$0xff] %vm4680, %v4600
      %4697 = vst.msk [vmem:[#allocation4 + $0x90] sm:$0xff] %vm4680, %v4602
      %4698 = vst.msk [vmem:[#allocation4 + $0x98] sm:$0xff] %vm4680, %v4604
      %4699 = vst.msk [vmem:[#allocation4 + $0xa0] sm:$0xff] %vm4680, %v4606
      %4700 = vst.msk [vmem:[#allocation4 + $0xa8] sm:$0xff] %vm4680, %v4608
      %4701 = vst.msk [vmem:[#allocation4 + $0xb0] sm:$0xff] %vm4680, %v4610
      %4702 = vst.msk [vmem:[#allocation4 + $0xb8] sm:$0xff] %vm4680, %v4612
      %4703 = vst.msk [vmem:[#allocation4 + $0xc0] sm:$0xff] %vm4680, %v4614
      %4704 = vst.msk [vmem:[#allocation4 + $0xc8] sm:$0xff] %vm4680, %v4616
      %4705 = vst.msk [vmem:[#allocation4 + $0xd0] sm:$0xff] %vm4680, %v4618
      %4706 = vst.msk [vmem:[#allocation4 + $0xd8] sm:$0xff] %vm4680, %v4620
      %4707 = vst.msk [vmem:[#allocation4 + $0xe0] sm:$0xff] %vm4680, %v4622
      %4708 = vst.msk [vmem:[#allocation4 + $0xe8] sm:$0xff] %vm4680, %v4624
      %4709 = vst.msk [vmem:[#allocation4 + $0xf0] sm:$0xff] %vm4680, %v4626
      %4710 = vst.msk [vmem:[#allocation4 + $0xf8] sm:$0xff] %vm4680, %v4628
      %4711 = vst.msk [vmem:[#allocation4 + $0x100] sm:$0xff] %vm4680, %v4630
      %4712 = vst.msk [vmem:[#allocation4 + $0x108] sm:$0xff] %vm4680, %v4632
      %4713 = vst.msk [vmem:[#allocation4 + $0x110] sm:$0xff] %vm4680, %v4634
      %4714 = vst.msk [vmem:[#allocation4 + $0x118] sm:$0xff] %vm4680, %v4636
      %4715 = vst.msk [vmem:[#allocation4 + $0x120] sm:$0xff] %vm4680, %v4638
      %4716 = vst.msk [vmem:[#allocation4 + $0x128] sm:$0xff] %vm4680, %v4640
      %4717 = vst.msk [vmem:[#allocation4 + $0x130] sm:$0xff] %vm4680, %v4642
      %v4718 = vld [vmem:[%s1 + $0x4ea] sm:$0xff]
      %v4719 = vld [vmem:[%s1 + $0x4f2] sm:$0xff]
      %v4720 = vld [vmem:[%s1 + $0x4fa] sm:$0xff]
      %v4721 = vld [vmem:[%s1 + $0x502] sm:$0xff]
      %v4722 = vld [vmem:[%s1 + $0x50a] sm:$0xff]
      %v4723 = vld [vmem:[%s1 + $0x512] sm:$0xff]
      %v4724 = vld [vmem:[%s1 + $0x51a] sm:$0xff]
      %v4725 = vld [vmem:[%s1 + $0x522] sm:$0xff]
      %v4726 = vld [vmem:[%s1 + $0x52a] sm:$0xff]
      %v4727 = vld [vmem:[%s1 + $0x532] sm:$0xff]
      %v4728 = vld [vmem:[%s1 + $0x53a] sm:$0xff]
      %v4729 = vld [vmem:[%s1 + $0x542] sm:$0xff]
      %v4730 = vld [vmem:[%s1 + $0x54a] sm:$0xff]
      %v4731 = vld [vmem:[%s1 + $0x552] sm:$0xff]
      %v4732 = vld [vmem:[%s1 + $0x55a] sm:$0xff]
      %v4733 = vld [vmem:[%s1 + $0x562] sm:$0xff]
      %v4734 = vld [vmem:[%s1 + $0x56a] sm:$0xff]
      %v4735 = vld [vmem:[%s1 + $0x572] sm:$0xff]
      %v4736 = vld [vmem:[%s1 + $0x57a] sm:$0xff]
      %v4737 = vld [vmem:[%s1 + $0x582] sm:$0xff]
      %v4738 = vld [vmem:[%s1 + $0x58a] sm:$0xff]
      %v4739 = vld [vmem:[%s1 + $0x592] sm:$0xff]
      %v4740 = vld [vmem:[%s1 + $0x59a] sm:$0xff]
      %v4741 = vld [vmem:[%s1 + $0x5a2] sm:$0xff]
      %v4742 = vld [vmem:[%s1 + $0x5aa] sm:$0xff]
      %v4743 = vld [vmem:[%s1 + $0x5b2] sm:$0xff]
      %v4744 = vld [vmem:[%s1 + $0x5ba] sm:$0xff]
      %v4745 = vld [vmem:[%s1 + $0x5c2] sm:$0xff]
      %v4746 = vld [vmem:[%s1 + $0x5ca] sm:$0xff]
      %v4747 = vld [vmem:[%s1 + $0x5d2] sm:$0xff]
      %v4748 = vld [vmem:[%s1 + $0x5da] sm:$0xff]
      %v4749 = vld [vmem:[%s1 + $0x5e2] sm:$0xff]
      %v4750 = vld [vmem:[%s1 + $0x5ea] sm:$0xff]
      %v4751 = vld [vmem:[%s1 + $0x5f2] sm:$0xff]
      %v4752 = vld [vmem:[%s1 + $0x5fa] sm:$0xff]
      %v4753 = vld [vmem:[%s1 + $0x602] sm:$0xff]
      %v4754 = vld [vmem:[%s1 + $0x60a] sm:$0xff]
      %v4755 = vld [vmem:[#allocation3 + $0x12] sm:$0xff]
      %v4756 = vld [vmem:[#allocation3 + $0x1a] sm:$0xff]
      %v4757 = vld [vmem:[#allocation3 + $0x22] sm:$0xff]
      %v4758 = vld [vmem:[#allocation3 + $0x2a] sm:$0xff]
      %v4759 = vld [vmem:[#allocation3 + $0x32] sm:$0xff]
      %v4760 = vld [vmem:[#allocation3 + $0x3a] sm:$0xff]
      %v4761 = vld [vmem:[#allocation3 + $0x42] sm:$0xff]
      %v4762 = vld [vmem:[#allocation3 + $0x4a] sm:$0xff]
      %v4763 = vld [vmem:[#allocation3 + $0x52] sm:$0xff]
      %v4764 = vld [vmem:[#allocation3 + $0x5a] sm:$0xff]
      %v4765 = vld [vmem:[#allocation3 + $0x62] sm:$0xff]
      %v4766 = vld [vmem:[#allocation3 + $0x6a] sm:$0xff]
      %v4767 = vld [vmem:[#allocation3 + $0x72] sm:$0xff]
      %v4768 = vld [vmem:[#allocation3 + $0x7a] sm:$0xff]
      %v4769 = vld [vmem:[#allocation3 + $0x82] sm:$0xff]
      %v4770 = vld [vmem:[#allocation3 + $0x8a] sm:$0xff]
      %v4771 = vld [vmem:[#allocation3 + $0x92] sm:$0xff]
      %v4772 = vld [vmem:[#allocation3 + $0x9a] sm:$0xff]
      %v4773 = vld [vmem:[#allocation3 + $0xa2] sm:$0xff]
      %v4774 = vld [vmem:[#allocation3 + $0xaa] sm:$0xff]
      %v4775 = vld [vmem:[#allocation3 + $0xb2] sm:$0xff]
      %v4776 = vld [vmem:[#allocation3 + $0xba] sm:$0xff]
      %v4777 = vld [vmem:[#allocation3 + $0xc2] sm:$0xff]
      %v4778 = vld [vmem:[#allocation3 + $0xca] sm:$0xff]
      %v4779 = vld [vmem:[#allocation3 + $0xd2] sm:$0xff]
      %v4780 = vld [vmem:[#allocation3 + $0xda] sm:$0xff]
      %v4781 = vld [vmem:[#allocation3 + $0xe2] sm:$0xff]
      %v4782 = vld [vmem:[#allocation3 + $0xea] sm:$0xff]
      %v4783 = vld [vmem:[#allocation3 + $0xf2] sm:$0xff]
      %v4784 = vld [vmem:[#allocation3 + $0xfa] sm:$0xff]
      %v4785 = vld [vmem:[#allocation3 + $0x102] sm:$0xff]
      %v4786 = vld [vmem:[#allocation3 + $0x10a] sm:$0xff]
      %v4787 = vld [vmem:[#allocation3 + $0x112] sm:$0xff]
      %v4788 = vld [vmem:[#allocation3 + $0x11a] sm:$0xff]
      %v4789 = vld [vmem:[#allocation3 + $0x122] sm:$0xff]
      %v4790 = vld [vmem:[#allocation3 + $0x12a] sm:$0xff]
      %v4791 = vld [vmem:[#allocation3 + $0x132] sm:$0xff]
      %vm4792 = vcmp.gt.f32.partialorder %v4718, 0.0
      %vm4793 = vcmp.gt.f32.partialorder %v4719, 0.0
      %vm4794 = vcmp.gt.f32.partialorder %v4720, 0.0
      %vm4795 = vcmp.gt.f32.partialorder %v4721, 0.0
      %vm4796 = vcmp.gt.f32.partialorder %v4722, 0.0
      %vm4797 = vcmp.gt.f32.partialorder %v4723, 0.0
      %vm4798 = vcmp.gt.f32.partialorder %v4724, 0.0
      %vm4799 = vcmp.gt.f32.partialorder %v4725, 0.0
      %vm4800 = vcmp.gt.f32.partialorder %v4726, 0.0
      %vm4801 = vcmp.gt.f32.partialorder %v4727, 0.0
      %vm4802 = vcmp.gt.f32.partialorder %v4728, 0.0
      %vm4803 = vcmp.gt.f32.partialorder %v4729, 0.0
      %vm4804 = vcmp.gt.f32.partialorder %v4730, 0.0
      %vm4805 = vcmp.gt.f32.partialorder %v4731, 0.0
      %vm4806 = vcmp.gt.f32.partialorder %v4732, 0.0
      %vm4807 = vcmp.gt.f32.partialorder %v4733, 0.0
      %vm4808 = vcmp.gt.f32.partialorder %v4734, 0.0
      %vm4809 = vcmp.gt.f32.partialorder %v4735, 0.0
      %vm4810 = vcmp.gt.f32.partialorder %v4736, 0.0
      %vm4811 = vcmp.gt.f32.partialorder %v4737, 0.0
      %vm4812 = vcmp.gt.f32.partialorder %v4738, 0.0
      %vm4813 = vcmp.gt.f32.partialorder %v4739, 0.0
      %vm4814 = vcmp.gt.f32.partialorder %v4740, 0.0
      %vm4815 = vcmp.gt.f32.partialorder %v4741, 0.0
      %vm4816 = vcmp.gt.f32.partialorder %v4742, 0.0
      %vm4817 = vcmp.gt.f32.partialorder %v4743, 0.0
      %vm4818 = vcmp.gt.f32.partialorder %v4744, 0.0
      %vm4819 = vcmp.gt.f32.partialorder %v4745, 0.0
      %vm4820 = vcmp.gt.f32.partialorder %v4746, 0.0
      %vm4821 = vcmp.gt.f32.partialorder %v4747, 0.0
      %vm4822 = vcmp.gt.f32.partialorder %v4748, 0.0
      %vm4823 = vcmp.gt.f32.partialorder %v4749, 0.0
      %vm4824 = vcmp.gt.f32.partialorder %v4750, 0.0
      %vm4825 = vcmp.gt.f32.partialorder %v4751, 0.0
      %vm4826 = vcmp.gt.f32.partialorder %v4752, 0.0
      %vm4827 = vcmp.gt.f32.partialorder %v4753, 0.0
      %vm4828 = vcmp.gt.f32.partialorder %v4754, 0.0
      %v4829 = vsel %vm4792, %v4755, 0.0
      %v4830 = vsel %vm4793, %v4756, 0.0
      %v4831 = vsel %vm4794, %v4757, 0.0
      %v4832 = vsel %vm4795, %v4758, 0.0
      %v4833 = vsel %vm4796, %v4759, 0.0
      %v4834 = vsel %vm4797, %v4760, 0.0
      %v4835 = vsel %vm4798, %v4761, 0.0
      %v4836 = vsel %vm4799, %v4762, 0.0
      %v4837 = vsel %vm4800, %v4763, 0.0
      %v4838 = vsel %vm4801, %v4764, 0.0
      %v4839 = vsel %vm4802, %v4765, 0.0
      %v4840 = vsel %vm4803, %v4766, 0.0
      %v4841 = vsel %vm4804, %v4767, 0.0
      %v4842 = vsel %vm4805, %v4768, 0.0
      %v4843 = vsel %vm4806, %v4769, 0.0
      %v4844 = vsel %vm4807, %v4770, 0.0
      %v4845 = vsel %vm4808, %v4771, 0.0
      %v4846 = vsel %vm4809, %v4772, 0.0
      %v4847 = vsel %vm4810, %v4773, 0.0
      %v4848 = vsel %vm4811, %v4774, 0.0
      %v4849 = vsel %vm4812, %v4775, 0.0
      %v4850 = vsel %vm4813, %v4776, 0.0
      %v4851 = vsel %vm4814, %v4777, 0.0
      %v4852 = vsel %vm4815, %v4778, 0.0
      %v4853 = vsel %vm4816, %v4779, 0.0
      %v4854 = vsel %vm4817, %v4780, 0.0
      %v4855 = vsel %vm4818, %v4781, 0.0
      %v4856 = vsel %vm4819, %v4782, 0.0
      %v4857 = vsel %vm4820, %v4783, 0.0
      %v4858 = vsel %vm4821, %v4784, 0.0
      %v4859 = vsel %vm4822, %v4785, 0.0
      %v4860 = vsel %vm4823, %v4786, 0.0
      %v4861 = vsel %vm4824, %v4787, 0.0
      %v4862 = vsel %vm4825, %v4788, 0.0
      %v4863 = vsel %vm4826, %v4789, 0.0
      %v4864 = vsel %vm4827, %v4790, 0.0
      %v4865 = vsel %vm4828, %v4791, 0.0
      %4903 = vrot.lane.b32.xlu0 %v4829, 32
      %v4904 = vpop.permute.xlu0 %4903
      %4905 = vrot.lane.b32.xlu0 %v4830, 32
      %v4906 = vpop.permute.xlu0 %4905
      %4907 = vrot.lane.b32.xlu0 %v4831, 32
      %v4908 = vpop.permute.xlu0 %4907
      %4909 = vrot.lane.b32.xlu0 %v4832, 32
      %v4910 = vpop.permute.xlu0 %4909
      %4911 = vrot.lane.b32.xlu0 %v4833, 32
      %v4912 = vpop.permute.xlu0 %4911
      %4913 = vrot.lane.b32.xlu0 %v4834, 32
      %v4914 = vpop.permute.xlu0 %4913
      %4915 = vrot.lane.b32.xlu0 %v4835, 32
      %v4916 = vpop.permute.xlu0 %4915
      %4917 = vrot.lane.b32.xlu0 %v4836, 32
      %v4918 = vpop.permute.xlu0 %4917
      %4919 = vrot.lane.b32.xlu0 %v4837, 32
      %v4920 = vpop.permute.xlu0 %4919
      %4921 = vrot.lane.b32.xlu0 %v4838, 32
      %v4922 = vpop.permute.xlu0 %4921
      %4923 = vrot.lane.b32.xlu0 %v4839, 32
      %v4924 = vpop.permute.xlu0 %4923
      %4925 = vrot.lane.b32.xlu0 %v4840, 32
      %v4926 = vpop.permute.xlu0 %4925
      %4927 = vrot.lane.b32.xlu0 %v4841, 32
      %v4928 = vpop.permute.xlu0 %4927
      %4929 = vrot.lane.b32.xlu0 %v4842, 32
      %v4930 = vpop.permute.xlu0 %4929
      %4931 = vrot.lane.b32.xlu0 %v4843, 32
      %v4932 = vpop.permute.xlu0 %4931
      %4933 = vrot.lane.b32.xlu0 %v4844, 32
      %v4934 = vpop.permute.xlu0 %4933
      %4935 = vrot.lane.b32.xlu0 %v4845, 32
      %v4936 = vpop.permute.xlu0 %4935
      %4937 = vrot.lane.b32.xlu0 %v4846, 32
      %v4938 = vpop.permute.xlu0 %4937
      %4939 = vrot.lane.b32.xlu0 %v4847, 32
      %v4940 = vpop.permute.xlu0 %4939
      %4941 = vrot.lane.b32.xlu0 %v4848, 32
      %v4942 = vpop.permute.xlu0 %4941
      %4943 = vrot.lane.b32.xlu0 %v4849, 32
      %v4944 = vpop.permute.xlu0 %4943
      %4945 = vrot.lane.b32.xlu0 %v4850, 32
      %v4946 = vpop.permute.xlu0 %4945
      %4947 = vrot.lane.b32.xlu0 %v4851, 32
      %v4948 = vpop.permute.xlu0 %4947
      %4949 = vrot.lane.b32.xlu0 %v4852, 32
      %v4950 = vpop.permute.xlu0 %4949
      %4951 = vrot.lane.b32.xlu0 %v4853, 32
      %v4952 = vpop.permute.xlu0 %4951
      %4953 = vrot.lane.b32.xlu0 %v4854, 32
      %v4954 = vpop.permute.xlu0 %4953
      %4955 = vrot.lane.b32.xlu0 %v4855, 32
      %v4956 = vpop.permute.xlu0 %4955
      %4957 = vrot.lane.b32.xlu0 %v4856, 32
      %v4958 = vpop.permute.xlu0 %4957
      %4959 = vrot.lane.b32.xlu0 %v4857, 32
      %v4960 = vpop.permute.xlu0 %4959
      %4961 = vrot.lane.b32.xlu0 %v4858, 32
      %v4962 = vpop.permute.xlu0 %4961
      %4963 = vrot.lane.b32.xlu0 %v4859, 32
      %v4964 = vpop.permute.xlu0 %4963
      %4965 = vrot.lane.b32.xlu0 %v4860, 32
      %v4966 = vpop.permute.xlu0 %4965
      %4967 = vrot.lane.b32.xlu0 %v4861, 32
      %v4968 = vpop.permute.xlu0 %4967
      %4969 = vrot.lane.b32.xlu0 %v4862, 32
      %v4970 = vpop.permute.xlu0 %4969
      %4971 = vrot.lane.b32.xlu0 %v4863, 32
      %v4972 = vpop.permute.xlu0 %4971
      %4973 = vrot.lane.b32.xlu0 %v4864, 32
      %v4974 = vpop.permute.xlu0 %4973
      %4975 = vrot.lane.b32.xlu0 %v4865, 32
      %v4976 = vpop.permute.xlu0 %4975
      %vm5014 = vcmask 392448
      %5015 = vst.msk [vmem:[#allocation4 + $0x10] sm:$0xff] %vm5014, %v4904
      %5016 = vst.msk [vmem:[#allocation4 + $0x18] sm:$0xff] %vm5014, %v4906
      %5017 = vst.msk [vmem:[#allocation4 + $0x20] sm:$0xff] %vm5014, %v4908
      %5018 = vst.msk [vmem:[#allocation4 + $0x28] sm:$0xff] %vm5014, %v4910
      %5019 = vst.msk [vmem:[#allocation4 + $0x30] sm:$0xff] %vm5014, %v4912
      %5020 = vst.msk [vmem:[#allocation4 + $0x38] sm:$0xff] %vm5014, %v4914
      %5021 = vst.msk [vmem:[#allocation4 + $0x40] sm:$0xff] %vm5014, %v4916
      %5022 = vst.msk [vmem:[#allocation4 + $0x48] sm:$0xff] %vm5014, %v4918
      %5023 = vst.msk [vmem:[#allocation4 + $0x50] sm:$0xff] %vm5014, %v4920
      %5024 = vst.msk [vmem:[#allocation4 + $0x58] sm:$0xff] %vm5014, %v4922
      %5025 = vst.msk [vmem:[#allocation4 + $0x60] sm:$0xff] %vm5014, %v4924
      %5026 = vst.msk [vmem:[#allocation4 + $0x68] sm:$0xff] %vm5014, %v4926
      %5027 = vst.msk [vmem:[#allocation4 + $0x70] sm:$0xff] %vm5014, %v4928
      %5028 = vst.msk [vmem:[#allocation4 + $0x78] sm:$0xff] %vm5014, %v4930
      %5029 = vst.msk [vmem:[#allocation4 + $0x80] sm:$0xff] %vm5014, %v4932
      %5030 = vst.msk [vmem:[#allocation4 + $0x88] sm:$0xff] %vm5014, %v4934
      %5031 = vst.msk [vmem:[#allocation4 + $0x90] sm:$0xff] %vm5014, %v4936
      %5032 = vst.msk [vmem:[#allocation4 + $0x98] sm:$0xff] %vm5014, %v4938
      %5033 = vst.msk [vmem:[#allocation4 + $0xa0] sm:$0xff] %vm5014, %v4940
      %5034 = vst.msk [vmem:[#allocation4 + $0xa8] sm:$0xff] %vm5014, %v4942
      %5035 = vst.msk [vmem:[#allocation4 + $0xb0] sm:$0xff] %vm5014, %v4944
      %5036 = vst.msk [vmem:[#allocation4 + $0xb8] sm:$0xff] %vm5014, %v4946
      %5037 = vst.msk [vmem:[#allocation4 + $0xc0] sm:$0xff] %vm5014, %v4948
      %5038 = vst.msk [vmem:[#allocation4 + $0xc8] sm:$0xff] %vm5014, %v4950
      %5039 = vst.msk [vmem:[#allocation4 + $0xd0] sm:$0xff] %vm5014, %v4952
      %5040 = vst.msk [vmem:[#allocation4 + $0xd8] sm:$0xff] %vm5014, %v4954
      %5041 = vst.msk [vmem:[#allocation4 + $0xe0] sm:$0xff] %vm5014, %v4956
      %5042 = vst.msk [vmem:[#allocation4 + $0xe8] sm:$0xff] %vm5014, %v4958
      %5043 = vst.msk [vmem:[#allocation4 + $0xf0] sm:$0xff] %vm5014, %v4960
      %5044 = vst.msk [vmem:[#allocation4 + $0xf8] sm:$0xff] %vm5014, %v4962
      %5045 = vst.msk [vmem:[#allocation4 + $0x100] sm:$0xff] %vm5014, %v4964
      %5046 = vst.msk [vmem:[#allocation4 + $0x108] sm:$0xff] %vm5014, %v4966
      %5047 = vst.msk [vmem:[#allocation4 + $0x110] sm:$0xff] %vm5014, %v4968
      %5048 = vst.msk [vmem:[#allocation4 + $0x118] sm:$0xff] %vm5014, %v4970
      %5049 = vst.msk [vmem:[#allocation4 + $0x120] sm:$0xff] %vm5014, %v4972
      %5050 = vst.msk [vmem:[#allocation4 + $0x128] sm:$0xff] %vm5014, %v4974
      %5051 = vst.msk [vmem:[#allocation4 + $0x130] sm:$0xff] %vm5014, %v4976
      %v5052 = vld [vmem:[%s1 + $0x4eb] sm:$0xff]
      %v5053 = vld [vmem:[%s1 + $0x4f3] sm:$0xff]
      %v5054 = vld [vmem:[%s1 + $0x4fb] sm:$0xff]
      %v5055 = vld [vmem:[%s1 + $0x503] sm:$0xff]
      %v5056 = vld [vmem:[%s1 + $0x50b] sm:$0xff]
      %v5057 = vld [vmem:[%s1 + $0x513] sm:$0xff]
      %v5058 = vld [vmem:[%s1 + $0x51b] sm:$0xff]
      %v5059 = vld [vmem:[%s1 + $0x523] sm:$0xff]
      %v5060 = vld [vmem:[%s1 + $0x52b] sm:$0xff]
      %v5061 = vld [vmem:[%s1 + $0x533] sm:$0xff]
      %v5062 = vld [vmem:[%s1 + $0x53b] sm:$0xff]
      %v5063 = vld [vmem:[%s1 + $0x543] sm:$0xff]
      %v5064 = vld [vmem:[%s1 + $0x54b] sm:$0xff]
      %v5065 = vld [vmem:[%s1 + $0x553] sm:$0xff]
      %v5066 = vld [vmem:[%s1 + $0x55b] sm:$0xff]
      %v5067 = vld [vmem:[%s1 + $0x563] sm:$0xff]
      %v5068 = vld [vmem:[%s1 + $0x56b] sm:$0xff]
      %v5069 = vld [vmem:[%s1 + $0x573] sm:$0xff]
      %v5070 = vld [vmem:[%s1 + $0x57b] sm:$0xff]
      %v5071 = vld [vmem:[%s1 + $0x583] sm:$0xff]
      %v5072 = vld [vmem:[%s1 + $0x58b] sm:$0xff]
      %v5073 = vld [vmem:[%s1 + $0x593] sm:$0xff]
      %v5074 = vld [vmem:[%s1 + $0x59b] sm:$0xff]
      %v5075 = vld [vmem:[%s1 + $0x5a3] sm:$0xff]
      %v5076 = vld [vmem:[%s1 + $0x5ab] sm:$0xff]
      %v5077 = vld [vmem:[%s1 + $0x5b3] sm:$0xff]
      %v5078 = vld [vmem:[%s1 + $0x5bb] sm:$0xff]
      %v5079 = vld [vmem:[%s1 + $0x5c3] sm:$0xff]
      %v5080 = vld [vmem:[%s1 + $0x5cb] sm:$0xff]
      %v5081 = vld [vmem:[%s1 + $0x5d3] sm:$0xff]
      %v5082 = vld [vmem:[%s1 + $0x5db] sm:$0xff]
      %v5083 = vld [vmem:[%s1 + $0x5e3] sm:$0xff]
      %v5084 = vld [vmem:[%s1 + $0x5eb] sm:$0xff]
      %v5085 = vld [vmem:[%s1 + $0x5f3] sm:$0xff]
      %v5086 = vld [vmem:[%s1 + $0x5fb] sm:$0xff]
      %v5087 = vld [vmem:[%s1 + $0x603] sm:$0xff]
      %v5088 = vld [vmem:[%s1 + $0x60b] sm:$0xff]
      %v5089 = vld [vmem:[#allocation3 + $0x13] sm:$0xff]
      %v5090 = vld [vmem:[#allocation3 + $0x1b] sm:$0xff]
      %v5091 = vld [vmem:[#allocation3 + $0x23] sm:$0xff]
      %v5092 = vld [vmem:[#allocation3 + $0x2b] sm:$0xff]
      %v5093 = vld [vmem:[#allocation3 + $0x33] sm:$0xff]
      %v5094 = vld [vmem:[#allocation3 + $0x3b] sm:$0xff]
      %v5095 = vld [vmem:[#allocation3 + $0x43] sm:$0xff]
      %v5096 = vld [vmem:[#allocation3 + $0x4b] sm:$0xff]
      %v5097 = vld [vmem:[#allocation3 + $0x53] sm:$0xff]
      %v5098 = vld [vmem:[#allocation3 + $0x5b] sm:$0xff]
      %v5099 = vld [vmem:[#allocation3 + $0x63] sm:$0xff]
      %v5100 = vld [vmem:[#allocation3 + $0x6b] sm:$0xff]
      %v5101 = vld [vmem:[#allocation3 + $0x73] sm:$0xff]
      %v5102 = vld [vmem:[#allocation3 + $0x7b] sm:$0xff]
      %v5103 = vld [vmem:[#allocation3 + $0x83] sm:$0xff]
      %v5104 = vld [vmem:[#allocation3 + $0x8b] sm:$0xff]
      %v5105 = vld [vmem:[#allocation3 + $0x93] sm:$0xff]
      %v5106 = vld [vmem:[#allocation3 + $0x9b] sm:$0xff]
      %v5107 = vld [vmem:[#allocation3 + $0xa3] sm:$0xff]
      %v5108 = vld [vmem:[#allocation3 + $0xab] sm:$0xff]
      %v5109 = vld [vmem:[#allocation3 + $0xb3] sm:$0xff]
      %v5110 = vld [vmem:[#allocation3 + $0xbb] sm:$0xff]
      %v5111 = vld [vmem:[#allocation3 + $0xc3] sm:$0xff]
      %v5112 = vld [vmem:[#allocation3 + $0xcb] sm:$0xff]
      %v5113 = vld [vmem:[#allocation3 + $0xd3] sm:$0xff]
      %v5114 = vld [vmem:[#allocation3 + $0xdb] sm:$0xff]
      %v5115 = vld [vmem:[#allocation3 + $0xe3] sm:$0xff]
      %v5116 = vld [vmem:[#allocation3 + $0xeb] sm:$0xff]
      %v5117 = vld [vmem:[#allocation3 + $0xf3] sm:$0xff]
      %v5118 = vld [vmem:[#allocation3 + $0xfb] sm:$0xff]
      %v5119 = vld [vmem:[#allocation3 + $0x103] sm:$0xff]
      %v5120 = vld [vmem:[#allocation3 + $0x10b] sm:$0xff]
      %v5121 = vld [vmem:[#allocation3 + $0x113] sm:$0xff]
      %v5122 = vld [vmem:[#allocation3 + $0x11b] sm:$0xff]
      %v5123 = vld [vmem:[#allocation3 + $0x123] sm:$0xff]
      %v5124 = vld [vmem:[#allocation3 + $0x12b] sm:$0xff]
      %v5125 = vld [vmem:[#allocation3 + $0x133] sm:$0xff]
      %vm5126 = vcmp.gt.f32.partialorder %v5052, 0.0
      %vm5127 = vcmp.gt.f32.partialorder %v5053, 0.0
      %vm5128 = vcmp.gt.f32.partialorder %v5054, 0.0
      %vm5129 = vcmp.gt.f32.partialorder %v5055, 0.0
      %vm5130 = vcmp.gt.f32.partialorder %v5056, 0.0
      %vm5131 = vcmp.gt.f32.partialorder %v5057, 0.0
      %vm5132 = vcmp.gt.f32.partialorder %v5058, 0.0
      %vm5133 = vcmp.gt.f32.partialorder %v5059, 0.0
      %vm5134 = vcmp.gt.f32.partialorder %v5060, 0.0
      %vm5135 = vcmp.gt.f32.partialorder %v5061, 0.0
      %vm5136 = vcmp.gt.f32.partialorder %v5062, 0.0
      %vm5137 = vcmp.gt.f32.partialorder %v5063, 0.0
      %vm5138 = vcmp.gt.f32.partialorder %v5064, 0.0
      %vm5139 = vcmp.gt.f32.partialorder %v5065, 0.0
      %vm5140 = vcmp.gt.f32.partialorder %v5066, 0.0
      %vm5141 = vcmp.gt.f32.partialorder %v5067, 0.0
      %vm5142 = vcmp.gt.f32.partialorder %v5068, 0.0
      %vm5143 = vcmp.gt.f32.partialorder %v5069, 0.0
      %vm5144 = vcmp.gt.f32.partialorder %v5070, 0.0
      %vm5145 = vcmp.gt.f32.partialorder %v5071, 0.0
      %vm5146 = vcmp.gt.f32.partialorder %v5072, 0.0
      %vm5147 = vcmp.gt.f32.partialorder %v5073, 0.0
      %vm5148 = vcmp.gt.f32.partialorder %v5074, 0.0
      %vm5149 = vcmp.gt.f32.partialorder %v5075, 0.0
      %vm5150 = vcmp.gt.f32.partialorder %v5076, 0.0
      %vm5151 = vcmp.gt.f32.partialorder %v5077, 0.0
      %vm5152 = vcmp.gt.f32.partialorder %v5078, 0.0
      %vm5153 = vcmp.gt.f32.partialorder %v5079, 0.0
      %vm5154 = vcmp.gt.f32.partialorder %v5080, 0.0
      %vm5155 = vcmp.gt.f32.partialorder %v5081, 0.0
      %vm5156 = vcmp.gt.f32.partialorder %v5082, 0.0
      %vm5157 = vcmp.gt.f32.partialorder %v5083, 0.0
      %vm5158 = vcmp.gt.f32.partialorder %v5084, 0.0
      %vm5159 = vcmp.gt.f32.partialorder %v5085, 0.0
      %vm5160 = vcmp.gt.f32.partialorder %v5086, 0.0
      %vm5161 = vcmp.gt.f32.partialorder %v5087, 0.0
      %vm5162 = vcmp.gt.f32.partialorder %v5088, 0.0
      %v5163 = vsel %vm5126, %v5089, 0.0
      %v5164 = vsel %vm5127, %v5090, 0.0
      %v5165 = vsel %vm5128, %v5091, 0.0
      %v5166 = vsel %vm5129, %v5092, 0.0
      %v5167 = vsel %vm5130, %v5093, 0.0
      %v5168 = vsel %vm5131, %v5094, 0.0
      %v5169 = vsel %vm5132, %v5095, 0.0
      %v5170 = vsel %vm5133, %v5096, 0.0
      %v5171 = vsel %vm5134, %v5097, 0.0
      %v5172 = vsel %vm5135, %v5098, 0.0
      %v5173 = vsel %vm5136, %v5099, 0.0
      %v5174 = vsel %vm5137, %v5100, 0.0
      %v5175 = vsel %vm5138, %v5101, 0.0
      %v5176 = vsel %vm5139, %v5102, 0.0
      %v5177 = vsel %vm5140, %v5103, 0.0
      %v5178 = vsel %vm5141, %v5104, 0.0
      %v5179 = vsel %vm5142, %v5105, 0.0
      %v5180 = vsel %vm5143, %v5106, 0.0
      %v5181 = vsel %vm5144, %v5107, 0.0
      %v5182 = vsel %vm5145, %v5108, 0.0
      %v5183 = vsel %vm5146, %v5109, 0.0
      %v5184 = vsel %vm5147, %v5110, 0.0
      %v5185 = vsel %vm5148, %v5111, 0.0
      %v5186 = vsel %vm5149, %v5112, 0.0
      %v5187 = vsel %vm5150, %v5113, 0.0
      %v5188 = vsel %vm5151, %v5114, 0.0
      %v5189 = vsel %vm5152, %v5115, 0.0
      %v5190 = vsel %vm5153, %v5116, 0.0
      %v5191 = vsel %vm5154, %v5117, 0.0
      %v5192 = vsel %vm5155, %v5118, 0.0
      %v5193 = vsel %vm5156, %v5119, 0.0
      %v5194 = vsel %vm5157, %v5120, 0.0
      %v5195 = vsel %vm5158, %v5121, 0.0
      %v5196 = vsel %vm5159, %v5122, 0.0
      %v5197 = vsel %vm5160, %v5123, 0.0
      %v5198 = vsel %vm5161, %v5124, 0.0
      %v5199 = vsel %vm5162, %v5125, 0.0
      %5237 = vrot.lane.b32.xlu0 %v5163, 48
      %v5238 = vpop.permute.xlu0 %5237
      %5239 = vrot.lane.b32.xlu0 %v5164, 48
      %v5240 = vpop.permute.xlu0 %5239
      %5241 = vrot.lane.b32.xlu0 %v5165, 48
      %v5242 = vpop.permute.xlu0 %5241
      %5243 = vrot.lane.b32.xlu0 %v5166, 48
      %v5244 = vpop.permute.xlu0 %5243
      %5245 = vrot.lane.b32.xlu0 %v5167, 48
      %v5246 = vpop.permute.xlu0 %5245
      %5247 = vrot.lane.b32.xlu0 %v5168, 48
      %v5248 = vpop.permute.xlu0 %5247
      %5249 = vrot.lane.b32.xlu0 %v5169, 48
      %v5250 = vpop.permute.xlu0 %5249
      %5251 = vrot.lane.b32.xlu0 %v5170, 48
      %v5252 = vpop.permute.xlu0 %5251
      %5253 = vrot.lane.b32.xlu0 %v5171, 48
      %v5254 = vpop.permute.xlu0 %5253
      %5255 = vrot.lane.b32.xlu0 %v5172, 48
      %v5256 = vpop.permute.xlu0 %5255
      %5257 = vrot.lane.b32.xlu0 %v5173, 48
      %v5258 = vpop.permute.xlu0 %5257
      %5259 = vrot.lane.b32.xlu0 %v5174, 48
      %v5260 = vpop.permute.xlu0 %5259
      %5261 = vrot.lane.b32.xlu0 %v5175, 48
      %v5262 = vpop.permute.xlu0 %5261
      %5263 = vrot.lane.b32.xlu0 %v5176, 48
      %v5264 = vpop.permute.xlu0 %5263
      %5265 = vrot.lane.b32.xlu0 %v5177, 48
      %v5266 = vpop.permute.xlu0 %5265
      %5267 = vrot.lane.b32.xlu0 %v5178, 48
      %v5268 = vpop.permute.xlu0 %5267
      %5269 = vrot.lane.b32.xlu0 %v5179, 48
      %v5270 = vpop.permute.xlu0 %5269
      %5271 = vrot.lane.b32.xlu0 %v5180, 48
      %v5272 = vpop.permute.xlu0 %5271
      %5273 = vrot.lane.b32.xlu0 %v5181, 48
      %v5274 = vpop.permute.xlu0 %5273
      %5275 = vrot.lane.b32.xlu0 %v5182, 48
      %v5276 = vpop.permute.xlu0 %5275
      %5277 = vrot.lane.b32.xlu0 %v5183, 48
      %v5278 = vpop.permute.xlu0 %5277
      %5279 = vrot.lane.b32.xlu0 %v5184, 48
      %v5280 = vpop.permute.xlu0 %5279
      %5281 = vrot.lane.b32.xlu0 %v5185, 48
      %v5282 = vpop.permute.xlu0 %5281
      %5283 = vrot.lane.b32.xlu0 %v5186, 48
      %v5284 = vpop.permute.xlu0 %5283
      %5285 = vrot.lane.b32.xlu0 %v5187, 48
      %v5286 = vpop.permute.xlu0 %5285
      %5287 = vrot.lane.b32.xlu0 %v5188, 48
      %v5288 = vpop.permute.xlu0 %5287
      %5289 = vrot.lane.b32.xlu0 %v5189, 48
      %v5290 = vpop.permute.xlu0 %5289
      %5291 = vrot.lane.b32.xlu0 %v5190, 48
      %v5292 = vpop.permute.xlu0 %5291
      %5293 = vrot.lane.b32.xlu0 %v5191, 48
      %v5294 = vpop.permute.xlu0 %5293
      %5295 = vrot.lane.b32.xlu0 %v5192, 48
      %v5296 = vpop.permute.xlu0 %5295
      %5297 = vrot.lane.b32.xlu0 %v5193, 48
      %v5298 = vpop.permute.xlu0 %5297
      %5299 = vrot.lane.b32.xlu0 %v5194, 48
      %v5300 = vpop.permute.xlu0 %5299
      %5301 = vrot.lane.b32.xlu0 %v5195, 48
      %v5302 = vpop.permute.xlu0 %5301
      %5303 = vrot.lane.b32.xlu0 %v5196, 48
      %v5304 = vpop.permute.xlu0 %5303
      %5305 = vrot.lane.b32.xlu0 %v5197, 48
      %v5306 = vpop.permute.xlu0 %5305
      %5307 = vrot.lane.b32.xlu0 %v5198, 48
      %v5308 = vpop.permute.xlu0 %5307
      %5309 = vrot.lane.b32.xlu0 %v5199, 48
      %v5310 = vpop.permute.xlu0 %5309
      %vm5348 = vcmask 523648
      %5349 = vst.msk [vmem:[#allocation4 + $0x10] sm:$0xff] %vm5348, %v5238
      %5350 = vst.msk [vmem:[#allocation4 + $0x18] sm:$0xff] %vm5348, %v5240
      %5351 = vst.msk [vmem:[#allocation4 + $0x20] sm:$0xff] %vm5348, %v5242
      %5352 = vst.msk [vmem:[#allocation4 + $0x28] sm:$0xff] %vm5348, %v5244
      %5353 = vst.msk [vmem:[#allocation4 + $0x30] sm:$0xff] %vm5348, %v5246
      %5354 = vst.msk [vmem:[#allocation4 + $0x38] sm:$0xff] %vm5348, %v5248
      %5355 = vst.msk [vmem:[#allocation4 + $0x40] sm:$0xff] %vm5348, %v5250
      %5356 = vst.msk [vmem:[#allocation4 + $0x48] sm:$0xff] %vm5348, %v5252
      %5357 = vst.msk [vmem:[#allocation4 + $0x50] sm:$0xff] %vm5348, %v5254
      %5358 = vst.msk [vmem:[#allocation4 + $0x58] sm:$0xff] %vm5348, %v5256
      %5359 = vst.msk [vmem:[#allocation4 + $0x60] sm:$0xff] %vm5348, %v5258
      %5360 = vst.msk [vmem:[#allocation4 + $0x68] sm:$0xff] %vm5348, %v5260
      %5361 = vst.msk [vmem:[#allocation4 + $0x70] sm:$0xff] %vm5348, %v5262
      %5362 = vst.msk [vmem:[#allocation4 + $0x78] sm:$0xff] %vm5348, %v5264
      %5363 = vst.msk [vmem:[#allocation4 + $0x80] sm:$0xff] %vm5348, %v5266
      %5364 = vst.msk [vmem:[#allocation4 + $0x88] sm:$0xff] %vm5348, %v5268
      %5365 = vst.msk [vmem:[#allocation4 + $0x90] sm:$0xff] %vm5348, %v5270
      %5366 = vst.msk [vmem:[#allocation4 + $0x98] sm:$0xff] %vm5348, %v5272
      %5367 = vst.msk [vmem:[#allocation4 + $0xa0] sm:$0xff] %vm5348, %v5274
      %5368 = vst.msk [vmem:[#allocation4 + $0xa8] sm:$0xff] %vm5348, %v5276
      %5369 = vst.msk [vmem:[#allocation4 + $0xb0] sm:$0xff] %vm5348, %v5278
      %5370 = vst.msk [vmem:[#allocation4 + $0xb8] sm:$0xff] %vm5348, %v5280
      %5371 = vst.msk [vmem:[#allocation4 + $0xc0] sm:$0xff] %vm5348, %v5282
      %5372 = vst.msk [vmem:[#allocation4 + $0xc8] sm:$0xff] %vm5348, %v5284
      %5373 = vst.msk [vmem:[#allocation4 + $0xd0] sm:$0xff] %vm5348, %v5286
      %5374 = vst.msk [vmem:[#allocation4 + $0xd8] sm:$0xff] %vm5348, %v5288
      %5375 = vst.msk [vmem:[#allocation4 + $0xe0] sm:$0xff] %vm5348, %v5290
      %5376 = vst.msk [vmem:[#allocation4 + $0xe8] sm:$0xff] %vm5348, %v5292
      %5377 = vst.msk [vmem:[#allocation4 + $0xf0] sm:$0xff] %vm5348, %v5294
      %5378 = vst.msk [vmem:[#allocation4 + $0xf8] sm:$0xff] %vm5348, %v5296
      %5379 = vst.msk [vmem:[#allocation4 + $0x100] sm:$0xff] %vm5348, %v5298
      %5380 = vst.msk [vmem:[#allocation4 + $0x108] sm:$0xff] %vm5348, %v5300
      %5381 = vst.msk [vmem:[#allocation4 + $0x110] sm:$0xff] %vm5348, %v5302
      %5382 = vst.msk [vmem:[#allocation4 + $0x118] sm:$0xff] %vm5348, %v5304
      %5383 = vst.msk [vmem:[#allocation4 + $0x120] sm:$0xff] %vm5348, %v5306
      %5384 = vst.msk [vmem:[#allocation4 + $0x128] sm:$0xff] %vm5348, %v5308
      %5385 = vst.msk [vmem:[#allocation4 + $0x130] sm:$0xff] %vm5348, %v5310
      %v5386 = vld [vmem:[%s1 + $0x620] sm:$0xff]
      %v5387 = vld [vmem:[%s1 + $0x628] sm:$0xff]
      %v5388 = vld [vmem:[%s1 + $0x630] sm:$0xff]
      %v5389 = vld [vmem:[%s1 + $0x638] sm:$0xff]
      %v5390 = vld [vmem:[%s1 + $0x640] sm:$0xff]
      %v5391 = vld [vmem:[%s1 + $0x648] sm:$0xff]
      %v5392 = vld [vmem:[%s1 + $0x650] sm:$0xff]
      %v5393 = vld [vmem:[%s1 + $0x658] sm:$0xff]
      %v5394 = vld [vmem:[%s1 + $0x660] sm:$0xff]
      %v5395 = vld [vmem:[%s1 + $0x668] sm:$0xff]
      %v5396 = vld [vmem:[%s1 + $0x670] sm:$0xff]
      %v5397 = vld [vmem:[%s1 + $0x678] sm:$0xff]
      %v5398 = vld [vmem:[%s1 + $0x680] sm:$0xff]
      %v5399 = vld [vmem:[%s1 + $0x688] sm:$0xff]
      %v5400 = vld [vmem:[%s1 + $0x690] sm:$0xff]
      %v5401 = vld [vmem:[#allocation4 + $0x10] sm:$0xff]
      %v5402 = vld [vmem:[#allocation4 + $0x18] sm:$0xff]
      %v5403 = vld [vmem:[#allocation4 + $0x20] sm:$0xff]
      %v5404 = vld [vmem:[#allocation4 + $0x28] sm:$0xff]
      %v5405 = vld [vmem:[#allocation4 + $0x30] sm:$0xff]
      %v5406 = vld [vmem:[#allocation4 + $0x38] sm:$0xff]
      %v5407 = vld [vmem:[#allocation4 + $0x40] sm:$0xff]
      %v5408 = vld [vmem:[#allocation4 + $0x48] sm:$0xff]
      %v5409 = vld [vmem:[#allocation4 + $0x50] sm:$0xff]
      %v5410 = vld [vmem:[#allocation4 + $0x58] sm:$0xff]
      %v5411 = vld [vmem:[#allocation4 + $0x60] sm:$0xff]
      %v5412 = vld [vmem:[#allocation4 + $0x68] sm:$0xff]
      %v5413 = vld [vmem:[#allocation4 + $0x70] sm:$0xff]
      %v5414 = vld [vmem:[#allocation4 + $0x78] sm:$0xff]
      %v5415 = vld [vmem:[#allocation4 + $0x80] sm:$0xff]
      %v5416 = vld [vmem:[#allocation4 + $0x88] sm:$0xff]
      %v5417 = vld [vmem:[#allocation4 + $0x90] sm:$0xff]
      %v5418 = vld [vmem:[#allocation4 + $0x98] sm:$0xff]
      %v5419 = vld [vmem:[#allocation4 + $0xa0] sm:$0xff]
      %v5420 = vld [vmem:[#allocation4 + $0xa8] sm:$0xff]
      %v5421 = vld [vmem:[#allocation4 + $0xb0] sm:$0xff]
      %v5422 = vld [vmem:[#allocation4 + $0xb8] sm:$0xff]
      %v5423 = vld [vmem:[#allocation4 + $0xc0] sm:$0xff]
      %v5424 = vld [vmem:[#allocation4 + $0xc8] sm:$0xff]
      %v5425 = vld [vmem:[#allocation4 + $0xd0] sm:$0xff]
      %v5426 = vld [vmem:[#allocation4 + $0xd8] sm:$0xff]
      %v5427 = vld [vmem:[#allocation4 + $0xe0] sm:$0xff]
      %v5428 = vld [vmem:[#allocation4 + $0xe8] sm:$0xff]
      %v5429 = vld [vmem:[#allocation4 + $0xf0] sm:$0xff]
      %v5430 = vld [vmem:[#allocation4 + $0xf8] sm:$0xff]
      %v5431 = vld [vmem:[#allocation4 + $0x100] sm:$0xff]
      %v5432 = vld [vmem:[#allocation4 + $0x108] sm:$0xff]
      %v5433 = vld [vmem:[%s1 + $0x48] sm:$0xff]
      %v5434 = vld [vmem:[%s1 + $0x50] sm:$0xff]
      %v5435 = vld [vmem:[%s1 + $0x58] sm:$0xff]
      %v5436 = vld [vmem:[%s1 + $0x60] sm:$0xff]
      %v5437 = vld [vmem:[%s1 + $0x68] sm:$0xff]
      %v5438 = vld [vmem:[%s1 + $0x70] sm:$0xff]
      %v5439 = vld [vmem:[%s1 + $0x78] sm:$0xff]
      %v5440 = vld [vmem:[%s1 + $0x80] sm:$0xff]
      %v5441 = vld [vmem:[#allocation4 + $0x1a] sm:$0xff]
      %v5442 = vld [vmem:[#allocation4 + $0x22] sm:$0xff]
      %v5443 = vld [vmem:[#allocation4 + $0x2a] sm:$0xff]
      %v5444 = vld [vmem:[#allocation4 + $0x32] sm:$0xff]
      %v5445 = vld [vmem:[#allocation4 + $0x3a] sm:$0xff]
      %v5446 = vld [vmem:[#allocation4 + $0x42] sm:$0xff]
      %v5447 = vld [vmem:[#allocation4 + $0x4a] sm:$0xff]
      %v5448 = vld [vmem:[#allocation4 + $0x52] sm:$0xff]
      %v5449 = vld [vmem:[#allocation4 + $0x5a] sm:$0xff]
      %v5450 = vld [vmem:[#allocation4 + $0x62] sm:$0xff]
      %v5451 = vld [vmem:[#allocation4 + $0x6a] sm:$0xff]
      %v5452 = vld [vmem:[#allocation4 + $0x72] sm:$0xff]
      %v5453 = vld [vmem:[#allocation4 + $0x7a] sm:$0xff]
      %v5454 = vld [vmem:[#allocation4 + $0x82] sm:$0xff]
      %v5455 = vld [vmem:[#allocation4 + $0x8a] sm:$0xff]
      %v5456 = vld [vmem:[#allocation4 + $0x92] sm:$0xff]
      %v5457 = vld [vmem:[#allocation4 + $0x9a] sm:$0xff]
      %v5458 = vld [vmem:[#allocation4 + $0xa2] sm:$0xff]
      %v5459 = vld [vmem:[#allocation4 + $0xaa] sm:$0xff]
      %v5460 = vld [vmem:[#allocation4 + $0xb2] sm:$0xff]
      %v5461 = vld [vmem:[#allocation4 + $0xba] sm:$0xff]
      %v5462 = vld [vmem:[#allocation4 + $0xc2] sm:$0xff]
      %v5463 = vld [vmem:[#allocation4 + $0xca] sm:$0xff]
      %v5464 = vld [vmem:[#allocation4 + $0xd2] sm:$0xff]
      %v5465 = vld [vmem:[#allocation4 + $0xda] sm:$0xff]
      %v5466 = vld [vmem:[#allocation4 + $0xe2] sm:$0xff]
      %v5467 = vld [vmem:[#allocation4 + $0xea] sm:$0xff]
      %v5468 = vld [vmem:[#allocation4 + $0xf2] sm:$0xff]
      %v5469 = vld [vmem:[#allocation4 + $0xfa] sm:$0xff]
      %v5470 = vld [vmem:[#allocation4 + $0x102] sm:$0xff]
      %v5471 = vld [vmem:[#allocation4 + $0x10a] sm:$0xff]
      %v5472 = vld [vmem:[#allocation4 + $0x112] sm:$0xff]
      %v5473 = vld [vmem:[%s1 + $0x88] sm:$0xff]
      %v5474 = vld [vmem:[%s1 + $0x90] sm:$0xff]
      %v5475 = vld [vmem:[%s1 + $0x98] sm:$0xff]
      %v5476 = vld [vmem:[%s1 + $0xa0] sm:$0xff]
      %v5477 = vld [vmem:[%s1 + $0xa8] sm:$0xff]
      %v5478 = vld [vmem:[%s1 + $0xb0] sm:$0xff]
      %v5479 = vld [vmem:[%s1 + $0xb8] sm:$0xff]
      %v5480 = vld [vmem:[%s1 + $0xc0] sm:$0xff]
      %vm5481 = vcmask 523264
      %v5483 = vsel %vm5481, %v5441, 0
      %v5486 = vsel %vm5481, %v5442, 0
      %v5489 = vsel %vm5481, %v5443, 0
      %v5492 = vsel %vm5481, %v5444, 0
      %v5495 = vsel %vm5481, %v5445, 0
      %v5498 = vsel %vm5481, %v5446, 0
      %v5501 = vsel %vm5481, %v5447, 0
      %v5504 = vsel %vm5481, %v5448, 0
      %v5507 = vsel %vm5481, %v5449, 0
      %v5510 = vsel %vm5481, %v5450, 0
      %v5513 = vsel %vm5481, %v5451, 0
      %v5516 = vsel %vm5481, %v5452, 0
      %v5519 = vsel %vm5481, %v5453, 0
      %v5522 = vsel %vm5481, %v5454, 0
      %v5525 = vsel %vm5481, %v5455, 0
      %v5528 = vsel %vm5481, %v5456, 0
      %v5531 = vsel %vm5481, %v5457, 0
      %v5534 = vsel %vm5481, %v5458, 0
      %v5537 = vsel %vm5481, %v5459, 0
      %v5540 = vsel %vm5481, %v5460, 0
      %v5543 = vsel %vm5481, %v5461, 0
      %v5546 = vsel %vm5481, %v5462, 0
      %v5549 = vsel %vm5481, %v5463, 0
      %v5552 = vsel %vm5481, %v5464, 0
      %v5555 = vsel %vm5481, %v5465, 0
      %v5558 = vsel %vm5481, %v5466, 0
      %v5561 = vsel %vm5481, %v5467, 0
      %v5564 = vsel %vm5481, %v5468, 0
      %v5567 = vsel %vm5481, %v5469, 0
      %v5570 = vsel %vm5481, %v5470, 0
      %v5573 = vsel %vm5481, %v5471, 0
      %v5576 = vsel %vm5481, %v5472, 0
      %5578 = vmatprep.subr.mxu0 0.0
      %5579 = vmatpush1.msra.mxu0 %v5473
      %5580 = vmatprep.subr.mxu0 0.0
      %5581 = vmatpush1.msra.mxu0 %v5474
      %5582 = vmatprep.subr.mxu0 0.0
      %5583 = vmatpush1.msra.mxu0 %v5475
      %5584 = vmatprep.subr.mxu0 0.0
      %5585 = vmatpush1.msra.mxu0 %v5476
      %5586 = vmatprep.subr.mxu0 0.0
      %5587 = vmatpush1.msra.mxu0 %v5477
      %5588 = vmatprep.subr.mxu0 0.0
      %5589 = vmatpush1.msra.mxu0 %v5478
      %5590 = vmatprep.subr.mxu0 0.0
      %5591 = vmatpush1.msra.mxu0 %v5479
      %5592 = vmatprep.subr.mxu0 0.0
      %5593 = vmatpush1.msra.mxu0 %v5480
      %5594 = vmatprep.subr.mxu0 0.0
      %5595 = vmatpush1.msra.mxu0 0.0
      %5596 = vmatprep.subr.mxu0 0.0
      %5597 = vmatpush1.msra.mxu0 0.0
      %5598 = vmatprep.subr.mxu0 0.0
      %5599 = vmatpush1.msra.mxu0 0.0
      %5600 = vmatprep.subr.mxu0 0.0
      %5601 = vmatpush1.msra.mxu0 0.0
      %5602 = vmatprep.subr.mxu0 0.0
      %5603 = vmatpush1.msra.mxu0 0.0
      %5604 = vmatprep.subr.mxu0 0.0
      %5605 = vmatpush1.msra.mxu0 0.0
      %5606 = vmatprep.subr.mxu0 0.0
      %5607 = vmatpush1.msra.mxu0 0.0
      %5608 = vmatprep.subr.mxu0 0.0
      %5609 = vmatpush1.msra.mxu0 0.0
      %5610 = vmatprep.subr.mxu0 0.0
      %5611 = vmatpush1.msra.mxu0 0.0
      %5612 = vmatprep.subr.mxu0 0.0
      %5613 = vmatpush1.msra.mxu0 0.0
      %5614 = vmatprep.subr.mxu0 0.0
      %5615 = vmatpush1.msra.mxu0 0.0
      %5616 = vmatprep.subr.mxu0 0.0
      %5617 = vmatpush1.msra.mxu0 0.0
      %5618 = vmatprep.subr.mxu0 0.0
      %5619 = vmatpush1.msra.mxu0 0.0
      %5620 = vmatprep.subr.mxu0 0.0
      %5621 = vmatpush1.msra.mxu0 0.0
      %5622 = vmatprep.subr.mxu0 0.0
      %5623 = vmatpush1.msra.mxu0 0.0
      %5624 = vmatprep.subr.mxu0 0.0
      %5625 = vmatpush1.msra.mxu0 0.0
      %5626 = vmatprep.subr.mxu0 0.0
      %5627 = vmatpush1.msra.mxu0 0.0
      %5628 = vmatprep.subr.mxu0 0.0
      %5629 = vmatpush1.msra.mxu0 0.0
      %5630 = vmatprep.subr.mxu0 0.0
      %5631 = vmatpush1.msra.mxu0 0.0
      %5632 = vmatprep.subr.mxu0 0.0
      %5633 = vmatpush1.msra.mxu0 0.0
      %5634 = vmatprep.subr.mxu0 0.0
      %5635 = vmatpush1.msra.mxu0 0.0
      %5636 = vmatprep.subr.mxu0 0.0
      %5637 = vmatpush1.msra.mxu0 0.0
      %5638 = vmatprep.subr.mxu0 0.0
      %5639 = vmatpush1.msra.mxu0 0.0
      %5640 = vmatprep.subr.mxu0 0.0
      %5641 = vmatpush1.msra.mxu0 0.0
      %5642 = vmatprep.mubr.f32.mxu0 0.0
      %5643 = vmatmul.mubr.f32.gmra.mrb[0].mxu0 %v5483
      %v5644 = vpop.f32.mrb[0].mxu0
      %v5645 = vadd.f32 0.0, %v5644
      %v5646 = vpop.f32.mrb[0].mxu0
      %5647 = vmatprep.mubr.f32.mxu0 0.0
      %5648 = vmatmul.mubr.f32.gmra.mrb[0].mxu0 %v5486
      %v5649 = vpop.f32.mrb[0].mxu0
      %v5650 = vadd.f32 0.0, %v5649
      %v5651 = vpop.f32.mrb[0].mxu0
      %5652 = vmatprep.mubr.f32.mxu0 0.0
      %5653 = vmatmul.mubr.f32.gmra.mrb[0].mxu0 %v5489
      %v5654 = vpop.f32.mrb[0].mxu0
      %v5655 = vadd.f32 0.0, %v5654
      %v5656 = vpop.f32.mrb[0].mxu0
      %5657 = vmatprep.mubr.f32.mxu0 0.0
      %5658 = vmatmul.mubr.f32.gmra.mrb[0].mxu0 %v5492
      %v5659 = vpop.f32.mrb[0].mxu0
      %v5660 = vadd.f32 0.0, %v5659
      %v5661 = vpop.f32.mrb[0].mxu0
      %5662 = vmatprep.mubr.f32.mxu0 0.0
      %5663 = vmatmul.mubr.f32.gmra.mrb[0].mxu0 %v5495
      %v5664 = vpop.f32.mrb[0].mxu0
      %v5665 = vadd.f32 0.0, %v5664
      %v5666 = vpop.f32.mrb[0].mxu0
      %5667 = vmatprep.mubr.f32.mxu0 0.0
      %5668 = vmatmul.mubr.f32.gmra.mrb[0].mxu0 %v5498
      %v5669 = vpop.f32.mrb[0].mxu0
      %v5670 = vadd.f32 0.0, %v5669
      %v5671 = vpop.f32.mrb[0].mxu0
      %5672 = vmatprep.mubr.f32.mxu0 0.0
      %5673 = vmatmul.mubr.f32.gmra.mrb[0].mxu0 %v5501
      %v5674 = vpop.f32.mrb[0].mxu0
      %v5675 = vadd.f32 0.0, %v5674
      %v5676 = vpop.f32.mrb[0].mxu0
      %5677 = vmatprep.mubr.f32.mxu0 0.0
      %5678 = vmatmul.mubr.f32.gmra.mrb[0].mxu0 %v5504
      %v5679 = vpop.f32.mrb[0].mxu0
      %v5680 = vadd.f32 0.0, %v5679
      %v5681 = vpop.f32.mrb[0].mxu0
      %5682 = vmatprep.mubr.f32.mxu0 0.0
      %5683 = vmatmul.mubr.f32.gmra.mrb[0].mxu0 %v5507
      %v5684 = vpop.f32.mrb[0].mxu0
      %v5685 = vadd.f32 0.0, %v5684
      %v5686 = vpop.f32.mrb[0].mxu0
      %5687 = vmatprep.mubr.f32.mxu0 0.0
      %5688 = vmatmul.mubr.f32.gmra.mrb[0].mxu0 %v5510
      %v5689 = vpop.f32.mrb[0].mxu0
      %v5690 = vadd.f32 0.0, %v5689
      %v5691 = vpop.f32.mrb[0].mxu0
      %5692 = vmatprep.mubr.f32.mxu0 0.0
      %5693 = vmatmul.mubr.f32.gmra.mrb[0].mxu0 %v5513
      %v5694 = vpop.f32.mrb[0].mxu0
      %v5695 = vadd.f32 0.0, %v5694
      %v5696 = vpop.f32.mrb[0].mxu0
      %5697 = vmatprep.mubr.f32.mxu0 0.0
      %5698 = vmatmul.mubr.f32.gmra.mrb[0].mxu0 %v5516
      %v5699 = vpop.f32.mrb[0].mxu0
      %v5700 = vadd.f32 0.0, %v5699
      %v5701 = vpop.f32.mrb[0].mxu0
      %5702 = vmatprep.mubr.f32.mxu0 0.0
      %5703 = vmatmul.mubr.f32.gmra.mrb[0].mxu0 %v5519
      %v5704 = vpop.f32.mrb[0].mxu0
      %v5705 = vadd.f32 0.0, %v5704
      %v5706 = vpop.f32.mrb[0].mxu0
      %5707 = vmatprep.mubr.f32.mxu0 0.0
      %5708 = vmatmul.mubr.f32.gmra.mrb[0].mxu0 %v5522
      %v5709 = vpop.f32.mrb[0].mxu0
      %v5710 = vadd.f32 0.0, %v5709
      %v5711 = vpop.f32.mrb[0].mxu0
      %5712 = vmatprep.mubr.f32.mxu0 0.0
      %5713 = vmatmul.mubr.f32.gmra.mrb[0].mxu0 %v5525
      %v5714 = vpop.f32.mrb[0].mxu0
      %v5715 = vadd.f32 0.0, %v5714
      %v5716 = vpop.f32.mrb[0].mxu0
      %5717 = vmatprep.mubr.f32.mxu0 0.0
      %5718 = vmatmul.mubr.f32.gmra.mrb[0].mxu0 %v5528
      %v5719 = vpop.f32.mrb[0].mxu0
      %v5720 = vadd.f32 0.0, %v5719
      %v5721 = vpop.f32.mrb[0].mxu0
      %5722 = vmatprep.mubr.f32.mxu0 0.0
      %5723 = vmatmul.mubr.f32.gmra.mrb[0].mxu0 %v5531
      %v5724 = vpop.f32.mrb[0].mxu0
      %v5725 = vadd.f32 0.0, %v5724
      %v5726 = vpop.f32.mrb[0].mxu0
      %5727 = vmatprep.mubr.f32.mxu0 0.0
      %5728 = vmatmul.mubr.f32.gmra.mrb[0].mxu0 %v5534
      %v5729 = vpop.f32.mrb[0].mxu0
      %v5730 = vadd.f32 0.0, %v5729
      %v5731 = vpop.f32.mrb[0].mxu0
      %5732 = vmatprep.mubr.f32.mxu0 0.0
      %5733 = vmatmul.mubr.f32.gmra.mrb[0].mxu0 %v5537
      %v5734 = vpop.f32.mrb[0].mxu0
      %v5735 = vadd.f32 0.0, %v5734
      %v5736 = vpop.f32.mrb[0].mxu0
      %5737 = vmatprep.mubr.f32.mxu0 0.0
      %5738 = vmatmul.mubr.f32.gmra.mrb[0].mxu0 %v5540
      %v5739 = vpop.f32.mrb[0].mxu0
      %v5740 = vadd.f32 0.0, %v5739
      %v5741 = vpop.f32.mrb[0].mxu0
      %5742 = vmatprep.mubr.f32.mxu0 0.0
      %5743 = vmatmul.mubr.f32.gmra.mrb[0].mxu0 %v5543
      %v5744 = vpop.f32.mrb[0].mxu0
      %v5745 = vadd.f32 0.0, %v5744
      %v5746 = vpop.f32.mrb[0].mxu0
      %5747 = vmatprep.mubr.f32.mxu0 0.0
      %5748 = vmatmul.mubr.f32.gmra.mrb[0].mxu0 %v5546
      %v5749 = vpop.f32.mrb[0].mxu0
      %v5750 = vadd.f32 0.0, %v5749
      %v5751 = vpop.f32.mrb[0].mxu0
      %5752 = vmatprep.mubr.f32.mxu0 0.0
      %5753 = vmatmul.mubr.f32.gmra.mrb[0].mxu0 %v5549
      %v5754 = vpop.f32.mrb[0].mxu0
      %v5755 = vadd.f32 0.0, %v5754
      %v5756 = vpop.f32.mrb[0].mxu0
      %5757 = vmatprep.mubr.f32.mxu0 0.0
      %5758 = vmatmul.mubr.f32.gmra.mrb[0].mxu0 %v5552
      %v5759 = vpop.f32.mrb[0].mxu0
      %v5760 = vadd.f32 0.0, %v5759
      %v5761 = vpop.f32.mrb[0].mxu0
      %5762 = vmatprep.mubr.f32.mxu0 0.0
      %5763 = vmatmul.mubr.f32.gmra.mrb[0].mxu0 %v5555
      %v5764 = vpop.f32.mrb[0].mxu0
      %v5765 = vadd.f32 0.0, %v5764
      %v5766 = vpop.f32.mrb[0].mxu0
      %5767 = vmatprep.mubr.f32.mxu0 0.0
      %5768 = vmatmul.mubr.f32.gmra.mrb[0].mxu0 %v5558
      %v5769 = vpop.f32.mrb[0].mxu0
      %v5770 = vadd.f32 0.0, %v5769
      %v5771 = vpop.f32.mrb[0].mxu0
      %5772 = vmatprep.mubr.f32.mxu0 0.0
      %5773 = vmatmul.mubr.f32.gmra.mrb[0].mxu0 %v5561
      %v5774 = vpop.f32.mrb[0].mxu0
      %v5775 = vadd.f32 0.0, %v5774
      %v5776 = vpop.f32.mrb[0].mxu0
      %5777 = vmatprep.mubr.f32.mxu0 0.0
      %5778 = vmatmul.mubr.f32.gmra.mrb[0].mxu0 %v5564
      %v5779 = vpop.f32.mrb[0].mxu0
      %v5780 = vadd.f32 0.0, %v5779
      %v5781 = vpop.f32.mrb[0].mxu0
      %5782 = vmatprep.mubr.f32.mxu0 0.0
      %5783 = vmatmul.mubr.f32.gmra.mrb[0].mxu0 %v5567
      %v5784 = vpop.f32.mrb[0].mxu0
      %v5785 = vadd.f32 0.0, %v5784
      %v5786 = vpop.f32.mrb[0].mxu0
      %5787 = vmatprep.mubr.f32.mxu0 0.0
      %5788 = vmatmul.mubr.f32.gmra.mrb[0].mxu0 %v5570
      %v5789 = vpop.f32.mrb[0].mxu0
      %v5790 = vadd.f32 0.0, %v5789
      %v5791 = vpop.f32.mrb[0].mxu0
      %5792 = vmatprep.mubr.f32.mxu0 0.0
      %5793 = vmatmul.mubr.f32.gmra.mrb[0].mxu0 %v5573
      %v5794 = vpop.f32.mrb[0].mxu0
      %v5795 = vadd.f32 0.0, %v5794
      %v5796 = vpop.f32.mrb[0].mxu0
      %5797 = vmatprep.mubr.f32.mxu0 0.0
      %5798 = vmatmul.mubr.f32.gmra.mrb[0].mxu0 %v5576
      %v5799 = vpop.f32.mrb[0].mxu0
      %v5800 = vadd.f32 0.0, %v5799
      %v5801 = vpop.f32.mrb[0].mxu0
      %5802 = vdwg.mxu0
      %v5804 = vsel %vm5481, %v5401, 0
      %v5807 = vsel %vm5481, %v5402, 0
      %v5810 = vsel %vm5481, %v5403, 0
      %v5813 = vsel %vm5481, %v5404, 0
      %v5816 = vsel %vm5481, %v5405, 0
      %v5819 = vsel %vm5481, %v5406, 0
      %v5822 = vsel %vm5481, %v5407, 0
      %v5825 = vsel %vm5481, %v5408, 0
      %v5828 = vsel %vm5481, %v5409, 0
      %v5831 = vsel %vm5481, %v5410, 0
      %v5834 = vsel %vm5481, %v5411, 0
      %v5837 = vsel %vm5481, %v5412, 0
      %v5840 = vsel %vm5481, %v5413, 0
      %v5843 = vsel %vm5481, %v5414, 0
      %v5846 = vsel %vm5481, %v5415, 0
      %v5849 = vsel %vm5481, %v5416, 0
      %v5852 = vsel %vm5481, %v5417, 0
      %v5855 = vsel %vm5481, %v5418, 0
      %v5858 = vsel %vm5481, %v5419, 0
      %v5861 = vsel %vm5481, %v5420, 0
      %v5864 = vsel %vm5481, %v5421, 0
      %v5867 = vsel %vm5481, %v5422, 0
      %v5870 = vsel %vm5481, %v5423, 0
      %v5873 = vsel %vm5481, %v5424, 0
      %v5876 = vsel %vm5481, %v5425, 0
      %v5879 = vsel %vm5481, %v5426, 0
      %v5882 = vsel %vm5481, %v5427, 0
      %v5885 = vsel %vm5481, %v5428, 0
      %v5888 = vsel %vm5481, %v5429, 0
      %v5891 = vsel %vm5481, %v5430, 0
      %v5894 = vsel %vm5481, %v5431, 0
      %v5897 = vsel %vm5481, %v5432, 0
      %5899 = vmatprep.subr.mxu0 0.0
      %5900 = vmatpush1.msra.mxu0 %v5433
      %5901 = vmatprep.subr.mxu0 0.0
      %5902 = vmatpush1.msra.mxu0 %v5434
      %5903 = vmatprep.subr.mxu0 0.0
      %5904 = vmatpush1.msra.mxu0 %v5435
      %5905 = vmatprep.subr.mxu0 0.0
      %5906 = vmatpush1.msra.mxu0 %v5436
      %5907 = vmatprep.subr.mxu0 0.0
      %5908 = vmatpush1.msra.mxu0 %v5437
      %5909 = vmatprep.subr.mxu0 0.0
      %5910 = vmatpush1.msra.mxu0 %v5438
      %5911 = vmatprep.subr.mxu0 0.0
      %5912 = vmatpush1.msra.mxu0 %v5439
      %5913 = vmatprep.subr.mxu0 0.0
      %5914 = vmatpush1.msra.mxu0 %v5440
      %5915 = vmatprep.subr.mxu0 0.0
      %5916 = vmatpush1.msra.mxu0 0.0
      %5917 = vmatprep.subr.mxu0 0.0
      %5918 = vmatpush1.msra.mxu0 0.0
      %5919 = vmatprep.subr.mxu0 0.0
      %5920 = vmatpush1.msra.mxu0 0.0
      %5921 = vmatprep.subr.mxu0 0.0
      %5922 = vmatpush1.msra.mxu0 0.0
      %5923 = vmatprep.subr.mxu0 0.0
      %5924 = vmatpush1.msra.mxu0 0.0
      %5925 = vmatprep.subr.mxu0 0.0
      %5926 = vmatpush1.msra.mxu0 0.0
      %5927 = vmatprep.subr.mxu0 0.0
      %5928 = vmatpush1.msra.mxu0 0.0
      %5929 = vmatprep.subr.mxu0 0.0
      %5930 = vmatpush1.msra.mxu0 0.0
      %5931 = vmatprep.subr.mxu0 0.0
      %5932 = vmatpush1.msra.mxu0 0.0
      %5933 = vmatprep.subr.mxu0 0.0
      %5934 = vmatpush1.msra.mxu0 0.0
      %5935 = vmatprep.subr.mxu0 0.0
      %5936 = vmatpush1.msra.mxu0 0.0
      %5937 = vmatprep.subr.mxu0 0.0
      %5938 = vmatpush1.msra.mxu0 0.0
      %5939 = vmatprep.subr.mxu0 0.0
      %5940 = vmatpush1.msra.mxu0 0.0
      %5941 = vmatprep.subr.mxu0 0.0
      %5942 = vmatpush1.msra.mxu0 0.0
      %5943 = vmatprep.subr.mxu0 0.0
      %5944 = vmatpush1.msra.mxu0 0.0
      %5945 = vmatprep.subr.mxu0 0.0
      %5946 = vmatpush1.msra.mxu0 0.0
      %5947 = vmatprep.subr.mxu0 0.0
      %5948 = vmatpush1.msra.mxu0 0.0
      %5949 = vmatprep.subr.mxu0 0.0
      %5950 = vmatpush1.msra.mxu0 0.0
      %5951 = vmatprep.subr.mxu0 0.0
      %5952 = vmatpush1.msra.mxu0 0.0
      %5953 = vmatprep.subr.mxu0 0.0
      %5954 = vmatpush1.msra.mxu0 0.0
      %5955 = vmatprep.subr.mxu0 0.0
      %5956 = vmatpush1.msra.mxu0 0.0
      %5957 = vmatprep.subr.mxu0 0.0
      %5958 = vmatpush1.msra.mxu0 0.0
      %5959 = vmatprep.subr.mxu0 0.0
      %5960 = vmatpush1.msra.mxu0 0.0
      %5961 = vmatprep.subr.mxu0 0.0
      %5962 = vmatpush1.msra.mxu0 0.0
      %5963 = vmatprep.mubr.f32.mxu0 0.0
      %5964 = vmatmul.mubr.f32.gmra.mrb[0].mxu0 %v5804
      %v5965 = vpop.f32.mrb[0].mxu0
      %v5966 = vadd.f32 %v5645, %v5965
      %v5967 = vpop.f32.mrb[0].mxu0
      %5968 = vmatprep.mubr.f32.mxu0 0.0
      %5969 = vmatmul.mubr.f32.gmra.mrb[0].mxu0 %v5807
      %v5970 = vpop.f32.mrb[0].mxu0
      %v5971 = vadd.f32 %v5650, %v5970
      %v5972 = vpop.f32.mrb[0].mxu0
      %5973 = vmatprep.mubr.f32.mxu0 0.0
      %5974 = vmatmul.mubr.f32.gmra.mrb[0].mxu0 %v5810
      %v5975 = vpop.f32.mrb[0].mxu0
      %v5976 = vadd.f32 %v5655, %v5975
      %v5977 = vpop.f32.mrb[0].mxu0
      %5978 = vmatprep.mubr.f32.mxu0 0.0
      %5979 = vmatmul.mubr.f32.gmra.mrb[0].mxu0 %v5813
      %v5980 = vpop.f32.mrb[0].mxu0
      %v5981 = vadd.f32 %v5660, %v5980
      %v5982 = vpop.f32.mrb[0].mxu0
      %5983 = vmatprep.mubr.f32.mxu0 0.0
      %5984 = vmatmul.mubr.f32.gmra.mrb[0].mxu0 %v5816
      %v5985 = vpop.f32.mrb[0].mxu0
      %v5986 = vadd.f32 %v5665, %v5985
      %v5987 = vpop.f32.mrb[0].mxu0
      %5988 = vmatprep.mubr.f32.mxu0 0.0
      %5989 = vmatmul.mubr.f32.gmra.mrb[0].mxu0 %v5819
      %v5990 = vpop.f32.mrb[0].mxu0
      %v5991 = vadd.f32 %v5670, %v5990
      %v5992 = vpop.f32.mrb[0].mxu0
      %5993 = vmatprep.mubr.f32.mxu0 0.0
      %5994 = vmatmul.mubr.f32.gmra.mrb[0].mxu0 %v5822
      %v5995 = vpop.f32.mrb[0].mxu0
      %v5996 = vadd.f32 %v5675, %v5995
      %v5997 = vpop.f32.mrb[0].mxu0
      %5998 = vmatprep.mubr.f32.mxu0 0.0
      %5999 = vmatmul.mubr.f32.gmra.mrb[0].mxu0 %v5825
      %v6000 = vpop.f32.mrb[0].mxu0
      %v6001 = vadd.f32 %v5680, %v6000
      %v6002 = vpop.f32.mrb[0].mxu0
      %6003 = vmatprep.mubr.f32.mxu0 0.0
      %6004 = vmatmul.mubr.f32.gmra.mrb[0].mxu0 %v5828
      %v6005 = vpop.f32.mrb[0].mxu0
      %v6006 = vadd.f32 %v5685, %v6005
      %v6007 = vpop.f32.mrb[0].mxu0
      %6008 = vmatprep.mubr.f32.mxu0 0.0
      %6009 = vmatmul.mubr.f32.gmra.mrb[0].mxu0 %v5831
      %v6010 = vpop.f32.mrb[0].mxu0
      %v6011 = vadd.f32 %v5690, %v6010
      %v6012 = vpop.f32.mrb[0].mxu0
      %6013 = vmatprep.mubr.f32.mxu0 0.0
      %6014 = vmatmul.mubr.f32.gmra.mrb[0].mxu0 %v5834
      %v6015 = vpop.f32.mrb[0].mxu0
      %v6016 = vadd.f32 %v5695, %v6015
      %v6017 = vpop.f32.mrb[0].mxu0
      %6018 = vmatprep.mubr.f32.mxu0 0.0
      %6019 = vmatmul.mubr.f32.gmra.mrb[0].mxu0 %v5837
      %v6020 = vpop.f32.mrb[0].mxu0
      %v6021 = vadd.f32 %v5700, %v6020
      %v6022 = vpop.f32.mrb[0].mxu0
      %6023 = vmatprep.mubr.f32.mxu0 0.0
      %6024 = vmatmul.mubr.f32.gmra.mrb[0].mxu0 %v5840
      %v6025 = vpop.f32.mrb[0].mxu0
      %v6026 = vadd.f32 %v5705, %v6025
      %v6027 = vpop.f32.mrb[0].mxu0
      %6028 = vmatprep.mubr.f32.mxu0 0.0
      %6029 = vmatmul.mubr.f32.gmra.mrb[0].mxu0 %v5843
      %v6030 = vpop.f32.mrb[0].mxu0
      %v6031 = vadd.f32 %v5710, %v6030
      %v6032 = vpop.f32.mrb[0].mxu0
      %6033 = vmatprep.mubr.f32.mxu0 0.0
      %6034 = vmatmul.mubr.f32.gmra.mrb[0].mxu0 %v5846
      %v6035 = vpop.f32.mrb[0].mxu0
      %v6036 = vadd.f32 %v5715, %v6035
      %v6037 = vpop.f32.mrb[0].mxu0
      %6038 = vmatprep.mubr.f32.mxu0 0.0
      %6039 = vmatmul.mubr.f32.gmra.mrb[0].mxu0 %v5849
      %v6040 = vpop.f32.mrb[0].mxu0
      %v6041 = vadd.f32 %v5720, %v6040
      %v6042 = vpop.f32.mrb[0].mxu0
      %6043 = vmatprep.mubr.f32.mxu0 0.0
      %6044 = vmatmul.mubr.f32.gmra.mrb[0].mxu0 %v5852
      %v6045 = vpop.f32.mrb[0].mxu0
      %v6046 = vadd.f32 %v5725, %v6045
      %v6047 = vpop.f32.mrb[0].mxu0
      %6048 = vmatprep.mubr.f32.mxu0 0.0
      %6049 = vmatmul.mubr.f32.gmra.mrb[0].mxu0 %v5855
      %v6050 = vpop.f32.mrb[0].mxu0
      %v6051 = vadd.f32 %v5730, %v6050
      %v6052 = vpop.f32.mrb[0].mxu0
      %6053 = vmatprep.mubr.f32.mxu0 0.0
      %6054 = vmatmul.mubr.f32.gmra.mrb[0].mxu0 %v5858
      %v6055 = vpop.f32.mrb[0].mxu0
      %v6056 = vadd.f32 %v5735, %v6055
      %v6057 = vpop.f32.mrb[0].mxu0
      %6058 = vmatprep.mubr.f32.mxu0 0.0
      %6059 = vmatmul.mubr.f32.gmra.mrb[0].mxu0 %v5861
      %v6060 = vpop.f32.mrb[0].mxu0
      %v6061 = vadd.f32 %v5740, %v6060
      %v6062 = vpop.f32.mrb[0].mxu0
      %6063 = vmatprep.mubr.f32.mxu0 0.0
      %6064 = vmatmul.mubr.f32.gmra.mrb[0].mxu0 %v5864
      %v6065 = vpop.f32.mrb[0].mxu0
      %v6066 = vadd.f32 %v5745, %v6065
      %v6067 = vpop.f32.mrb[0].mxu0
      %6068 = vmatprep.mubr.f32.mxu0 0.0
      %6069 = vmatmul.mubr.f32.gmra.mrb[0].mxu0 %v5867
      %v6070 = vpop.f32.mrb[0].mxu0
      %v6071 = vadd.f32 %v5750, %v6070
      %v6072 = vpop.f32.mrb[0].mxu0
      %6073 = vmatprep.mubr.f32.mxu0 0.0
      %6074 = vmatmul.mubr.f32.gmra.mrb[0].mxu0 %v5870
      %v6075 = vpop.f32.mrb[0].mxu0
      %v6076 = vadd.f32 %v5755, %v6075
      %v6077 = vpop.f32.mrb[0].mxu0
      %6078 = vmatprep.mubr.f32.mxu0 0.0
      %6079 = vmatmul.mubr.f32.gmra.mrb[0].mxu0 %v5873
      %v6080 = vpop.f32.mrb[0].mxu0
      %v6081 = vadd.f32 %v5760, %v6080
      %v6082 = vpop.f32.mrb[0].mxu0
      %6083 = vmatprep.mubr.f32.mxu0 0.0
      %6084 = vmatmul.mubr.f32.gmra.mrb[0].mxu0 %v5876
      %v6085 = vpop.f32.mrb[0].mxu0
      %v6086 = vadd.f32 %v5765, %v6085
      %v6087 = vpop.f32.mrb[0].mxu0
      %6088 = vmatprep.mubr.f32.mxu0 0.0
      %6089 = vmatmul.mubr.f32.gmra.mrb[0].mxu0 %v5879
      %v6090 = vpop.f32.mrb[0].mxu0
      %v6091 = vadd.f32 %v5770, %v6090
      %v6092 = vpop.f32.mrb[0].mxu0
      %6093 = vmatprep.mubr.f32.mxu0 0.0
      %6094 = vmatmul.mubr.f32.gmra.mrb[0].mxu0 %v5882
      %v6095 = vpop.f32.mrb[0].mxu0
      %v6096 = vadd.f32 %v5775, %v6095
      %v6097 = vpop.f32.mrb[0].mxu0
      %6098 = vmatprep.mubr.f32.mxu0 0.0
      %6099 = vmatmul.mubr.f32.gmra.mrb[0].mxu0 %v5885
      %v6100 = vpop.f32.mrb[0].mxu0
      %v6101 = vadd.f32 %v5780, %v6100
      %v6102 = vpop.f32.mrb[0].mxu0
      %6103 = vmatprep.mubr.f32.mxu0 0.0
      %6104 = vmatmul.mubr.f32.gmra.mrb[0].mxu0 %v5888
      %v6105 = vpop.f32.mrb[0].mxu0
      %v6106 = vadd.f32 %v5785, %v6105
      %v6107 = vpop.f32.mrb[0].mxu0
      %6108 = vmatprep.mubr.f32.mxu0 0.0
      %6109 = vmatmul.mubr.f32.gmra.mrb[0].mxu0 %v5891
      %v6110 = vpop.f32.mrb[0].mxu0
      %v6111 = vadd.f32 %v5790, %v6110
      %v6112 = vpop.f32.mrb[0].mxu0
      %6113 = vmatprep.mubr.f32.mxu0 0.0
      %6114 = vmatmul.mubr.f32.gmra.mrb[0].mxu0 %v5894
      %v6115 = vpop.f32.mrb[0].mxu0
      %v6116 = vadd.f32 %v5795, %v6115
      %v6117 = vpop.f32.mrb[0].mxu0
      %6118 = vmatprep.mubr.f32.mxu0 0.0
      %6119 = vmatmul.mubr.f32.gmra.mrb[0].mxu0 %v5897
      %v6120 = vpop.f32.mrb[0].mxu0
      %v6121 = vadd.f32 %v5800, %v6120
      %v6122 = vpop.f32.mrb[0].mxu0
      %6123 = vdwg.mxu0
      %v6124 = vld [vmem:[#allocation4 + $0x24] sm:$0xff]
      %v6125 = vld [vmem:[#allocation4 + $0x2c] sm:$0xff]
      %v6126 = vld [vmem:[#allocation4 + $0x34] sm:$0xff]
      %v6127 = vld [vmem:[#allocation4 + $0x3c] sm:$0xff]
      %v6128 = vld [vmem:[#allocation4 + $0x44] sm:$0xff]
      %v6129 = vld [vmem:[#allocation4 + $0x4c] sm:$0xff]
      %v6130 = vld [vmem:[#allocation4 + $0x54] sm:$0xff]
      %v6131 = vld [vmem:[#allocation4 + $0x5c] sm:$0xff]
      %v6132 = vld [vmem:[#allocation4 + $0x64] sm:$0xff]
      %v6133 = vld [vmem:[#allocation4 + $0x6c] sm:$0xff]
      %v6134 = vld [vmem:[#allocation4 + $0x74] sm:$0xff]
      %v6135 = vld [vmem:[#allocation4 + $0x7c] sm:$0xff]
      %v6136 = vld [vmem:[#allocation4 + $0x84] sm:$0xff]
      %v6137 = vld [vmem:[#allocation4 + $0x8c] sm:$0xff]
      %v6138 = vld [vmem:[#allocation4 + $0x94] sm:$0xff]
      %v6139 = vld [vmem:[#allocation4 + $0x9c] sm:$0xff]
      %v6140 = vld [vmem:[#allocation4 + $0xa4] sm:$0xff]
      %v6141 = vld [vmem:[#allocation4 + $0xac] sm:$0xff]
      %v6142 = vld [vmem:[#allocation4 + $0xb4] sm:$0xff]
      %v6143 = vld [vmem:[#allocation4 + $0xbc] sm:$0xff]
      %v6144 = vld [vmem:[#allocation4 + $0xc4] sm:$0xff]
      %v6145 = vld [vmem:[#allocation4 + $0xcc] sm:$0xff]
      %v6146 = vld [vmem:[#allocation4 + $0xd4] sm:$0xff]
      %v6147 = vld [vmem:[#allocation4 + $0xdc] sm:$0xff]
      %v6148 = vld [vmem:[#allocation4 + $0xe4] sm:$0xff]
      %v6149 = vld [vmem:[#allocation4 + $0xec] sm:$0xff]
      %v6150 = vld [vmem:[#allocation4 + $0xf4] sm:$0xff]
      %v6151 = vld [vmem:[#allocation4 + $0xfc] sm:$0xff]
      %v6152 = vld [vmem:[#allocation4 + $0x104] sm:$0xff]
      %v6153 = vld [vmem:[#allocation4 + $0x10c] sm:$0xff]
      %v6154 = vld [vmem:[#allocation4 + $0x114] sm:$0xff]
      %v6155 = vld [vmem:[#allocation4 + $0x11c] sm:$0xff]
      %v6156 = vld [vmem:[%s1 + $0xc8] sm:$0xff]
      %v6157 = vld [vmem:[%s1 + $0xd0] sm:$0xff]
      %v6158 = vld [vmem:[%s1 + $0xd8] sm:$0xff]
      %v6159 = vld [vmem:[%s1 + $0xe0] sm:$0xff]
      %v6160 = vld [vmem:[%s1 + $0xe8] sm:$0xff]
      %v6161 = vld [vmem:[%s1 + $0xf0] sm:$0xff]
      %v6162 = vld [vmem:[%s1 + $0xf8] sm:$0xff]
      %v6163 = vld [vmem:[%s1 + $0x100] sm:$0xff]
      %v6165 = vsel %vm5481, %v6124, 0
      %v6168 = vsel %vm5481, %v6125, 0
      %v6171 = vsel %vm5481, %v6126, 0
      %v6174 = vsel %vm5481, %v6127, 0
      %v6177 = vsel %vm5481, %v6128, 0
      %v6180 = vsel %vm5481, %v6129, 0
      %v6183 = vsel %vm5481, %v6130, 0
      %v6186 = vsel %vm5481, %v6131, 0
      %v6189 = vsel %vm5481, %v6132, 0
      %v6192 = vsel %vm5481, %v6133, 0
      %v6195 = vsel %vm5481, %v6134, 0
      %v6198 = vsel %vm5481, %v6135, 0
      %v6201 = vsel %vm5481, %v6136, 0
      %v6204 = vsel %vm5481, %v6137, 0
      %v6207 = vsel %vm5481, %v6138, 0
      %v6210 = vsel %vm5481, %v6139, 0
      %v6213 = vsel %vm5481, %v6140, 0
      %v6216 = vsel %vm5481, %v6141, 0
      %v6219 = vsel %vm5481, %v6142, 0
      %v6222 = vsel %vm5481, %v6143, 0
      %v6225 = vsel %vm5481, %v6144, 0
      %v6228 = vsel %vm5481, %v6145, 0
      %v6231 = vsel %vm5481, %v6146, 0
      %v6234 = vsel %vm5481, %v6147, 0
      %v6237 = vsel %vm5481, %v6148, 0
      %v6240 = vsel %vm5481, %v6149, 0
      %v6243 = vsel %vm5481, %v6150, 0
      %v6246 = vsel %vm5481, %v6151, 0
      %v6249 = vsel %vm5481, %v6152, 0
      %v6252 = vsel %vm5481, %v6153, 0
      %v6255 = vsel %vm5481, %v6154, 0
      %v6258 = vsel %vm5481, %v6155, 0
      %6260 = vmatprep.subr.mxu0 0.0
      %6261 = vmatpush1.msra.mxu0 %v6156
      %6262 = vmatprep.subr.mxu0 0.0
      %6263 = vmatpush1.msra.mxu0 %v6157
      %6264 = vmatprep.subr.mxu0 0.0
      %6265 = vmatpush1.msra.mxu0 %v6158
      %6266 = vmatprep.subr.mxu0 0.0
      %6267 = vmatpush1.msra.mxu0 %v6159
      %6268 = vmatprep.subr.mxu0 0.0
      %6269 = vmatpush1.msra.mxu0 %v6160
      %6270 = vmatprep.subr.mxu0 0.0
      %6271 = vmatpush1.msra.mxu0 %v6161
      %6272 = vmatprep.subr.mxu0 0.0
      %6273 = vmatpush1.msra.mxu0 %v6162
      %6274 = vmatprep.subr.mxu0 0.0
      %6275 = vmatpush1.msra.mxu0 %v6163
      %6276 = vmatprep.subr.mxu0 0.0
      %6277 = vmatpush1.msra.mxu0 0.0
      %6278 = vmatprep.subr.mxu0 0.0
      %6279 = vmatpush1.msra.mxu0 0.0
      %6280 = vmatprep.subr.mxu0 0.0
      %6281 = vmatpush1.msra.mxu0 0.0
      %6282 = vmatprep.subr.mxu0 0.0
      %6283 = vmatpush1.msra.mxu0 0.0
      %6284 = vmatprep.subr.mxu0 0.0
      %6285 = vmatpush1.msra.mxu0 0.0
      %6286 = vmatprep.subr.mxu0 0.0
      %6287 = vmatpush1.msra.mxu0 0.0
      %6288 = vmatprep.subr.mxu0 0.0
      %6289 = vmatpush1.msra.mxu0 0.0
      %6290 = vmatprep.subr.mxu0 0.0
      %6291 = vmatpush1.msra.mxu0 0.0
      %6292 = vmatprep.subr.mxu0 0.0
      %6293 = vmatpush1.msra.mxu0 0.0
      %6294 = vmatprep.subr.mxu0 0.0
      %6295 = vmatpush1.msra.mxu0 0.0
      %6296 = vmatprep.subr.mxu0 0.0
      %6297 = vmatpush1.msra.mxu0 0.0
      %6298 = vmatprep.subr.mxu0 0.0
      %6299 = vmatpush1.msra.mxu0 0.0
      %6300 = vmatprep.subr.mxu0 0.0
      %6301 = vmatpush1.msra.mxu0 0.0
      %6302 = vmatprep.subr.mxu0 0.0
      %6303 = vmatpush1.msra.mxu0 0.0
      %6304 = vmatprep.subr.mxu0 0.0
      %6305 = vmatpush1.msra.mxu0 0.0
      %6306 = vmatprep.subr.mxu0 0.0
      %6307 = vmatpush1.msra.mxu0 0.0
      %6308 = vmatprep.subr.mxu0 0.0
      %6309 = vmatpush1.msra.mxu0 0.0
      %6310 = vmatprep.subr.mxu0 0.0
      %6311 = vmatpush1.msra.mxu0 0.0
      %6312 = vmatprep.subr.mxu0 0.0
      %6313 = vmatpush1.msra.mxu0 0.0
      %6314 = vmatprep.subr.mxu0 0.0
      %6315 = vmatpush1.msra.mxu0 0.0
      %6316 = vmatprep.subr.mxu0 0.0
      %6317 = vmatpush1.msra.mxu0 0.0
      %6318 = vmatprep.subr.mxu0 0.0
      %6319 = vmatpush1.msra.mxu0 0.0
      %6320 = vmatprep.subr.mxu0 0.0
      %6321 = vmatpush1.msra.mxu0 0.0
      %6322 = vmatprep.subr.mxu0 0.0
      %6323 = vmatpush1.msra.mxu0 0.0
      %6324 = vmatprep.mubr.f32.mxu0 0.0
      %6325 = vmatmul.mubr.f32.gmra.mrb[0].mxu0 %v6165
      %v6326 = vpop.f32.mrb[0].mxu0
      %v6327 = vadd.f32 0.0, %v6326
      %v6328 = vpop.f32.mrb[0].mxu0
      %6329 = vmatprep.mubr.f32.mxu0 0.0
      %6330 = vmatmul.mubr.f32.gmra.mrb[0].mxu0 %v6168
      %v6331 = vpop.f32.mrb[0].mxu0
      %v6332 = vadd.f32 0.0, %v6331
      %v6333 = vpop.f32.mrb[0].mxu0
      %6334 = vmatprep.mubr.f32.mxu0 0.0
      %6335 = vmatmul.mubr.f32.gmra.mrb[0].mxu0 %v6171
      %v6336 = vpop.f32.mrb[0].mxu0
      %v6337 = vadd.f32 0.0, %v6336
      %v6338 = vpop.f32.mrb[0].mxu0
      %6339 = vmatprep.mubr.f32.mxu0 0.0
      %6340 = vmatmul.mubr.f32.gmra.mrb[0].mxu0 %v6174
      %v6341 = vpop.f32.mrb[0].mxu0
      %v6342 = vadd.f32 0.0, %v6341
      %v6343 = vpop.f32.mrb[0].mxu0
      %6344 = vmatprep.mubr.f32.mxu0 0.0
      %6345 = vmatmul.mubr.f32.gmra.mrb[0].mxu0 %v6177
      %v6346 = vpop.f32.mrb[0].mxu0
      %v6347 = vadd.f32 0.0, %v6346
      %v6348 = vpop.f32.mrb[0].mxu0
      %6349 = vmatprep.mubr.f32.mxu0 0.0
      %6350 = vmatmul.mubr.f32.gmra.mrb[0].mxu0 %v6180
      %v6351 = vpop.f32.mrb[0].mxu0
      %v6352 = vadd.f32 0.0, %v6351
      %v6353 = vpop.f32.mrb[0].mxu0
      %6354 = vmatprep.mubr.f32.mxu0 0.0
      %6355 = vmatmul.mubr.f32.gmra.mrb[0].mxu0 %v6183
      %v6356 = vpop.f32.mrb[0].mxu0
      %v6357 = vadd.f32 0.0, %v6356
      %v6358 = vpop.f32.mrb[0].mxu0
      %6359 = vmatprep.mubr.f32.mxu0 0.0
      %6360 = vmatmul.mubr.f32.gmra.mrb[0].mxu0 %v6186
      %v6361 = vpop.f32.mrb[0].mxu0
      %v6362 = vadd.f32 0.0, %v6361
      %v6363 = vpop.f32.mrb[0].mxu0
      %6364 = vmatprep.mubr.f32.mxu0 0.0
      %6365 = vmatmul.mubr.f32.gmra.mrb[0].mxu0 %v6189
      %v6366 = vpop.f32.mrb[0].mxu0
      %v6367 = vadd.f32 0.0, %v6366
      %v6368 = vpop.f32.mrb[0].mxu0
      %6369 = vmatprep.mubr.f32.mxu0 0.0
      %6370 = vmatmul.mubr.f32.gmra.mrb[0].mxu0 %v6192
      %v6371 = vpop.f32.mrb[0].mxu0
      %v6372 = vadd.f32 0.0, %v6371
      %v6373 = vpop.f32.mrb[0].mxu0
      %6374 = vmatprep.mubr.f32.mxu0 0.0
      %6375 = vmatmul.mubr.f32.gmra.mrb[0].mxu0 %v6195
      %v6376 = vpop.f32.mrb[0].mxu0
      %v6377 = vadd.f32 0.0, %v6376
      %v6378 = vpop.f32.mrb[0].mxu0
      %6379 = vmatprep.mubr.f32.mxu0 0.0
      %6380 = vmatmul.mubr.f32.gmra.mrb[0].mxu0 %v6198
      %v6381 = vpop.f32.mrb[0].mxu0
      %v6382 = vadd.f32 0.0, %v6381
      %v6383 = vpop.f32.mrb[0].mxu0
      %6384 = vmatprep.mubr.f32.mxu0 0.0
      %6385 = vmatmul.mubr.f32.gmra.mrb[0].mxu0 %v6201
      %v6386 = vpop.f32.mrb[0].mxu0
      %v6387 = vadd.f32 0.0, %v6386
      %v6388 = vpop.f32.mrb[0].mxu0
      %6389 = vmatprep.mubr.f32.mxu0 0.0
      %6390 = vmatmul.mubr.f32.gmra.mrb[0].mxu0 %v6204
      %v6391 = vpop.f32.mrb[0].mxu0
      %v6392 = vadd.f32 0.0, %v6391
      %v6393 = vpop.f32.mrb[0].mxu0
      %6394 = vmatprep.mubr.f32.mxu0 0.0
      %6395 = vmatmul.mubr.f32.gmra.mrb[0].mxu0 %v6207
      %v6396 = vpop.f32.mrb[0].mxu0
      %v6397 = vadd.f32 0.0, %v6396
      %v6398 = vpop.f32.mrb[0].mxu0
      %6399 = vmatprep.mubr.f32.mxu0 0.0
      %6400 = vmatmul.mubr.f32.gmra.mrb[0].mxu0 %v6210
      %v6401 = vpop.f32.mrb[0].mxu0
      %v6402 = vadd.f32 0.0, %v6401
      %v6403 = vpop.f32.mrb[0].mxu0
      %6404 = vmatprep.mubr.f32.mxu0 0.0
      %6405 = vmatmul.mubr.f32.gmra.mrb[0].mxu0 %v6213
      %v6406 = vpop.f32.mrb[0].mxu0
      %v6407 = vadd.f32 0.0, %v6406
      %v6408 = vpop.f32.mrb[0].mxu0
      %6409 = vmatprep.mubr.f32.mxu0 0.0
      %6410 = vmatmul.mubr.f32.gmra.mrb[0].mxu0 %v6216
      %v6411 = vpop.f32.mrb[0].mxu0
      %v6412 = vadd.f32 0.0, %v6411
      %v6413 = vpop.f32.mrb[0].mxu0
      %6414 = vmatprep.mubr.f32.mxu0 0.0
      %6415 = vmatmul.mubr.f32.gmra.mrb[0].mxu0 %v6219
      %v6416 = vpop.f32.mrb[0].mxu0
      %v6417 = vadd.f32 0.0, %v6416
      %v6418 = vpop.f32.mrb[0].mxu0
      %6419 = vmatprep.mubr.f32.mxu0 0.0
      %6420 = vmatmul.mubr.f32.gmra.mrb[0].mxu0 %v6222
      %v6421 = vpop.f32.mrb[0].mxu0
      %v6422 = vadd.f32 0.0, %v6421
      %v6423 = vpop.f32.mrb[0].mxu0
      %6424 = vmatprep.mubr.f32.mxu0 0.0
      %6425 = vmatmul.mubr.f32.gmra.mrb[0].mxu0 %v6225
      %v6426 = vpop.f32.mrb[0].mxu0
      %v6427 = vadd.f32 0.0, %v6426
      %v6428 = vpop.f32.mrb[0].mxu0
      %6429 = vmatprep.mubr.f32.mxu0 0.0
      %6430 = vmatmul.mubr.f32.gmra.mrb[0].mxu0 %v6228
      %v6431 = vpop.f32.mrb[0].mxu0
      %v6432 = vadd.f32 0.0, %v6431
      %v6433 = vpop.f32.mrb[0].mxu0
      %6434 = vmatprep.mubr.f32.mxu0 0.0
      %6435 = vmatmul.mubr.f32.gmra.mrb[0].mxu0 %v6231
      %v6436 = vpop.f32.mrb[0].mxu0
      %v6437 = vadd.f32 0.0, %v6436
      %v6438 = vpop.f32.mrb[0].mxu0
      %6439 = vmatprep.mubr.f32.mxu0 0.0
      %6440 = vmatmul.mubr.f32.gmra.mrb[0].mxu0 %v6234
      %v6441 = vpop.f32.mrb[0].mxu0
      %v6442 = vadd.f32 0.0, %v6441
      %v6443 = vpop.f32.mrb[0].mxu0
      %6444 = vmatprep.mubr.f32.mxu0 0.0
      %6445 = vmatmul.mubr.f32.gmra.mrb[0].mxu0 %v6237
      %v6446 = vpop.f32.mrb[0].mxu0
      %v6447 = vadd.f32 0.0, %v6446
      %v6448 = vpop.f32.mrb[0].mxu0
      %6449 = vmatprep.mubr.f32.mxu0 0.0
      %6450 = vmatmul.mubr.f32.gmra.mrb[0].mxu0 %v6240
      %v6451 = vpop.f32.mrb[0].mxu0
      %v6452 = vadd.f32 0.0, %v6451
      %v6453 = vpop.f32.mrb[0].mxu0
      %6454 = vmatprep.mubr.f32.mxu0 0.0
      %6455 = vmatmul.mubr.f32.gmra.mrb[0].mxu0 %v6243
      %v6456 = vpop.f32.mrb[0].mxu0
      %v6457 = vadd.f32 0.0, %v6456
      %v6458 = vpop.f32.mrb[0].mxu0
      %6459 = vmatprep.mubr.f32.mxu0 0.0
      %6460 = vmatmul.mubr.f32.gmra.mrb[0].mxu0 %v6246
      %v6461 = vpop.f32.mrb[0].mxu0
      %v6462 = vadd.f32 0.0, %v6461
      %v6463 = vpop.f32.mrb[0].mxu0
      %6464 = vmatprep.mubr.f32.mxu0 0.0
      %6465 = vmatmul.mubr.f32.gmra.mrb[0].mxu0 %v6249
      %v6466 = vpop.f32.mrb[0].mxu0
      %v6467 = vadd.f32 0.0, %v6466
      %v6468 = vpop.f32.mrb[0].mxu0
      %6469 = vmatprep.mubr.f32.mxu0 0.0
      %6470 = vmatmul.mubr.f32.gmra.mrb[0].mxu0 %v6252
      %v6471 = vpop.f32.mrb[0].mxu0
      %v6472 = vadd.f32 0.0, %v6471
      %v6473 = vpop.f32.mrb[0].mxu0
      %6474 = vmatprep.mubr.f32.mxu0 0.0
      %6475 = vmatmul.mubr.f32.gmra.mrb[0].mxu0 %v6255
      %v6476 = vpop.f32.mrb[0].mxu0
      %v6477 = vadd.f32 0.0, %v6476
      %v6478 = vpop.f32.mrb[0].mxu0
      %6479 = vmatprep.mubr.f32.mxu0 0.0
      %6480 = vmatmul.mubr.f32.gmra.mrb[0].mxu0 %v6258
      %v6481 = vpop.f32.mrb[0].mxu0
      %v6482 = vadd.f32 0.0, %v6481
      %v6483 = vpop.f32.mrb[0].mxu0
      %6484 = vdwg.mxu0
      %v6485 = vadd.f32 %v5966, %v6327
      %v6486 = vadd.f32 %v5971, %v6332
      %v6487 = vadd.f32 %v5976, %v6337
      %v6488 = vadd.f32 %v5981, %v6342
      %v6489 = vadd.f32 %v5986, %v6347
      %v6490 = vadd.f32 %v5991, %v6352
      %v6491 = vadd.f32 %v5996, %v6357
      %v6492 = vadd.f32 %v6001, %v6362
      %v6493 = vadd.f32 %v6006, %v6367
      %v6494 = vadd.f32 %v6011, %v6372
      %v6495 = vadd.f32 %v6016, %v6377
      %v6496 = vadd.f32 %v6021, %v6382
      %v6497 = vadd.f32 %v6026, %v6387
      %v6498 = vadd.f32 %v6031, %v6392
      %v6499 = vadd.f32 %v6036, %v6397
      %v6500 = vadd.f32 %v6041, %v6402
      %v6501 = vadd.f32 %v6046, %v6407
      %v6502 = vadd.f32 %v6051, %v6412
      %v6503 = vadd.f32 %v6056, %v6417
      %v6504 = vadd.f32 %v6061, %v6422
      %v6505 = vadd.f32 %v6066, %v6427
      %v6506 = vadd.f32 %v6071, %v6432
      %v6507 = vadd.f32 %v6076, %v6437
      %v6508 = vadd.f32 %v6081, %v6442
      %v6509 = vadd.f32 %v6086, %v6447
      %v6510 = vadd.f32 %v6091, %v6452
      %v6511 = vadd.f32 %v6096, %v6457
      %v6512 = vadd.f32 %v6101, %v6462
      %v6513 = vadd.f32 %v6106, %v6467
      %v6514 = vadd.f32 %v6111, %v6472
      %v6515 = vadd.f32 %v6116, %v6477
      %v6516 = vadd.f32 %v6121, %v6482
      %v6517 = vld [vmem:[#allocation4 + $0x2e] sm:$0xff]
      %v6518 = vld [vmem:[#allocation4 + $0x36] sm:$0xff]
      %v6519 = vld [vmem:[#allocation4 + $0x3e] sm:$0xff]
      %v6520 = vld [vmem:[#allocation4 + $0x46] sm:$0xff]
      %v6521 = vld [vmem:[#allocation4 + $0x4e] sm:$0xff]
      %v6522 = vld [vmem:[#allocation4 + $0x56] sm:$0xff]
      %v6523 = vld [vmem:[#allocation4 + $0x5e] sm:$0xff]
      %v6524 = vld [vmem:[#allocation4 + $0x66] sm:$0xff]
      %v6525 = vld [vmem:[#allocation4 + $0x6e] sm:$0xff]
      %v6526 = vld [vmem:[#allocation4 + $0x76] sm:$0xff]
      %v6527 = vld [vmem:[#allocation4 + $0x7e] sm:$0xff]
      %v6528 = vld [vmem:[#allocation4 + $0x86] sm:$0xff]
      %v6529 = vld [vmem:[#allocation4 + $0x8e] sm:$0xff]
      %v6530 = vld [vmem:[#allocation4 + $0x96] sm:$0xff]
      %v6531 = vld [vmem:[#allocation4 + $0x9e] sm:$0xff]
      %v6532 = vld [vmem:[#allocation4 + $0xa6] sm:$0xff]
      %v6533 = vld [vmem:[#allocation4 + $0xae] sm:$0xff]
      %v6534 = vld [vmem:[#allocation4 + $0xb6] sm:$0xff]
      %v6535 = vld [vmem:[#allocation4 + $0xbe] sm:$0xff]
      %v6536 = vld [vmem:[#allocation4 + $0xc6] sm:$0xff]
      %v6537 = vld [vmem:[#allocation4 + $0xce] sm:$0xff]
      %v6538 = vld [vmem:[#allocation4 + $0xd6] sm:$0xff]
      %v6539 = vld [vmem:[#allocation4 + $0xde] sm:$0xff]
      %v6540 = vld [vmem:[#allocation4 + $0xe6] sm:$0xff]
      %v6541 = vld [vmem:[#allocation4 + $0xee] sm:$0xff]
      %v6542 = vld [vmem:[#allocation4 + $0xf6] sm:$0xff]
      %v6543 = vld [vmem:[#allocation4 + $0xfe] sm:$0xff]
      %v6544 = vld [vmem:[#allocation4 + $0x106] sm:$0xff]
      %v6545 = vld [vmem:[#allocation4 + $0x10e] sm:$0xff]
      %v6546 = vld [vmem:[#allocation4 + $0x116] sm:$0xff]
      %v6547 = vld [vmem:[#allocation4 + $0x11e] sm:$0xff]
      %v6548 = vld [vmem:[#allocation4 + $0x126] sm:$0xff]
      %v6549 = vld [vmem:[%s1 + $0x108] sm:$0xff]
      %v6550 = vld [vmem:[%s1 + $0x110] sm:$0xff]
      %v6551 = vld [vmem:[%s1 + $0x118] sm:$0xff]
      %v6552 = vld [vmem:[%s1 + $0x120] sm:$0xff]
      %v6553 = vld [vmem:[%s1 + $0x128] sm:$0xff]
      %v6554 = vld [vmem:[%s1 + $0x130] sm:$0xff]
      %v6555 = vld [vmem:[%s1 + $0x138] sm:$0xff]
      %v6556 = vld [vmem:[%s1 + $0x140] sm:$0xff]
      %v6558 = vsel %vm5481, %v6517, 0
      %v6561 = vsel %vm5481, %v6518, 0
      %v6564 = vsel %vm5481, %v6519, 0
      %v6567 = vsel %vm5481, %v6520, 0
      %v6570 = vsel %vm5481, %v6521, 0
      %v6573 = vsel %vm5481, %v6522, 0
      %v6576 = vsel %vm5481, %v6523, 0
      %v6579 = vsel %vm5481, %v6524, 0
      %v6582 = vsel %vm5481, %v6525, 0
      %v6585 = vsel %vm5481, %v6526, 0
      %v6588 = vsel %vm5481, %v6527, 0
      %v6591 = vsel %vm5481, %v6528, 0
      %v6594 = vsel %vm5481, %v6529, 0
      %v6597 = vsel %vm5481, %v6530, 0
      %v6600 = vsel %vm5481, %v6531, 0
      %v6603 = vsel %vm5481, %v6532, 0
      %v6606 = vsel %vm5481, %v6533, 0
      %v6609 = vsel %vm5481, %v6534, 0
      %v6612 = vsel %vm5481, %v6535, 0
      %v6615 = vsel %vm5481, %v6536, 0
      %v6618 = vsel %vm5481, %v6537, 0
      %v6621 = vsel %vm5481, %v6538, 0
      %v6624 = vsel %vm5481, %v6539, 0
      %v6627 = vsel %vm5481, %v6540, 0
      %v6630 = vsel %vm5481, %v6541, 0
      %v6633 = vsel %vm5481, %v6542, 0
      %v6636 = vsel %vm5481, %v6543, 0
      %v6639 = vsel %vm5481, %v6544, 0
      %v6642 = vsel %vm5481, %v6545, 0
      %v6645 = vsel %vm5481, %v6546, 0
      %v6648 = vsel %vm5481, %v6547, 0
      %v6651 = vsel %vm5481, %v6548, 0
      %6653 = vmatprep.subr.mxu0 0.0
      %6654 = vmatpush1.msra.mxu0 %v6549
      %6655 = vmatprep.subr.mxu0 0.0
      %6656 = vmatpush1.msra.mxu0 %v6550
      %6657 = vmatprep.subr.mxu0 0.0
      %6658 = vmatpush1.msra.mxu0 %v6551
      %6659 = vmatprep.subr.mxu0 0.0
      %6660 = vmatpush1.msra.mxu0 %v6552
      %6661 = vmatprep.subr.mxu0 0.0
      %6662 = vmatpush1.msra.mxu0 %v6553
      %6663 = vmatprep.subr.mxu0 0.0
      %6664 = vmatpush1.msra.mxu0 %v6554
      %6665 = vmatprep.subr.mxu0 0.0
      %6666 = vmatpush1.msra.mxu0 %v6555
      %6667 = vmatprep.subr.mxu0 0.0
      %6668 = vmatpush1.msra.mxu0 %v6556
      %6669 = vmatprep.subr.mxu0 0.0
      %6670 = vmatpush1.msra.mxu0 0.0
      %6671 = vmatprep.subr.mxu0 0.0
      %6672 = vmatpush1.msra.mxu0 0.0
      %6673 = vmatprep.subr.mxu0 0.0
      %6674 = vmatpush1.msra.mxu0 0.0
      %6675 = vmatprep.subr.mxu0 0.0
      %6676 = vmatpush1.msra.mxu0 0.0
      %6677 = vmatprep.subr.mxu0 0.0
      %6678 = vmatpush1.msra.mxu0 0.0
      %6679 = vmatprep.subr.mxu0 0.0
      %6680 = vmatpush1.msra.mxu0 0.0
      %6681 = vmatprep.subr.mxu0 0.0
      %6682 = vmatpush1.msra.mxu0 0.0
      %6683 = vmatprep.subr.mxu0 0.0
      %6684 = vmatpush1.msra.mxu0 0.0
      %6685 = vmatprep.subr.mxu0 0.0
      %6686 = vmatpush1.msra.mxu0 0.0
      %6687 = vmatprep.subr.mxu0 0.0
      %6688 = vmatpush1.msra.mxu0 0.0
      %6689 = vmatprep.subr.mxu0 0.0
      %6690 = vmatpush1.msra.mxu0 0.0
      %6691 = vmatprep.subr.mxu0 0.0
      %6692 = vmatpush1.msra.mxu0 0.0
      %6693 = vmatprep.subr.mxu0 0.0
      %6694 = vmatpush1.msra.mxu0 0.0
      %6695 = vmatprep.subr.mxu0 0.0
      %6696 = vmatpush1.msra.mxu0 0.0
      %6697 = vmatprep.subr.mxu0 0.0
      %6698 = vmatpush1.msra.mxu0 0.0
      %6699 = vmatprep.subr.mxu0 0.0
      %6700 = vmatpush1.msra.mxu0 0.0
      %6701 = vmatprep.subr.mxu0 0.0
      %6702 = vmatpush1.msra.mxu0 0.0
      %6703 = vmatprep.subr.mxu0 0.0
      %6704 = vmatpush1.msra.mxu0 0.0
      %6705 = vmatprep.subr.mxu0 0.0
      %6706 = vmatpush1.msra.mxu0 0.0
      %6707 = vmatprep.subr.mxu0 0.0
      %6708 = vmatpush1.msra.mxu0 0.0
      %6709 = vmatprep.subr.mxu0 0.0
      %6710 = vmatpush1.msra.mxu0 0.0
      %6711 = vmatprep.subr.mxu0 0.0
      %6712 = vmatpush1.msra.mxu0 0.0
      %6713 = vmatprep.subr.mxu0 0.0
      %6714 = vmatpush1.msra.mxu0 0.0
      %6715 = vmatprep.subr.mxu0 0.0
      %6716 = vmatpush1.msra.mxu0 0.0
      %6717 = vmatprep.mubr.f32.mxu0 0.0
      %6718 = vmatmul.mubr.f32.gmra.mrb[0].mxu0 %v6558
      %v6719 = vpop.f32.mrb[0].mxu0
      %v6720 = vadd.f32 0.0, %v6719
      %v6721 = vpop.f32.mrb[0].mxu0
      %6722 = vmatprep.mubr.f32.mxu0 0.0
      %6723 = vmatmul.mubr.f32.gmra.mrb[0].mxu0 %v6561
      %v6724 = vpop.f32.mrb[0].mxu0
      %v6725 = vadd.f32 0.0, %v6724
      %v6726 = vpop.f32.mrb[0].mxu0
      %6727 = vmatprep.mubr.f32.mxu0 0.0
      %6728 = vmatmul.mubr.f32.gmra.mrb[0].mxu0 %v6564
      %v6729 = vpop.f32.mrb[0].mxu0
      %v6730 = vadd.f32 0.0, %v6729
      %v6731 = vpop.f32.mrb[0].mxu0
      %6732 = vmatprep.mubr.f32.mxu0 0.0
      %6733 = vmatmul.mubr.f32.gmra.mrb[0].mxu0 %v6567
      %v6734 = vpop.f32.mrb[0].mxu0
      %v6735 = vadd.f32 0.0, %v6734
      %v6736 = vpop.f32.mrb[0].mxu0
      %6737 = vmatprep.mubr.f32.mxu0 0.0
      %6738 = vmatmul.mubr.f32.gmra.mrb[0].mxu0 %v6570
      %v6739 = vpop.f32.mrb[0].mxu0
      %v6740 = vadd.f32 0.0, %v6739
      %v6741 = vpop.f32.mrb[0].mxu0
      %6742 = vmatprep.mubr.f32.mxu0 0.0
      %6743 = vmatmul.mubr.f32.gmra.mrb[0].mxu0 %v6573
      %v6744 = vpop.f32.mrb[0].mxu0
      %v6745 = vadd.f32 0.0, %v6744
      %v6746 = vpop.f32.mrb[0].mxu0
      %6747 = vmatprep.mubr.f32.mxu0 0.0
      %6748 = vmatmul.mubr.f32.gmra.mrb[0].mxu0 %v6576
      %v6749 = vpop.f32.mrb[0].mxu0
      %v6750 = vadd.f32 0.0, %v6749
      %v6751 = vpop.f32.mrb[0].mxu0
      %6752 = vmatprep.mubr.f32.mxu0 0.0
      %6753 = vmatmul.mubr.f32.gmra.mrb[0].mxu0 %v6579
      %v6754 = vpop.f32.mrb[0].mxu0
      %v6755 = vadd.f32 0.0, %v6754
      %v6756 = vpop.f32.mrb[0].mxu0
      %6757 = vmatprep.mubr.f32.mxu0 0.0
      %6758 = vmatmul.mubr.f32.gmra.mrb[0].mxu0 %v6582
      %v6759 = vpop.f32.mrb[0].mxu0
      %v6760 = vadd.f32 0.0, %v6759
      %v6761 = vpop.f32.mrb[0].mxu0
      %6762 = vmatprep.mubr.f32.mxu0 0.0
      %6763 = vmatmul.mubr.f32.gmra.mrb[0].mxu0 %v6585
      %v6764 = vpop.f32.mrb[0].mxu0
      %v6765 = vadd.f32 0.0, %v6764
      %v6766 = vpop.f32.mrb[0].mxu0
      %6767 = vmatprep.mubr.f32.mxu0 0.0
      %6768 = vmatmul.mubr.f32.gmra.mrb[0].mxu0 %v6588
      %v6769 = vpop.f32.mrb[0].mxu0
      %v6770 = vadd.f32 0.0, %v6769
      %v6771 = vpop.f32.mrb[0].mxu0
      %6772 = vmatprep.mubr.f32.mxu0 0.0
      %6773 = vmatmul.mubr.f32.gmra.mrb[0].mxu0 %v6591
      %v6774 = vpop.f32.mrb[0].mxu0
      %v6775 = vadd.f32 0.0, %v6774
      %v6776 = vpop.f32.mrb[0].mxu0
      %6777 = vmatprep.mubr.f32.mxu0 0.0
      %6778 = vmatmul.mubr.f32.gmra.mrb[0].mxu0 %v6594
      %v6779 = vpop.f32.mrb[0].mxu0
      %v6780 = vadd.f32 0.0, %v6779
      %v6781 = vpop.f32.mrb[0].mxu0
      %6782 = vmatprep.mubr.f32.mxu0 0.0
      %6783 = vmatmul.mubr.f32.gmra.mrb[0].mxu0 %v6597
      %v6784 = vpop.f32.mrb[0].mxu0
      %v6785 = vadd.f32 0.0, %v6784
      %v6786 = vpop.f32.mrb[0].mxu0
      %6787 = vmatprep.mubr.f32.mxu0 0.0
      %6788 = vmatmul.mubr.f32.gmra.mrb[0].mxu0 %v6600
      %v6789 = vpop.f32.mrb[0].mxu0
      %v6790 = vadd.f32 0.0, %v6789
      %v6791 = vpop.f32.mrb[0].mxu0
      %6792 = vmatprep.mubr.f32.mxu0 0.0
      %6793 = vmatmul.mubr.f32.gmra.mrb[0].mxu0 %v6603
      %v6794 = vpop.f32.mrb[0].mxu0
      %v6795 = vadd.f32 0.0, %v6794
      %v6796 = vpop.f32.mrb[0].mxu0
      %6797 = vmatprep.mubr.f32.mxu0 0.0
      %6798 = vmatmul.mubr.f32.gmra.mrb[0].mxu0 %v6606
      %v6799 = vpop.f32.mrb[0].mxu0
      %v6800 = vadd.f32 0.0, %v6799
      %v6801 = vpop.f32.mrb[0].mxu0
      %6802 = vmatprep.mubr.f32.mxu0 0.0
      %6803 = vmatmul.mubr.f32.gmra.mrb[0].mxu0 %v6609
      %v6804 = vpop.f32.mrb[0].mxu0
      %v6805 = vadd.f32 0.0, %v6804
      %v6806 = vpop.f32.mrb[0].mxu0
      %6807 = vmatprep.mubr.f32.mxu0 0.0
      %6808 = vmatmul.mubr.f32.gmra.mrb[0].mxu0 %v6612
      %v6809 = vpop.f32.mrb[0].mxu0
      %v6810 = vadd.f32 0.0, %v6809
      %v6811 = vpop.f32.mrb[0].mxu0
      %6812 = vmatprep.mubr.f32.mxu0 0.0
      %6813 = vmatmul.mubr.f32.gmra.mrb[0].mxu0 %v6615
      %v6814 = vpop.f32.mrb[0].mxu0
      %v6815 = vadd.f32 0.0, %v6814
      %v6816 = vpop.f32.mrb[0].mxu0
      %6817 = vmatprep.mubr.f32.mxu0 0.0
      %6818 = vmatmul.mubr.f32.gmra.mrb[0].mxu0 %v6618
      %v6819 = vpop.f32.mrb[0].mxu0
      %v6820 = vadd.f32 0.0, %v6819
      %v6821 = vpop.f32.mrb[0].mxu0
      %6822 = vmatprep.mubr.f32.mxu0 0.0
      %6823 = vmatmul.mubr.f32.gmra.mrb[0].mxu0 %v6621
      %v6824 = vpop.f32.mrb[0].mxu0
      %v6825 = vadd.f32 0.0, %v6824
      %v6826 = vpop.f32.mrb[0].mxu0
      %6827 = vmatprep.mubr.f32.mxu0 0.0
      %6828 = vmatmul.mubr.f32.gmra.mrb[0].mxu0 %v6624
      %v6829 = vpop.f32.mrb[0].mxu0
      %v6830 = vadd.f32 0.0, %v6829
      %v6831 = vpop.f32.mrb[0].mxu0
      %6832 = vmatprep.mubr.f32.mxu0 0.0
      %6833 = vmatmul.mubr.f32.gmra.mrb[0].mxu0 %v6627
      %v6834 = vpop.f32.mrb[0].mxu0
      %v6835 = vadd.f32 0.0, %v6834
      %v6836 = vpop.f32.mrb[0].mxu0
      %6837 = vmatprep.mubr.f32.mxu0 0.0
      %6838 = vmatmul.mubr.f32.gmra.mrb[0].mxu0 %v6630
      %v6839 = vpop.f32.mrb[0].mxu0
      %v6840 = vadd.f32 0.0, %v6839
      %v6841 = vpop.f32.mrb[0].mxu0
      %6842 = vmatprep.mubr.f32.mxu0 0.0
      %6843 = vmatmul.mubr.f32.gmra.mrb[0].mxu0 %v6633
      %v6844 = vpop.f32.mrb[0].mxu0
      %v6845 = vadd.f32 0.0, %v6844
      %v6846 = vpop.f32.mrb[0].mxu0
      %6847 = vmatprep.mubr.f32.mxu0 0.0
      %6848 = vmatmul.mubr.f32.gmra.mrb[0].mxu0 %v6636
      %v6849 = vpop.f32.mrb[0].mxu0
      %v6850 = vadd.f32 0.0, %v6849
      %v6851 = vpop.f32.mrb[0].mxu0
      %6852 = vmatprep.mubr.f32.mxu0 0.0
      %6853 = vmatmul.mubr.f32.gmra.mrb[0].mxu0 %v6639
      %v6854 = vpop.f32.mrb[0].mxu0
      %v6855 = vadd.f32 0.0, %v6854
      %v6856 = vpop.f32.mrb[0].mxu0
      %6857 = vmatprep.mubr.f32.mxu0 0.0
      %6858 = vmatmul.mubr.f32.gmra.mrb[0].mxu0 %v6642
      %v6859 = vpop.f32.mrb[0].mxu0
      %v6860 = vadd.f32 0.0, %v6859
      %v6861 = vpop.f32.mrb[0].mxu0
      %6862 = vmatprep.mubr.f32.mxu0 0.0
      %6863 = vmatmul.mubr.f32.gmra.mrb[0].mxu0 %v6645
      %v6864 = vpop.f32.mrb[0].mxu0
      %v6865 = vadd.f32 0.0, %v6864
      %v6866 = vpop.f32.mrb[0].mxu0
      %6867 = vmatprep.mubr.f32.mxu0 0.0
      %6868 = vmatmul.mubr.f32.gmra.mrb[0].mxu0 %v6648
      %v6869 = vpop.f32.mrb[0].mxu0
      %v6870 = vadd.f32 0.0, %v6869
      %v6871 = vpop.f32.mrb[0].mxu0
      %6872 = vmatprep.mubr.f32.mxu0 0.0
      %6873 = vmatmul.mubr.f32.gmra.mrb[0].mxu0 %v6651
      %v6874 = vpop.f32.mrb[0].mxu0
      %v6875 = vadd.f32 0.0, %v6874
      %v6876 = vpop.f32.mrb[0].mxu0
      %6877 = vdwg.mxu0
      %v6878 = vadd.f32 %v6485, %v6720
      %v6879 = vadd.f32 %v6486, %v6725
      %v6880 = vadd.f32 %v6487, %v6730
      %v6881 = vadd.f32 %v6488, %v6735
      %v6882 = vadd.f32 %v6489, %v6740
      %v6883 = vadd.f32 %v6490, %v6745
      %v6884 = vadd.f32 %v6491, %v6750
      %v6885 = vadd.f32 %v6492, %v6755
      %v6886 = vadd.f32 %v6493, %v6760
      %v6887 = vadd.f32 %v6494, %v6765
      %v6888 = vadd.f32 %v6495, %v6770
      %v6889 = vadd.f32 %v6496, %v6775
      %v6890 = vadd.f32 %v6497, %v6780
      %v6891 = vadd.f32 %v6498, %v6785
      %v6892 = vadd.f32 %v6499, %v6790
      %v6893 = vadd.f32 %v6500, %v6795
      %v6894 = vadd.f32 %v6501, %v6800
      %v6895 = vadd.f32 %v6502, %v6805
      %v6896 = vadd.f32 %v6503, %v6810
      %v6897 = vadd.f32 %v6504, %v6815
      %v6898 = vadd.f32 %v6505, %v6820
      %v6899 = vadd.f32 %v6506, %v6825
      %v6900 = vadd.f32 %v6507, %v6830
      %v6901 = vadd.f32 %v6508, %v6835
      %v6902 = vadd.f32 %v6509, %v6840
      %v6903 = vadd.f32 %v6510, %v6845
      %v6904 = vadd.f32 %v6511, %v6850
      %v6905 = vadd.f32 %v6512, %v6855
      %v6906 = vadd.f32 %v6513, %v6860
      %v6907 = vadd.f32 %v6514, %v6865
      %v6908 = vadd.f32 %v6515, %v6870
      %v6909 = vadd.f32 %v6516, %v6875
      %v6910 = vld [vmem:[%s1 + $0x148] sm:$0x1]
      %v6911 = vlaneseq
      %v6912 = vshrl.u32 %v6911, 7
      %v6913 = vsub.s32 0, %v6912
      %v6914 = vrot.slane %v6910, %v6913
      %v6915 = vadd.f32 %v6878, %v6914
      %v6916 = vadd.f32 %v6879, %v6914
      %v6917 = vadd.f32 %v6880, %v6914
      %v6918 = vadd.f32 %v6881, %v6914
      %v6919 = vadd.f32 %v6882, %v6914
      %v6920 = vadd.f32 %v6883, %v6914
      %v6921 = vadd.f32 %v6884, %v6914
      %v6922 = vadd.f32 %v6885, %v6914
      %v6923 = vadd.f32 %v6886, %v6914
      %v6924 = vadd.f32 %v6887, %v6914
      %v6925 = vadd.f32 %v6888, %v6914
      %v6926 = vadd.f32 %v6889, %v6914
      %v6927 = vadd.f32 %v6890, %v6914
      %v6928 = vadd.f32 %v6891, %v6914
      %v6929 = vadd.f32 %v6892, %v6914
      %v6930 = vadd.f32 %v6893, %v6914
      %v6931 = vadd.f32 %v6894, %v6914
      %v6932 = vadd.f32 %v6895, %v6914
      %v6933 = vadd.f32 %v6896, %v6914
      %v6934 = vadd.f32 %v6897, %v6914
      %v6935 = vadd.f32 %v6898, %v6914
      %v6936 = vadd.f32 %v6899, %v6914
      %v6937 = vadd.f32 %v6900, %v6914
      %v6938 = vadd.f32 %v6901, %v6914
      %v6939 = vadd.f32 %v6902, %v6914
      %v6940 = vadd.f32 %v6903, %v6914
      %v6941 = vadd.f32 %v6904, %v6914
      %v6942 = vadd.f32 %v6905, %v6914
      %v6943 = vadd.f32 %v6906, %v6914
      %v6944 = vadd.f32 %v6907, %v6914
      %v6945 = vadd.f32 %v6908, %v6914
      %v6946 = vadd.f32 %v6909, %v6914
      %v6947 = vmax.f32 %v6915, 0.0
      %v6948 = vmax.f32 %v6916, 0.0
      %v6949 = vmax.f32 %v6917, 0.0
      %v6950 = vmax.f32 %v6918, 0.0
      %v6951 = vmax.f32 %v6919, 0.0
      %v6952 = vmax.f32 %v6920, 0.0
      %v6953 = vmax.f32 %v6921, 0.0
      %v6954 = vmax.f32 %v6922, 0.0
      %v6955 = vmax.f32 %v6923, 0.0
      %v6956 = vmax.f32 %v6924, 0.0
      %v6957 = vmax.f32 %v6925, 0.0
      %v6958 = vmax.f32 %v6926, 0.0
      %v6959 = vmax.f32 %v6927, 0.0
      %v6960 = vmax.f32 %v6928, 0.0
      %v6961 = vmax.f32 %v6929, 0.0
      %v6962 = vmax.f32 %v6930, 0.0
      %v6963 = vmax.f32 %v6931, 0.0
      %v6964 = vmax.f32 %v6932, 0.0
      %v6965 = vmax.f32 %v6933, 0.0
      %v6966 = vmax.f32 %v6934, 0.0
      %v6967 = vmax.f32 %v6935, 0.0
      %v6968 = vmax.f32 %v6936, 0.0
      %v6969 = vmax.f32 %v6937, 0.0
      %v6970 = vmax.f32 %v6938, 0.0
      %v6971 = vmax.f32 %v6939, 0.0
      %v6972 = vmax.f32 %v6940, 0.0
      %v6973 = vmax.f32 %v6941, 0.0
      %v6974 = vmax.f32 %v6942, 0.0
      %v6975 = vmax.f32 %v6943, 0.0
      %v6976 = vmax.f32 %v6944, 0.0
      %v6977 = vmax.f32 %v6945, 0.0
      %v6978 = vmax.f32 %v6946, 0.0
      %vm6979 = vcmask 261120
      %6980 = vst.msk [vmem:[#allocation5] sm:$0xff] %vm6979, %v6947
      %6981 = vst.msk [vmem:[#allocation5 + $0x8] sm:$0xff] %vm6979, %v6948
      %6982 = vst.msk [vmem:[#allocation5 + $0x10] sm:$0xff] %vm6979, %v6949
      %6983 = vst.msk [vmem:[#allocation5 + $0x18] sm:$0xff] %vm6979, %v6950
      %6984 = vst.msk [vmem:[#allocation5 + $0x20] sm:$0xff] %vm6979, %v6951
      %6985 = vst.msk [vmem:[#allocation5 + $0x28] sm:$0xff] %vm6979, %v6952
      %6986 = vst.msk [vmem:[#allocation5 + $0x30] sm:$0xff] %vm6979, %v6953
      %6987 = vst.msk [vmem:[#allocation5 + $0x38] sm:$0xff] %vm6979, %v6954
      %6988 = vst.msk [vmem:[#allocation5 + $0x40] sm:$0xff] %vm6979, %v6955
      %6989 = vst.msk [vmem:[#allocation5 + $0x48] sm:$0xff] %vm6979, %v6956
      %6990 = vst.msk [vmem:[#allocation5 + $0x50] sm:$0xff] %vm6979, %v6957
      %6991 = vst.msk [vmem:[#allocation5 + $0x58] sm:$0xff] %vm6979, %v6958
      %6992 = vst.msk [vmem:[#allocation5 + $0x60] sm:$0xff] %vm6979, %v6959
      %6993 = vst.msk [vmem:[#allocation5 + $0x68] sm:$0xff] %vm6979, %v6960
      %6994 = vst.msk [vmem:[#allocation5 + $0x70] sm:$0xff] %vm6979, %v6961
      %6995 = vst.msk [vmem:[#allocation5 + $0x78] sm:$0xff] %vm6979, %v6962
      %6996 = vst.msk [vmem:[#allocation5 + $0x80] sm:$0xff] %vm6979, %v6963
      %6997 = vst.msk [vmem:[#allocation5 + $0x88] sm:$0xff] %vm6979, %v6964
      %6998 = vst.msk [vmem:[#allocation5 + $0x90] sm:$0xff] %vm6979, %v6965
      %6999 = vst.msk [vmem:[#allocation5 + $0x98] sm:$0xff] %vm6979, %v6966
      %7000 = vst.msk [vmem:[#allocation5 + $0xa0] sm:$0xff] %vm6979, %v6967
      %7001 = vst.msk [vmem:[#allocation5 + $0xa8] sm:$0xff] %vm6979, %v6968
      %7002 = vst.msk [vmem:[#allocation5 + $0xb0] sm:$0xff] %vm6979, %v6969
      %7003 = vst.msk [vmem:[#allocation5 + $0xb8] sm:$0xff] %vm6979, %v6970
      %7004 = vst.msk [vmem:[#allocation5 + $0xc0] sm:$0xff] %vm6979, %v6971
      %7005 = vst.msk [vmem:[#allocation5 + $0xc8] sm:$0xff] %vm6979, %v6972
      %7006 = vst.msk [vmem:[#allocation5 + $0xd0] sm:$0xff] %vm6979, %v6973
      %7007 = vst.msk [vmem:[#allocation5 + $0xd8] sm:$0xff] %vm6979, %v6974
      %7008 = vst.msk [vmem:[#allocation5 + $0xe0] sm:$0xff] %vm6979, %v6975
      %7009 = vst.msk [vmem:[#allocation5 + $0xe8] sm:$0xff] %vm6979, %v6976
      %7010 = vst.msk [vmem:[#allocation5 + $0xf0] sm:$0xff] %vm6979, %v6977
      %7011 = vst.msk [vmem:[#allocation5 + $0xf8] sm:$0xff] %vm6979, %v6978
      %v7012 = vld [vmem:[#allocation5] ss:$2 sm:$0xf]
      %vm7013 = vcmask 257024
      %7014 = vst.msk [vmem:[#allocation6 + $0xf] sm:$0xf] %vm7013, %v7012
      %s7015 = scalar_lea.vmem [#allocation5], 20
      %v7016 = vld [vmem:[%s7015] ss:$2 sm:$0xf]
      %7017 = vst.msk [vmem:[#allocation6 + $0x15] sm:$0xf] %vm7013, %v7016
      %s7018 = scalar_lea.vmem [#allocation5], 40
      %v7019 = vld [vmem:[%s7018] ss:$2 sm:$0xf]
      %7020 = vst.msk [vmem:[#allocation6 + $0x1b] sm:$0xf] %vm7013, %v7019
      %s7021 = scalar_lea.vmem [#allocation5], 60
      %v7022 = vld [vmem:[%s7021] ss:$2 sm:$0xf]
      %7023 = vst.msk [vmem:[#allocation6 + $0x21] sm:$0xf] %vm7013, %v7022
      %s7024 = scalar_lea.vmem [#allocation5], 152
      %v7025 = vld [vmem:[%s7024] ss:$2 sm:$0xf]
      %7026 = vst.msk [vmem:[#allocation6 + $0x5f] sm:$0xf] %vm7013, %v7025
      %s7027 = scalar_lea.vmem [#allocation5], 172
      %v7028 = vld [vmem:[%s7027] ss:$2 sm:$0xf]
      %7029 = vst.msk [vmem:[#allocation6 + $0x65] sm:$0xf] %vm7013, %v7028
      %s7030 = scalar_lea.vmem [#allocation5], 192
      %v7031 = vld [vmem:[%s7030] ss:$2 sm:$0xf]
      %7032 = vst.msk [vmem:[#allocation6 + $0x6b] sm:$0xf] %vm7013, %v7031
      %s7033 = scalar_lea.vmem [#allocation5], 212
      %v7034 = vld [vmem:[%s7033] ss:$2 sm:$0xf]
      %7035 = vst.msk [vmem:[#allocation6 + $0x71] sm:$0xf] %vm7013, %v7034
      %v7036 = vld [vmem:[%s1 + $0x620] sm:$0xff]
      %v7037 = vld [vmem:[%s1 + $0x628] sm:$0xff]
      %v7038 = vld [vmem:[%s1 + $0x630] sm:$0xff]
      %v7039 = vld [vmem:[%s1 + $0x638] sm:$0xff]
      %v7040 = vld [vmem:[%s1 + $0x640] sm:$0xff]
      %v7041 = vld [vmem:[%s1 + $0x648] sm:$0xff]
      %v7042 = vld [vmem:[%s1 + $0x650] sm:$0xff]
      %v7043 = vld [vmem:[%s1 + $0x658] sm:$0xff]
      %v7044 = vld [vmem:[%s1 + $0x660] sm:$0xff]
      %v7045 = vld [vmem:[%s1 + $0x668] sm:$0xff]
      %v7046 = vld [vmem:[%s1 + $0x670] sm:$0xff]
      %v7047 = vld [vmem:[%s1 + $0x678] sm:$0xff]
      %v7048 = vld [vmem:[%s1 + $0x680] sm:$0xff]
      %v7049 = vld [vmem:[%s1 + $0x688] sm:$0xff]
      %v7050 = vld [vmem:[%s1 + $0x690] sm:$0xff]
      %v7051 = vld [vmem:[%s1 + $0x698] sm:$0xff]
      %v7052 = vld [vmem:[%s1 + $0x6a0] sm:$0xff]
      %v7053 = vld [vmem:[%s1 + $0x6a8] sm:$0xff]
      %v7054 = vld [vmem:[%s1 + $0x6b0] sm:$0xff]
      %v7055 = vld [vmem:[#allocation6 + $0x8] sm:$0xff]
      %v7056 = vld [vmem:[#allocation6 + $0x10] sm:$0xff]
      %v7057 = vld [vmem:[#allocation6 + $0x18] sm:$0xff]
      %v7058 = vld [vmem:[#allocation6 + $0x20] sm:$0xff]
      %v7059 = vld [vmem:[#allocation6 + $0x28] sm:$0xff]
      %v7060 = vld [vmem:[#allocation6 + $0x30] sm:$0xff]
      %v7061 = vld [vmem:[#allocation6 + $0x38] sm:$0xff]
      %v7062 = vld [vmem:[#allocation6 + $0x40] sm:$0xff]
      %v7063 = vld [vmem:[#allocation6 + $0x48] sm:$0xff]
      %v7064 = vld [vmem:[#allocation6 + $0x50] sm:$0xff]
      %v7065 = vld [vmem:[#allocation6 + $0x58] sm:$0xff]
      %v7066 = vld [vmem:[#allocation6 + $0x60] sm:$0xff]
      %v7067 = vld [vmem:[#allocation6 + $0x68] sm:$0xff]
      %v7068 = vld [vmem:[#allocation6 + $0x70] sm:$0xff]
      %v7069 = vld [vmem:[#allocation6 + $0x78] sm:$0xff]
      %v7070 = vld [vmem:[#allocation6 + $0x80] sm:$0xff]
      %v7071 = vld [vmem:[#allocation6 + $0x88] sm:$0xff]
      %v7072 = vld [vmem:[#allocation6 + $0x90] sm:$0xff]
      %v7073 = vld [vmem:[#allocation6 + $0x98] sm:$0xff]
      %vm7074 = vcmp.gt.f32.partialorder %v7036, 0.0
      %vm7075 = vcmp.gt.f32.partialorder %v7037, 0.0
      %vm7076 = vcmp.gt.f32.partialorder %v7038, 0.0
      %vm7077 = vcmp.gt.f32.partialorder %v7039, 0.0
      %vm7078 = vcmp.gt.f32.partialorder %v7040, 0.0
      %vm7079 = vcmp.gt.f32.partialorder %v7041, 0.0
      %vm7080 = vcmp.gt.f32.partialorder %v7042, 0.0
      %vm7081 = vcmp.gt.f32.partialorder %v7043, 0.0
      %vm7082 = vcmp.gt.f32.partialorder %v7044, 0.0
      %vm7083 = vcmp.gt.f32.partialorder %v7045, 0.0
      %vm7084 = vcmp.gt.f32.partialorder %v7046, 0.0
      %vm7085 = vcmp.gt.f32.partialorder %v7047, 0.0
      %vm7086 = vcmp.gt.f32.partialorder %v7048, 0.0
      %vm7087 = vcmp.gt.f32.partialorder %v7049, 0.0
      %vm7088 = vcmp.gt.f32.partialorder %v7050, 0.0
      %vm7089 = vcmp.gt.f32.partialorder %v7051, 0.0
      %vm7090 = vcmp.gt.f32.partialorder %v7052, 0.0
      %vm7091 = vcmp.gt.f32.partialorder %v7053, 0.0
      %vm7092 = vcmp.gt.f32.partialorder %v7054, 0.0
      %v7093 = vsel %vm7074, %v7055, 0.0
      %v7094 = vsel %vm7075, %v7056, 0.0
      %v7095 = vsel %vm7076, %v7057, 0.0
      %v7096 = vsel %vm7077, %v7058, 0.0
      %v7097 = vsel %vm7078, %v7059, 0.0
      %v7098 = vsel %vm7079, %v7060, 0.0
      %v7099 = vsel %vm7080, %v7061, 0.0
      %v7100 = vsel %vm7081, %v7062, 0.0
      %v7101 = vsel %vm7082, %v7063, 0.0
      %v7102 = vsel %vm7083, %v7064, 0.0
      %v7103 = vsel %vm7084, %v7065, 0.0
      %v7104 = vsel %vm7085, %v7066, 0.0
      %v7105 = vsel %vm7086, %v7067, 0.0
      %v7106 = vsel %vm7087, %v7068, 0.0
      %v7107 = vsel %vm7088, %v7069, 0.0
      %v7108 = vsel %vm7089, %v7070, 0.0
      %v7109 = vsel %vm7090, %v7071, 0.0
      %v7110 = vsel %vm7091, %v7072, 0.0
      %v7111 = vsel %vm7092, %v7073, 0.0
      %7112 = vst.msk [vmem:[#allocation7 + $0x8] sm:$0xff] %vm6979, %v7093
      %7113 = vst.msk [vmem:[#allocation7 + $0x10] sm:$0xff] %vm6979, %v7094
      %7114 = vst.msk [vmem:[#allocation7 + $0x18] sm:$0xff] %vm6979, %v7095
      %7115 = vst.msk [vmem:[#allocation7 + $0x20] sm:$0xff] %vm6979, %v7096
      %7116 = vst.msk [vmem:[#allocation7 + $0x28] sm:$0xff] %vm6979, %v7097
      %7117 = vst.msk [vmem:[#allocation7 + $0x30] sm:$0xff] %vm6979, %v7098
      %7118 = vst.msk [vmem:[#allocation7 + $0x38] sm:$0xff] %vm6979, %v7099
      %7119 = vst.msk [vmem:[#allocation7 + $0x40] sm:$0xff] %vm6979, %v7100
      %7120 = vst.msk [vmem:[#allocation7 + $0x48] sm:$0xff] %vm6979, %v7101
      %7121 = vst.msk [vmem:[#allocation7 + $0x50] sm:$0xff] %vm6979, %v7102
      %7122 = vst.msk [vmem:[#allocation7 + $0x58] sm:$0xff] %vm6979, %v7103
      %7123 = vst.msk [vmem:[#allocation7 + $0x60] sm:$0xff] %vm6979, %v7104
      %7124 = vst.msk [vmem:[#allocation7 + $0x68] sm:$0xff] %vm6979, %v7105
      %7125 = vst.msk [vmem:[#allocation7 + $0x70] sm:$0xff] %vm6979, %v7106
      %7126 = vst.msk [vmem:[#allocation7 + $0x78] sm:$0xff] %vm6979, %v7107
      %7127 = vst.msk [vmem:[#allocation7 + $0x80] sm:$0xff] %vm6979, %v7108
      %7128 = vst.msk [vmem:[#allocation7 + $0x88] sm:$0xff] %vm6979, %v7109
      %7129 = vst.msk [vmem:[#allocation7 + $0x90] sm:$0xff] %vm6979, %v7110
      %7130 = vst.msk [vmem:[#allocation7 + $0x98] sm:$0xff] %vm6979, %v7111
      %v7131 = vld [vmem:[%s1 + $0x621] sm:$0xff]
      %v7132 = vld [vmem:[%s1 + $0x629] sm:$0xff]
      %v7133 = vld [vmem:[%s1 + $0x631] sm:$0xff]
      %v7134 = vld [vmem:[%s1 + $0x639] sm:$0xff]
      %v7135 = vld [vmem:[%s1 + $0x641] sm:$0xff]
      %v7136 = vld [vmem:[%s1 + $0x649] sm:$0xff]
      %v7137 = vld [vmem:[%s1 + $0x651] sm:$0xff]
      %v7138 = vld [vmem:[%s1 + $0x659] sm:$0xff]
      %v7139 = vld [vmem:[%s1 + $0x661] sm:$0xff]
      %v7140 = vld [vmem:[%s1 + $0x669] sm:$0xff]
      %v7141 = vld [vmem:[%s1 + $0x671] sm:$0xff]
      %v7142 = vld [vmem:[%s1 + $0x679] sm:$0xff]
      %v7143 = vld [vmem:[%s1 + $0x681] sm:$0xff]
      %v7144 = vld [vmem:[%s1 + $0x689] sm:$0xff]
      %v7145 = vld [vmem:[%s1 + $0x691] sm:$0xff]
      %v7146 = vld [vmem:[%s1 + $0x699] sm:$0xff]
      %v7147 = vld [vmem:[%s1 + $0x6a1] sm:$0xff]
      %v7148 = vld [vmem:[%s1 + $0x6a9] sm:$0xff]
      %v7149 = vld [vmem:[%s1 + $0x6b1] sm:$0xff]
      %v7150 = vld [vmem:[#allocation6 + $0x9] sm:$0xff]
      %v7151 = vld [vmem:[#allocation6 + $0x11] sm:$0xff]
      %v7152 = vld [vmem:[#allocation6 + $0x19] sm:$0xff]
      %v7153 = vld [vmem:[#allocation6 + $0x21] sm:$0xff]
      %v7154 = vld [vmem:[#allocation6 + $0x29] sm:$0xff]
      %v7155 = vld [vmem:[#allocation6 + $0x31] sm:$0xff]
      %v7156 = vld [vmem:[#allocation6 + $0x39] sm:$0xff]
      %v7157 = vld [vmem:[#allocation6 + $0x41] sm:$0xff]
      %v7158 = vld [vmem:[#allocation6 + $0x49] sm:$0xff]
      %v7159 = vld [vmem:[#allocation6 + $0x51] sm:$0xff]
      %v7160 = vld [vmem:[#allocation6 + $0x59] sm:$0xff]
      %v7161 = vld [vmem:[#allocation6 + $0x61] sm:$0xff]
      %v7162 = vld [vmem:[#allocation6 + $0x69] sm:$0xff]
      %v7163 = vld [vmem:[#allocation6 + $0x71] sm:$0xff]
      %v7164 = vld [vmem:[#allocation6 + $0x79] sm:$0xff]
      %v7165 = vld [vmem:[#allocation6 + $0x81] sm:$0xff]
      %v7166 = vld [vmem:[#allocation6 + $0x89] sm:$0xff]
      %v7167 = vld [vmem:[#allocation6 + $0x91] sm:$0xff]
      %v7168 = vld [vmem:[#allocation6 + $0x99] sm:$0xff]
      %vm7169 = vcmp.gt.f32.partialorder %v7131, 0.0
      %vm7170 = vcmp.gt.f32.partialorder %v7132, 0.0
      %vm7171 = vcmp.gt.f32.partialorder %v7133, 0.0
      %vm7172 = vcmp.gt.f32.partialorder %v7134, 0.0
      %vm7173 = vcmp.gt.f32.partialorder %v7135, 0.0
      %vm7174 = vcmp.gt.f32.partialorder %v7136, 0.0
      %vm7175 = vcmp.gt.f32.partialorder %v7137, 0.0
      %vm7176 = vcmp.gt.f32.partialorder %v7138, 0.0
      %vm7177 = vcmp.gt.f32.partialorder %v7139, 0.0
      %vm7178 = vcmp.gt.f32.partialorder %v7140, 0.0
      %vm7179 = vcmp.gt.f32.partialorder %v7141, 0.0
      %vm7180 = vcmp.gt.f32.partialorder %v7142, 0.0
      %vm7181 = vcmp.gt.f32.partialorder %v7143, 0.0
      %vm7182 = vcmp.gt.f32.partialorder %v7144, 0.0
      %vm7183 = vcmp.gt.f32.partialorder %v7145, 0.0
      %vm7184 = vcmp.gt.f32.partialorder %v7146, 0.0
      %vm7185 = vcmp.gt.f32.partialorder %v7147, 0.0
      %vm7186 = vcmp.gt.f32.partialorder %v7148, 0.0
      %vm7187 = vcmp.gt.f32.partialorder %v7149, 0.0
      %v7188 = vsel %vm7169, %v7150, 0.0
      %v7189 = vsel %vm7170, %v7151, 0.0
      %v7190 = vsel %vm7171, %v7152, 0.0
      %v7191 = vsel %vm7172, %v7153, 0.0
      %v7192 = vsel %vm7173, %v7154, 0.0
      %v7193 = vsel %vm7174, %v7155, 0.0
      %v7194 = vsel %vm7175, %v7156, 0.0
      %v7195 = vsel %vm7176, %v7157, 0.0
      %v7196 = vsel %vm7177, %v7158, 0.0
      %v7197 = vsel %vm7178, %v7159, 0.0
      %v7198 = vsel %vm7179, %v7160, 0.0
      %v7199 = vsel %vm7180, %v7161, 0.0
      %v7200 = vsel %vm7181, %v7162, 0.0
      %v7201 = vsel %vm7182, %v7163, 0.0
      %v7202 = vsel %vm7183, %v7164, 0.0
      %v7203 = vsel %vm7184, %v7165, 0.0
      %v7204 = vsel %vm7185, %v7166, 0.0
      %v7205 = vsel %vm7186, %v7167, 0.0
      %v7206 = vsel %vm7187, %v7168, 0.0
      %7226 = vrot.lane.b32.xlu0 %v7188, 32
      %v7227 = vpop.permute.xlu0 %7226
      %7228 = vrot.lane.b32.xlu0 %v7189, 32
      %v7229 = vpop.permute.xlu0 %7228
      %7230 = vrot.lane.b32.xlu0 %v7190, 32
      %v7231 = vpop.permute.xlu0 %7230
      %7232 = vrot.lane.b32.xlu0 %v7191, 32
      %v7233 = vpop.permute.xlu0 %7232
      %7234 = vrot.lane.b32.xlu0 %v7192, 32
      %v7235 = vpop.permute.xlu0 %7234
      %7236 = vrot.lane.b32.xlu0 %v7193, 32
      %v7237 = vpop.permute.xlu0 %7236
      %7238 = vrot.lane.b32.xlu0 %v7194, 32
      %v7239 = vpop.permute.xlu0 %7238
      %7240 = vrot.lane.b32.xlu0 %v7195, 32
      %v7241 = vpop.permute.xlu0 %7240
      %7242 = vrot.lane.b32.xlu0 %v7196, 32
      %v7243 = vpop.permute.xlu0 %7242
      %7244 = vrot.lane.b32.xlu0 %v7197, 32
      %v7245 = vpop.permute.xlu0 %7244
      %7246 = vrot.lane.b32.xlu0 %v7198, 32
      %v7247 = vpop.permute.xlu0 %7246
      %7248 = vrot.lane.b32.xlu0 %v7199, 32
      %v7249 = vpop.permute.xlu0 %7248
      %7250 = vrot.lane.b32.xlu0 %v7200, 32
      %v7251 = vpop.permute.xlu0 %7250
      %7252 = vrot.lane.b32.xlu0 %v7201, 32
      %v7253 = vpop.permute.xlu0 %7252
      %7254 = vrot.lane.b32.xlu0 %v7202, 32
      %v7255 = vpop.permute.xlu0 %7254
      %7256 = vrot.lane.b32.xlu0 %v7203, 32
      %v7257 = vpop.permute.xlu0 %7256
      %7258 = vrot.lane.b32.xlu0 %v7204, 32
      %v7259 = vpop.permute.xlu0 %7258
      %7260 = vrot.lane.b32.xlu0 %v7205, 32
      %v7261 = vpop.permute.xlu0 %7260
      %7262 = vrot.lane.b32.xlu0 %v7206, 32
      %v7263 = vpop.permute.xlu0 %7262
      %vm7283 = vcmask 523520
      %7284 = vst.msk [vmem:[#allocation7 + $0x8] sm:$0xff] %vm7283, %v7227
      %7285 = vst.msk [vmem:[#allocation7 + $0x10] sm:$0xff] %vm7283, %v7229
      %7286 = vst.msk [vmem:[#allocation7 + $0x18] sm:$0xff] %vm7283, %v7231
      %7287 = vst.msk [vmem:[#allocation7 + $0x20] sm:$0xff] %vm7283, %v7233
      %7288 = vst.msk [vmem:[#allocation7 + $0x28] sm:$0xff] %vm7283, %v7235
      %7289 = vst.msk [vmem:[#allocation7 + $0x30] sm:$0xff] %vm7283, %v7237
      %7290 = vst.msk [vmem:[#allocation7 + $0x38] sm:$0xff] %vm7283, %v7239
      %7291 = vst.msk [vmem:[#allocation7 + $0x40] sm:$0xff] %vm7283, %v7241
      %7292 = vst.msk [vmem:[#allocation7 + $0x48] sm:$0xff] %vm7283, %v7243
      %7293 = vst.msk [vmem:[#allocation7 + $0x50] sm:$0xff] %vm7283, %v7245
      %7294 = vst.msk [vmem:[#allocation7 + $0x58] sm:$0xff] %vm7283, %v7247
      %7295 = vst.msk [vmem:[#allocation7 + $0x60] sm:$0xff] %vm7283, %v7249
      %7296 = vst.msk [vmem:[#allocation7 + $0x68] sm:$0xff] %vm7283, %v7251
      %7297 = vst.msk [vmem:[#allocation7 + $0x70] sm:$0xff] %vm7283, %v7253
      %7298 = vst.msk [vmem:[#allocation7 + $0x78] sm:$0xff] %vm7283, %v7255
      %7299 = vst.msk [vmem:[#allocation7 + $0x80] sm:$0xff] %vm7283, %v7257
      %7300 = vst.msk [vmem:[#allocation7 + $0x88] sm:$0xff] %vm7283, %v7259
      %7301 = vst.msk [vmem:[#allocation7 + $0x90] sm:$0xff] %vm7283, %v7261
      %7302 = vst.msk [vmem:[#allocation7 + $0x98] sm:$0xff] %vm7283, %v7263
      %v7303 = vld [vmem:[%s1 + $0x622] sm:$0xff]
      %v7304 = vld [vmem:[%s1 + $0x62a] sm:$0xff]
      %v7305 = vld [vmem:[%s1 + $0x632] sm:$0xff]
      %v7306 = vld [vmem:[%s1 + $0x63a] sm:$0xff]
      %v7307 = vld [vmem:[%s1 + $0x642] sm:$0xff]
      %v7308 = vld [vmem:[%s1 + $0x64a] sm:$0xff]
      %v7309 = vld [vmem:[%s1 + $0x652] sm:$0xff]
      %v7310 = vld [vmem:[%s1 + $0x65a] sm:$0xff]
      %v7311 = vld [vmem:[%s1 + $0x662] sm:$0xff]
      %v7312 = vld [vmem:[%s1 + $0x66a] sm:$0xff]
      %v7313 = vld [vmem:[%s1 + $0x672] sm:$0xff]
      %v7314 = vld [vmem:[%s1 + $0x67a] sm:$0xff]
      %v7315 = vld [vmem:[%s1 + $0x682] sm:$0xff]
      %v7316 = vld [vmem:[%s1 + $0x68a] sm:$0xff]
      %v7317 = vld [vmem:[%s1 + $0x692] sm:$0xff]
      %v7318 = vld [vmem:[%s1 + $0x69a] sm:$0xff]
      %v7319 = vld [vmem:[%s1 + $0x6a2] sm:$0xff]
      %v7320 = vld [vmem:[%s1 + $0x6aa] sm:$0xff]
      %v7321 = vld [vmem:[%s1 + $0x6b2] sm:$0xff]
      %v7322 = vld [vmem:[#allocation6 + $0xa] sm:$0xff]
      %v7323 = vld [vmem:[#allocation6 + $0x12] sm:$0xff]
      %v7324 = vld [vmem:[#allocation6 + $0x1a] sm:$0xff]
      %v7325 = vld [vmem:[#allocation6 + $0x22] sm:$0xff]
      %v7326 = vld [vmem:[#allocation6 + $0x2a] sm:$0xff]
      %v7327 = vld [vmem:[#allocation6 + $0x32] sm:$0xff]
      %v7328 = vld [vmem:[#allocation6 + $0x3a] sm:$0xff]
      %v7329 = vld [vmem:[#allocation6 + $0x42] sm:$0xff]
      %v7330 = vld [vmem:[#allocation6 + $0x4a] sm:$0xff]
      %v7331 = vld [vmem:[#allocation6 + $0x52] sm:$0xff]
      %v7332 = vld [vmem:[#allocation6 + $0x5a] sm:$0xff]
      %v7333 = vld [vmem:[#allocation6 + $0x62] sm:$0xff]
      %v7334 = vld [vmem:[#allocation6 + $0x6a] sm:$0xff]
      %v7335 = vld [vmem:[#allocation6 + $0x72] sm:$0xff]
      %v7336 = vld [vmem:[#allocation6 + $0x7a] sm:$0xff]
      %v7337 = vld [vmem:[#allocation6 + $0x82] sm:$0xff]
      %v7338 = vld [vmem:[#allocation6 + $0x8a] sm:$0xff]
      %v7339 = vld [vmem:[#allocation6 + $0x92] sm:$0xff]
      %v7340 = vld [vmem:[#allocation6 + $0x9a] sm:$0xff]
      %vm7341 = vcmp.gt.f32.partialorder %v7303, 0.0
      %vm7342 = vcmp.gt.f32.partialorder %v7304, 0.0
      %vm7343 = vcmp.gt.f32.partialorder %v7305, 0.0
      %vm7344 = vcmp.gt.f32.partialorder %v7306, 0.0
      %vm7345 = vcmp.gt.f32.partialorder %v7307, 0.0
      %vm7346 = vcmp.gt.f32.partialorder %v7308, 0.0
      %vm7347 = vcmp.gt.f32.partialorder %v7309, 0.0
      %vm7348 = vcmp.gt.f32.partialorder %v7310, 0.0
      %vm7349 = vcmp.gt.f32.partialorder %v7311, 0.0
      %vm7350 = vcmp.gt.f32.partialorder %v7312, 0.0
      %vm7351 = vcmp.gt.f32.partialorder %v7313, 0.0
      %vm7352 = vcmp.gt.f32.partialorder %v7314, 0.0
      %vm7353 = vcmp.gt.f32.partialorder %v7315, 0.0
      %vm7354 = vcmp.gt.f32.partialorder %v7316, 0.0
      %vm7355 = vcmp.gt.f32.partialorder %v7317, 0.0
      %vm7356 = vcmp.gt.f32.partialorder %v7318, 0.0
      %vm7357 = vcmp.gt.f32.partialorder %v7319, 0.0
      %vm7358 = vcmp.gt.f32.partialorder %v7320, 0.0
      %vm7359 = vcmp.gt.f32.partialorder %v7321, 0.0
      %v7360 = vsel %vm7341, %v7322, 0.0
      %v7361 = vsel %vm7342, %v7323, 0.0
      %v7362 = vsel %vm7343, %v7324, 0.0
      %v7363 = vsel %vm7344, %v7325, 0.0
      %v7364 = vsel %vm7345, %v7326, 0.0
      %v7365 = vsel %vm7346, %v7327, 0.0
      %v7366 = vsel %vm7347, %v7328, 0.0
      %v7367 = vsel %vm7348, %v7329, 0.0
      %v7368 = vsel %vm7349, %v7330, 0.0
      %v7369 = vsel %vm7350, %v7331, 0.0
      %v7370 = vsel %vm7351, %v7332, 0.0
      %v7371 = vsel %vm7352, %v7333, 0.0
      %v7372 = vsel %vm7353, %v7334, 0.0
      %v7373 = vsel %vm7354, %v7335, 0.0
      %v7374 = vsel %vm7355, %v7336, 0.0
      %v7375 = vsel %vm7356, %v7337, 0.0
      %v7376 = vsel %vm7357, %v7338, 0.0
      %v7377 = vsel %vm7358, %v7339, 0.0
      %v7378 = vsel %vm7359, %v7340, 0.0
      %7398 = vrot.lane.b32.xlu0 %v7360, 64
      %v7399 = vpop.permute.xlu0 %7398
      %7400 = vrot.lane.b32.xlu0 %v7361, 64
      %v7401 = vpop.permute.xlu0 %7400
      %7402 = vrot.lane.b32.xlu0 %v7362, 64
      %v7403 = vpop.permute.xlu0 %7402
      %7404 = vrot.lane.b32.xlu0 %v7363, 64
      %v7405 = vpop.permute.xlu0 %7404
      %7406 = vrot.lane.b32.xlu0 %v7364, 64
      %v7407 = vpop.permute.xlu0 %7406
      %7408 = vrot.lane.b32.xlu0 %v7365, 64
      %v7409 = vpop.permute.xlu0 %7408
      %7410 = vrot.lane.b32.xlu0 %v7366, 64
      %v7411 = vpop.permute.xlu0 %7410
      %7412 = vrot.lane.b32.xlu0 %v7367, 64
      %v7413 = vpop.permute.xlu0 %7412
      %7414 = vrot.lane.b32.xlu0 %v7368, 64
      %v7415 = vpop.permute.xlu0 %7414
      %7416 = vrot.lane.b32.xlu0 %v7369, 64
      %v7417 = vpop.permute.xlu0 %7416
      %7418 = vrot.lane.b32.xlu0 %v7370, 64
      %v7419 = vpop.permute.xlu0 %7418
      %7420 = vrot.lane.b32.xlu0 %v7371, 64
      %v7421 = vpop.permute.xlu0 %7420
      %7422 = vrot.lane.b32.xlu0 %v7372, 64
      %v7423 = vpop.permute.xlu0 %7422
      %7424 = vrot.lane.b32.xlu0 %v7373, 64
      %v7425 = vpop.permute.xlu0 %7424
      %7426 = vrot.lane.b32.xlu0 %v7374, 64
      %v7427 = vpop.permute.xlu0 %7426
      %7428 = vrot.lane.b32.xlu0 %v7375, 64
      %v7429 = vpop.permute.xlu0 %7428
      %7430 = vrot.lane.b32.xlu0 %v7376, 64
      %v7431 = vpop.permute.xlu0 %7430
      %7432 = vrot.lane.b32.xlu0 %v7377, 64
      %v7433 = vpop.permute.xlu0 %7432
      %7434 = vrot.lane.b32.xlu0 %v7378, 64
      %v7435 = vpop.permute.xlu0 %7434
      %vm7455 = vcmask 785920
      %7456 = vst.msk [vmem:[#allocation7 + $0x8] sm:$0xff] %vm7455, %v7399
      %7457 = vst.msk [vmem:[#allocation7 + $0x10] sm:$0xff] %vm7455, %v7401
      %7458 = vst.msk [vmem:[#allocation7 + $0x18] sm:$0xff] %vm7455, %v7403
      %7459 = vst.msk [vmem:[#allocation7 + $0x20] sm:$0xff] %vm7455, %v7405
      %7460 = vst.msk [vmem:[#allocation7 + $0x28] sm:$0xff] %vm7455, %v7407
      %7461 = vst.msk [vmem:[#allocation7 + $0x30] sm:$0xff] %vm7455, %v7409
      %7462 = vst.msk [vmem:[#allocation7 + $0x38] sm:$0xff] %vm7455, %v7411
      %7463 = vst.msk [vmem:[#allocation7 + $0x40] sm:$0xff] %vm7455, %v7413
      %7464 = vst.msk [vmem:[#allocation7 + $0x48] sm:$0xff] %vm7455, %v7415
      %7465 = vst.msk [vmem:[#allocation7 + $0x50] sm:$0xff] %vm7455, %v7417
      %7466 = vst.msk [vmem:[#allocation7 + $0x58] sm:$0xff] %vm7455, %v7419
      %7467 = vst.msk [vmem:[#allocation7 + $0x60] sm:$0xff] %vm7455, %v7421
      %7468 = vst.msk [vmem:[#allocation7 + $0x68] sm:$0xff] %vm7455, %v7423
      %7469 = vst.msk [vmem:[#allocation7 + $0x70] sm:$0xff] %vm7455, %v7425
      %7470 = vst.msk [vmem:[#allocation7 + $0x78] sm:$0xff] %vm7455, %v7427
      %7471 = vst.msk [vmem:[#allocation7 + $0x80] sm:$0xff] %vm7455, %v7429
      %7472 = vst.msk [vmem:[#allocation7 + $0x88] sm:$0xff] %vm7455, %v7431
      %7473 = vst.msk [vmem:[#allocation7 + $0x90] sm:$0xff] %vm7455, %v7433
      %7474 = vst.msk [vmem:[#allocation7 + $0x98] sm:$0xff] %vm7455, %v7435
      %v7475 = vld [vmem:[#allocation7 + $0x1] sm:$0xff]
      %v7476 = vld [vmem:[#allocation7 + $0x9] sm:$0xff]
      %v7477 = vld [vmem:[#allocation7 + $0x11] sm:$0xff]
      %v7478 = vld [vmem:[#allocation7 + $0x19] sm:$0xff]
      %v7479 = vld [vmem:[#allocation7 + $0x21] sm:$0xff]
      %v7480 = vld [vmem:[#allocation7 + $0x29] sm:$0xff]
      %v7481 = vld [vmem:[#allocation7 + $0x31] sm:$0xff]
      %v7482 = vld [vmem:[#allocation7 + $0x39] sm:$0xff]
      %v7483 = vld [vmem:[#allocation7 + $0x41] sm:$0xff]
      %v7484 = vld [vmem:[#allocation7 + $0x49] sm:$0xff]
      %v7485 = vld [vmem:[#allocation7 + $0x51] sm:$0xff]
      %v7486 = vld [vmem:[#allocation7 + $0x59] sm:$0xff]
      %v7487 = vld [vmem:[#allocation7 + $0x61] sm:$0xff]
      %v7488 = vld [vmem:[#allocation7 + $0x69] sm:$0xff]
      %v7489 = vld [vmem:[#allocation7 + $0x71] sm:$0xff]
      %v7490 = vld [vmem:[%s1 + $0x150] sm:$0xff]
      %v7491 = vld [vmem:[%s1 + $0x158] sm:$0xff]
      %v7492 = vld [vmem:[%s1 + $0x160] sm:$0xff]
      %v7493 = vld [vmem:[%s1 + $0x168] sm:$0xff]
      %v7494 = vld [vmem:[%s1 + $0x170] sm:$0xff]
      %v7495 = vld [vmem:[%s1 + $0x178] sm:$0xff]
      %v7496 = vld [vmem:[%s1 + $0x180] sm:$0xff]
      %v7497 = vld [vmem:[%s1 + $0x188] sm:$0xff]
      %v7498 = vld [vmem:[%s1 + $0x190] sm:$0xff]
      %v7499 = vld [vmem:[%s1 + $0x198] sm:$0xff]
      %v7500 = vld [vmem:[%s1 + $0x1a0] sm:$0xff]
      %v7501 = vld [vmem:[%s1 + $0x1a8] sm:$0xff]
      %v7502 = vld [vmem:[#allocation7 + $0x7] sm:$0xff]
      %v7503 = vld [vmem:[#allocation7 + $0xf] sm:$0xff]
      %v7504 = vld [vmem:[#allocation7 + $0x17] sm:$0xff]
      %v7505 = vld [vmem:[#allocation7 + $0x1f] sm:$0xff]
      %v7506 = vld [vmem:[#allocation7 + $0x27] sm:$0xff]
      %v7507 = vld [vmem:[#allocation7 + $0x2f] sm:$0xff]
      %v7508 = vld [vmem:[#allocation7 + $0x37] sm:$0xff]
      %v7509 = vld [vmem:[#allocation7 + $0x3f] sm:$0xff]
      %v7510 = vld [vmem:[#allocation7 + $0x47] sm:$0xff]
      %v7511 = vld [vmem:[#allocation7 + $0x4f] sm:$0xff]
      %v7512 = vld [vmem:[#allocation7 + $0x57] sm:$0xff]
      %v7513 = vld [vmem:[#allocation7 + $0x5f] sm:$0xff]
      %v7514 = vld [vmem:[#allocation7 + $0x67] sm:$0xff]
      %v7515 = vld [vmem:[#allocation7 + $0x6f] sm:$0xff]
      %v7516 = vld [vmem:[#allocation7 + $0x77] sm:$0xff]
      %v7517 = vld [vmem:[%s1 + $0x1b0] sm:$0xff]
      %v7518 = vld [vmem:[%s1 + $0x1b8] sm:$0xff]
      %v7519 = vld [vmem:[%s1 + $0x1c0] sm:$0xff]
      %v7520 = vld [vmem:[%s1 + $0x1c8] sm:$0xff]
      %v7521 = vld [vmem:[%s1 + $0x1d0] sm:$0xff]
      %v7522 = vld [vmem:[%s1 + $0x1d8] sm:$0xff]
      %v7523 = vld [vmem:[%s1 + $0x1e0] sm:$0xff]
      %v7524 = vld [vmem:[%s1 + $0x1e8] sm:$0xff]
      %v7525 = vld [vmem:[%s1 + $0x1f0] sm:$0xff]
      %v7526 = vld [vmem:[%s1 + $0x1f8] sm:$0xff]
      %v7527 = vld [vmem:[%s1 + $0x200] sm:$0xff]
      %v7528 = vld [vmem:[%s1 + $0x208] sm:$0xff]
      %vm7529 = vcmask 785408
      %v7531 = vsel %vm7529, %v7502, 0
      %v7534 = vsel %vm7529, %v7503, 0
      %v7537 = vsel %vm7529, %v7504, 0
      %v7540 = vsel %vm7529, %v7505, 0
      %v7543 = vsel %vm7529, %v7506, 0
      %v7546 = vsel %vm7529, %v7507, 0
      %v7549 = vsel %vm7529, %v7508, 0
      %v7552 = vsel %vm7529, %v7509, 0
      %v7555 = vsel %vm7529, %v7510, 0
      %v7558 = vsel %vm7529, %v7511, 0
      %v7561 = vsel %vm7529, %v7512, 0
      %v7564 = vsel %vm7529, %v7513, 0
      %v7567 = vsel %vm7529, %v7514, 0
      %v7570 = vsel %vm7529, %v7515, 0
      %v7573 = vsel %vm7529, %v7516, 0
      %7575 = vmatprep.subr.mxu0 0.0
      %7576 = vmatpush1.msra.mxu0 %v7517
      %7577 = vmatprep.subr.mxu0 0.0
      %7578 = vmatpush1.msra.mxu0 %v7518
      %7579 = vmatprep.subr.mxu0 0.0
      %7580 = vmatpush1.msra.mxu0 %v7519
      %7581 = vmatprep.subr.mxu0 0.0
      %7582 = vmatpush1.msra.mxu0 %v7520
      %7583 = vmatprep.subr.mxu0 0.0
      %7584 = vmatpush1.msra.mxu0 %v7521
      %7585 = vmatprep.subr.mxu0 0.0
      %7586 = vmatpush1.msra.mxu0 %v7522
      %7587 = vmatprep.subr.mxu0 0.0
      %7588 = vmatpush1.msra.mxu0 %v7523
      %7589 = vmatprep.subr.mxu0 0.0
      %7590 = vmatpush1.msra.mxu0 %v7524
      %7591 = vmatprep.subr.mxu0 0.0
      %7592 = vmatpush1.msra.mxu0 %v7525
      %7593 = vmatprep.subr.mxu0 0.0
      %7594 = vmatpush1.msra.mxu0 %v7526
      %7595 = vmatprep.subr.mxu0 0.0
      %7596 = vmatpush1.msra.mxu0 %v7527
      %7597 = vmatprep.subr.mxu0 0.0
      %7598 = vmatpush1.msra.mxu0 %v7528
      %7599 = vmatprep.subr.mxu0 0.0
      %7600 = vmatpush1.msra.mxu0 0.0
      %7601 = vmatprep.subr.mxu0 0.0
      %7602 = vmatpush1.msra.mxu0 0.0
      %7603 = vmatprep.subr.mxu0 0.0
      %7604 = vmatpush1.msra.mxu0 0.0
      %7605 = vmatprep.subr.mxu0 0.0
      %7606 = vmatpush1.msra.mxu0 0.0
      %7607 = vmatprep.subr.mxu0 0.0
      %7608 = vmatpush1.msra.mxu0 0.0
      %7609 = vmatprep.subr.mxu0 0.0
      %7610 = vmatpush1.msra.mxu0 0.0
      %7611 = vmatprep.subr.mxu0 0.0
      %7612 = vmatpush1.msra.mxu0 0.0
      %7613 = vmatprep.subr.mxu0 0.0
      %7614 = vmatpush1.msra.mxu0 0.0
      %7615 = vmatprep.subr.mxu0 0.0
      %7616 = vmatpush1.msra.mxu0 0.0
      %7617 = vmatprep.subr.mxu0 0.0
      %7618 = vmatpush1.msra.mxu0 0.0
      %7619 = vmatprep.subr.mxu0 0.0
      %7620 = vmatpush1.msra.mxu0 0.0
      %7621 = vmatprep.subr.mxu0 0.0
      %7622 = vmatpush1.msra.mxu0 0.0
      %7623 = vmatprep.subr.mxu0 0.0
      %7624 = vmatpush1.msra.mxu0 0.0
      %7625 = vmatprep.subr.mxu0 0.0
      %7626 = vmatpush1.msra.mxu0 0.0
      %7627 = vmatprep.subr.mxu0 0.0
      %7628 = vmatpush1.msra.mxu0 0.0
      %7629 = vmatprep.subr.mxu0 0.0
      %7630 = vmatpush1.msra.mxu0 0.0
      %7631 = vmatprep.subr.mxu0 0.0
      %7632 = vmatpush1.msra.mxu0 0.0
      %7633 = vmatprep.subr.mxu0 0.0
      %7634 = vmatpush1.msra.mxu0 0.0
      %7635 = vmatprep.subr.mxu0 0.0
      %7636 = vmatpush1.msra.mxu0 0.0
      %7637 = vmatprep.subr.mxu0 0.0
      %7638 = vmatpush1.msra.mxu0 0.0
      %7639 = vmatprep.mubr.f32.mxu0 0.0
      %7640 = vmatmul.mubr.f32.gmra.mrb[0].mxu0 %v7531
      %v7641 = vpop.f32.mrb[0].mxu0
      %v7642 = vadd.f32 0.0, %v7641
      %v7643 = vpop.f32.mrb[0].mxu0
      %7644 = vmatprep.mubr.f32.mxu0 0.0
      %7645 = vmatmul.mubr.f32.gmra.mrb[0].mxu0 %v7534
      %v7646 = vpop.f32.mrb[0].mxu0
      %v7647 = vadd.f32 0.0, %v7646
      %v7648 = vpop.f32.mrb[0].mxu0
      %7649 = vmatprep.mubr.f32.mxu0 0.0
      %7650 = vmatmul.mubr.f32.gmra.mrb[0].mxu0 %v7537
      %v7651 = vpop.f32.mrb[0].mxu0
      %v7652 = vadd.f32 0.0, %v7651
      %v7653 = vpop.f32.mrb[0].mxu0
      %7654 = vmatprep.mubr.f32.mxu0 0.0
      %7655 = vmatmul.mubr.f32.gmra.mrb[0].mxu0 %v7540
      %v7656 = vpop.f32.mrb[0].mxu0
      %v7657 = vadd.f32 0.0, %v7656
      %v7658 = vpop.f32.mrb[0].mxu0
      %7659 = vmatprep.mubr.f32.mxu0 0.0
      %7660 = vmatmul.mubr.f32.gmra.mrb[0].mxu0 %v7543
      %v7661 = vpop.f32.mrb[0].mxu0
      %v7662 = vadd.f32 0.0, %v7661
      %v7663 = vpop.f32.mrb[0].mxu0
      %7664 = vmatprep.mubr.f32.mxu0 0.0
      %7665 = vmatmul.mubr.f32.gmra.mrb[0].mxu0 %v7546
      %v7666 = vpop.f32.mrb[0].mxu0
      %v7667 = vadd.f32 0.0, %v7666
      %v7668 = vpop.f32.mrb[0].mxu0
      %7669 = vmatprep.mubr.f32.mxu0 0.0
      %7670 = vmatmul.mubr.f32.gmra.mrb[0].mxu0 %v7549
      %v7671 = vpop.f32.mrb[0].mxu0
      %v7672 = vadd.f32 0.0, %v7671
      %v7673 = vpop.f32.mrb[0].mxu0
      %7674 = vmatprep.mubr.f32.mxu0 0.0
      %7675 = vmatmul.mubr.f32.gmra.mrb[0].mxu0 %v7552
      %v7676 = vpop.f32.mrb[0].mxu0
      %v7677 = vadd.f32 0.0, %v7676
      %v7678 = vpop.f32.mrb[0].mxu0
      %7679 = vmatprep.mubr.f32.mxu0 0.0
      %7680 = vmatmul.mubr.f32.gmra.mrb[0].mxu0 %v7555
      %v7681 = vpop.f32.mrb[0].mxu0
      %v7682 = vadd.f32 0.0, %v7681
      %v7683 = vpop.f32.mrb[0].mxu0
      %7684 = vmatprep.mubr.f32.mxu0 0.0
      %7685 = vmatmul.mubr.f32.gmra.mrb[0].mxu0 %v7558
      %v7686 = vpop.f32.mrb[0].mxu0
      %v7687 = vadd.f32 0.0, %v7686
      %v7688 = vpop.f32.mrb[0].mxu0
      %7689 = vmatprep.mubr.f32.mxu0 0.0
      %7690 = vmatmul.mubr.f32.gmra.mrb[0].mxu0 %v7561
      %v7691 = vpop.f32.mrb[0].mxu0
      %v7692 = vadd.f32 0.0, %v7691
      %v7693 = vpop.f32.mrb[0].mxu0
      %7694 = vmatprep.mubr.f32.mxu0 0.0
      %7695 = vmatmul.mubr.f32.gmra.mrb[0].mxu0 %v7564
      %v7696 = vpop.f32.mrb[0].mxu0
      %v7697 = vadd.f32 0.0, %v7696
      %v7698 = vpop.f32.mrb[0].mxu0
      %7699 = vmatprep.mubr.f32.mxu0 0.0
      %7700 = vmatmul.mubr.f32.gmra.mrb[0].mxu0 %v7567
      %v7701 = vpop.f32.mrb[0].mxu0
      %v7702 = vadd.f32 0.0, %v7701
      %v7703 = vpop.f32.mrb[0].mxu0
      %7704 = vmatprep.mubr.f32.mxu0 0.0
      %7705 = vmatmul.mubr.f32.gmra.mrb[0].mxu0 %v7570
      %v7706 = vpop.f32.mrb[0].mxu0
      %v7707 = vadd.f32 0.0, %v7706
      %v7708 = vpop.f32.mrb[0].mxu0
      %7709 = vmatprep.mubr.f32.mxu0 0.0
      %7710 = vmatmul.mubr.f32.gmra.mrb[0].mxu0 %v7573
      %v7711 = vpop.f32.mrb[0].mxu0
      %v7712 = vadd.f32 0.0, %v7711
      %v7713 = vpop.f32.mrb[0].mxu0
      %7714 = vdwg.mxu0
      %v7716 = vsel %vm7529, %v7475, 0
      %v7719 = vsel %vm7529, %v7476, 0
      %v7722 = vsel %vm7529, %v7477, 0
      %v7725 = vsel %vm7529, %v7478, 0
      %v7728 = vsel %vm7529, %v7479, 0
      %v7731 = vsel %vm7529, %v7480, 0
      %v7734 = vsel %vm7529, %v7481, 0
      %v7737 = vsel %vm7529, %v7482, 0
      %v7740 = vsel %vm7529, %v7483, 0
      %v7743 = vsel %vm7529, %v7484, 0
      %v7746 = vsel %vm7529, %v7485, 0
      %v7749 = vsel %vm7529, %v7486, 0
      %v7752 = vsel %vm7529, %v7487, 0
      %v7755 = vsel %vm7529, %v7488, 0
      %v7758 = vsel %vm7529, %v7489, 0
      %7760 = vmatprep.subr.mxu0 0.0
      %7761 = vmatpush1.msra.mxu0 %v7490
      %7762 = vmatprep.subr.mxu0 0.0
      %7763 = vmatpush1.msra.mxu0 %v7491
      %7764 = vmatprep.subr.mxu0 0.0
      %7765 = vmatpush1.msra.mxu0 %v7492
      %7766 = vmatprep.subr.mxu0 0.0
      %7767 = vmatpush1.msra.mxu0 %v7493
      %7768 = vmatprep.subr.mxu0 0.0
      %7769 = vmatpush1.msra.mxu0 %v7494
      %7770 = vmatprep.subr.mxu0 0.0
      %7771 = vmatpush1.msra.mxu0 %v7495
      %7772 = vmatprep.subr.mxu0 0.0
      %7773 = vmatpush1.msra.mxu0 %v7496
      %7774 = vmatprep.subr.mxu0 0.0
      %7775 = vmatpush1.msra.mxu0 %v7497
      %7776 = vmatprep.subr.mxu0 0.0
      %7777 = vmatpush1.msra.mxu0 %v7498
      %7778 = vmatprep.subr.mxu0 0.0
      %7779 = vmatpush1.msra.mxu0 %v7499
      %7780 = vmatprep.subr.mxu0 0.0
      %7781 = vmatpush1.msra.mxu0 %v7500
      %7782 = vmatprep.subr.mxu0 0.0
      %7783 = vmatpush1.msra.mxu0 %v7501
      %7784 = vmatprep.subr.mxu0 0.0
      %7785 = vmatpush1.msra.mxu0 0.0
      %7786 = vmatprep.subr.mxu0 0.0
      %7787 = vmatpush1.msra.mxu0 0.0
      %7788 = vmatprep.subr.mxu0 0.0
      %7789 = vmatpush1.msra.mxu0 0.0
      %7790 = vmatprep.subr.mxu0 0.0
      %7791 = vmatpush1.msra.mxu0 0.0
      %7792 = vmatprep.subr.mxu0 0.0
      %7793 = vmatpush1.msra.mxu0 0.0
      %7794 = vmatprep.subr.mxu0 0.0
      %7795 = vmatpush1.msra.mxu0 0.0
      %7796 = vmatprep.subr.mxu0 0.0
      %7797 = vmatpush1.msra.mxu0 0.0
      %7798 = vmatprep.subr.mxu0 0.0
      %7799 = vmatpush1.msra.mxu0 0.0
      %7800 = vmatprep.subr.mxu0 0.0
      %7801 = vmatpush1.msra.mxu0 0.0
      %7802 = vmatprep.subr.mxu0 0.0
      %7803 = vmatpush1.msra.mxu0 0.0
      %7804 = vmatprep.subr.mxu0 0.0
      %7805 = vmatpush1.msra.mxu0 0.0
      %7806 = vmatprep.subr.mxu0 0.0
      %7807 = vmatpush1.msra.mxu0 0.0
      %7808 = vmatprep.subr.mxu0 0.0
      %7809 = vmatpush1.msra.mxu0 0.0
      %7810 = vmatprep.subr.mxu0 0.0
      %7811 = vmatpush1.msra.mxu0 0.0
      %7812 = vmatprep.subr.mxu0 0.0
      %7813 = vmatpush1.msra.mxu0 0.0
      %7814 = vmatprep.subr.mxu0 0.0
      %7815 = vmatpush1.msra.mxu0 0.0
      %7816 = vmatprep.subr.mxu0 0.0
      %7817 = vmatpush1.msra.mxu0 0.0
      %7818 = vmatprep.subr.mxu0 0.0
      %7819 = vmatpush1.msra.mxu0 0.0
      %7820 = vmatprep.subr.mxu0 0.0
      %7821 = vmatpush1.msra.mxu0 0.0
      %7822 = vmatprep.subr.mxu0 0.0
      %7823 = vmatpush1.msra.mxu0 0.0
      %7824 = vmatprep.mubr.f32.mxu0 0.0
      %7825 = vmatmul.mubr.f32.gmra.mrb[0].mxu0 %v7716
      %v7826 = vpop.f32.mrb[0].mxu0
      %v7827 = vadd.f32 %v7642, %v7826
      %v7828 = vpop.f32.mrb[0].mxu0
      %7829 = vmatprep.mubr.f32.mxu0 0.0
      %7830 = vmatmul.mubr.f32.gmra.mrb[0].mxu0 %v7719
      %v7831 = vpop.f32.mrb[0].mxu0
      %v7832 = vadd.f32 %v7647, %v7831
      %v7833 = vpop.f32.mrb[0].mxu0
      %7834 = vmatprep.mubr.f32.mxu0 0.0
      %7835 = vmatmul.mubr.f32.gmra.mrb[0].mxu0 %v7722
      %v7836 = vpop.f32.mrb[0].mxu0
      %v7837 = vadd.f32 %v7652, %v7836
      %v7838 = vpop.f32.mrb[0].mxu0
      %7839 = vmatprep.mubr.f32.mxu0 0.0
      %7840 = vmatmul.mubr.f32.gmra.mrb[0].mxu0 %v7725
      %v7841 = vpop.f32.mrb[0].mxu0
      %v7842 = vadd.f32 %v7657, %v7841
      %v7843 = vpop.f32.mrb[0].mxu0
      %7844 = vmatprep.mubr.f32.mxu0 0.0
      %7845 = vmatmul.mubr.f32.gmra.mrb[0].mxu0 %v7728
      %v7846 = vpop.f32.mrb[0].mxu0
      %v7847 = vadd.f32 %v7662, %v7846
      %v7848 = vpop.f32.mrb[0].mxu0
      %7849 = vmatprep.mubr.f32.mxu0 0.0
      %7850 = vmatmul.mubr.f32.gmra.mrb[0].mxu0 %v7731
      %v7851 = vpop.f32.mrb[0].mxu0
      %v7852 = vadd.f32 %v7667, %v7851
      %v7853 = vpop.f32.mrb[0].mxu0
      %7854 = vmatprep.mubr.f32.mxu0 0.0
      %7855 = vmatmul.mubr.f32.gmra.mrb[0].mxu0 %v7734
      %v7856 = vpop.f32.mrb[0].mxu0
      %v7857 = vadd.f32 %v7672, %v7856
      %v7858 = vpop.f32.mrb[0].mxu0
      %7859 = vmatprep.mubr.f32.mxu0 0.0
      %7860 = vmatmul.mubr.f32.gmra.mrb[0].mxu0 %v7737
      %v7861 = vpop.f32.mrb[0].mxu0
      %v7862 = vadd.f32 %v7677, %v7861
      %v7863 = vpop.f32.mrb[0].mxu0
      %7864 = vmatprep.mubr.f32.mxu0 0.0
      %7865 = vmatmul.mubr.f32.gmra.mrb[0].mxu0 %v7740
      %v7866 = vpop.f32.mrb[0].mxu0
      %v7867 = vadd.f32 %v7682, %v7866
      %v7868 = vpop.f32.mrb[0].mxu0
      %7869 = vmatprep.mubr.f32.mxu0 0.0
      %7870 = vmatmul.mubr.f32.gmra.mrb[0].mxu0 %v7743
      %v7871 = vpop.f32.mrb[0].mxu0
      %v7872 = vadd.f32 %v7687, %v7871
      %v7873 = vpop.f32.mrb[0].mxu0
      %7874 = vmatprep.mubr.f32.mxu0 0.0
      %7875 = vmatmul.mubr.f32.gmra.mrb[0].mxu0 %v7746
      %v7876 = vpop.f32.mrb[0].mxu0
      %v7877 = vadd.f32 %v7692, %v7876
      %v7878 = vpop.f32.mrb[0].mxu0
      %7879 = vmatprep.mubr.f32.mxu0 0.0
      %7880 = vmatmul.mubr.f32.gmra.mrb[0].mxu0 %v7749
      %v7881 = vpop.f32.mrb[0].mxu0
      %v7882 = vadd.f32 %v7697, %v7881
      %v7883 = vpop.f32.mrb[0].mxu0
      %7884 = vmatprep.mubr.f32.mxu0 0.0
      %7885 = vmatmul.mubr.f32.gmra.mrb[0].mxu0 %v7752
      %v7886 = vpop.f32.mrb[0].mxu0
      %v7887 = vadd.f32 %v7702, %v7886
      %v7888 = vpop.f32.mrb[0].mxu0
      %7889 = vmatprep.mubr.f32.mxu0 0.0
      %7890 = vmatmul.mubr.f32.gmra.mrb[0].mxu0 %v7755
      %v7891 = vpop.f32.mrb[0].mxu0
      %v7892 = vadd.f32 %v7707, %v7891
      %v7893 = vpop.f32.mrb[0].mxu0
      %7894 = vmatprep.mubr.f32.mxu0 0.0
      %7895 = vmatmul.mubr.f32.gmra.mrb[0].mxu0 %v7758
      %v7896 = vpop.f32.mrb[0].mxu0
      %v7897 = vadd.f32 %v7712, %v7896
      %v7898 = vpop.f32.mrb[0].mxu0
      %7899 = vdwg.mxu0
      %v7900 = vld [vmem:[#allocation7 + $0xd] sm:$0xff]
      %v7901 = vld [vmem:[#allocation7 + $0x15] sm:$0xff]
      %v7902 = vld [vmem:[#allocation7 + $0x1d] sm:$0xff]
      %v7903 = vld [vmem:[#allocation7 + $0x25] sm:$0xff]
      %v7904 = vld [vmem:[#allocation7 + $0x2d] sm:$0xff]
      %v7905 = vld [vmem:[#allocation7 + $0x35] sm:$0xff]
      %v7906 = vld [vmem:[#allocation7 + $0x3d] sm:$0xff]
      %v7907 = vld [vmem:[#allocation7 + $0x45] sm:$0xff]
      %v7908 = vld [vmem:[#allocation7 + $0x4d] sm:$0xff]
      %v7909 = vld [vmem:[#allocation7 + $0x55] sm:$0xff]
      %v7910 = vld [vmem:[#allocation7 + $0x5d] sm:$0xff]
      %v7911 = vld [vmem:[#allocation7 + $0x65] sm:$0xff]
      %v7912 = vld [vmem:[#allocation7 + $0x6d] sm:$0xff]
      %v7913 = vld [vmem:[#allocation7 + $0x75] sm:$0xff]
      %v7914 = vld [vmem:[#allocation7 + $0x7d] sm:$0xff]
      %v7915 = vld [vmem:[%s1 + $0x210] sm:$0xff]
      %v7916 = vld [vmem:[%s1 + $0x218] sm:$0xff]
      %v7917 = vld [vmem:[%s1 + $0x220] sm:$0xff]
      %v7918 = vld [vmem:[%s1 + $0x228] sm:$0xff]
      %v7919 = vld [vmem:[%s1 + $0x230] sm:$0xff]
      %v7920 = vld [vmem:[%s1 + $0x238] sm:$0xff]
      %v7921 = vld [vmem:[%s1 + $0x240] sm:$0xff]
      %v7922 = vld [vmem:[%s1 + $0x248] sm:$0xff]
      %v7923 = vld [vmem:[%s1 + $0x250] sm:$0xff]
      %v7924 = vld [vmem:[%s1 + $0x258] sm:$0xff]
      %v7925 = vld [vmem:[%s1 + $0x260] sm:$0xff]
      %v7926 = vld [vmem:[%s1 + $0x268] sm:$0xff]
      %v7928 = vsel %vm7529, %v7900, 0
      %v7931 = vsel %vm7529, %v7901, 0
      %v7934 = vsel %vm7529, %v7902, 0
      %v7937 = vsel %vm7529, %v7903, 0
      %v7940 = vsel %vm7529, %v7904, 0
      %v7943 = vsel %vm7529, %v7905, 0
      %v7946 = vsel %vm7529, %v7906, 0
      %v7949 = vsel %vm7529, %v7907, 0
      %v7952 = vsel %vm7529, %v7908, 0
      %v7955 = vsel %vm7529, %v7909, 0
      %v7958 = vsel %vm7529, %v7910, 0
      %v7961 = vsel %vm7529, %v7911, 0
      %v7964 = vsel %vm7529, %v7912, 0
      %v7967 = vsel %vm7529, %v7913, 0
      %v7970 = vsel %vm7529, %v7914, 0
      %7972 = vmatprep.subr.mxu0 0.0
      %7973 = vmatpush1.msra.mxu0 %v7915
      %7974 = vmatprep.subr.mxu0 0.0
      %7975 = vmatpush1.msra.mxu0 %v7916
      %7976 = vmatprep.subr.mxu0 0.0
      %7977 = vmatpush1.msra.mxu0 %v7917
      %7978 = vmatprep.subr.mxu0 0.0
      %7979 = vmatpush1.msra.mxu0 %v7918
      %7980 = vmatprep.subr.mxu0 0.0
      %7981 = vmatpush1.msra.mxu0 %v7919
      %7982 = vmatprep.subr.mxu0 0.0
      %7983 = vmatpush1.msra.mxu0 %v7920
      %7984 = vmatprep.subr.mxu0 0.0
      %7985 = vmatpush1.msra.mxu0 %v7921
      %7986 = vmatprep.subr.mxu0 0.0
      %7987 = vmatpush1.msra.mxu0 %v7922
      %7988 = vmatprep.subr.mxu0 0.0
      %7989 = vmatpush1.msra.mxu0 %v7923
      %7990 = vmatprep.subr.mxu0 0.0
      %7991 = vmatpush1.msra.mxu0 %v7924
      %7992 = vmatprep.subr.mxu0 0.0
      %7993 = vmatpush1.msra.mxu0 %v7925
      %7994 = vmatprep.subr.mxu0 0.0
      %7995 = vmatpush1.msra.mxu0 %v7926
      %7996 = vmatprep.subr.mxu0 0.0
      %7997 = vmatpush1.msra.mxu0 0.0
      %7998 = vmatprep.subr.mxu0 0.0
      %7999 = vmatpush1.msra.mxu0 0.0
      %8000 = vmatprep.subr.mxu0 0.0
      %8001 = vmatpush1.msra.mxu0 0.0
      %8002 = vmatprep.subr.mxu0 0.0
      %8003 = vmatpush1.msra.mxu0 0.0
      %8004 = vmatprep.subr.mxu0 0.0
      %8005 = vmatpush1.msra.mxu0 0.0
      %8006 = vmatprep.subr.mxu0 0.0
      %8007 = vmatpush1.msra.mxu0 0.0
      %8008 = vmatprep.subr.mxu0 0.0
      %8009 = vmatpush1.msra.mxu0 0.0
      %8010 = vmatprep.subr.mxu0 0.0
      %8011 = vmatpush1.msra.mxu0 0.0
      %8012 = vmatprep.subr.mxu0 0.0
      %8013 = vmatpush1.msra.mxu0 0.0
      %8014 = vmatprep.subr.mxu0 0.0
      %8015 = vmatpush1.msra.mxu0 0.0
      %8016 = vmatprep.subr.mxu0 0.0
      %8017 = vmatpush1.msra.mxu0 0.0
      %8018 = vmatprep.subr.mxu0 0.0
      %8019 = vmatpush1.msra.mxu0 0.0
      %8020 = vmatprep.subr.mxu0 0.0
      %8021 = vmatpush1.msra.mxu0 0.0
      %8022 = vmatprep.subr.mxu0 0.0
      %8023 = vmatpush1.msra.mxu0 0.0
      %8024 = vmatprep.subr.mxu0 0.0
      %8025 = vmatpush1.msra.mxu0 0.0
      %8026 = vmatprep.subr.mxu0 0.0
      %8027 = vmatpush1.msra.mxu0 0.0
      %8028 = vmatprep.subr.mxu0 0.0
      %8029 = vmatpush1.msra.mxu0 0.0
      %8030 = vmatprep.subr.mxu0 0.0
      %8031 = vmatpush1.msra.mxu0 0.0
      %8032 = vmatprep.subr.mxu0 0.0
      %8033 = vmatpush1.msra.mxu0 0.0
      %8034 = vmatprep.subr.mxu0 0.0
      %8035 = vmatpush1.msra.mxu0 0.0
      %8036 = vmatprep.mubr.f32.mxu0 0.0
      %8037 = vmatmul.mubr.f32.gmra.mrb[0].mxu0 %v7928
      %v8038 = vpop.f32.mrb[0].mxu0
      %v8039 = vadd.f32 0.0, %v8038
      %v8040 = vpop.f32.mrb[0].mxu0
      %8041 = vmatprep.mubr.f32.mxu0 0.0
      %8042 = vmatmul.mubr.f32.gmra.mrb[0].mxu0 %v7931
      %v8043 = vpop.f32.mrb[0].mxu0
      %v8044 = vadd.f32 0.0, %v8043
      %v8045 = vpop.f32.mrb[0].mxu0
      %8046 = vmatprep.mubr.f32.mxu0 0.0
      %8047 = vmatmul.mubr.f32.gmra.mrb[0].mxu0 %v7934
      %v8048 = vpop.f32.mrb[0].mxu0
      %v8049 = vadd.f32 0.0, %v8048
      %v8050 = vpop.f32.mrb[0].mxu0
      %8051 = vmatprep.mubr.f32.mxu0 0.0
      %8052 = vmatmul.mubr.f32.gmra.mrb[0].mxu0 %v7937
      %v8053 = vpop.f32.mrb[0].mxu0
      %v8054 = vadd.f32 0.0, %v8053
      %v8055 = vpop.f32.mrb[0].mxu0
      %8056 = vmatprep.mubr.f32.mxu0 0.0
      %8057 = vmatmul.mubr.f32.gmra.mrb[0].mxu0 %v7940
      %v8058 = vpop.f32.mrb[0].mxu0
      %v8059 = vadd.f32 0.0, %v8058
      %v8060 = vpop.f32.mrb[0].mxu0
      %8061 = vmatprep.mubr.f32.mxu0 0.0
      %8062 = vmatmul.mubr.f32.gmra.mrb[0].mxu0 %v7943
      %v8063 = vpop.f32.mrb[0].mxu0
      %v8064 = vadd.f32 0.0, %v8063
      %v8065 = vpop.f32.mrb[0].mxu0
      %8066 = vmatprep.mubr.f32.mxu0 0.0
      %8067 = vmatmul.mubr.f32.gmra.mrb[0].mxu0 %v7946
      %v8068 = vpop.f32.mrb[0].mxu0
      %v8069 = vadd.f32 0.0, %v8068
      %v8070 = vpop.f32.mrb[0].mxu0
      %8071 = vmatprep.mubr.f32.mxu0 0.0
      %8072 = vmatmul.mubr.f32.gmra.mrb[0].mxu0 %v7949
      %v8073 = vpop.f32.mrb[0].mxu0
      %v8074 = vadd.f32 0.0, %v8073
      %v8075 = vpop.f32.mrb[0].mxu0
      %8076 = vmatprep.mubr.f32.mxu0 0.0
      %8077 = vmatmul.mubr.f32.gmra.mrb[0].mxu0 %v7952
      %v8078 = vpop.f32.mrb[0].mxu0
      %v8079 = vadd.f32 0.0, %v8078
      %v8080 = vpop.f32.mrb[0].mxu0
      %8081 = vmatprep.mubr.f32.mxu0 0.0
      %8082 = vmatmul.mubr.f32.gmra.mrb[0].mxu0 %v7955
      %v8083 = vpop.f32.mrb[0].mxu0
      %v8084 = vadd.f32 0.0, %v8083
      %v8085 = vpop.f32.mrb[0].mxu0
      %8086 = vmatprep.mubr.f32.mxu0 0.0
      %8087 = vmatmul.mubr.f32.gmra.mrb[0].mxu0 %v7958
      %v8088 = vpop.f32.mrb[0].mxu0
      %v8089 = vadd.f32 0.0, %v8088
      %v8090 = vpop.f32.mrb[0].mxu0
      %8091 = vmatprep.mubr.f32.mxu0 0.0
      %8092 = vmatmul.mubr.f32.gmra.mrb[0].mxu0 %v7961
      %v8093 = vpop.f32.mrb[0].mxu0
      %v8094 = vadd.f32 0.0, %v8093
      %v8095 = vpop.f32.mrb[0].mxu0
      %8096 = vmatprep.mubr.f32.mxu0 0.0
      %8097 = vmatmul.mubr.f32.gmra.mrb[0].mxu0 %v7964
      %v8098 = vpop.f32.mrb[0].mxu0
      %v8099 = vadd.f32 0.0, %v8098
      %v8100 = vpop.f32.mrb[0].mxu0
      %8101 = vmatprep.mubr.f32.mxu0 0.0
      %8102 = vmatmul.mubr.f32.gmra.mrb[0].mxu0 %v7967
      %v8103 = vpop.f32.mrb[0].mxu0
      %v8104 = vadd.f32 0.0, %v8103
      %v8105 = vpop.f32.mrb[0].mxu0
      %8106 = vmatprep.mubr.f32.mxu0 0.0
      %8107 = vmatmul.mubr.f32.gmra.mrb[0].mxu0 %v7970
      %v8108 = vpop.f32.mrb[0].mxu0
      %v8109 = vadd.f32 0.0, %v8108
      %v8110 = vpop.f32.mrb[0].mxu0
      %8111 = vdwg.mxu0
      %v8112 = vadd.f32 %v7827, %v8039
      %v8113 = vadd.f32 %v7832, %v8044
      %v8114 = vadd.f32 %v7837, %v8049
      %v8115 = vadd.f32 %v7842, %v8054
      %v8116 = vadd.f32 %v7847, %v8059
      %v8117 = vadd.f32 %v7852, %v8064
      %v8118 = vadd.f32 %v7857, %v8069
      %v8119 = vadd.f32 %v7862, %v8074
      %v8120 = vadd.f32 %v7867, %v8079
      %v8121 = vadd.f32 %v7872, %v8084
      %v8122 = vadd.f32 %v7877, %v8089
      %v8123 = vadd.f32 %v7882, %v8094
      %v8124 = vadd.f32 %v7887, %v8099
      %v8125 = vadd.f32 %v7892, %v8104
      %v8126 = vadd.f32 %v7897, %v8109
      %v8127 = vld [vmem:[%s1 + $0x270] sm:$0x1]
      %v8128 = vlaneseq
      %v8129 = vshrl.u32 %v8128, 7
      %v8130 = vsub.s32 0, %v8129
      %v8131 = vrot.slane %v8127, %v8130
      %v8132 = vadd.f32 %v8112, %v8131
      %v8133 = vadd.f32 %v8113, %v8131
      %v8134 = vadd.f32 %v8114, %v8131
      %v8135 = vadd.f32 %v8115, %v8131
      %v8136 = vadd.f32 %v8116, %v8131
      %v8137 = vadd.f32 %v8117, %v8131
      %v8138 = vadd.f32 %v8118, %v8131
      %v8139 = vadd.f32 %v8119, %v8131
      %v8140 = vadd.f32 %v8120, %v8131
      %v8141 = vadd.f32 %v8121, %v8131
      %v8142 = vadd.f32 %v8122, %v8131
      %v8143 = vadd.f32 %v8123, %v8131
      %v8144 = vadd.f32 %v8124, %v8131
      %v8145 = vadd.f32 %v8125, %v8131
      %v8146 = vadd.f32 %v8126, %v8131
      %vm8147 = vcmp.gt.f32.partialorder %v5386, 0.0
      %vm8148 = vcmp.gt.f32.partialorder %v5387, 0.0
      %vm8149 = vcmp.gt.f32.partialorder %v5388, 0.0
      %vm8150 = vcmp.gt.f32.partialorder %v5389, 0.0
      %vm8151 = vcmp.gt.f32.partialorder %v5390, 0.0
      %vm8152 = vcmp.gt.f32.partialorder %v5391, 0.0
      %vm8153 = vcmp.gt.f32.partialorder %v5392, 0.0
      %vm8154 = vcmp.gt.f32.partialorder %v5393, 0.0
      %vm8155 = vcmp.gt.f32.partialorder %v5394, 0.0
      %vm8156 = vcmp.gt.f32.partialorder %v5395, 0.0
      %vm8157 = vcmp.gt.f32.partialorder %v5396, 0.0
      %vm8158 = vcmp.gt.f32.partialorder %v5397, 0.0
      %vm8159 = vcmp.gt.f32.partialorder %v5398, 0.0
      %vm8160 = vcmp.gt.f32.partialorder %v5399, 0.0
      %vm8161 = vcmp.gt.f32.partialorder %v5400, 0.0
      %v8162 = vsel %vm8147, %v8132, 0.0
      %v8163 = vsel %vm8148, %v8133, 0.0
      %v8164 = vsel %vm8149, %v8134, 0.0
      %v8165 = vsel %vm8150, %v8135, 0.0
      %v8166 = vsel %vm8151, %v8136, 0.0
      %v8167 = vsel %vm8152, %v8137, 0.0
      %v8168 = vsel %vm8153, %v8138, 0.0
      %v8169 = vsel %vm8154, %v8139, 0.0
      %v8170 = vsel %vm8155, %v8140, 0.0
      %v8171 = vsel %vm8156, %v8141, 0.0
      %v8172 = vsel %vm8157, %v8142, 0.0
      %v8173 = vsel %vm8158, %v8143, 0.0
      %v8174 = vsel %vm8159, %v8144, 0.0
      %v8175 = vsel %vm8160, %v8145, 0.0
      %v8176 = vsel %vm8161, %v8146, 0.0
      %v8177 = vmax.f32 %v8162, 0.0
      %v8178 = vmax.f32 %v8163, 0.0
      %v8179 = vmax.f32 %v8164, 0.0
      %v8180 = vmax.f32 %v8165, 0.0
      %v8181 = vmax.f32 %v8166, 0.0
      %v8182 = vmax.f32 %v8167, 0.0
      %v8183 = vmax.f32 %v8168, 0.0
      %v8184 = vmax.f32 %v8169, 0.0
      %v8185 = vmax.f32 %v8170, 0.0
      %v8186 = vmax.f32 %v8171, 0.0
      %v8187 = vmax.f32 %v8172, 0.0
      %v8188 = vmax.f32 %v8173, 0.0
      %v8189 = vmax.f32 %v8174, 0.0
      %v8190 = vmax.f32 %v8175, 0.0
      %v8191 = vmax.f32 %v8176, 0.0
      %8192 = vst.msk [vmem:[#allocation6 + $0x8] sm:$0xff] %vm6979, %v8177
      %8193 = vst.msk [vmem:[#allocation6 + $0x10] sm:$0xff] %vm6979, %v8178
      %8194 = vst.msk [vmem:[#allocation6 + $0x18] sm:$0xff] %vm6979, %v8179
      %8195 = vst.msk [vmem:[#allocation6 + $0x20] sm:$0xff] %vm6979, %v8180
      %8196 = vst.msk [vmem:[#allocation6 + $0x28] sm:$0xff] %vm6979, %v8181
      %8197 = vst.msk [vmem:[#allocation6 + $0x30] sm:$0xff] %vm6979, %v8182
      %8198 = vst.msk [vmem:[#allocation6 + $0x38] sm:$0xff] %vm6979, %v8183
      %8199 = vst.msk [vmem:[#allocation6 + $0x40] sm:$0xff] %vm6979, %v8184
      %8200 = vst.msk [vmem:[#allocation6 + $0x48] sm:$0xff] %vm6979, %v8185
      %8201 = vst.msk [vmem:[#allocation6 + $0x50] sm:$0xff] %vm6979, %v8186
      %8202 = vst.msk [vmem:[#allocation6 + $0x58] sm:$0xff] %vm6979, %v8187
      %8203 = vst.msk [vmem:[#allocation6 + $0x60] sm:$0xff] %vm6979, %v8188
      %8204 = vst.msk [vmem:[#allocation6 + $0x68] sm:$0xff] %vm6979, %v8189
      %8205 = vst.msk [vmem:[#allocation6 + $0x70] sm:$0xff] %vm6979, %v8190
      %8206 = vst.msk [vmem:[#allocation6 + $0x78] sm:$0xff] %vm6979, %v8191
      %v8207 = vld [vmem:[%s1 + $0x620] sm:$0xff]
      %v8208 = vld [vmem:[%s1 + $0x628] sm:$0xff]
      %v8209 = vld [vmem:[%s1 + $0x630] sm:$0xff]
      %v8210 = vld [vmem:[%s1 + $0x638] sm:$0xff]
      %v8211 = vld [vmem:[%s1 + $0x640] sm:$0xff]
      %v8212 = vld [vmem:[%s1 + $0x648] sm:$0xff]
      %v8213 = vld [vmem:[%s1 + $0x650] sm:$0xff]
      %v8214 = vld [vmem:[%s1 + $0x658] sm:$0xff]
      %v8215 = vld [vmem:[%s1 + $0x660] sm:$0xff]
      %v8216 = vld [vmem:[%s1 + $0x668] sm:$0xff]
      %v8217 = vld [vmem:[%s1 + $0x670] sm:$0xff]
      %v8218 = vld [vmem:[%s1 + $0x678] sm:$0xff]
      %v8219 = vld [vmem:[%s1 + $0x680] sm:$0xff]
      %v8220 = vld [vmem:[%s1 + $0x688] sm:$0xff]
      %v8221 = vld [vmem:[%s1 + $0x690] sm:$0xff]
      %v8222 = vld [vmem:[%s1 + $0x698] sm:$0xff]
      %v8223 = vld [vmem:[%s1 + $0x6a0] sm:$0xff]
      %v8224 = vld [vmem:[%s1 + $0x6a8] sm:$0xff]
      %v8225 = vld [vmem:[%s1 + $0x6b0] sm:$0xff]
      %v8226 = vld [vmem:[#allocation6 + $0x8] sm:$0xff]
      %v8227 = vld [vmem:[#allocation6 + $0x10] sm:$0xff]
      %v8228 = vld [vmem:[#allocation6 + $0x18] sm:$0xff]
      %v8229 = vld [vmem:[#allocation6 + $0x20] sm:$0xff]
      %v8230 = vld [vmem:[#allocation6 + $0x28] sm:$0xff]
      %v8231 = vld [vmem:[#allocation6 + $0x30] sm:$0xff]
      %v8232 = vld [vmem:[#allocation6 + $0x38] sm:$0xff]
      %v8233 = vld [vmem:[#allocation6 + $0x40] sm:$0xff]
      %v8234 = vld [vmem:[#allocation6 + $0x48] sm:$0xff]
      %v8235 = vld [vmem:[#allocation6 + $0x50] sm:$0xff]
      %v8236 = vld [vmem:[#allocation6 + $0x58] sm:$0xff]
      %v8237 = vld [vmem:[#allocation6 + $0x60] sm:$0xff]
      %v8238 = vld [vmem:[#allocation6 + $0x68] sm:$0xff]
      %v8239 = vld [vmem:[#allocation6 + $0x70] sm:$0xff]
      %v8240 = vld [vmem:[#allocation6 + $0x78] sm:$0xff]
      %v8241 = vld [vmem:[#allocation6 + $0x80] sm:$0xff]
      %v8242 = vld [vmem:[#allocation6 + $0x88] sm:$0xff]
      %v8243 = vld [vmem:[#allocation6 + $0x90] sm:$0xff]
      %v8244 = vld [vmem:[#allocation6 + $0x98] sm:$0xff]
      %vm8245 = vcmp.gt.f32.partialorder %v8207, 0.0
      %vm8246 = vcmp.gt.f32.partialorder %v8208, 0.0
      %vm8247 = vcmp.gt.f32.partialorder %v8209, 0.0
      %vm8248 = vcmp.gt.f32.partialorder %v8210, 0.0
      %vm8249 = vcmp.gt.f32.partialorder %v8211, 0.0
      %vm8250 = vcmp.gt.f32.partialorder %v8212, 0.0
      %vm8251 = vcmp.gt.f32.partialorder %v8213, 0.0
      %vm8252 = vcmp.gt.f32.partialorder %v8214, 0.0
      %vm8253 = vcmp.gt.f32.partialorder %v8215, 0.0
      %vm8254 = vcmp.gt.f32.partialorder %v8216, 0.0
      %vm8255 = vcmp.gt.f32.partialorder %v8217, 0.0
      %vm8256 = vcmp.gt.f32.partialorder %v8218, 0.0
      %vm8257 = vcmp.gt.f32.partialorder %v8219, 0.0
      %vm8258 = vcmp.gt.f32.partialorder %v8220, 0.0
      %vm8259 = vcmp.gt.f32.partialorder %v8221, 0.0
      %vm8260 = vcmp.gt.f32.partialorder %v8222, 0.0
      %vm8261 = vcmp.gt.f32.partialorder %v8223, 0.0
      %vm8262 = vcmp.gt.f32.partialorder %v8224, 0.0
      %vm8263 = vcmp.gt.f32.partialorder %v8225, 0.0
      %v8264 = vsel %vm8245, %v8226, 0.0
      %v8265 = vsel %vm8246, %v8227, 0.0
      %v8266 = vsel %vm8247, %v8228, 0.0
      %v8267 = vsel %vm8248, %v8229, 0.0
      %v8268 = vsel %vm8249, %v8230, 0.0
      %v8269 = vsel %vm8250, %v8231, 0.0
      %v8270 = vsel %vm8251, %v8232, 0.0
      %v8271 = vsel %vm8252, %v8233, 0.0
      %v8272 = vsel %vm8253, %v8234, 0.0
      %v8273 = vsel %vm8254, %v8235, 0.0
      %v8274 = vsel %vm8255, %v8236, 0.0
      %v8275 = vsel %vm8256, %v8237, 0.0
      %v8276 = vsel %vm8257, %v8238, 0.0
      %v8277 = vsel %vm8258, %v8239, 0.0
      %v8278 = vsel %vm8259, %v8240, 0.0
      %v8279 = vsel %vm8260, %v8241, 0.0
      %v8280 = vsel %vm8261, %v8242, 0.0
      %v8281 = vsel %vm8262, %v8243, 0.0
      %v8282 = vsel %vm8263, %v8244, 0.0
      %8283 = vst.msk [vmem:[#allocation7 + $0x8] sm:$0xff] %vm6979, %v8264
      %8284 = vst.msk [vmem:[#allocation7 + $0x10] sm:$0xff] %vm6979, %v8265
      %8285 = vst.msk [vmem:[#allocation7 + $0x18] sm:$0xff] %vm6979, %v8266
      %8286 = vst.msk [vmem:[#allocation7 + $0x20] sm:$0xff] %vm6979, %v8267
      %8287 = vst.msk [vmem:[#allocation7 + $0x28] sm:$0xff] %vm6979, %v8268
      %8288 = vst.msk [vmem:[#allocation7 + $0x30] sm:$0xff] %vm6979, %v8269
      %8289 = vst.msk [vmem:[#allocation7 + $0x38] sm:$0xff] %vm6979, %v8270
      %8290 = vst.msk [vmem:[#allocation7 + $0x40] sm:$0xff] %vm6979, %v8271
      %8291 = vst.msk [vmem:[#allocation7 + $0x48] sm:$0xff] %vm6979, %v8272
      %8292 = vst.msk [vmem:[#allocation7 + $0x50] sm:$0xff] %vm6979, %v8273
      %8293 = vst.msk [vmem:[#allocation7 + $0x58] sm:$0xff] %vm6979, %v8274
      %8294 = vst.msk [vmem:[#allocation7 + $0x60] sm:$0xff] %vm6979, %v8275
      %8295 = vst.msk [vmem:[#allocation7 + $0x68] sm:$0xff] %vm6979, %v8276
      %8296 = vst.msk [vmem:[#allocation7 + $0x70] sm:$0xff] %vm6979, %v8277
      %8297 = vst.msk [vmem:[#allocation7 + $0x78] sm:$0xff] %vm6979, %v8278
      %8298 = vst.msk [vmem:[#allocation7 + $0x80] sm:$0xff] %vm6979, %v8279
      %8299 = vst.msk [vmem:[#allocation7 + $0x88] sm:$0xff] %vm6979, %v8280
      %8300 = vst.msk [vmem:[#allocation7 + $0x90] sm:$0xff] %vm6979, %v8281
      %8301 = vst.msk [vmem:[#allocation7 + $0x98] sm:$0xff] %vm6979, %v8282
      %v8302 = vld [vmem:[%s1 + $0x621] sm:$0xff]
      %v8303 = vld [vmem:[%s1 + $0x629] sm:$0xff]
      %v8304 = vld [vmem:[%s1 + $0x631] sm:$0xff]
      %v8305 = vld [vmem:[%s1 + $0x639] sm:$0xff]
      %v8306 = vld [vmem:[%s1 + $0x641] sm:$0xff]
      %v8307 = vld [vmem:[%s1 + $0x649] sm:$0xff]
      %v8308 = vld [vmem:[%s1 + $0x651] sm:$0xff]
      %v8309 = vld [vmem:[%s1 + $0x659] sm:$0xff]
      %v8310 = vld [vmem:[%s1 + $0x661] sm:$0xff]
      %v8311 = vld [vmem:[%s1 + $0x669] sm:$0xff]
      %v8312 = vld [vmem:[%s1 + $0x671] sm:$0xff]
      %v8313 = vld [vmem:[%s1 + $0x679] sm:$0xff]
      %v8314 = vld [vmem:[%s1 + $0x681] sm:$0xff]
      %v8315 = vld [vmem:[%s1 + $0x689] sm:$0xff]
      %v8316 = vld [vmem:[%s1 + $0x691] sm:$0xff]
      %v8317 = vld [vmem:[%s1 + $0x699] sm:$0xff]
      %v8318 = vld [vmem:[%s1 + $0x6a1] sm:$0xff]
      %v8319 = vld [vmem:[%s1 + $0x6a9] sm:$0xff]
      %v8320 = vld [vmem:[%s1 + $0x6b1] sm:$0xff]
      %v8321 = vld [vmem:[#allocation6 + $0x9] sm:$0xff]
      %v8322 = vld [vmem:[#allocation6 + $0x11] sm:$0xff]
      %v8323 = vld [vmem:[#allocation6 + $0x19] sm:$0xff]
      %v8324 = vld [vmem:[#allocation6 + $0x21] sm:$0xff]
      %v8325 = vld [vmem:[#allocation6 + $0x29] sm:$0xff]
      %v8326 = vld [vmem:[#allocation6 + $0x31] sm:$0xff]
      %v8327 = vld [vmem:[#allocation6 + $0x39] sm:$0xff]
      %v8328 = vld [vmem:[#allocation6 + $0x41] sm:$0xff]
      %v8329 = vld [vmem:[#allocation6 + $0x49] sm:$0xff]
      %v8330 = vld [vmem:[#allocation6 + $0x51] sm:$0xff]
      %v8331 = vld [vmem:[#allocation6 + $0x59] sm:$0xff]
      %v8332 = vld [vmem:[#allocation6 + $0x61] sm:$0xff]
      %v8333 = vld [vmem:[#allocation6 + $0x69] sm:$0xff]
      %v8334 = vld [vmem:[#allocation6 + $0x71] sm:$0xff]
      %v8335 = vld [vmem:[#allocation6 + $0x79] sm:$0xff]
      %v8336 = vld [vmem:[#allocation6 + $0x81] sm:$0xff]
      %v8337 = vld [vmem:[#allocation6 + $0x89] sm:$0xff]
      %v8338 = vld [vmem:[#allocation6 + $0x91] sm:$0xff]
      %v8339 = vld [vmem:[#allocation6 + $0x99] sm:$0xff]
      %vm8340 = vcmp.gt.f32.partialorder %v8302, 0.0
      %vm8341 = vcmp.gt.f32.partialorder %v8303, 0.0
      %vm8342 = vcmp.gt.f32.partialorder %v8304, 0.0
      %vm8343 = vcmp.gt.f32.partialorder %v8305, 0.0
      %vm8344 = vcmp.gt.f32.partialorder %v8306, 0.0
      %vm8345 = vcmp.gt.f32.partialorder %v8307, 0.0
      %vm8346 = vcmp.gt.f32.partialorder %v8308, 0.0
      %vm8347 = vcmp.gt.f32.partialorder %v8309, 0.0
      %vm8348 = vcmp.gt.f32.partialorder %v8310, 0.0
      %vm8349 = vcmp.gt.f32.partialorder %v8311, 0.0
      %vm8350 = vcmp.gt.f32.partialorder %v8312, 0.0
      %vm8351 = vcmp.gt.f32.partialorder %v8313, 0.0
      %vm8352 = vcmp.gt.f32.partialorder %v8314, 0.0
      %vm8353 = vcmp.gt.f32.partialorder %v8315, 0.0
      %vm8354 = vcmp.gt.f32.partialorder %v8316, 0.0
      %vm8355 = vcmp.gt.f32.partialorder %v8317, 0.0
      %vm8356 = vcmp.gt.f32.partialorder %v8318, 0.0
      %vm8357 = vcmp.gt.f32.partialorder %v8319, 0.0
      %vm8358 = vcmp.gt.f32.partialorder %v8320, 0.0
      %v8359 = vsel %vm8340, %v8321, 0.0
      %v8360 = vsel %vm8341, %v8322, 0.0
      %v8361 = vsel %vm8342, %v8323, 0.0
      %v8362 = vsel %vm8343, %v8324, 0.0
      %v8363 = vsel %vm8344, %v8325, 0.0
      %v8364 = vsel %vm8345, %v8326, 0.0
      %v8365 = vsel %vm8346, %v8327, 0.0
      %v8366 = vsel %vm8347, %v8328, 0.0
      %v8367 = vsel %vm8348, %v8329, 0.0
      %v8368 = vsel %vm8349, %v8330, 0.0
      %v8369 = vsel %vm8350, %v8331, 0.0
      %v8370 = vsel %vm8351, %v8332, 0.0
      %v8371 = vsel %vm8352, %v8333, 0.0
      %v8372 = vsel %vm8353, %v8334, 0.0
      %v8373 = vsel %vm8354, %v8335, 0.0
      %v8374 = vsel %vm8355, %v8336, 0.0
      %v8375 = vsel %vm8356, %v8337, 0.0
      %v8376 = vsel %vm8357, %v8338, 0.0
      %v8377 = vsel %vm8358, %v8339, 0.0
      %8397 = vrot.lane.b32.xlu0 %v8359, 32
      %v8398 = vpop.permute.xlu0 %8397
      %8399 = vrot.lane.b32.xlu0 %v8360, 32
      %v8400 = vpop.permute.xlu0 %8399
      %8401 = vrot.lane.b32.xlu0 %v8361, 32
      %v8402 = vpop.permute.xlu0 %8401
      %8403 = vrot.lane.b32.xlu0 %v8362, 32
      %v8404 = vpop.permute.xlu0 %8403
      %8405 = vrot.lane.b32.xlu0 %v8363, 32
      %v8406 = vpop.permute.xlu0 %8405
      %8407 = vrot.lane.b32.xlu0 %v8364, 32
      %v8408 = vpop.permute.xlu0 %8407
      %8409 = vrot.lane.b32.xlu0 %v8365, 32
      %v8410 = vpop.permute.xlu0 %8409
      %8411 = vrot.lane.b32.xlu0 %v8366, 32
      %v8412 = vpop.permute.xlu0 %8411
      %8413 = vrot.lane.b32.xlu0 %v8367, 32
      %v8414 = vpop.permute.xlu0 %8413
      %8415 = vrot.lane.b32.xlu0 %v8368, 32
      %v8416 = vpop.permute.xlu0 %8415
      %8417 = vrot.lane.b32.xlu0 %v8369, 32
      %v8418 = vpop.permute.xlu0 %8417
      %8419 = vrot.lane.b32.xlu0 %v8370, 32
      %v8420 = vpop.permute.xlu0 %8419
      %8421 = vrot.lane.b32.xlu0 %v8371, 32
      %v8422 = vpop.permute.xlu0 %8421
      %8423 = vrot.lane.b32.xlu0 %v8372, 32
      %v8424 = vpop.permute.xlu0 %8423
      %8425 = vrot.lane.b32.xlu0 %v8373, 32
      %v8426 = vpop.permute.xlu0 %8425
      %8427 = vrot.lane.b32.xlu0 %v8374, 32
      %v8428 = vpop.permute.xlu0 %8427
      %8429 = vrot.lane.b32.xlu0 %v8375, 32
      %v8430 = vpop.permute.xlu0 %8429
      %8431 = vrot.lane.b32.xlu0 %v8376, 32
      %v8432 = vpop.permute.xlu0 %8431
      %8433 = vrot.lane.b32.xlu0 %v8377, 32
      %v8434 = vpop.permute.xlu0 %8433
      %8454 = vst.msk [vmem:[#allocation7 + $0x8] sm:$0xff] %vm7283, %v8398
      %8455 = vst.msk [vmem:[#allocation7 + $0x10] sm:$0xff] %vm7283, %v8400
      %8456 = vst.msk [vmem:[#allocation7 + $0x18] sm:$0xff] %vm7283, %v8402
      %8457 = vst.msk [vmem:[#allocation7 + $0x20] sm:$0xff] %vm7283, %v8404
      %8458 = vst.msk [vmem:[#allocation7 + $0x28] sm:$0xff] %vm7283, %v8406
      %8459 = vst.msk [vmem:[#allocation7 + $0x30] sm:$0xff] %vm7283, %v8408
      %8460 = vst.msk [vmem:[#allocation7 + $0x38] sm:$0xff] %vm7283, %v8410
      %8461 = vst.msk [vmem:[#allocation7 + $0x40] sm:$0xff] %vm7283, %v8412
      %8462 = vst.msk [vmem:[#allocation7 + $0x48] sm:$0xff] %vm7283, %v8414
      %8463 = vst.msk [vmem:[#allocation7 + $0x50] sm:$0xff] %vm7283, %v8416
      %8464 = vst.msk [vmem:[#allocation7 + $0x58] sm:$0xff] %vm7283, %v8418
      %8465 = vst.msk [vmem:[#allocation7 + $0x60] sm:$0xff] %vm7283, %v8420
      %8466 = vst.msk [vmem:[#allocation7 + $0x68] sm:$0xff] %vm7283, %v8422
      %8467 = vst.msk [vmem:[#allocation7 + $0x70] sm:$0xff] %vm7283, %v8424
      %8468 = vst.msk [vmem:[#allocation7 + $0x78] sm:$0xff] %vm7283, %v8426
      %8469 = vst.msk [vmem:[#allocation7 + $0x80] sm:$0xff] %vm7283, %v8428
      %8470 = vst.msk [vmem:[#allocation7 + $0x88] sm:$0xff] %vm7283, %v8430
      %8471 = vst.msk [vmem:[#allocation7 + $0x90] sm:$0xff] %vm7283, %v8432
      %8472 = vst.msk [vmem:[#allocation7 + $0x98] sm:$0xff] %vm7283, %v8434
      %v8473 = vld [vmem:[%s1 + $0x622] sm:$0xff]
      %v8474 = vld [vmem:[%s1 + $0x62a] sm:$0xff]
      %v8475 = vld [vmem:[%s1 + $0x632] sm:$0xff]
      %v8476 = vld [vmem:[%s1 + $0x63a] sm:$0xff]
      %v8477 = vld [vmem:[%s1 + $0x642] sm:$0xff]
      %v8478 = vld [vmem:[%s1 + $0x64a] sm:$0xff]
      %v8479 = vld [vmem:[%s1 + $0x652] sm:$0xff]
      %v8480 = vld [vmem:[%s1 + $0x65a] sm:$0xff]
      %v8481 = vld [vmem:[%s1 + $0x662] sm:$0xff]
      %v8482 = vld [vmem:[%s1 + $0x66a] sm:$0xff]
      %v8483 = vld [vmem:[%s1 + $0x672] sm:$0xff]
      %v8484 = vld [vmem:[%s1 + $0x67a] sm:$0xff]
      %v8485 = vld [vmem:[%s1 + $0x682] sm:$0xff]
      %v8486 = vld [vmem:[%s1 + $0x68a] sm:$0xff]
      %v8487 = vld [vmem:[%s1 + $0x692] sm:$0xff]
      %v8488 = vld [vmem:[%s1 + $0x69a] sm:$0xff]
      %v8489 = vld [vmem:[%s1 + $0x6a2] sm:$0xff]
      %v8490 = vld [vmem:[%s1 + $0x6aa] sm:$0xff]
      %v8491 = vld [vmem:[%s1 + $0x6b2] sm:$0xff]
      %v8492 = vld [vmem:[#allocation6 + $0xa] sm:$0xff]
      %v8493 = vld [vmem:[#allocation6 + $0x12] sm:$0xff]
      %v8494 = vld [vmem:[#allocation6 + $0x1a] sm:$0xff]
      %v8495 = vld [vmem:[#allocation6 + $0x22] sm:$0xff]
      %v8496 = vld [vmem:[#allocation6 + $0x2a] sm:$0xff]
      %v8497 = vld [vmem:[#allocation6 + $0x32] sm:$0xff]
      %v8498 = vld [vmem:[#allocation6 + $0x3a] sm:$0xff]
      %v8499 = vld [vmem:[#allocation6 + $0x42] sm:$0xff]
      %v8500 = vld [vmem:[#allocation6 + $0x4a] sm:$0xff]
      %v8501 = vld [vmem:[#allocation6 + $0x52] sm:$0xff]
      %v8502 = vld [vmem:[#allocation6 + $0x5a] sm:$0xff]
      %v8503 = vld [vmem:[#allocation6 + $0x62] sm:$0xff]
      %v8504 = vld [vmem:[#allocation6 + $0x6a] sm:$0xff]
      %v8505 = vld [vmem:[#allocation6 + $0x72] sm:$0xff]
      %v8506 = vld [vmem:[#allocation6 + $0x7a] sm:$0xff]
      %v8507 = vld [vmem:[#allocation6 + $0x82] sm:$0xff]
      %v8508 = vld [vmem:[#allocation6 + $0x8a] sm:$0xff]
      %v8509 = vld [vmem:[#allocation6 + $0x92] sm:$0xff]
      %v8510 = vld [vmem:[#allocation6 + $0x9a] sm:$0xff]
      %vm8511 = vcmp.gt.f32.partialorder %v8473, 0.0
      %vm8512 = vcmp.gt.f32.partialorder %v8474, 0.0
      %vm8513 = vcmp.gt.f32.partialorder %v8475, 0.0
      %vm8514 = vcmp.gt.f32.partialorder %v8476, 0.0
      %vm8515 = vcmp.gt.f32.partialorder %v8477, 0.0
      %vm8516 = vcmp.gt.f32.partialorder %v8478, 0.0
      %vm8517 = vcmp.gt.f32.partialorder %v8479, 0.0
      %vm8518 = vcmp.gt.f32.partialorder %v8480, 0.0
      %vm8519 = vcmp.gt.f32.partialorder %v8481, 0.0
      %vm8520 = vcmp.gt.f32.partialorder %v8482, 0.0
      %vm8521 = vcmp.gt.f32.partialorder %v8483, 0.0
      %vm8522 = vcmp.gt.f32.partialorder %v8484, 0.0
      %vm8523 = vcmp.gt.f32.partialorder %v8485, 0.0
      %vm8524 = vcmp.gt.f32.partialorder %v8486, 0.0
      %vm8525 = vcmp.gt.f32.partialorder %v8487, 0.0
      %vm8526 = vcmp.gt.f32.partialorder %v8488, 0.0
      %vm8527 = vcmp.gt.f32.partialorder %v8489, 0.0
      %vm8528 = vcmp.gt.f32.partialorder %v8490, 0.0
      %vm8529 = vcmp.gt.f32.partialorder %v8491, 0.0
      %v8530 = vsel %vm8511, %v8492, 0.0
      %v8531 = vsel %vm8512, %v8493, 0.0
      %v8532 = vsel %vm8513, %v8494, 0.0
      %v8533 = vsel %vm8514, %v8495, 0.0
      %v8534 = vsel %vm8515, %v8496, 0.0
      %v8535 = vsel %vm8516, %v8497, 0.0
      %v8536 = vsel %vm8517, %v8498, 0.0
      %v8537 = vsel %vm8518, %v8499, 0.0
      %v8538 = vsel %vm8519, %v8500, 0.0
      %v8539 = vsel %vm8520, %v8501, 0.0
      %v8540 = vsel %vm8521, %v8502, 0.0
      %v8541 = vsel %vm8522, %v8503, 0.0
      %v8542 = vsel %vm8523, %v8504, 0.0
      %v8543 = vsel %vm8524, %v8505, 0.0
      %v8544 = vsel %vm8525, %v8506, 0.0
      %v8545 = vsel %vm8526, %v8507, 0.0
      %v8546 = vsel %vm8527, %v8508, 0.0
      %v8547 = vsel %vm8528, %v8509, 0.0
      %v8548 = vsel %vm8529, %v8510, 0.0
      %8568 = vrot.lane.b32.xlu0 %v8530, 64
      %v8569 = vpop.permute.xlu0 %8568
      %8570 = vrot.lane.b32.xlu0 %v8531, 64
      %v8571 = vpop.permute.xlu0 %8570
      %8572 = vrot.lane.b32.xlu0 %v8532, 64
      %v8573 = vpop.permute.xlu0 %8572
      %8574 = vrot.lane.b32.xlu0 %v8533, 64
      %v8575 = vpop.permute.xlu0 %8574
      %8576 = vrot.lane.b32.xlu0 %v8534, 64
      %v8577 = vpop.permute.xlu0 %8576
      %8578 = vrot.lane.b32.xlu0 %v8535, 64
      %v8579 = vpop.permute.xlu0 %8578
      %8580 = vrot.lane.b32.xlu0 %v8536, 64
      %v8581 = vpop.permute.xlu0 %8580
      %8582 = vrot.lane.b32.xlu0 %v8537, 64
      %v8583 = vpop.permute.xlu0 %8582
      %8584 = vrot.lane.b32.xlu0 %v8538, 64
      %v8585 = vpop.permute.xlu0 %8584
      %8586 = vrot.lane.b32.xlu0 %v8539, 64
      %v8587 = vpop.permute.xlu0 %8586
      %8588 = vrot.lane.b32.xlu0 %v8540, 64
      %v8589 = vpop.permute.xlu0 %8588
      %8590 = vrot.lane.b32.xlu0 %v8541, 64
      %v8591 = vpop.permute.xlu0 %8590
      %8592 = vrot.lane.b32.xlu0 %v8542, 64
      %v8593 = vpop.permute.xlu0 %8592
      %8594 = vrot.lane.b32.xlu0 %v8543, 64
      %v8595 = vpop.permute.xlu0 %8594
      %8596 = vrot.lane.b32.xlu0 %v8544, 64
      %v8597 = vpop.permute.xlu0 %8596
      %8598 = vrot.lane.b32.xlu0 %v8545, 64
      %v8599 = vpop.permute.xlu0 %8598
      %8600 = vrot.lane.b32.xlu0 %v8546, 64
      %v8601 = vpop.permute.xlu0 %8600
      %8602 = vrot.lane.b32.xlu0 %v8547, 64
      %v8603 = vpop.permute.xlu0 %8602
      %8604 = vrot.lane.b32.xlu0 %v8548, 64
      %v8605 = vpop.permute.xlu0 %8604
      %8625 = vst.msk [vmem:[#allocation7 + $0x8] sm:$0xff] %vm7455, %v8569
      %8626 = vst.msk [vmem:[#allocation7 + $0x10] sm:$0xff] %vm7455, %v8571
      %8627 = vst.msk [vmem:[#allocation7 + $0x18] sm:$0xff] %vm7455, %v8573
      %8628 = vst.msk [vmem:[#allocation7 + $0x20] sm:$0xff] %vm7455, %v8575
      %8629 = vst.msk [vmem:[#allocation7 + $0x28] sm:$0xff] %vm7455, %v8577
      %8630 = vst.msk [vmem:[#allocation7 + $0x30] sm:$0xff] %vm7455, %v8579
      %8631 = vst.msk [vmem:[#allocation7 + $0x38] sm:$0xff] %vm7455, %v8581
      %8632 = vst.msk [vmem:[#allocation7 + $0x40] sm:$0xff] %vm7455, %v8583
      %8633 = vst.msk [vmem:[#allocation7 + $0x48] sm:$0xff] %vm7455, %v8585
      %8634 = vst.msk [vmem:[#allocation7 + $0x50] sm:$0xff] %vm7455, %v8587
      %8635 = vst.msk [vmem:[#allocation7 + $0x58] sm:$0xff] %vm7455, %v8589
      %8636 = vst.msk [vmem:[#allocation7 + $0x60] sm:$0xff] %vm7455, %v8591
      %8637 = vst.msk [vmem:[#allocation7 + $0x68] sm:$0xff] %vm7455, %v8593
      %8638 = vst.msk [vmem:[#allocation7 + $0x70] sm:$0xff] %vm7455, %v8595
      %8639 = vst.msk [vmem:[#allocation7 + $0x78] sm:$0xff] %vm7455, %v8597
      %8640 = vst.msk [vmem:[#allocation7 + $0x80] sm:$0xff] %vm7455, %v8599
      %8641 = vst.msk [vmem:[#allocation7 + $0x88] sm:$0xff] %vm7455, %v8601
      %8642 = vst.msk [vmem:[#allocation7 + $0x90] sm:$0xff] %vm7455, %v8603
      %8643 = vst.msk [vmem:[#allocation7 + $0x98] sm:$0xff] %vm7455, %v8605
      %v8644 = vld [vmem:[#allocation7 + $0x1] sm:$0xff]
      %v8645 = vld [vmem:[#allocation7 + $0x9] sm:$0xff]
      %v8646 = vld [vmem:[#allocation7 + $0x11] sm:$0xff]
      %v8647 = vld [vmem:[#allocation7 + $0x19] sm:$0xff]
      %v8648 = vld [vmem:[#allocation7 + $0x21] sm:$0xff]
      %v8649 = vld [vmem:[#allocation7 + $0x29] sm:$0xff]
      %v8650 = vld [vmem:[#allocation7 + $0x31] sm:$0xff]
      %v8651 = vld [vmem:[#allocation7 + $0x39] sm:$0xff]
      %v8652 = vld [vmem:[#allocation7 + $0x41] sm:$0xff]
      %v8653 = vld [vmem:[#allocation7 + $0x49] sm:$0xff]
      %v8654 = vld [vmem:[#allocation7 + $0x51] sm:$0xff]
      %v8655 = vld [vmem:[#allocation7 + $0x59] sm:$0xff]
      %v8656 = vld [vmem:[#allocation7 + $0x61] sm:$0xff]
      %v8657 = vld [vmem:[#allocation7 + $0x69] sm:$0xff]
      %v8658 = vld [vmem:[#allocation7 + $0x71] sm:$0xff]
      %v8659 = vld [vmem:[%s1 + $0x278] sm:$0xff]
      %v8660 = vld [vmem:[%s1 + $0x280] sm:$0xff]
      %v8661 = vld [vmem:[%s1 + $0x288] sm:$0xff]
      %v8662 = vld [vmem:[%s1 + $0x290] sm:$0xff]
      %v8663 = vld [vmem:[%s1 + $0x298] sm:$0xff]
      %v8664 = vld [vmem:[%s1 + $0x2a0] sm:$0xff]
      %v8665 = vld [vmem:[%s1 + $0x2a8] sm:$0xff]
      %v8666 = vld [vmem:[%s1 + $0x2b0] sm:$0xff]
      %v8667 = vld [vmem:[%s1 + $0x2b8] sm:$0xff]
      %v8668 = vld [vmem:[%s1 + $0x2c0] sm:$0xff]
      %v8669 = vld [vmem:[%s1 + $0x2c8] sm:$0xff]
      %v8670 = vld [vmem:[%s1 + $0x2d0] sm:$0xff]
      %v8671 = vld [vmem:[#allocation7 + $0x7] sm:$0xff]
      %v8672 = vld [vmem:[#allocation7 + $0xf] sm:$0xff]
      %v8673 = vld [vmem:[#allocation7 + $0x17] sm:$0xff]
      %v8674 = vld [vmem:[#allocation7 + $0x1f] sm:$0xff]
      %v8675 = vld [vmem:[#allocation7 + $0x27] sm:$0xff]
      %v8676 = vld [vmem:[#allocation7 + $0x2f] sm:$0xff]
      %v8677 = vld [vmem:[#allocation7 + $0x37] sm:$0xff]
      %v8678 = vld [vmem:[#allocation7 + $0x3f] sm:$0xff]
      %v8679 = vld [vmem:[#allocation7 + $0x47] sm:$0xff]
      %v8680 = vld [vmem:[#allocation7 + $0x4f] sm:$0xff]
      %v8681 = vld [vmem:[#allocation7 + $0x57] sm:$0xff]
      %v8682 = vld [vmem:[#allocation7 + $0x5f] sm:$0xff]
      %v8683 = vld [vmem:[#allocation7 + $0x67] sm:$0xff]
      %v8684 = vld [vmem:[#allocation7 + $0x6f] sm:$0xff]
      %v8685 = vld [vmem:[#allocation7 + $0x77] sm:$0xff]
      %v8686 = vld [vmem:[%s1 + $0x2d8] sm:$0xff]
      %v8687 = vld [vmem:[%s1 + $0x2e0] sm:$0xff]
      %v8688 = vld [vmem:[%s1 + $0x2e8] sm:$0xff]
      %v8689 = vld [vmem:[%s1 + $0x2f0] sm:$0xff]
      %v8690 = vld [vmem:[%s1 + $0x2f8] sm:$0xff]
      %v8691 = vld [vmem:[%s1 + $0x300] sm:$0xff]
      %v8692 = vld [vmem:[%s1 + $0x308] sm:$0xff]
      %v8693 = vld [vmem:[%s1 + $0x310] sm:$0xff]
      %v8694 = vld [vmem:[%s1 + $0x318] sm:$0xff]
      %v8695 = vld [vmem:[%s1 + $0x320] sm:$0xff]
      %v8696 = vld [vmem:[%s1 + $0x328] sm:$0xff]
      %v8697 = vld [vmem:[%s1 + $0x330] sm:$0xff]
      %v8699 = vsel %vm7529, %v8671, 0
      %v8702 = vsel %vm7529, %v8672, 0
      %v8705 = vsel %vm7529, %v8673, 0
      %v8708 = vsel %vm7529, %v8674, 0
      %v8711 = vsel %vm7529, %v8675, 0
      %v8714 = vsel %vm7529, %v8676, 0
      %v8717 = vsel %vm7529, %v8677, 0
      %v8720 = vsel %vm7529, %v8678, 0
      %v8723 = vsel %vm7529, %v8679, 0
      %v8726 = vsel %vm7529, %v8680, 0
      %v8729 = vsel %vm7529, %v8681, 0
      %v8732 = vsel %vm7529, %v8682, 0
      %v8735 = vsel %vm7529, %v8683, 0
      %v8738 = vsel %vm7529, %v8684, 0
      %v8741 = vsel %vm7529, %v8685, 0
      %8743 = vmatprep.subr.mxu0 0.0
      %8744 = vmatpush1.msra.mxu0 %v8686
      %8745 = vmatprep.subr.mxu0 0.0
      %8746 = vmatpush1.msra.mxu0 %v8687
      %8747 = vmatprep.subr.mxu0 0.0
      %8748 = vmatpush1.msra.mxu0 %v8688
      %8749 = vmatprep.subr.mxu0 0.0
      %8750 = vmatpush1.msra.mxu0 %v8689
      %8751 = vmatprep.subr.mxu0 0.0
      %8752 = vmatpush1.msra.mxu0 %v8690
      %8753 = vmatprep.subr.mxu0 0.0
      %8754 = vmatpush1.msra.mxu0 %v8691
      %8755 = vmatprep.subr.mxu0 0.0
      %8756 = vmatpush1.msra.mxu0 %v8692
      %8757 = vmatprep.subr.mxu0 0.0
      %8758 = vmatpush1.msra.mxu0 %v8693
      %8759 = vmatprep.subr.mxu0 0.0
      %8760 = vmatpush1.msra.mxu0 %v8694
      %8761 = vmatprep.subr.mxu0 0.0
      %8762 = vmatpush1.msra.mxu0 %v8695
      %8763 = vmatprep.subr.mxu0 0.0
      %8764 = vmatpush1.msra.mxu0 %v8696
      %8765 = vmatprep.subr.mxu0 0.0
      %8766 = vmatpush1.msra.mxu0 %v8697
      %8767 = vmatprep.subr.mxu0 0.0
      %8768 = vmatpush1.msra.mxu0 0.0
      %8769 = vmatprep.subr.mxu0 0.0
      %8770 = vmatpush1.msra.mxu0 0.0
      %8771 = vmatprep.subr.mxu0 0.0
      %8772 = vmatpush1.msra.mxu0 0.0
      %8773 = vmatprep.subr.mxu0 0.0
      %8774 = vmatpush1.msra.mxu0 0.0
      %8775 = vmatprep.subr.mxu0 0.0
      %8776 = vmatpush1.msra.mxu0 0.0
      %8777 = vmatprep.subr.mxu0 0.0
      %8778 = vmatpush1.msra.mxu0 0.0
      %8779 = vmatprep.subr.mxu0 0.0
      %8780 = vmatpush1.msra.mxu0 0.0
      %8781 = vmatprep.subr.mxu0 0.0
      %8782 = vmatpush1.msra.mxu0 0.0
      %8783 = vmatprep.subr.mxu0 0.0
      %8784 = vmatpush1.msra.mxu0 0.0
      %8785 = vmatprep.subr.mxu0 0.0
      %8786 = vmatpush1.msra.mxu0 0.0
      %8787 = vmatprep.subr.mxu0 0.0
      %8788 = vmatpush1.msra.mxu0 0.0
      %8789 = vmatprep.subr.mxu0 0.0
      %8790 = vmatpush1.msra.mxu0 0.0
      %8791 = vmatprep.subr.mxu0 0.0
      %8792 = vmatpush1.msra.mxu0 0.0
      %8793 = vmatprep.subr.mxu0 0.0
      %8794 = vmatpush1.msra.mxu0 0.0
      %8795 = vmatprep.subr.mxu0 0.0
      %8796 = vmatpush1.msra.mxu0 0.0
      %8797 = vmatprep.subr.mxu0 0.0
      %8798 = vmatpush1.msra.mxu0 0.0
      %8799 = vmatprep.subr.mxu0 0.0
      %8800 = vmatpush1.msra.mxu0 0.0
      %8801 = vmatprep.subr.mxu0 0.0
      %8802 = vmatpush1.msra.mxu0 0.0
      %8803 = vmatprep.subr.mxu0 0.0
      %8804 = vmatpush1.msra.mxu0 0.0
      %8805 = vmatprep.subr.mxu0 0.0
      %8806 = vmatpush1.msra.mxu0 0.0
      %8807 = vmatprep.mubr.f32.mxu0 0.0
      %8808 = vmatmul.mubr.f32.gmra.mrb[0].mxu0 %v8699
      %v8809 = vpop.f32.mrb[0].mxu0
      %v8810 = vadd.f32 0.0, %v8809
      %v8811 = vpop.f32.mrb[0].mxu0
      %8812 = vmatprep.mubr.f32.mxu0 0.0
      %8813 = vmatmul.mubr.f32.gmra.mrb[0].mxu0 %v8702
      %v8814 = vpop.f32.mrb[0].mxu0
      %v8815 = vadd.f32 0.0, %v8814
      %v8816 = vpop.f32.mrb[0].mxu0
      %8817 = vmatprep.mubr.f32.mxu0 0.0
      %8818 = vmatmul.mubr.f32.gmra.mrb[0].mxu0 %v8705
      %v8819 = vpop.f32.mrb[0].mxu0
      %v8820 = vadd.f32 0.0, %v8819
      %v8821 = vpop.f32.mrb[0].mxu0
      %8822 = vmatprep.mubr.f32.mxu0 0.0
      %8823 = vmatmul.mubr.f32.gmra.mrb[0].mxu0 %v8708
      %v8824 = vpop.f32.mrb[0].mxu0
      %v8825 = vadd.f32 0.0, %v8824
      %v8826 = vpop.f32.mrb[0].mxu0
      %8827 = vmatprep.mubr.f32.mxu0 0.0
      %8828 = vmatmul.mubr.f32.gmra.mrb[0].mxu0 %v8711
      %v8829 = vpop.f32.mrb[0].mxu0
      %v8830 = vadd.f32 0.0, %v8829
      %v8831 = vpop.f32.mrb[0].mxu0
      %8832 = vmatprep.mubr.f32.mxu0 0.0
      %8833 = vmatmul.mubr.f32.gmra.mrb[0].mxu0 %v8714
      %v8834 = vpop.f32.mrb[0].mxu0
      %v8835 = vadd.f32 0.0, %v8834
      %v8836 = vpop.f32.mrb[0].mxu0
      %8837 = vmatprep.mubr.f32.mxu0 0.0
      %8838 = vmatmul.mubr.f32.gmra.mrb[0].mxu0 %v8717
      %v8839 = vpop.f32.mrb[0].mxu0
      %v8840 = vadd.f32 0.0, %v8839
      %v8841 = vpop.f32.mrb[0].mxu0
      %8842 = vmatprep.mubr.f32.mxu0 0.0
      %8843 = vmatmul.mubr.f32.gmra.mrb[0].mxu0 %v8720
      %v8844 = vpop.f32.mrb[0].mxu0
      %v8845 = vadd.f32 0.0, %v8844
      %v8846 = vpop.f32.mrb[0].mxu0
      %8847 = vmatprep.mubr.f32.mxu0 0.0
      %8848 = vmatmul.mubr.f32.gmra.mrb[0].mxu0 %v8723
      %v8849 = vpop.f32.mrb[0].mxu0
      %v8850 = vadd.f32 0.0, %v8849
      %v8851 = vpop.f32.mrb[0].mxu0
      %8852 = vmatprep.mubr.f32.mxu0 0.0
      %8853 = vmatmul.mubr.f32.gmra.mrb[0].mxu0 %v8726
      %v8854 = vpop.f32.mrb[0].mxu0
      %v8855 = vadd.f32 0.0, %v8854
      %v8856 = vpop.f32.mrb[0].mxu0
      %8857 = vmatprep.mubr.f32.mxu0 0.0
      %8858 = vmatmul.mubr.f32.gmra.mrb[0].mxu0 %v8729
      %v8859 = vpop.f32.mrb[0].mxu0
      %v8860 = vadd.f32 0.0, %v8859
      %v8861 = vpop.f32.mrb[0].mxu0
      %8862 = vmatprep.mubr.f32.mxu0 0.0
      %8863 = vmatmul.mubr.f32.gmra.mrb[0].mxu0 %v8732
      %v8864 = vpop.f32.mrb[0].mxu0
      %v8865 = vadd.f32 0.0, %v8864
      %v8866 = vpop.f32.mrb[0].mxu0
      %8867 = vmatprep.mubr.f32.mxu0 0.0
      %8868 = vmatmul.mubr.f32.gmra.mrb[0].mxu0 %v8735
      %v8869 = vpop.f32.mrb[0].mxu0
      %v8870 = vadd.f32 0.0, %v8869
      %v8871 = vpop.f32.mrb[0].mxu0
      %8872 = vmatprep.mubr.f32.mxu0 0.0
      %8873 = vmatmul.mubr.f32.gmra.mrb[0].mxu0 %v8738
      %v8874 = vpop.f32.mrb[0].mxu0
      %v8875 = vadd.f32 0.0, %v8874
      %v8876 = vpop.f32.mrb[0].mxu0
      %8877 = vmatprep.mubr.f32.mxu0 0.0
      %8878 = vmatmul.mubr.f32.gmra.mrb[0].mxu0 %v8741
      %v8879 = vpop.f32.mrb[0].mxu0
      %v8880 = vadd.f32 0.0, %v8879
      %v8881 = vpop.f32.mrb[0].mxu0
      %8882 = vdwg.mxu0
      %v8884 = vsel %vm7529, %v8644, 0
      %v8887 = vsel %vm7529, %v8645, 0
      %v8890 = vsel %vm7529, %v8646, 0
      %v8893 = vsel %vm7529, %v8647, 0
      %v8896 = vsel %vm7529, %v8648, 0
      %v8899 = vsel %vm7529, %v8649, 0
      %v8902 = vsel %vm7529, %v8650, 0
      %v8905 = vsel %vm7529, %v8651, 0
      %v8908 = vsel %vm7529, %v8652, 0
      %v8911 = vsel %vm7529, %v8653, 0
      %v8914 = vsel %vm7529, %v8654, 0
      %v8917 = vsel %vm7529, %v8655, 0
      %v8920 = vsel %vm7529, %v8656, 0
      %v8923 = vsel %vm7529, %v8657, 0
      %v8926 = vsel %vm7529, %v8658, 0
      %8928 = vmatprep.subr.mxu0 0.0
      %8929 = vmatpush1.msra.mxu0 %v8659
      %8930 = vmatprep.subr.mxu0 0.0
      %8931 = vmatpush1.msra.mxu0 %v8660
      %8932 = vmatprep.subr.mxu0 0.0
      %8933 = vmatpush1.msra.mxu0 %v8661
      %8934 = vmatprep.subr.mxu0 0.0
      %8935 = vmatpush1.msra.mxu0 %v8662
      %8936 = vmatprep.subr.mxu0 0.0
      %8937 = vmatpush1.msra.mxu0 %v8663
      %8938 = vmatprep.subr.mxu0 0.0
      %8939 = vmatpush1.msra.mxu0 %v8664
      %8940 = vmatprep.subr.mxu0 0.0
      %8941 = vmatpush1.msra.mxu0 %v8665
      %8942 = vmatprep.subr.mxu0 0.0
      %8943 = vmatpush1.msra.mxu0 %v8666
      %8944 = vmatprep.subr.mxu0 0.0
      %8945 = vmatpush1.msra.mxu0 %v8667
      %8946 = vmatprep.subr.mxu0 0.0
      %8947 = vmatpush1.msra.mxu0 %v8668
      %8948 = vmatprep.subr.mxu0 0.0
      %8949 = vmatpush1.msra.mxu0 %v8669
      %8950 = vmatprep.subr.mxu0 0.0
      %8951 = vmatpush1.msra.mxu0 %v8670
      %8952 = vmatprep.subr.mxu0 0.0
      %8953 = vmatpush1.msra.mxu0 0.0
      %8954 = vmatprep.subr.mxu0 0.0
      %8955 = vmatpush1.msra.mxu0 0.0
      %8956 = vmatprep.subr.mxu0 0.0
      %8957 = vmatpush1.msra.mxu0 0.0
      %8958 = vmatprep.subr.mxu0 0.0
      %8959 = vmatpush1.msra.mxu0 0.0
      %8960 = vmatprep.subr.mxu0 0.0
      %8961 = vmatpush1.msra.mxu0 0.0
      %8962 = vmatprep.subr.mxu0 0.0
      %8963 = vmatpush1.msra.mxu0 0.0
      %8964 = vmatprep.subr.mxu0 0.0
      %8965 = vmatpush1.msra.mxu0 0.0
      %8966 = vmatprep.subr.mxu0 0.0
      %8967 = vmatpush1.msra.mxu0 0.0
      %8968 = vmatprep.subr.mxu0 0.0
      %8969 = vmatpush1.msra.mxu0 0.0
      %8970 = vmatprep.subr.mxu0 0.0
      %8971 = vmatpush1.msra.mxu0 0.0
      %8972 = vmatprep.subr.mxu0 0.0
      %8973 = vmatpush1.msra.mxu0 0.0
      %8974 = vmatprep.subr.mxu0 0.0
      %8975 = vmatpush1.msra.mxu0 0.0
      %8976 = vmatprep.subr.mxu0 0.0
      %8977 = vmatpush1.msra.mxu0 0.0
      %8978 = vmatprep.subr.mxu0 0.0
      %8979 = vmatpush1.msra.mxu0 0.0
      %8980 = vmatprep.subr.mxu0 0.0
      %8981 = vmatpush1.msra.mxu0 0.0
      %8982 = vmatprep.subr.mxu0 0.0
      %8983 = vmatpush1.msra.mxu0 0.0
      %8984 = vmatprep.subr.mxu0 0.0
      %8985 = vmatpush1.msra.mxu0 0.0
      %8986 = vmatprep.subr.mxu0 0.0
      %8987 = vmatpush1.msra.mxu0 0.0
      %8988 = vmatprep.subr.mxu0 0.0
      %8989 = vmatpush1.msra.mxu0 0.0
      %8990 = vmatprep.subr.mxu0 0.0
      %8991 = vmatpush1.msra.mxu0 0.0
      %8992 = vmatprep.mubr.f32.mxu0 0.0
      %8993 = vmatmul.mubr.f32.gmra.mrb[0].mxu0 %v8884
      %v8994 = vpop.f32.mrb[0].mxu0
      %v8995 = vadd.f32 %v8810, %v8994
      %v8996 = vpop.f32.mrb[0].mxu0
      %8997 = vmatprep.mubr.f32.mxu0 0.0
      %8998 = vmatmul.mubr.f32.gmra.mrb[0].mxu0 %v8887
      %v8999 = vpop.f32.mrb[0].mxu0
      %v9000 = vadd.f32 %v8815, %v8999
      %v9001 = vpop.f32.mrb[0].mxu0
      %9002 = vmatprep.mubr.f32.mxu0 0.0
      %9003 = vmatmul.mubr.f32.gmra.mrb[0].mxu0 %v8890
      %v9004 = vpop.f32.mrb[0].mxu0
      %v9005 = vadd.f32 %v8820, %v9004
      %v9006 = vpop.f32.mrb[0].mxu0
      %9007 = vmatprep.mubr.f32.mxu0 0.0
      %9008 = vmatmul.mubr.f32.gmra.mrb[0].mxu0 %v8893
      %v9009 = vpop.f32.mrb[0].mxu0
      %v9010 = vadd.f32 %v8825, %v9009
      %v9011 = vpop.f32.mrb[0].mxu0
      %9012 = vmatprep.mubr.f32.mxu0 0.0
      %9013 = vmatmul.mubr.f32.gmra.mrb[0].mxu0 %v8896
      %v9014 = vpop.f32.mrb[0].mxu0
      %v9015 = vadd.f32 %v8830, %v9014
      %v9016 = vpop.f32.mrb[0].mxu0
      %9017 = vmatprep.mubr.f32.mxu0 0.0
      %9018 = vmatmul.mubr.f32.gmra.mrb[0].mxu0 %v8899
      %v9019 = vpop.f32.mrb[0].mxu0
      %v9020 = vadd.f32 %v8835, %v9019
      %v9021 = vpop.f32.mrb[0].mxu0
      %9022 = vmatprep.mubr.f32.mxu0 0.0
      %9023 = vmatmul.mubr.f32.gmra.mrb[0].mxu0 %v8902
      %v9024 = vpop.f32.mrb[0].mxu0
      %v9025 = vadd.f32 %v8840, %v9024
      %v9026 = vpop.f32.mrb[0].mxu0
      %9027 = vmatprep.mubr.f32.mxu0 0.0
      %9028 = vmatmul.mubr.f32.gmra.mrb[0].mxu0 %v8905
      %v9029 = vpop.f32.mrb[0].mxu0
      %v9030 = vadd.f32 %v8845, %v9029
      %v9031 = vpop.f32.mrb[0].mxu0
      %9032 = vmatprep.mubr.f32.mxu0 0.0
      %9033 = vmatmul.mubr.f32.gmra.mrb[0].mxu0 %v8908
      %v9034 = vpop.f32.mrb[0].mxu0
      %v9035 = vadd.f32 %v8850, %v9034
      %v9036 = vpop.f32.mrb[0].mxu0
      %9037 = vmatprep.mubr.f32.mxu0 0.0
      %9038 = vmatmul.mubr.f32.gmra.mrb[0].mxu0 %v8911
      %v9039 = vpop.f32.mrb[0].mxu0
      %v9040 = vadd.f32 %v8855, %v9039
      %v9041 = vpop.f32.mrb[0].mxu0
      %9042 = vmatprep.mubr.f32.mxu0 0.0
      %9043 = vmatmul.mubr.f32.gmra.mrb[0].mxu0 %v8914
      %v9044 = vpop.f32.mrb[0].mxu0
      %v9045 = vadd.f32 %v8860, %v9044
      %v9046 = vpop.f32.mrb[0].mxu0
      %9047 = vmatprep.mubr.f32.mxu0 0.0
      %9048 = vmatmul.mubr.f32.gmra.mrb[0].mxu0 %v8917
      %v9049 = vpop.f32.mrb[0].mxu0
      %v9050 = vadd.f32 %v8865, %v9049
      %v9051 = vpop.f32.mrb[0].mxu0
      %9052 = vmatprep.mubr.f32.mxu0 0.0
      %9053 = vmatmul.mubr.f32.gmra.mrb[0].mxu0 %v8920
      %v9054 = vpop.f32.mrb[0].mxu0
      %v9055 = vadd.f32 %v8870, %v9054
      %v9056 = vpop.f32.mrb[0].mxu0
      %9057 = vmatprep.mubr.f32.mxu0 0.0
      %9058 = vmatmul.mubr.f32.gmra.mrb[0].mxu0 %v8923
      %v9059 = vpop.f32.mrb[0].mxu0
      %v9060 = vadd.f32 %v8875, %v9059
      %v9061 = vpop.f32.mrb[0].mxu0
      %9062 = vmatprep.mubr.f32.mxu0 0.0
      %9063 = vmatmul.mubr.f32.gmra.mrb[0].mxu0 %v8926
      %v9064 = vpop.f32.mrb[0].mxu0
      %v9065 = vadd.f32 %v8880, %v9064
      %v9066 = vpop.f32.mrb[0].mxu0
      %9067 = vdwg.mxu0
      %v9068 = vld [vmem:[#allocation7 + $0xd] sm:$0xff]
      %v9069 = vld [vmem:[#allocation7 + $0x15] sm:$0xff]
      %v9070 = vld [vmem:[#allocation7 + $0x1d] sm:$0xff]
      %v9071 = vld [vmem:[#allocation7 + $0x25] sm:$0xff]
      %v9072 = vld [vmem:[#allocation7 + $0x2d] sm:$0xff]
      %v9073 = vld [vmem:[#allocation7 + $0x35] sm:$0xff]
      %v9074 = vld [vmem:[#allocation7 + $0x3d] sm:$0xff]
      %v9075 = vld [vmem:[#allocation7 + $0x45] sm:$0xff]
      %v9076 = vld [vmem:[#allocation7 + $0x4d] sm:$0xff]
      %v9077 = vld [vmem:[#allocation7 + $0x55] sm:$0xff]
      %v9078 = vld [vmem:[#allocation7 + $0x5d] sm:$0xff]
      %v9079 = vld [vmem:[#allocation7 + $0x65] sm:$0xff]
      %v9080 = vld [vmem:[#allocation7 + $0x6d] sm:$0xff]
      %v9081 = vld [vmem:[#allocation7 + $0x75] sm:$0xff]
      %v9082 = vld [vmem:[#allocation7 + $0x7d] sm:$0xff]
      %v9083 = vld [vmem:[%s1 + $0x338] sm:$0xff]
      %v9084 = vld [vmem:[%s1 + $0x340] sm:$0xff]
      %v9085 = vld [vmem:[%s1 + $0x348] sm:$0xff]
      %v9086 = vld [vmem:[%s1 + $0x350] sm:$0xff]
      %v9087 = vld [vmem:[%s1 + $0x358] sm:$0xff]
      %v9088 = vld [vmem:[%s1 + $0x360] sm:$0xff]
      %v9089 = vld [vmem:[%s1 + $0x368] sm:$0xff]
      %v9090 = vld [vmem:[%s1 + $0x370] sm:$0xff]
      %v9091 = vld [vmem:[%s1 + $0x378] sm:$0xff]
      %v9092 = vld [vmem:[%s1 + $0x380] sm:$0xff]
      %v9093 = vld [vmem:[%s1 + $0x388] sm:$0xff]
      %v9094 = vld [vmem:[%s1 + $0x390] sm:$0xff]
      %v9096 = vsel %vm7529, %v9068, 0
      %v9099 = vsel %vm7529, %v9069, 0
      %v9102 = vsel %vm7529, %v9070, 0
      %v9105 = vsel %vm7529, %v9071, 0
      %v9108 = vsel %vm7529, %v9072, 0
      %v9111 = vsel %vm7529, %v9073, 0
      %v9114 = vsel %vm7529, %v9074, 0
      %v9117 = vsel %vm7529, %v9075, 0
      %v9120 = vsel %vm7529, %v9076, 0
      %v9123 = vsel %vm7529, %v9077, 0
      %v9126 = vsel %vm7529, %v9078, 0
      %v9129 = vsel %vm7529, %v9079, 0
      %v9132 = vsel %vm7529, %v9080, 0
      %v9135 = vsel %vm7529, %v9081, 0
      %v9138 = vsel %vm7529, %v9082, 0
      %9140 = vmatprep.subr.mxu0 0.0
      %9141 = vmatpush1.msra.mxu0 %v9083
      %9142 = vmatprep.subr.mxu0 0.0
      %9143 = vmatpush1.msra.mxu0 %v9084
      %9144 = vmatprep.subr.mxu0 0.0
      %9145 = vmatpush1.msra.mxu0 %v9085
      %9146 = vmatprep.subr.mxu0 0.0
      %9147 = vmatpush1.msra.mxu0 %v9086
      %9148 = vmatprep.subr.mxu0 0.0
      %9149 = vmatpush1.msra.mxu0 %v9087
      %9150 = vmatprep.subr.mxu0 0.0
      %9151 = vmatpush1.msra.mxu0 %v9088
      %9152 = vmatprep.subr.mxu0 0.0
      %9153 = vmatpush1.msra.mxu0 %v9089
      %9154 = vmatprep.subr.mxu0 0.0
      %9155 = vmatpush1.msra.mxu0 %v9090
      %9156 = vmatprep.subr.mxu0 0.0
      %9157 = vmatpush1.msra.mxu0 %v9091
      %9158 = vmatprep.subr.mxu0 0.0
      %9159 = vmatpush1.msra.mxu0 %v9092
      %9160 = vmatprep.subr.mxu0 0.0
      %9161 = vmatpush1.msra.mxu0 %v9093
      %9162 = vmatprep.subr.mxu0 0.0
      %9163 = vmatpush1.msra.mxu0 %v9094
      %9164 = vmatprep.subr.mxu0 0.0
      %9165 = vmatpush1.msra.mxu0 0.0
      %9166 = vmatprep.subr.mxu0 0.0
      %9167 = vmatpush1.msra.mxu0 0.0
      %9168 = vmatprep.subr.mxu0 0.0
      %9169 = vmatpush1.msra.mxu0 0.0
      %9170 = vmatprep.subr.mxu0 0.0
      %9171 = vmatpush1.msra.mxu0 0.0
      %9172 = vmatprep.subr.mxu0 0.0
      %9173 = vmatpush1.msra.mxu0 0.0
      %9174 = vmatprep.subr.mxu0 0.0
      %9175 = vmatpush1.msra.mxu0 0.0
      %9176 = vmatprep.subr.mxu0 0.0
      %9177 = vmatpush1.msra.mxu0 0.0
      %9178 = vmatprep.subr.mxu0 0.0
      %9179 = vmatpush1.msra.mxu0 0.0
      %9180 = vmatprep.subr.mxu0 0.0
      %9181 = vmatpush1.msra.mxu0 0.0
      %9182 = vmatprep.subr.mxu0 0.0
      %9183 = vmatpush1.msra.mxu0 0.0
      %9184 = vmatprep.subr.mxu0 0.0
      %9185 = vmatpush1.msra.mxu0 0.0
      %9186 = vmatprep.subr.mxu0 0.0
      %9187 = vmatpush1.msra.mxu0 0.0
      %9188 = vmatprep.subr.mxu0 0.0
      %9189 = vmatpush1.msra.mxu0 0.0
      %9190 = vmatprep.subr.mxu0 0.0
      %9191 = vmatpush1.msra.mxu0 0.0
      %9192 = vmatprep.subr.mxu0 0.0
      %9193 = vmatpush1.msra.mxu0 0.0
      %9194 = vmatprep.subr.mxu0 0.0
      %9195 = vmatpush1.msra.mxu0 0.0
      %9196 = vmatprep.subr.mxu0 0.0
      %9197 = vmatpush1.msra.mxu0 0.0
      %9198 = vmatprep.subr.mxu0 0.0
      %9199 = vmatpush1.msra.mxu0 0.0
      %9200 = vmatprep.subr.mxu0 0.0
      %9201 = vmatpush1.msra.mxu0 0.0
      %9202 = vmatprep.subr.mxu0 0.0
      %9203 = vmatpush1.msra.mxu0 0.0
      %9204 = vmatprep.mubr.f32.mxu0 0.0
      %9205 = vmatmul.mubr.f32.gmra.mrb[0].mxu0 %v9096
      %v9206 = vpop.f32.mrb[0].mxu0
      %v9207 = vadd.f32 0.0, %v9206
      %v9208 = vpop.f32.mrb[0].mxu0
      %9209 = vmatprep.mubr.f32.mxu0 0.0
      %9210 = vmatmul.mubr.f32.gmra.mrb[0].mxu0 %v9099
      %v9211 = vpop.f32.mrb[0].mxu0
      %v9212 = vadd.f32 0.0, %v9211
      %v9213 = vpop.f32.mrb[0].mxu0
      %9214 = vmatprep.mubr.f32.mxu0 0.0
      %9215 = vmatmul.mubr.f32.gmra.mrb[0].mxu0 %v9102
      %v9216 = vpop.f32.mrb[0].mxu0
      %v9217 = vadd.f32 0.0, %v9216
      %v9218 = vpop.f32.mrb[0].mxu0
      %9219 = vmatprep.mubr.f32.mxu0 0.0
      %9220 = vmatmul.mubr.f32.gmra.mrb[0].mxu0 %v9105
      %v9221 = vpop.f32.mrb[0].mxu0
      %v9222 = vadd.f32 0.0, %v9221
      %v9223 = vpop.f32.mrb[0].mxu0
      %9224 = vmatprep.mubr.f32.mxu0 0.0
      %9225 = vmatmul.mubr.f32.gmra.mrb[0].mxu0 %v9108
      %v9226 = vpop.f32.mrb[0].mxu0
      %v9227 = vadd.f32 0.0, %v9226
      %v9228 = vpop.f32.mrb[0].mxu0
      %9229 = vmatprep.mubr.f32.mxu0 0.0
      %9230 = vmatmul.mubr.f32.gmra.mrb[0].mxu0 %v9111
      %v9231 = vpop.f32.mrb[0].mxu0
      %v9232 = vadd.f32 0.0, %v9231
      %v9233 = vpop.f32.mrb[0].mxu0
      %9234 = vmatprep.mubr.f32.mxu0 0.0
      %9235 = vmatmul.mubr.f32.gmra.mrb[0].mxu0 %v9114
      %v9236 = vpop.f32.mrb[0].mxu0
      %v9237 = vadd.f32 0.0, %v9236
      %v9238 = vpop.f32.mrb[0].mxu0
      %9239 = vmatprep.mubr.f32.mxu0 0.0
      %9240 = vmatmul.mubr.f32.gmra.mrb[0].mxu0 %v9117
      %v9241 = vpop.f32.mrb[0].mxu0
      %v9242 = vadd.f32 0.0, %v9241
      %v9243 = vpop.f32.mrb[0].mxu0
      %9244 = vmatprep.mubr.f32.mxu0 0.0
      %9245 = vmatmul.mubr.f32.gmra.mrb[0].mxu0 %v9120
      %v9246 = vpop.f32.mrb[0].mxu0
      %v9247 = vadd.f32 0.0, %v9246
      %v9248 = vpop.f32.mrb[0].mxu0
      %9249 = vmatprep.mubr.f32.mxu0 0.0
      %9250 = vmatmul.mubr.f32.gmra.mrb[0].mxu0 %v9123
      %v9251 = vpop.f32.mrb[0].mxu0
      %v9252 = vadd.f32 0.0, %v9251
      %v9253 = vpop.f32.mrb[0].mxu0
      %9254 = vmatprep.mubr.f32.mxu0 0.0
      %9255 = vmatmul.mubr.f32.gmra.mrb[0].mxu0 %v9126
      %v9256 = vpop.f32.mrb[0].mxu0
      %v9257 = vadd.f32 0.0, %v9256
      %v9258 = vpop.f32.mrb[0].mxu0
      %9259 = vmatprep.mubr.f32.mxu0 0.0
      %9260 = vmatmul.mubr.f32.gmra.mrb[0].mxu0 %v9129
      %v9261 = vpop.f32.mrb[0].mxu0
      %v9262 = vadd.f32 0.0, %v9261
      %v9263 = vpop.f32.mrb[0].mxu0
      %9264 = vmatprep.mubr.f32.mxu0 0.0
      %9265 = vmatmul.mubr.f32.gmra.mrb[0].mxu0 %v9132
      %v9266 = vpop.f32.mrb[0].mxu0
      %v9267 = vadd.f32 0.0, %v9266
      %v9268 = vpop.f32.mrb[0].mxu0
      %9269 = vmatprep.mubr.f32.mxu0 0.0
      %9270 = vmatmul.mubr.f32.gmra.mrb[0].mxu0 %v9135
      %v9271 = vpop.f32.mrb[0].mxu0
      %v9272 = vadd.f32 0.0, %v9271
      %v9273 = vpop.f32.mrb[0].mxu0
      %9274 = vmatprep.mubr.f32.mxu0 0.0
      %9275 = vmatmul.mubr.f32.gmra.mrb[0].mxu0 %v9138
      %v9276 = vpop.f32.mrb[0].mxu0
      %v9277 = vadd.f32 0.0, %v9276
      %v9278 = vpop.f32.mrb[0].mxu0
      %9279 = vdwg.mxu0
      %v9280 = vadd.f32 %v8995, %v9207
      %v9281 = vadd.f32 %v9000, %v9212
      %v9282 = vadd.f32 %v9005, %v9217
      %v9283 = vadd.f32 %v9010, %v9222
      %v9284 = vadd.f32 %v9015, %v9227
      %v9285 = vadd.f32 %v9020, %v9232
      %v9286 = vadd.f32 %v9025, %v9237
      %v9287 = vadd.f32 %v9030, %v9242
      %v9288 = vadd.f32 %v9035, %v9247
      %v9289 = vadd.f32 %v9040, %v9252
      %v9290 = vadd.f32 %v9045, %v9257
      %v9291 = vadd.f32 %v9050, %v9262
      %v9292 = vadd.f32 %v9055, %v9267
      %v9293 = vadd.f32 %v9060, %v9272
      %v9294 = vadd.f32 %v9065, %v9277
      %v9295 = vmax.f32 %v9280, 0.0
      %v9296 = vmax.f32 %v9281, 0.0
      %v9297 = vmax.f32 %v9282, 0.0
      %v9298 = vmax.f32 %v9283, 0.0
      %v9299 = vmax.f32 %v9284, 0.0
      %v9300 = vmax.f32 %v9285, 0.0
      %v9301 = vmax.f32 %v9286, 0.0
      %v9302 = vmax.f32 %v9287, 0.0
      %v9303 = vmax.f32 %v9288, 0.0
      %v9304 = vmax.f32 %v9289, 0.0
      %v9305 = vmax.f32 %v9290, 0.0
      %v9306 = vmax.f32 %v9291, 0.0
      %v9307 = vmax.f32 %v9292, 0.0
      %v9308 = vmax.f32 %v9293, 0.0
      %v9309 = vmax.f32 %v9294, 0.0
      %v9310 = vld [vmem:[%s1 + $0x398] sm:$0xff]
      %v9311 = vld [vmem:[%s1 + $0x3a0] sm:$0xff]
      %v9313 = vsel %vm333, %v9295, 0
      %v9316 = vsel %vm333, %v9296, 0
      %v9319 = vsel %vm333, %v9297, 0
      %v9322 = vsel %vm333, %v9298, 0
      %v9325 = vsel %vm333, %v9299, 0
      %v9328 = vsel %vm333, %v9300, 0
      %v9331 = vsel %vm333, %v9301, 0
      %v9334 = vsel %vm333, %v9302, 0
      %v9337 = vsel %vm333, %v9303, 0
      %v9340 = vsel %vm333, %v9304, 0
      %v9343 = vsel %vm333, %v9305, 0
      %v9346 = vsel %vm333, %v9306, 0
      %v9349 = vsel %vm333, %v9307, 0
      %v9352 = vsel %vm333, %v9308, 0
      %v9355 = vsel %vm333, %v9309, 0
      %9357 = vmatprep.subr.mxu0 0.0
      %9358 = vmatpush1.msra.mxu0 %v9310
      %9359 = vmatprep.subr.mxu0 0.0
      %9360 = vmatpush1.msra.mxu0 %v9311
      %9361 = vmatprep.subr.mxu0 0.0
      %9362 = vmatpush1.msra.mxu0 0.0
      %9363 = vmatprep.subr.mxu0 0.0
      %9364 = vmatpush1.msra.mxu0 0.0
      %9365 = vmatprep.subr.mxu0 0.0
      %9366 = vmatpush1.msra.mxu0 0.0
      %9367 = vmatprep.subr.mxu0 0.0
      %9368 = vmatpush1.msra.mxu0 0.0
      %9369 = vmatprep.subr.mxu0 0.0
      %9370 = vmatpush1.msra.mxu0 0.0
      %9371 = vmatprep.subr.mxu0 0.0
      %9372 = vmatpush1.msra.mxu0 0.0
      %9373 = vmatprep.subr.mxu0 0.0
      %9374 = vmatpush1.msra.mxu0 0.0
      %9375 = vmatprep.subr.mxu0 0.0
      %9376 = vmatpush1.msra.mxu0 0.0
      %9377 = vmatprep.subr.mxu0 0.0
      %9378 = vmatpush1.msra.mxu0 0.0
      %9379 = vmatprep.subr.mxu0 0.0
      %9380 = vmatpush1.msra.mxu0 0.0
      %9381 = vmatprep.subr.mxu0 0.0
      %9382 = vmatpush1.msra.mxu0 0.0
      %9383 = vmatprep.subr.mxu0 0.0
      %9384 = vmatpush1.msra.mxu0 0.0
      %9385 = vmatprep.subr.mxu0 0.0
      %9386 = vmatpush1.msra.mxu0 0.0
      %9387 = vmatprep.subr.mxu0 0.0
      %9388 = vmatpush1.msra.mxu0 0.0
      %9389 = vmatprep.subr.mxu0 0.0
      %9390 = vmatpush1.msra.mxu0 0.0
      %9391 = vmatprep.subr.mxu0 0.0
      %9392 = vmatpush1.msra.mxu0 0.0
      %9393 = vmatprep.subr.mxu0 0.0
      %9394 = vmatpush1.msra.mxu0 0.0
      %9395 = vmatprep.subr.mxu0 0.0
      %9396 = vmatpush1.msra.mxu0 0.0
      %9397 = vmatprep.subr.mxu0 0.0
      %9398 = vmatpush1.msra.mxu0 0.0
      %9399 = vmatprep.subr.mxu0 0.0
      %9400 = vmatpush1.msra.mxu0 0.0
      %9401 = vmatprep.subr.mxu0 0.0
      %9402 = vmatpush1.msra.mxu0 0.0
      %9403 = vmatprep.subr.mxu0 0.0
      %9404 = vmatpush1.msra.mxu0 0.0
      %9405 = vmatprep.subr.mxu0 0.0
      %9406 = vmatpush1.msra.mxu0 0.0
      %9407 = vmatprep.subr.mxu0 0.0
      %9408 = vmatpush1.msra.mxu0 0.0
      %9409 = vmatprep.subr.mxu0 0.0
      %9410 = vmatpush1.msra.mxu0 0.0
      %9411 = vmatprep.subr.mxu0 0.0
      %9412 = vmatpush1.msra.mxu0 0.0
      %9413 = vmatprep.subr.mxu0 0.0
      %9414 = vmatpush1.msra.mxu0 0.0
      %9415 = vmatprep.subr.mxu0 0.0
      %9416 = vmatpush1.msra.mxu0 0.0
      %9417 = vmatprep.subr.mxu0 0.0
      %9418 = vmatpush1.msra.mxu0 0.0
      %9419 = vmatprep.subr.mxu0 0.0
      %9420 = vmatpush1.msra.mxu0 0.0
      %9421 = vmatprep.mubr.f32.mxu0 0.0
      %9422 = vmatmul.mubr.f32.gmra.mrb[0].mxu0 %v9313
      %v9423 = vpop.f32.mrb[0].mxu0
      %v9424 = vadd.f32 0.0, %v9423
      %v9425 = vpop.f32.mrb[0].mxu0
      %9426 = vmatprep.mubr.f32.mxu0 0.0
      %9427 = vmatmul.mubr.f32.gmra.mrb[0].mxu0 %v9316
      %v9428 = vpop.f32.mrb[0].mxu0
      %v9429 = vadd.f32 0.0, %v9428
      %v9430 = vpop.f32.mrb[0].mxu0
      %9431 = vmatprep.mubr.f32.mxu0 0.0
      %9432 = vmatmul.mubr.f32.gmra.mrb[0].mxu0 %v9319
      %v9433 = vpop.f32.mrb[0].mxu0
      %v9434 = vadd.f32 0.0, %v9433
      %v9435 = vpop.f32.mrb[0].mxu0
      %9436 = vmatprep.mubr.f32.mxu0 0.0
      %9437 = vmatmul.mubr.f32.gmra.mrb[0].mxu0 %v9322
      %v9438 = vpop.f32.mrb[0].mxu0
      %v9439 = vadd.f32 0.0, %v9438
      %v9440 = vpop.f32.mrb[0].mxu0
      %9441 = vmatprep.mubr.f32.mxu0 0.0
      %9442 = vmatmul.mubr.f32.gmra.mrb[0].mxu0 %v9325
      %v9443 = vpop.f32.mrb[0].mxu0
      %v9444 = vadd.f32 0.0, %v9443
      %v9445 = vpop.f32.mrb[0].mxu0
      %9446 = vmatprep.mubr.f32.mxu0 0.0
      %9447 = vmatmul.mubr.f32.gmra.mrb[0].mxu0 %v9328
      %v9448 = vpop.f32.mrb[0].mxu0
      %v9449 = vadd.f32 0.0, %v9448
      %v9450 = vpop.f32.mrb[0].mxu0
      %9451 = vmatprep.mubr.f32.mxu0 0.0
      %9452 = vmatmul.mubr.f32.gmra.mrb[0].mxu0 %v9331
      %v9453 = vpop.f32.mrb[0].mxu0
      %v9454 = vadd.f32 0.0, %v9453
      %v9455 = vpop.f32.mrb[0].mxu0
      %9456 = vmatprep.mubr.f32.mxu0 0.0
      %9457 = vmatmul.mubr.f32.gmra.mrb[0].mxu0 %v9334
      %v9458 = vpop.f32.mrb[0].mxu0
      %v9459 = vadd.f32 0.0, %v9458
      %v9460 = vpop.f32.mrb[0].mxu0
      %9461 = vmatprep.mubr.f32.mxu0 0.0
      %9462 = vmatmul.mubr.f32.gmra.mrb[0].mxu0 %v9337
      %v9463 = vpop.f32.mrb[0].mxu0
      %v9464 = vadd.f32 0.0, %v9463
      %v9465 = vpop.f32.mrb[0].mxu0
      %9466 = vmatprep.mubr.f32.mxu0 0.0
      %9467 = vmatmul.mubr.f32.gmra.mrb[0].mxu0 %v9340
      %v9468 = vpop.f32.mrb[0].mxu0
      %v9469 = vadd.f32 0.0, %v9468
      %v9470 = vpop.f32.mrb[0].mxu0
      %9471 = vmatprep.mubr.f32.mxu0 0.0
      %9472 = vmatmul.mubr.f32.gmra.mrb[0].mxu0 %v9343
      %v9473 = vpop.f32.mrb[0].mxu0
      %v9474 = vadd.f32 0.0, %v9473
      %v9475 = vpop.f32.mrb[0].mxu0
      %9476 = vmatprep.mubr.f32.mxu0 0.0
      %9477 = vmatmul.mubr.f32.gmra.mrb[0].mxu0 %v9346
      %v9478 = vpop.f32.mrb[0].mxu0
      %v9479 = vadd.f32 0.0, %v9478
      %v9480 = vpop.f32.mrb[0].mxu0
      %9481 = vmatprep.mubr.f32.mxu0 0.0
      %9482 = vmatmul.mubr.f32.gmra.mrb[0].mxu0 %v9349
      %v9483 = vpop.f32.mrb[0].mxu0
      %v9484 = vadd.f32 0.0, %v9483
      %v9485 = vpop.f32.mrb[0].mxu0
      %9486 = vmatprep.mubr.f32.mxu0 0.0
      %9487 = vmatmul.mubr.f32.gmra.mrb[0].mxu0 %v9352
      %v9488 = vpop.f32.mrb[0].mxu0
      %v9489 = vadd.f32 0.0, %v9488
      %v9490 = vpop.f32.mrb[0].mxu0
      %9491 = vmatprep.mubr.f32.mxu0 0.0
      %9492 = vmatmul.mubr.f32.gmra.mrb[0].mxu0 %v9355
      %v9493 = vpop.f32.mrb[0].mxu0
      %v9494 = vadd.f32 0.0, %v9493
      %v9495 = vpop.f32.mrb[0].mxu0
      %9496 = vdwg.mxu0
      %v9497 = vadd.f32 %v8162, %v9424
      %v9498 = vadd.f32 %v8163, %v9429
      %v9499 = vadd.f32 %v8164, %v9434
      %v9500 = vadd.f32 %v8165, %v9439
      %v9501 = vadd.f32 %v8166, %v9444
      %v9502 = vadd.f32 %v8167, %v9449
      %v9503 = vadd.f32 %v8168, %v9454
      %v9504 = vadd.f32 %v8169, %v9459
      %v9505 = vadd.f32 %v8170, %v9464
      %v9506 = vadd.f32 %v8171, %v9469
      %v9507 = vadd.f32 %v8172, %v9474
      %v9508 = vadd.f32 %v8173, %v9479
      %v9509 = vadd.f32 %v8174, %v9484
      %v9510 = vadd.f32 %v8175, %v9489
      %v9511 = vadd.f32 %v8176, %v9494
      %v9512 = vsel %vm8147, %v9497, 0.0
      %v9513 = vsel %vm8148, %v9498, 0.0
      %v9514 = vsel %vm8149, %v9499, 0.0
      %v9515 = vsel %vm8150, %v9500, 0.0
      %v9516 = vsel %vm8151, %v9501, 0.0
      %v9517 = vsel %vm8152, %v9502, 0.0
      %v9518 = vsel %vm8153, %v9503, 0.0
      %v9519 = vsel %vm8154, %v9504, 0.0
      %v9520 = vsel %vm8155, %v9505, 0.0
      %v9521 = vsel %vm8156, %v9506, 0.0
      %v9522 = vsel %vm8157, %v9507, 0.0
      %v9523 = vsel %vm8158, %v9508, 0.0
      %v9524 = vsel %vm8159, %v9509, 0.0
      %v9525 = vsel %vm8160, %v9510, 0.0
      %v9526 = vsel %vm8161, %v9511, 0.0
      %v9527 = vmax.f32 %v9512, 0.0
      %v9528 = vmax.f32 %v9513, 0.0
      %v9529 = vmax.f32 %v9514, 0.0
      %v9530 = vmax.f32 %v9515, 0.0
      %v9531 = vmax.f32 %v9516, 0.0
      %v9532 = vmax.f32 %v9517, 0.0
      %v9533 = vmax.f32 %v9518, 0.0
      %v9534 = vmax.f32 %v9519, 0.0
      %v9535 = vmax.f32 %v9520, 0.0
      %v9536 = vmax.f32 %v9521, 0.0
      %v9537 = vmax.f32 %v9522, 0.0
      %v9538 = vmax.f32 %v9523, 0.0
      %v9539 = vmax.f32 %v9524, 0.0
      %v9540 = vmax.f32 %v9525, 0.0
      %v9541 = vmax.f32 %v9526, 0.0
      %9542 = vst.msk [vmem:[#allocation6 + $0x8] sm:$0xff] %vm6979, %v9527
      %9543 = vst.msk [vmem:[#allocation6 + $0x10] sm:$0xff] %vm6979, %v9528
      %9544 = vst.msk [vmem:[#allocation6 + $0x18] sm:$0xff] %vm6979, %v9529
      %9545 = vst.msk [vmem:[#allocation6 + $0x20] sm:$0xff] %vm6979, %v9530
      %9546 = vst.msk [vmem:[#allocation6 + $0x28] sm:$0xff] %vm6979, %v9531
      %9547 = vst.msk [vmem:[#allocation6 + $0x30] sm:$0xff] %vm6979, %v9532
      %9548 = vst.msk [vmem:[#allocation6 + $0x38] sm:$0xff] %vm6979, %v9533
      %9549 = vst.msk [vmem:[#allocation6 + $0x40] sm:$0xff] %vm6979, %v9534
      %9550 = vst.msk [vmem:[#allocation6 + $0x48] sm:$0xff] %vm6979, %v9535
      %9551 = vst.msk [vmem:[#allocation6 + $0x50] sm:$0xff] %vm6979, %v9536
      %9552 = vst.msk [vmem:[#allocation6 + $0x58] sm:$0xff] %vm6979, %v9537
      %9553 = vst.msk [vmem:[#allocation6 + $0x60] sm:$0xff] %vm6979, %v9538
      %9554 = vst.msk [vmem:[#allocation6 + $0x68] sm:$0xff] %vm6979, %v9539
      %9555 = vst.msk [vmem:[#allocation6 + $0x70] sm:$0xff] %vm6979, %v9540
      %9556 = vst.msk [vmem:[#allocation6 + $0x78] sm:$0xff] %vm6979, %v9541
      %v9557 = vld [vmem:[%s1 + $0x620] sm:$0xff]
      %v9558 = vld [vmem:[%s1 + $0x628] sm:$0xff]
      %v9559 = vld [vmem:[%s1 + $0x630] sm:$0xff]
      %v9560 = vld [vmem:[%s1 + $0x638] sm:$0xff]
      %v9561 = vld [vmem:[%s1 + $0x640] sm:$0xff]
      %v9562 = vld [vmem:[%s1 + $0x648] sm:$0xff]
      %v9563 = vld [vmem:[%s1 + $0x650] sm:$0xff]
      %v9564 = vld [vmem:[%s1 + $0x658] sm:$0xff]
      %v9565 = vld [vmem:[%s1 + $0x660] sm:$0xff]
      %v9566 = vld [vmem:[%s1 + $0x668] sm:$0xff]
      %v9567 = vld [vmem:[%s1 + $0x670] sm:$0xff]
      %v9568 = vld [vmem:[%s1 + $0x678] sm:$0xff]
      %v9569 = vld [vmem:[%s1 + $0x680] sm:$0xff]
      %v9570 = vld [vmem:[%s1 + $0x688] sm:$0xff]
      %v9571 = vld [vmem:[%s1 + $0x690] sm:$0xff]
      %v9572 = vld [vmem:[%s1 + $0x698] sm:$0xff]
      %v9573 = vld [vmem:[%s1 + $0x6a0] sm:$0xff]
      %v9574 = vld [vmem:[%s1 + $0x6a8] sm:$0xff]
      %v9575 = vld [vmem:[%s1 + $0x6b0] sm:$0xff]
      %v9576 = vld [vmem:[#allocation6 + $0x8] sm:$0xff]
      %v9577 = vld [vmem:[#allocation6 + $0x10] sm:$0xff]
      %v9578 = vld [vmem:[#allocation6 + $0x18] sm:$0xff]
      %v9579 = vld [vmem:[#allocation6 + $0x20] sm:$0xff]
      %v9580 = vld [vmem:[#allocation6 + $0x28] sm:$0xff]
      %v9581 = vld [vmem:[#allocation6 + $0x30] sm:$0xff]
      %v9582 = vld [vmem:[#allocation6 + $0x38] sm:$0xff]
      %v9583 = vld [vmem:[#allocation6 + $0x40] sm:$0xff]
      %v9584 = vld [vmem:[#allocation6 + $0x48] sm:$0xff]
      %v9585 = vld [vmem:[#allocation6 + $0x50] sm:$0xff]
      %v9586 = vld [vmem:[#allocation6 + $0x58] sm:$0xff]
      %v9587 = vld [vmem:[#allocation6 + $0x60] sm:$0xff]
      %v9588 = vld [vmem:[#allocation6 + $0x68] sm:$0xff]
      %v9589 = vld [vmem:[#allocation6 + $0x70] sm:$0xff]
      %v9590 = vld [vmem:[#allocation6 + $0x78] sm:$0xff]
      %v9591 = vld [vmem:[#allocation6 + $0x80] sm:$0xff]
      %v9592 = vld [vmem:[#allocation6 + $0x88] sm:$0xff]
      %v9593 = vld [vmem:[#allocation6 + $0x90] sm:$0xff]
      %v9594 = vld [vmem:[#allocation6 + $0x98] sm:$0xff]
      %vm9595 = vcmp.gt.f32.partialorder %v9557, 0.0
      %vm9596 = vcmp.gt.f32.partialorder %v9558, 0.0
      %vm9597 = vcmp.gt.f32.partialorder %v9559, 0.0
      %vm9598 = vcmp.gt.f32.partialorder %v9560, 0.0
      %vm9599 = vcmp.gt.f32.partialorder %v9561, 0.0
      %vm9600 = vcmp.gt.f32.partialorder %v9562, 0.0
      %vm9601 = vcmp.gt.f32.partialorder %v9563, 0.0
      %vm9602 = vcmp.gt.f32.partialorder %v9564, 0.0
      %vm9603 = vcmp.gt.f32.partialorder %v9565, 0.0
      %vm9604 = vcmp.gt.f32.partialorder %v9566, 0.0
      %vm9605 = vcmp.gt.f32.partialorder %v9567, 0.0
      %vm9606 = vcmp.gt.f32.partialorder %v9568, 0.0
      %vm9607 = vcmp.gt.f32.partialorder %v9569, 0.0
      %vm9608 = vcmp.gt.f32.partialorder %v9570, 0.0
      %vm9609 = vcmp.gt.f32.partialorder %v9571, 0.0
      %vm9610 = vcmp.gt.f32.partialorder %v9572, 0.0
      %vm9611 = vcmp.gt.f32.partialorder %v9573, 0.0
      %vm9612 = vcmp.gt.f32.partialorder %v9574, 0.0
      %vm9613 = vcmp.gt.f32.partialorder %v9575, 0.0
      %v9614 = vsel %vm9595, %v9576, 0.0
      %v9615 = vsel %vm9596, %v9577, 0.0
      %v9616 = vsel %vm9597, %v9578, 0.0
      %v9617 = vsel %vm9598, %v9579, 0.0
      %v9618 = vsel %vm9599, %v9580, 0.0
      %v9619 = vsel %vm9600, %v9581, 0.0
      %v9620 = vsel %vm9601, %v9582, 0.0
      %v9621 = vsel %vm9602, %v9583, 0.0
      %v9622 = vsel %vm9603, %v9584, 0.0
      %v9623 = vsel %vm9604, %v9585, 0.0
      %v9624 = vsel %vm9605, %v9586, 0.0
      %v9625 = vsel %vm9606, %v9587, 0.0
      %v9626 = vsel %vm9607, %v9588, 0.0
      %v9627 = vsel %vm9608, %v9589, 0.0
      %v9628 = vsel %vm9609, %v9590, 0.0
      %v9629 = vsel %vm9610, %v9591, 0.0
      %v9630 = vsel %vm9611, %v9592, 0.0
      %v9631 = vsel %vm9612, %v9593, 0.0
      %v9632 = vsel %vm9613, %v9594, 0.0
      %9633 = vst.msk [vmem:[#allocation7 + $0x8] sm:$0xff] %vm6979, %v9614
      %9634 = vst.msk [vmem:[#allocation7 + $0x10] sm:$0xff] %vm6979, %v9615
      %9635 = vst.msk [vmem:[#allocation7 + $0x18] sm:$0xff] %vm6979, %v9616
      %9636 = vst.msk [vmem:[#allocation7 + $0x20] sm:$0xff] %vm6979, %v9617
      %9637 = vst.msk [vmem:[#allocation7 + $0x28] sm:$0xff] %vm6979, %v9618
      %9638 = vst.msk [vmem:[#allocation7 + $0x30] sm:$0xff] %vm6979, %v9619
      %9639 = vst.msk [vmem:[#allocation7 + $0x38] sm:$0xff] %vm6979, %v9620
      %9640 = vst.msk [vmem:[#allocation7 + $0x40] sm:$0xff] %vm6979, %v9621
      %9641 = vst.msk [vmem:[#allocation7 + $0x48] sm:$0xff] %vm6979, %v9622
      %9642 = vst.msk [vmem:[#allocation7 + $0x50] sm:$0xff] %vm6979, %v9623
      %9643 = vst.msk [vmem:[#allocation7 + $0x58] sm:$0xff] %vm6979, %v9624
      %9644 = vst.msk [vmem:[#allocation7 + $0x60] sm:$0xff] %vm6979, %v9625
      %9645 = vst.msk [vmem:[#allocation7 + $0x68] sm:$0xff] %vm6979, %v9626
      %9646 = vst.msk [vmem:[#allocation7 + $0x70] sm:$0xff] %vm6979, %v9627
      %9647 = vst.msk [vmem:[#allocation7 + $0x78] sm:$0xff] %vm6979, %v9628
      %9648 = vst.msk [vmem:[#allocation7 + $0x80] sm:$0xff] %vm6979, %v9629
      %9649 = vst.msk [vmem:[#allocation7 + $0x88] sm:$0xff] %vm6979, %v9630
      %9650 = vst.msk [vmem:[#allocation7 + $0x90] sm:$0xff] %vm6979, %v9631
      %9651 = vst.msk [vmem:[#allocation7 + $0x98] sm:$0xff] %vm6979, %v9632
      %v9652 = vld [vmem:[%s1 + $0x621] sm:$0xff]
      %v9653 = vld [vmem:[%s1 + $0x629] sm:$0xff]
      %v9654 = vld [vmem:[%s1 + $0x631] sm:$0xff]
      %v9655 = vld [vmem:[%s1 + $0x639] sm:$0xff]
      %v9656 = vld [vmem:[%s1 + $0x641] sm:$0xff]
      %v9657 = vld [vmem:[%s1 + $0x649] sm:$0xff]
      %v9658 = vld [vmem:[%s1 + $0x651] sm:$0xff]
      %v9659 = vld [vmem:[%s1 + $0x659] sm:$0xff]
      %v9660 = vld [vmem:[%s1 + $0x661] sm:$0xff]
      %v9661 = vld [vmem:[%s1 + $0x669] sm:$0xff]
      %v9662 = vld [vmem:[%s1 + $0x671] sm:$0xff]
      %v9663 = vld [vmem:[%s1 + $0x679] sm:$0xff]
      %v9664 = vld [vmem:[%s1 + $0x681] sm:$0xff]
      %v9665 = vld [vmem:[%s1 + $0x689] sm:$0xff]
      %v9666 = vld [vmem:[%s1 + $0x691] sm:$0xff]
      %v9667 = vld [vmem:[%s1 + $0x699] sm:$0xff]
      %v9668 = vld [vmem:[%s1 + $0x6a1] sm:$0xff]
      %v9669 = vld [vmem:[%s1 + $0x6a9] sm:$0xff]
      %v9670 = vld [vmem:[%s1 + $0x6b1] sm:$0xff]
      %v9671 = vld [vmem:[#allocation6 + $0x9] sm:$0xff]
      %v9672 = vld [vmem:[#allocation6 + $0x11] sm:$0xff]
      %v9673 = vld [vmem:[#allocation6 + $0x19] sm:$0xff]
      %v9674 = vld [vmem:[#allocation6 + $0x21] sm:$0xff]
      %v9675 = vld [vmem:[#allocation6 + $0x29] sm:$0xff]
      %v9676 = vld [vmem:[#allocation6 + $0x31] sm:$0xff]
      %v9677 = vld [vmem:[#allocation6 + $0x39] sm:$0xff]
      %v9678 = vld [vmem:[#allocation6 + $0x41] sm:$0xff]
      %v9679 = vld [vmem:[#allocation6 + $0x49] sm:$0xff]
      %v9680 = vld [vmem:[#allocation6 + $0x51] sm:$0xff]
      %v9681 = vld [vmem:[#allocation6 + $0x59] sm:$0xff]
      %v9682 = vld [vmem:[#allocation6 + $0x61] sm:$0xff]
      %v9683 = vld [vmem:[#allocation6 + $0x69] sm:$0xff]
      %v9684 = vld [vmem:[#allocation6 + $0x71] sm:$0xff]
      %v9685 = vld [vmem:[#allocation6 + $0x79] sm:$0xff]
      %v9686 = vld [vmem:[#allocation6 + $0x81] sm:$0xff]
      %v9687 = vld [vmem:[#allocation6 + $0x89] sm:$0xff]
      %v9688 = vld [vmem:[#allocation6 + $0x91] sm:$0xff]
      %v9689 = vld [vmem:[#allocation6 + $0x99] sm:$0xff]
      %vm9690 = vcmp.gt.f32.partialorder %v9652, 0.0
      %vm9691 = vcmp.gt.f32.partialorder %v9653, 0.0
      %vm9692 = vcmp.gt.f32.partialorder %v9654, 0.0
      %vm9693 = vcmp.gt.f32.partialorder %v9655, 0.0
      %vm9694 = vcmp.gt.f32.partialorder %v9656, 0.0
      %vm9695 = vcmp.gt.f32.partialorder %v9657, 0.0
      %vm9696 = vcmp.gt.f32.partialorder %v9658, 0.0
      %vm9697 = vcmp.gt.f32.partialorder %v9659, 0.0
      %vm9698 = vcmp.gt.f32.partialorder %v9660, 0.0
      %vm9699 = vcmp.gt.f32.partialorder %v9661, 0.0
      %vm9700 = vcmp.gt.f32.partialorder %v9662, 0.0
      %vm9701 = vcmp.gt.f32.partialorder %v9663, 0.0
      %vm9702 = vcmp.gt.f32.partialorder %v9664, 0.0
      %vm9703 = vcmp.gt.f32.partialorder %v9665, 0.0
      %vm9704 = vcmp.gt.f32.partialorder %v9666, 0.0
      %vm9705 = vcmp.gt.f32.partialorder %v9667, 0.0
      %vm9706 = vcmp.gt.f32.partialorder %v9668, 0.0
      %vm9707 = vcmp.gt.f32.partialorder %v9669, 0.0
      %vm9708 = vcmp.gt.f32.partialorder %v9670, 0.0
      %v9709 = vsel %vm9690, %v9671, 0.0
      %v9710 = vsel %vm9691, %v9672, 0.0
      %v9711 = vsel %vm9692, %v9673, 0.0
      %v9712 = vsel %vm9693, %v9674, 0.0
      %v9713 = vsel %vm9694, %v9675, 0.0
      %v9714 = vsel %vm9695, %v9676, 0.0
      %v9715 = vsel %vm9696, %v9677, 0.0
      %v9716 = vsel %vm9697, %v9678, 0.0
      %v9717 = vsel %vm9698, %v9679, 0.0
      %v9718 = vsel %vm9699, %v9680, 0.0
      %v9719 = vsel %vm9700, %v9681, 0.0
      %v9720 = vsel %vm9701, %v9682, 0.0
      %v9721 = vsel %vm9702, %v9683, 0.0
      %v9722 = vsel %vm9703, %v9684, 0.0
      %v9723 = vsel %vm9704, %v9685, 0.0
      %v9724 = vsel %vm9705, %v9686, 0.0
      %v9725 = vsel %vm9706, %v9687, 0.0
      %v9726 = vsel %vm9707, %v9688, 0.0
      %v9727 = vsel %vm9708, %v9689, 0.0
      %9747 = vrot.lane.b32.xlu0 %v9709, 32
      %v9748 = vpop.permute.xlu0 %9747
      %9749 = vrot.lane.b32.xlu0 %v9710, 32
      %v9750 = vpop.permute.xlu0 %9749
      %9751 = vrot.lane.b32.xlu0 %v9711, 32
      %v9752 = vpop.permute.xlu0 %9751
      %9753 = vrot.lane.b32.xlu0 %v9712, 32
      %v9754 = vpop.permute.xlu0 %9753
      %9755 = vrot.lane.b32.xlu0 %v9713, 32
      %v9756 = vpop.permute.xlu0 %9755
      %9757 = vrot.lane.b32.xlu0 %v9714, 32
      %v9758 = vpop.permute.xlu0 %9757
      %9759 = vrot.lane.b32.xlu0 %v9715, 32
      %v9760 = vpop.permute.xlu0 %9759
      %9761 = vrot.lane.b32.xlu0 %v9716, 32
      %v9762 = vpop.permute.xlu0 %9761
      %9763 = vrot.lane.b32.xlu0 %v9717, 32
      %v9764 = vpop.permute.xlu0 %9763
      %9765 = vrot.lane.b32.xlu0 %v9718, 32
      %v9766 = vpop.permute.xlu0 %9765
      %9767 = vrot.lane.b32.xlu0 %v9719, 32
      %v9768 = vpop.permute.xlu0 %9767
      %9769 = vrot.lane.b32.xlu0 %v9720, 32
      %v9770 = vpop.permute.xlu0 %9769
      %9771 = vrot.lane.b32.xlu0 %v9721, 32
      %v9772 = vpop.permute.xlu0 %9771
      %9773 = vrot.lane.b32.xlu0 %v9722, 32
      %v9774 = vpop.permute.xlu0 %9773
      %9775 = vrot.lane.b32.xlu0 %v9723, 32
      %v9776 = vpop.permute.xlu0 %9775
      %9777 = vrot.lane.b32.xlu0 %v9724, 32
      %v9778 = vpop.permute.xlu0 %9777
      %9779 = vrot.lane.b32.xlu0 %v9725, 32
      %v9780 = vpop.permute.xlu0 %9779
      %9781 = vrot.lane.b32.xlu0 %v9726, 32
      %v9782 = vpop.permute.xlu0 %9781
      %9783 = vrot.lane.b32.xlu0 %v9727, 32
      %v9784 = vpop.permute.xlu0 %9783
      %9804 = vst.msk [vmem:[#allocation7 + $0x8] sm:$0xff] %vm7283, %v9748
      %9805 = vst.msk [vmem:[#allocation7 + $0x10] sm:$0xff] %vm7283, %v9750
      %9806 = vst.msk [vmem:[#allocation7 + $0x18] sm:$0xff] %vm7283, %v9752
      %9807 = vst.msk [vmem:[#allocation7 + $0x20] sm:$0xff] %vm7283, %v9754
      %9808 = vst.msk [vmem:[#allocation7 + $0x28] sm:$0xff] %vm7283, %v9756
      %9809 = vst.msk [vmem:[#allocation7 + $0x30] sm:$0xff] %vm7283, %v9758
      %9810 = vst.msk [vmem:[#allocation7 + $0x38] sm:$0xff] %vm7283, %v9760
      %9811 = vst.msk [vmem:[#allocation7 + $0x40] sm:$0xff] %vm7283, %v9762
      %9812 = vst.msk [vmem:[#allocation7 + $0x48] sm:$0xff] %vm7283, %v9764
      %9813 = vst.msk [vmem:[#allocation7 + $0x50] sm:$0xff] %vm7283, %v9766
      %9814 = vst.msk [vmem:[#allocation7 + $0x58] sm:$0xff] %vm7283, %v9768
      %9815 = vst.msk [vmem:[#allocation7 + $0x60] sm:$0xff] %vm7283, %v9770
      %9816 = vst.msk [vmem:[#allocation7 + $0x68] sm:$0xff] %vm7283, %v9772
      %9817 = vst.msk [vmem:[#allocation7 + $0x70] sm:$0xff] %vm7283, %v9774
      %9818 = vst.msk [vmem:[#allocation7 + $0x78] sm:$0xff] %vm7283, %v9776
      %9819 = vst.msk [vmem:[#allocation7 + $0x80] sm:$0xff] %vm7283, %v9778
      %9820 = vst.msk [vmem:[#allocation7 + $0x88] sm:$0xff] %vm7283, %v9780
      %9821 = vst.msk [vmem:[#allocation7 + $0x90] sm:$0xff] %vm7283, %v9782
      %9822 = vst.msk [vmem:[#allocation7 + $0x98] sm:$0xff] %vm7283, %v9784
      %v9823 = vld [vmem:[%s1 + $0x622] sm:$0xff]
      %v9824 = vld [vmem:[%s1 + $0x62a] sm:$0xff]
      %v9825 = vld [vmem:[%s1 + $0x632] sm:$0xff]
      %v9826 = vld [vmem:[%s1 + $0x63a] sm:$0xff]
      %v9827 = vld [vmem:[%s1 + $0x642] sm:$0xff]
      %v9828 = vld [vmem:[%s1 + $0x64a] sm:$0xff]
      %v9829 = vld [vmem:[%s1 + $0x652] sm:$0xff]
      %v9830 = vld [vmem:[%s1 + $0x65a] sm:$0xff]
      %v9831 = vld [vmem:[%s1 + $0x662] sm:$0xff]
      %v9832 = vld [vmem:[%s1 + $0x66a] sm:$0xff]
      %v9833 = vld [vmem:[%s1 + $0x672] sm:$0xff]
      %v9834 = vld [vmem:[%s1 + $0x67a] sm:$0xff]
      %v9835 = vld [vmem:[%s1 + $0x682] sm:$0xff]
      %v9836 = vld [vmem:[%s1 + $0x68a] sm:$0xff]
      %v9837 = vld [vmem:[%s1 + $0x692] sm:$0xff]
      %v9838 = vld [vmem:[%s1 + $0x69a] sm:$0xff]
      %v9839 = vld [vmem:[%s1 + $0x6a2] sm:$0xff]
      %v9840 = vld [vmem:[%s1 + $0x6aa] sm:$0xff]
      %v9841 = vld [vmem:[%s1 + $0x6b2] sm:$0xff]
      %v9842 = vld [vmem:[#allocation6 + $0xa] sm:$0xff]
      %v9843 = vld [vmem:[#allocation6 + $0x12] sm:$0xff]
      %v9844 = vld [vmem:[#allocation6 + $0x1a] sm:$0xff]
      %v9845 = vld [vmem:[#allocation6 + $0x22] sm:$0xff]
      %v9846 = vld [vmem:[#allocation6 + $0x2a] sm:$0xff]
      %v9847 = vld [vmem:[#allocation6 + $0x32] sm:$0xff]
      %v9848 = vld [vmem:[#allocation6 + $0x3a] sm:$0xff]
      %v9849 = vld [vmem:[#allocation6 + $0x42] sm:$0xff]
      %v9850 = vld [vmem:[#allocation6 + $0x4a] sm:$0xff]
      %v9851 = vld [vmem:[#allocation6 + $0x52] sm:$0xff]
      %v9852 = vld [vmem:[#allocation6 + $0x5a] sm:$0xff]
      %v9853 = vld [vmem:[#allocation6 + $0x62] sm:$0xff]
      %v9854 = vld [vmem:[#allocation6 + $0x6a] sm:$0xff]
      %v9855 = vld [vmem:[#allocation6 + $0x72] sm:$0xff]
      %v9856 = vld [vmem:[#allocation6 + $0x7a] sm:$0xff]
      %v9857 = vld [vmem:[#allocation6 + $0x82] sm:$0xff]
      %v9858 = vld [vmem:[#allocation6 + $0x8a] sm:$0xff]
      %v9859 = vld [vmem:[#allocation6 + $0x92] sm:$0xff]
      %v9860 = vld [vmem:[#allocation6 + $0x9a] sm:$0xff]
      %vm9861 = vcmp.gt.f32.partialorder %v9823, 0.0
      %vm9862 = vcmp.gt.f32.partialorder %v9824, 0.0
      %vm9863 = vcmp.gt.f32.partialorder %v9825, 0.0
      %vm9864 = vcmp.gt.f32.partialorder %v9826, 0.0
      %vm9865 = vcmp.gt.f32.partialorder %v9827, 0.0
      %vm9866 = vcmp.gt.f32.partialorder %v9828, 0.0
      %vm9867 = vcmp.gt.f32.partialorder %v9829, 0.0
      %vm9868 = vcmp.gt.f32.partialorder %v9830, 0.0
      %vm9869 = vcmp.gt.f32.partialorder %v9831, 0.0
      %vm9870 = vcmp.gt.f32.partialorder %v9832, 0.0
      %vm9871 = vcmp.gt.f32.partialorder %v9833, 0.0
      %vm9872 = vcmp.gt.f32.partialorder %v9834, 0.0
      %vm9873 = vcmp.gt.f32.partialorder %v9835, 0.0
      %vm9874 = vcmp.gt.f32.partialorder %v9836, 0.0
      %vm9875 = vcmp.gt.f32.partialorder %v9837, 0.0
      %vm9876 = vcmp.gt.f32.partialorder %v9838, 0.0
      %vm9877 = vcmp.gt.f32.partialorder %v9839, 0.0
      %vm9878 = vcmp.gt.f32.partialorder %v9840, 0.0
      %vm9879 = vcmp.gt.f32.partialorder %v9841, 0.0
      %v9880 = vsel %vm9861, %v9842, 0.0
      %v9881 = vsel %vm9862, %v9843, 0.0
      %v9882 = vsel %vm9863, %v9844, 0.0
      %v9883 = vsel %vm9864, %v9845, 0.0
      %v9884 = vsel %vm9865, %v9846, 0.0
      %v9885 = vsel %vm9866, %v9847, 0.0
      %v9886 = vsel %vm9867, %v9848, 0.0
      %v9887 = vsel %vm9868, %v9849, 0.0
      %v9888 = vsel %vm9869, %v9850, 0.0
      %v9889 = vsel %vm9870, %v9851, 0.0
      %v9890 = vsel %vm9871, %v9852, 0.0
      %v9891 = vsel %vm9872, %v9853, 0.0
      %v9892 = vsel %vm9873, %v9854, 0.0
      %v9893 = vsel %vm9874, %v9855, 0.0
      %v9894 = vsel %vm9875, %v9856, 0.0
      %v9895 = vsel %vm9876, %v9857, 0.0
      %v9896 = vsel %vm9877, %v9858, 0.0
      %v9897 = vsel %vm9878, %v9859, 0.0
      %v9898 = vsel %vm9879, %v9860, 0.0
      %9918 = vrot.lane.b32.xlu0 %v9880, 64
      %v9919 = vpop.permute.xlu0 %9918
      %9920 = vrot.lane.b32.xlu0 %v9881, 64
      %v9921 = vpop.permute.xlu0 %9920
      %9922 = vrot.lane.b32.xlu0 %v9882, 64
      %v9923 = vpop.permute.xlu0 %9922
      %9924 = vrot.lane.b32.xlu0 %v9883, 64
      %v9925 = vpop.permute.xlu0 %9924
      %9926 = vrot.lane.b32.xlu0 %v9884, 64
      %v9927 = vpop.permute.xlu0 %9926
      %9928 = vrot.lane.b32.xlu0 %v9885, 64
      %v9929 = vpop.permute.xlu0 %9928
      %9930 = vrot.lane.b32.xlu0 %v9886, 64
      %v9931 = vpop.permute.xlu0 %9930
      %9932 = vrot.lane.b32.xlu0 %v9887, 64
      %v9933 = vpop.permute.xlu0 %9932
      %9934 = vrot.lane.b32.xlu0 %v9888, 64
      %v9935 = vpop.permute.xlu0 %9934
      %9936 = vrot.lane.b32.xlu0 %v9889, 64
      %v9937 = vpop.permute.xlu0 %9936
      %9938 = vrot.lane.b32.xlu0 %v9890, 64
      %v9939 = vpop.permute.xlu0 %9938
      %9940 = vrot.lane.b32.xlu0 %v9891, 64
      %v9941 = vpop.permute.xlu0 %9940
      %9942 = vrot.lane.b32.xlu0 %v9892, 64
      %v9943 = vpop.permute.xlu0 %9942
      %9944 = vrot.lane.b32.xlu0 %v9893, 64
      %v9945 = vpop.permute.xlu0 %9944
      %9946 = vrot.lane.b32.xlu0 %v9894, 64
      %v9947 = vpop.permute.xlu0 %9946
      %9948 = vrot.lane.b32.xlu0 %v9895, 64
      %v9949 = vpop.permute.xlu0 %9948
      %9950 = vrot.lane.b32.xlu0 %v9896, 64
      %v9951 = vpop.permute.xlu0 %9950
      %9952 = vrot.lane.b32.xlu0 %v9897, 64
      %v9953 = vpop.permute.xlu0 %9952
      %9954 = vrot.lane.b32.xlu0 %v9898, 64
      %v9955 = vpop.permute.xlu0 %9954
      %9975 = vst.msk [vmem:[#allocation7 + $0x8] sm:$0xff] %vm7455, %v9919
      %9976 = vst.msk [vmem:[#allocation7 + $0x10] sm:$0xff] %vm7455, %v9921
      %9977 = vst.msk [vmem:[#allocation7 + $0x18] sm:$0xff] %vm7455, %v9923
      %9978 = vst.msk [vmem:[#allocation7 + $0x20] sm:$0xff] %vm7455, %v9925
      %9979 = vst.msk [vmem:[#allocation7 + $0x28] sm:$0xff] %vm7455, %v9927
      %9980 = vst.msk [vmem:[#allocation7 + $0x30] sm:$0xff] %vm7455, %v9929
      %9981 = vst.msk [vmem:[#allocation7 + $0x38] sm:$0xff] %vm7455, %v9931
      %9982 = vst.msk [vmem:[#allocation7 + $0x40] sm:$0xff] %vm7455, %v9933
      %9983 = vst.msk [vmem:[#allocation7 + $0x48] sm:$0xff] %vm7455, %v9935
      %9984 = vst.msk [vmem:[#allocation7 + $0x50] sm:$0xff] %vm7455, %v9937
      %9985 = vst.msk [vmem:[#allocation7 + $0x58] sm:$0xff] %vm7455, %v9939
      %9986 = vst.msk [vmem:[#allocation7 + $0x60] sm:$0xff] %vm7455, %v9941
      %9987 = vst.msk [vmem:[#allocation7 + $0x68] sm:$0xff] %vm7455, %v9943
      %9988 = vst.msk [vmem:[#allocation7 + $0x70] sm:$0xff] %vm7455, %v9945
      %9989 = vst.msk [vmem:[#allocation7 + $0x78] sm:$0xff] %vm7455, %v9947
      %9990 = vst.msk [vmem:[#allocation7 + $0x80] sm:$0xff] %vm7455, %v9949
      %9991 = vst.msk [vmem:[#allocation7 + $0x88] sm:$0xff] %vm7455, %v9951
      %9992 = vst.msk [vmem:[#allocation7 + $0x90] sm:$0xff] %vm7455, %v9953
      %9993 = vst.msk [vmem:[#allocation7 + $0x98] sm:$0xff] %vm7455, %v9955
      %v9994 = vld [vmem:[#allocation7 + $0x1] sm:$0xff]
      %v9995 = vld [vmem:[#allocation7 + $0x9] sm:$0xff]
      %v9996 = vld [vmem:[#allocation7 + $0x11] sm:$0xff]
      %v9997 = vld [vmem:[#allocation7 + $0x19] sm:$0xff]
      %v9998 = vld [vmem:[#allocation7 + $0x21] sm:$0xff]
      %v9999 = vld [vmem:[#allocation7 + $0x29] sm:$0xff]
      %v10000 = vld [vmem:[#allocation7 + $0x31] sm:$0xff]
      %v10001 = vld [vmem:[#allocation7 + $0x39] sm:$0xff]
      %v10002 = vld [vmem:[#allocation7 + $0x41] sm:$0xff]
      %v10003 = vld [vmem:[#allocation7 + $0x49] sm:$0xff]
      %v10004 = vld [vmem:[#allocation7 + $0x51] sm:$0xff]
      %v10005 = vld [vmem:[#allocation7 + $0x59] sm:$0xff]
      %v10006 = vld [vmem:[#allocation7 + $0x61] sm:$0xff]
      %v10007 = vld [vmem:[#allocation7 + $0x69] sm:$0xff]
      %v10008 = vld [vmem:[#allocation7 + $0x71] sm:$0xff]
      %v10009 = vld [vmem:[%s1 + $0x3a8] sm:$0xff]
      %v10010 = vld [vmem:[%s1 + $0x3b0] sm:$0xff]
      %v10011 = vld [vmem:[%s1 + $0x3b8] sm:$0xff]
      %v10012 = vld [vmem:[%s1 + $0x3c0] sm:$0xff]
      %v10013 = vld [vmem:[%s1 + $0x3c8] sm:$0xff]
      %v10014 = vld [vmem:[%s1 + $0x3d0] sm:$0xff]
      %v10015 = vld [vmem:[%s1 + $0x3d8] sm:$0xff]
      %v10016 = vld [vmem:[%s1 + $0x3e0] sm:$0xff]
      %v10017 = vld [vmem:[%s1 + $0x3e8] sm:$0xff]
      %v10018 = vld [vmem:[%s1 + $0x3f0] sm:$0xff]
      %v10019 = vld [vmem:[%s1 + $0x3f8] sm:$0xff]
      %v10020 = vld [vmem:[%s1 + $0x400] sm:$0xff]
      %v10021 = vld [vmem:[#allocation7 + $0x7] sm:$0xff]
      %v10022 = vld [vmem:[#allocation7 + $0xf] sm:$0xff]
      %v10023 = vld [vmem:[#allocation7 + $0x17] sm:$0xff]
      %v10024 = vld [vmem:[#allocation7 + $0x1f] sm:$0xff]
      %v10025 = vld [vmem:[#allocation7 + $0x27] sm:$0xff]
      %v10026 = vld [vmem:[#allocation7 + $0x2f] sm:$0xff]
      %v10027 = vld [vmem:[#allocation7 + $0x37] sm:$0xff]
      %v10028 = vld [vmem:[#allocation7 + $0x3f] sm:$0xff]
      %v10029 = vld [vmem:[#allocation7 + $0x47] sm:$0xff]
      %v10030 = vld [vmem:[#allocation7 + $0x4f] sm:$0xff]
      %v10031 = vld [vmem:[#allocation7 + $0x57] sm:$0xff]
      %v10032 = vld [vmem:[#allocation7 + $0x5f] sm:$0xff]
      %v10033 = vld [vmem:[#allocation7 + $0x67] sm:$0xff]
      %v10034 = vld [vmem:[#allocation7 + $0x6f] sm:$0xff]
      %v10035 = vld [vmem:[#allocation7 + $0x77] sm:$0xff]
      %v10036 = vld [vmem:[%s1 + $0x408] sm:$0xff]
      %v10037 = vld [vmem:[%s1 + $0x410] sm:$0xff]
      %v10038 = vld [vmem:[%s1 + $0x418] sm:$0xff]
      %v10039 = vld [vmem:[%s1 + $0x420] sm:$0xff]
      %v10040 = vld [vmem:[%s1 + $0x428] sm:$0xff]
      %v10041 = vld [vmem:[%s1 + $0x430] sm:$0xff]
      %v10042 = vld [vmem:[%s1 + $0x438] sm:$0xff]
      %v10043 = vld [vmem:[%s1 + $0x440] sm:$0xff]
      %v10044 = vld [vmem:[%s1 + $0x448] sm:$0xff]
      %v10045 = vld [vmem:[%s1 + $0x450] sm:$0xff]
      %v10046 = vld [vmem:[%s1 + $0x458] sm:$0xff]
      %v10047 = vld [vmem:[%s1 + $0x460] sm:$0xff]
      %v10049 = vsel %vm7529, %v10021, 0
      %v10052 = vsel %vm7529, %v10022, 0
      %v10055 = vsel %vm7529, %v10023, 0
      %v10058 = vsel %vm7529, %v10024, 0
      %v10061 = vsel %vm7529, %v10025, 0
      %v10064 = vsel %vm7529, %v10026, 0
      %v10067 = vsel %vm7529, %v10027, 0
      %v10070 = vsel %vm7529, %v10028, 0
      %v10073 = vsel %vm7529, %v10029, 0
      %v10076 = vsel %vm7529, %v10030, 0
      %v10079 = vsel %vm7529, %v10031, 0
      %v10082 = vsel %vm7529, %v10032, 0
      %v10085 = vsel %vm7529, %v10033, 0
      %v10088 = vsel %vm7529, %v10034, 0
      %v10091 = vsel %vm7529, %v10035, 0
      %10093 = vmatprep.subr.mxu0 0.0
      %10094 = vmatpush1.msra.mxu0 %v10036
      %10095 = vmatprep.subr.mxu0 0.0
      %10096 = vmatpush1.msra.mxu0 %v10037
      %10097 = vmatprep.subr.mxu0 0.0
      %10098 = vmatpush1.msra.mxu0 %v10038
      %10099 = vmatprep.subr.mxu0 0.0
      %10100 = vmatpush1.msra.mxu0 %v10039
      %10101 = vmatprep.subr.mxu0 0.0
      %10102 = vmatpush1.msra.mxu0 %v10040
      %10103 = vmatprep.subr.mxu0 0.0
      %10104 = vmatpush1.msra.mxu0 %v10041
      %10105 = vmatprep.subr.mxu0 0.0
      %10106 = vmatpush1.msra.mxu0 %v10042
      %10107 = vmatprep.subr.mxu0 0.0
      %10108 = vmatpush1.msra.mxu0 %v10043
      %10109 = vmatprep.subr.mxu0 0.0
      %10110 = vmatpush1.msra.mxu0 %v10044
      %10111 = vmatprep.subr.mxu0 0.0
      %10112 = vmatpush1.msra.mxu0 %v10045
      %10113 = vmatprep.subr.mxu0 0.0
      %10114 = vmatpush1.msra.mxu0 %v10046
      %10115 = vmatprep.subr.mxu0 0.0
      %10116 = vmatpush1.msra.mxu0 %v10047
      %10117 = vmatprep.subr.mxu0 0.0
      %10118 = vmatpush1.msra.mxu0 0.0
      %10119 = vmatprep.subr.mxu0 0.0
      %10120 = vmatpush1.msra.mxu0 0.0
      %10121 = vmatprep.subr.mxu0 0.0
      %10122 = vmatpush1.msra.mxu0 0.0
      %10123 = vmatprep.subr.mxu0 0.0
      %10124 = vmatpush1.msra.mxu0 0.0
      %10125 = vmatprep.subr.mxu0 0.0
      %10126 = vmatpush1.msra.mxu0 0.0
      %10127 = vmatprep.subr.mxu0 0.0
      %10128 = vmatpush1.msra.mxu0 0.0
      %10129 = vmatprep.subr.mxu0 0.0
      %10130 = vmatpush1.msra.mxu0 0.0
      %10131 = vmatprep.subr.mxu0 0.0
      %10132 = vmatpush1.msra.mxu0 0.0
      %10133 = vmatprep.subr.mxu0 0.0
      %10134 = vmatpush1.msra.mxu0 0.0
      %10135 = vmatprep.subr.mxu0 0.0
      %10136 = vmatpush1.msra.mxu0 0.0
      %10137 = vmatprep.subr.mxu0 0.0
      %10138 = vmatpush1.msra.mxu0 0.0
      %10139 = vmatprep.subr.mxu0 0.0
      %10140 = vmatpush1.msra.mxu0 0.0
      %10141 = vmatprep.subr.mxu0 0.0
      %10142 = vmatpush1.msra.mxu0 0.0
      %10143 = vmatprep.subr.mxu0 0.0
      %10144 = vmatpush1.msra.mxu0 0.0
      %10145 = vmatprep.subr.mxu0 0.0
      %10146 = vmatpush1.msra.mxu0 0.0
      %10147 = vmatprep.subr.mxu0 0.0
      %10148 = vmatpush1.msra.mxu0 0.0
      %10149 = vmatprep.subr.mxu0 0.0
      %10150 = vmatpush1.msra.mxu0 0.0
      %10151 = vmatprep.subr.mxu0 0.0
      %10152 = vmatpush1.msra.mxu0 0.0
      %10153 = vmatprep.subr.mxu0 0.0
      %10154 = vmatpush1.msra.mxu0 0.0
      %10155 = vmatprep.subr.mxu0 0.0
      %10156 = vmatpush1.msra.mxu0 0.0
      %10157 = vmatprep.mubr.f32.mxu0 0.0
      %10158 = vmatmul.mubr.f32.gmra.mrb[0].mxu0 %v10049
      %v10159 = vpop.f32.mrb[0].mxu0
      %v10160 = vadd.f32 0.0, %v10159
      %v10161 = vpop.f32.mrb[0].mxu0
      %10162 = vmatprep.mubr.f32.mxu0 0.0
      %10163 = vmatmul.mubr.f32.gmra.mrb[0].mxu0 %v10052
      %v10164 = vpop.f32.mrb[0].mxu0
      %v10165 = vadd.f32 0.0, %v10164
      %v10166 = vpop.f32.mrb[0].mxu0
      %10167 = vmatprep.mubr.f32.mxu0 0.0
      %10168 = vmatmul.mubr.f32.gmra.mrb[0].mxu0 %v10055
      %v10169 = vpop.f32.mrb[0].mxu0
      %v10170 = vadd.f32 0.0, %v10169
      %v10171 = vpop.f32.mrb[0].mxu0
      %10172 = vmatprep.mubr.f32.mxu0 0.0
      %10173 = vmatmul.mubr.f32.gmra.mrb[0].mxu0 %v10058
      %v10174 = vpop.f32.mrb[0].mxu0
      %v10175 = vadd.f32 0.0, %v10174
      %v10176 = vpop.f32.mrb[0].mxu0
      %10177 = vmatprep.mubr.f32.mxu0 0.0
      %10178 = vmatmul.mubr.f32.gmra.mrb[0].mxu0 %v10061
      %v10179 = vpop.f32.mrb[0].mxu0
      %v10180 = vadd.f32 0.0, %v10179
      %v10181 = vpop.f32.mrb[0].mxu0
      %10182 = vmatprep.mubr.f32.mxu0 0.0
      %10183 = vmatmul.mubr.f32.gmra.mrb[0].mxu0 %v10064
      %v10184 = vpop.f32.mrb[0].mxu0
      %v10185 = vadd.f32 0.0, %v10184
      %v10186 = vpop.f32.mrb[0].mxu0
      %10187 = vmatprep.mubr.f32.mxu0 0.0
      %10188 = vmatmul.mubr.f32.gmra.mrb[0].mxu0 %v10067
      %v10189 = vpop.f32.mrb[0].mxu0
      %v10190 = vadd.f32 0.0, %v10189
      %v10191 = vpop.f32.mrb[0].mxu0
      %10192 = vmatprep.mubr.f32.mxu0 0.0
      %10193 = vmatmul.mubr.f32.gmra.mrb[0].mxu0 %v10070
      %v10194 = vpop.f32.mrb[0].mxu0
      %v10195 = vadd.f32 0.0, %v10194
      %v10196 = vpop.f32.mrb[0].mxu0
      %10197 = vmatprep.mubr.f32.mxu0 0.0
      %10198 = vmatmul.mubr.f32.gmra.mrb[0].mxu0 %v10073
      %v10199 = vpop.f32.mrb[0].mxu0
      %v10200 = vadd.f32 0.0, %v10199
      %v10201 = vpop.f32.mrb[0].mxu0
      %10202 = vmatprep.mubr.f32.mxu0 0.0
      %10203 = vmatmul.mubr.f32.gmra.mrb[0].mxu0 %v10076
      %v10204 = vpop.f32.mrb[0].mxu0
      %v10205 = vadd.f32 0.0, %v10204
      %v10206 = vpop.f32.mrb[0].mxu0
      %10207 = vmatprep.mubr.f32.mxu0 0.0
      %10208 = vmatmul.mubr.f32.gmra.mrb[0].mxu0 %v10079
      %v10209 = vpop.f32.mrb[0].mxu0
      %v10210 = vadd.f32 0.0, %v10209
      %v10211 = vpop.f32.mrb[0].mxu0
      %10212 = vmatprep.mubr.f32.mxu0 0.0
      %10213 = vmatmul.mubr.f32.gmra.mrb[0].mxu0 %v10082
      %v10214 = vpop.f32.mrb[0].mxu0
      %v10215 = vadd.f32 0.0, %v10214
      %v10216 = vpop.f32.mrb[0].mxu0
      %10217 = vmatprep.mubr.f32.mxu0 0.0
      %10218 = vmatmul.mubr.f32.gmra.mrb[0].mxu0 %v10085
      %v10219 = vpop.f32.mrb[0].mxu0
      %v10220 = vadd.f32 0.0, %v10219
      %v10221 = vpop.f32.mrb[0].mxu0
      %10222 = vmatprep.mubr.f32.mxu0 0.0
      %10223 = vmatmul.mubr.f32.gmra.mrb[0].mxu0 %v10088
      %v10224 = vpop.f32.mrb[0].mxu0
      %v10225 = vadd.f32 0.0, %v10224
      %v10226 = vpop.f32.mrb[0].mxu0
      %10227 = vmatprep.mubr.f32.mxu0 0.0
      %10228 = vmatmul.mubr.f32.gmra.mrb[0].mxu0 %v10091
      %v10229 = vpop.f32.mrb[0].mxu0
      %v10230 = vadd.f32 0.0, %v10229
      %v10231 = vpop.f32.mrb[0].mxu0
      %10232 = vdwg.mxu0
      %v10234 = vsel %vm7529, %v9994, 0
      %v10237 = vsel %vm7529, %v9995, 0
      %v10240 = vsel %vm7529, %v9996, 0
      %v10243 = vsel %vm7529, %v9997, 0
      %v10246 = vsel %vm7529, %v9998, 0
      %v10249 = vsel %vm7529, %v9999, 0
      %v10252 = vsel %vm7529, %v10000, 0
      %v10255 = vsel %vm7529, %v10001, 0
      %v10258 = vsel %vm7529, %v10002, 0
      %v10261 = vsel %vm7529, %v10003, 0
      %v10264 = vsel %vm7529, %v10004, 0
      %v10267 = vsel %vm7529, %v10005, 0
      %v10270 = vsel %vm7529, %v10006, 0
      %v10273 = vsel %vm7529, %v10007, 0
      %v10276 = vsel %vm7529, %v10008, 0
      %10278 = vmatprep.subr.mxu0 0.0
      %10279 = vmatpush1.msra.mxu0 %v10009
      %10280 = vmatprep.subr.mxu0 0.0
      %10281 = vmatpush1.msra.mxu0 %v10010
      %10282 = vmatprep.subr.mxu0 0.0
      %10283 = vmatpush1.msra.mxu0 %v10011
      %10284 = vmatprep.subr.mxu0 0.0
      %10285 = vmatpush1.msra.mxu0 %v10012
      %10286 = vmatprep.subr.mxu0 0.0
      %10287 = vmatpush1.msra.mxu0 %v10013
      %10288 = vmatprep.subr.mxu0 0.0
      %10289 = vmatpush1.msra.mxu0 %v10014
      %10290 = vmatprep.subr.mxu0 0.0
      %10291 = vmatpush1.msra.mxu0 %v10015
      %10292 = vmatprep.subr.mxu0 0.0
      %10293 = vmatpush1.msra.mxu0 %v10016
      %10294 = vmatprep.subr.mxu0 0.0
      %10295 = vmatpush1.msra.mxu0 %v10017
      %10296 = vmatprep.subr.mxu0 0.0
      %10297 = vmatpush1.msra.mxu0 %v10018
      %10298 = vmatprep.subr.mxu0 0.0
      %10299 = vmatpush1.msra.mxu0 %v10019
      %10300 = vmatprep.subr.mxu0 0.0
      %10301 = vmatpush1.msra.mxu0 %v10020
      %10302 = vmatprep.subr.mxu0 0.0
      %10303 = vmatpush1.msra.mxu0 0.0
      %10304 = vmatprep.subr.mxu0 0.0
      %10305 = vmatpush1.msra.mxu0 0.0
      %10306 = vmatprep.subr.mxu0 0.0
      %10307 = vmatpush1.msra.mxu0 0.0
      %10308 = vmatprep.subr.mxu0 0.0
      %10309 = vmatpush1.msra.mxu0 0.0
      %10310 = vmatprep.subr.mxu0 0.0
      %10311 = vmatpush1.msra.mxu0 0.0
      %10312 = vmatprep.subr.mxu0 0.0
      %10313 = vmatpush1.msra.mxu0 0.0
      %10314 = vmatprep.subr.mxu0 0.0
      %10315 = vmatpush1.msra.mxu0 0.0
      %10316 = vmatprep.subr.mxu0 0.0
      %10317 = vmatpush1.msra.mxu0 0.0
      %10318 = vmatprep.subr.mxu0 0.0
      %10319 = vmatpush1.msra.mxu0 0.0
      %10320 = vmatprep.subr.mxu0 0.0
      %10321 = vmatpush1.msra.mxu0 0.0
      %10322 = vmatprep.subr.mxu0 0.0
      %10323 = vmatpush1.msra.mxu0 0.0
      %10324 = vmatprep.subr.mxu0 0.0
      %10325 = vmatpush1.msra.mxu0 0.0
      %10326 = vmatprep.subr.mxu0 0.0
      %10327 = vmatpush1.msra.mxu0 0.0
      %10328 = vmatprep.subr.mxu0 0.0
      %10329 = vmatpush1.msra.mxu0 0.0
      %10330 = vmatprep.subr.mxu0 0.0
      %10331 = vmatpush1.msra.mxu0 0.0
      %10332 = vmatprep.subr.mxu0 0.0
      %10333 = vmatpush1.msra.mxu0 0.0
      %10334 = vmatprep.subr.mxu0 0.0
      %10335 = vmatpush1.msra.mxu0 0.0
      %10336 = vmatprep.subr.mxu0 0.0
      %10337 = vmatpush1.msra.mxu0 0.0
      %10338 = vmatprep.subr.mxu0 0.0
      %10339 = vmatpush1.msra.mxu0 0.0
      %10340 = vmatprep.subr.mxu0 0.0
      %10341 = vmatpush1.msra.mxu0 0.0
      %10342 = vmatprep.mubr.f32.mxu0 0.0
      %10343 = vmatmul.mubr.f32.gmra.mrb[0].mxu0 %v10234
      %v10344 = vpop.f32.mrb[0].mxu0
      %v10345 = vadd.f32 %v10160, %v10344
      %v10346 = vpop.f32.mrb[0].mxu0
      %10347 = vmatprep.mubr.f32.mxu0 0.0
      %10348 = vmatmul.mubr.f32.gmra.mrb[0].mxu0 %v10237
      %v10349 = vpop.f32.mrb[0].mxu0
      %v10350 = vadd.f32 %v10165, %v10349
      %v10351 = vpop.f32.mrb[0].mxu0
      %10352 = vmatprep.mubr.f32.mxu0 0.0
      %10353 = vmatmul.mubr.f32.gmra.mrb[0].mxu0 %v10240
      %v10354 = vpop.f32.mrb[0].mxu0
      %v10355 = vadd.f32 %v10170, %v10354
      %v10356 = vpop.f32.mrb[0].mxu0
      %10357 = vmatprep.mubr.f32.mxu0 0.0
      %10358 = vmatmul.mubr.f32.gmra.mrb[0].mxu0 %v10243
      %v10359 = vpop.f32.mrb[0].mxu0
      %v10360 = vadd.f32 %v10175, %v10359
      %v10361 = vpop.f32.mrb[0].mxu0
      %10362 = vmatprep.mubr.f32.mxu0 0.0
      %10363 = vmatmul.mubr.f32.gmra.mrb[0].mxu0 %v10246
      %v10364 = vpop.f32.mrb[0].mxu0
      %v10365 = vadd.f32 %v10180, %v10364
      %v10366 = vpop.f32.mrb[0].mxu0
      %10367 = vmatprep.mubr.f32.mxu0 0.0
      %10368 = vmatmul.mubr.f32.gmra.mrb[0].mxu0 %v10249
      %v10369 = vpop.f32.mrb[0].mxu0
      %v10370 = vadd.f32 %v10185, %v10369
      %v10371 = vpop.f32.mrb[0].mxu0
      %10372 = vmatprep.mubr.f32.mxu0 0.0
      %10373 = vmatmul.mubr.f32.gmra.mrb[0].mxu0 %v10252
      %v10374 = vpop.f32.mrb[0].mxu0
      %v10375 = vadd.f32 %v10190, %v10374
      %v10376 = vpop.f32.mrb[0].mxu0
      %10377 = vmatprep.mubr.f32.mxu0 0.0
      %10378 = vmatmul.mubr.f32.gmra.mrb[0].mxu0 %v10255
      %v10379 = vpop.f32.mrb[0].mxu0
      %v10380 = vadd.f32 %v10195, %v10379
      %v10381 = vpop.f32.mrb[0].mxu0
      %10382 = vmatprep.mubr.f32.mxu0 0.0
      %10383 = vmatmul.mubr.f32.gmra.mrb[0].mxu0 %v10258
      %v10384 = vpop.f32.mrb[0].mxu0
      %v10385 = vadd.f32 %v10200, %v10384
      %v10386 = vpop.f32.mrb[0].mxu0
      %10387 = vmatprep.mubr.f32.mxu0 0.0
      %10388 = vmatmul.mubr.f32.gmra.mrb[0].mxu0 %v10261
      %v10389 = vpop.f32.mrb[0].mxu0
      %v10390 = vadd.f32 %v10205, %v10389
      %v10391 = vpop.f32.mrb[0].mxu0
      %10392 = vmatprep.mubr.f32.mxu0 0.0
      %10393 = vmatmul.mubr.f32.gmra.mrb[0].mxu0 %v10264
      %v10394 = vpop.f32.mrb[0].mxu0
      %v10395 = vadd.f32 %v10210, %v10394
      %v10396 = vpop.f32.mrb[0].mxu0
      %10397 = vmatprep.mubr.f32.mxu0 0.0
      %10398 = vmatmul.mubr.f32.gmra.mrb[0].mxu0 %v10267
      %v10399 = vpop.f32.mrb[0].mxu0
      %v10400 = vadd.f32 %v10215, %v10399
      %v10401 = vpop.f32.mrb[0].mxu0
      %10402 = vmatprep.mubr.f32.mxu0 0.0
      %10403 = vmatmul.mubr.f32.gmra.mrb[0].mxu0 %v10270
      %v10404 = vpop.f32.mrb[0].mxu0
      %v10405 = vadd.f32 %v10220, %v10404
      %v10406 = vpop.f32.mrb[0].mxu0
      %10407 = vmatprep.mubr.f32.mxu0 0.0
      %10408 = vmatmul.mubr.f32.gmra.mrb[0].mxu0 %v10273
      %v10409 = vpop.f32.mrb[0].mxu0
      %v10410 = vadd.f32 %v10225, %v10409
      %v10411 = vpop.f32.mrb[0].mxu0
      %10412 = vmatprep.mubr.f32.mxu0 0.0
      %10413 = vmatmul.mubr.f32.gmra.mrb[0].mxu0 %v10276
      %v10414 = vpop.f32.mrb[0].mxu0
      %v10415 = vadd.f32 %v10230, %v10414
      %v10416 = vpop.f32.mrb[0].mxu0
      %10417 = vdwg.mxu0
      %v10418 = vld [vmem:[#allocation7 + $0xd] sm:$0xff]
      %v10419 = vld [vmem:[#allocation7 + $0x15] sm:$0xff]
      %v10420 = vld [vmem:[#allocation7 + $0x1d] sm:$0xff]
      %v10421 = vld [vmem:[#allocation7 + $0x25] sm:$0xff]
      %v10422 = vld [vmem:[#allocation7 + $0x2d] sm:$0xff]
      %v10423 = vld [vmem:[#allocation7 + $0x35] sm:$0xff]
      %v10424 = vld [vmem:[#allocation7 + $0x3d] sm:$0xff]
      %v10425 = vld [vmem:[#allocation7 + $0x45] sm:$0xff]
      %v10426 = vld [vmem:[#allocation7 + $0x4d] sm:$0xff]
      %v10427 = vld [vmem:[#allocation7 + $0x55] sm:$0xff]
      %v10428 = vld [vmem:[#allocation7 + $0x5d] sm:$0xff]
      %v10429 = vld [vmem:[#allocation7 + $0x65] sm:$0xff]
      %v10430 = vld [vmem:[#allocation7 + $0x6d] sm:$0xff]
      %v10431 = vld [vmem:[#allocation7 + $0x75] sm:$0xff]
      %v10432 = vld [vmem:[#allocation7 + $0x7d] sm:$0xff]
      %v10433 = vld [vmem:[%s1 + $0x468] sm:$0xff]
      %v10434 = vld [vmem:[%s1 + $0x470] sm:$0xff]
      %v10435 = vld [vmem:[%s1 + $0x478] sm:$0xff]
      %v10436 = vld [vmem:[%s1 + $0x480] sm:$0xff]
      %v10437 = vld [vmem:[%s1 + $0x488] sm:$0xff]
      %v10438 = vld [vmem:[%s1 + $0x490] sm:$0xff]
      %v10439 = vld [vmem:[%s1 + $0x498] sm:$0xff]
      %v10440 = vld [vmem:[%s1 + $0x4a0] sm:$0xff]
      %v10441 = vld [vmem:[%s1 + $0x4a8] sm:$0xff]
      %v10442 = vld [vmem:[%s1 + $0x4b0] sm:$0xff]
      %v10443 = vld [vmem:[%s1 + $0x4b8] sm:$0xff]
      %v10444 = vld [vmem:[%s1 + $0x4c0] sm:$0xff]
      %v10446 = vsel %vm7529, %v10418, 0
      %v10449 = vsel %vm7529, %v10419, 0
      %v10452 = vsel %vm7529, %v10420, 0
      %v10455 = vsel %vm7529, %v10421, 0
      %v10458 = vsel %vm7529, %v10422, 0
      %v10461 = vsel %vm7529, %v10423, 0
      %v10464 = vsel %vm7529, %v10424, 0
      %v10467 = vsel %vm7529, %v10425, 0
      %v10470 = vsel %vm7529, %v10426, 0
      %v10473 = vsel %vm7529, %v10427, 0
      %v10476 = vsel %vm7529, %v10428, 0
      %v10479 = vsel %vm7529, %v10429, 0
      %v10482 = vsel %vm7529, %v10430, 0
      %v10485 = vsel %vm7529, %v10431, 0
      %v10488 = vsel %vm7529, %v10432, 0
      %10490 = vmatprep.subr.mxu0 0.0
      %10491 = vmatpush1.msra.mxu0 %v10433
      %10492 = vmatprep.subr.mxu0 0.0
      %10493 = vmatpush1.msra.mxu0 %v10434
      %10494 = vmatprep.subr.mxu0 0.0
      %10495 = vmatpush1.msra.mxu0 %v10435
      %10496 = vmatprep.subr.mxu0 0.0
      %10497 = vmatpush1.msra.mxu0 %v10436
      %10498 = vmatprep.subr.mxu0 0.0
      %10499 = vmatpush1.msra.mxu0 %v10437
      %10500 = vmatprep.subr.mxu0 0.0
      %10501 = vmatpush1.msra.mxu0 %v10438
      %10502 = vmatprep.subr.mxu0 0.0
      %10503 = vmatpush1.msra.mxu0 %v10439
      %10504 = vmatprep.subr.mxu0 0.0
      %10505 = vmatpush1.msra.mxu0 %v10440
      %10506 = vmatprep.subr.mxu0 0.0
      %10507 = vmatpush1.msra.mxu0 %v10441
      %10508 = vmatprep.subr.mxu0 0.0
      %10509 = vmatpush1.msra.mxu0 %v10442
      %10510 = vmatprep.subr.mxu0 0.0
      %10511 = vmatpush1.msra.mxu0 %v10443
      %10512 = vmatprep.subr.mxu0 0.0
      %10513 = vmatpush1.msra.mxu0 %v10444
      %10514 = vmatprep.subr.mxu0 0.0
      %10515 = vmatpush1.msra.mxu0 0.0
      %10516 = vmatprep.subr.mxu0 0.0
      %10517 = vmatpush1.msra.mxu0 0.0
      %10518 = vmatprep.subr.mxu0 0.0
      %10519 = vmatpush1.msra.mxu0 0.0
      %10520 = vmatprep.subr.mxu0 0.0
      %10521 = vmatpush1.msra.mxu0 0.0
      %10522 = vmatprep.subr.mxu0 0.0
      %10523 = vmatpush1.msra.mxu0 0.0
      %10524 = vmatprep.subr.mxu0 0.0
      %10525 = vmatpush1.msra.mxu0 0.0
      %10526 = vmatprep.subr.mxu0 0.0
      %10527 = vmatpush1.msra.mxu0 0.0
      %10528 = vmatprep.subr.mxu0 0.0
      %10529 = vmatpush1.msra.mxu0 0.0
      %10530 = vmatprep.subr.mxu0 0.0
      %10531 = vmatpush1.msra.mxu0 0.0
      %10532 = vmatprep.subr.mxu0 0.0
      %10533 = vmatpush1.msra.mxu0 0.0
      %10534 = vmatprep.subr.mxu0 0.0
      %10535 = vmatpush1.msra.mxu0 0.0
      %10536 = vmatprep.subr.mxu0 0.0
      %10537 = vmatpush1.msra.mxu0 0.0
      %10538 = vmatprep.subr.mxu0 0.0
      %10539 = vmatpush1.msra.mxu0 0.0
      %10540 = vmatprep.subr.mxu0 0.0
      %10541 = vmatpush1.msra.mxu0 0.0
      %10542 = vmatprep.subr.mxu0 0.0
      %10543 = vmatpush1.msra.mxu0 0.0
      %10544 = vmatprep.subr.mxu0 0.0
      %10545 = vmatpush1.msra.mxu0 0.0
      %10546 = vmatprep.subr.mxu0 0.0
      %10547 = vmatpush1.msra.mxu0 0.0
      %10548 = vmatprep.subr.mxu0 0.0
      %10549 = vmatpush1.msra.mxu0 0.0
      %10550 = vmatprep.subr.mxu0 0.0
      %10551 = vmatpush1.msra.mxu0 0.0
      %10552 = vmatprep.subr.mxu0 0.0
      %10553 = vmatpush1.msra.mxu0 0.0
      %10554 = vmatprep.mubr.f32.mxu0 0.0
      %10555 = vmatmul.mubr.f32.gmra.mrb[0].mxu0 %v10446
      %v10556 = vpop.f32.mrb[0].mxu0
      %v10557 = vadd.f32 0.0, %v10556
      %v10558 = vpop.f32.mrb[0].mxu0
      %10559 = vmatprep.mubr.f32.mxu0 0.0
      %10560 = vmatmul.mubr.f32.gmra.mrb[0].mxu0 %v10449
      %v10561 = vpop.f32.mrb[0].mxu0
      %v10562 = vadd.f32 0.0, %v10561
      %v10563 = vpop.f32.mrb[0].mxu0
      %10564 = vmatprep.mubr.f32.mxu0 0.0
      %10565 = vmatmul.mubr.f32.gmra.mrb[0].mxu0 %v10452
      %v10566 = vpop.f32.mrb[0].mxu0
      %v10567 = vadd.f32 0.0, %v10566
      %v10568 = vpop.f32.mrb[0].mxu0
      %10569 = vmatprep.mubr.f32.mxu0 0.0
      %10570 = vmatmul.mubr.f32.gmra.mrb[0].mxu0 %v10455
      %v10571 = vpop.f32.mrb[0].mxu0
      %v10572 = vadd.f32 0.0, %v10571
      %v10573 = vpop.f32.mrb[0].mxu0
      %10574 = vmatprep.mubr.f32.mxu0 0.0
      %10575 = vmatmul.mubr.f32.gmra.mrb[0].mxu0 %v10458
      %v10576 = vpop.f32.mrb[0].mxu0
      %v10577 = vadd.f32 0.0, %v10576
      %v10578 = vpop.f32.mrb[0].mxu0
      %10579 = vmatprep.mubr.f32.mxu0 0.0
      %10580 = vmatmul.mubr.f32.gmra.mrb[0].mxu0 %v10461
      %v10581 = vpop.f32.mrb[0].mxu0
      %v10582 = vadd.f32 0.0, %v10581
      %v10583 = vpop.f32.mrb[0].mxu0
      %10584 = vmatprep.mubr.f32.mxu0 0.0
      %10585 = vmatmul.mubr.f32.gmra.mrb[0].mxu0 %v10464
      %v10586 = vpop.f32.mrb[0].mxu0
      %v10587 = vadd.f32 0.0, %v10586
      %v10588 = vpop.f32.mrb[0].mxu0
      %10589 = vmatprep.mubr.f32.mxu0 0.0
      %10590 = vmatmul.mubr.f32.gmra.mrb[0].mxu0 %v10467
      %v10591 = vpop.f32.mrb[0].mxu0
      %v10592 = vadd.f32 0.0, %v10591
      %v10593 = vpop.f32.mrb[0].mxu0
      %10594 = vmatprep.mubr.f32.mxu0 0.0
      %10595 = vmatmul.mubr.f32.gmra.mrb[0].mxu0 %v10470
      %v10596 = vpop.f32.mrb[0].mxu0
      %v10597 = vadd.f32 0.0, %v10596
      %v10598 = vpop.f32.mrb[0].mxu0
      %10599 = vmatprep.mubr.f32.mxu0 0.0
      %10600 = vmatmul.mubr.f32.gmra.mrb[0].mxu0 %v10473
      %v10601 = vpop.f32.mrb[0].mxu0
      %v10602 = vadd.f32 0.0, %v10601
      %v10603 = vpop.f32.mrb[0].mxu0
      %10604 = vmatprep.mubr.f32.mxu0 0.0
      %10605 = vmatmul.mubr.f32.gmra.mrb[0].mxu0 %v10476
      %v10606 = vpop.f32.mrb[0].mxu0
      %v10607 = vadd.f32 0.0, %v10606
      %v10608 = vpop.f32.mrb[0].mxu0
      %10609 = vmatprep.mubr.f32.mxu0 0.0
      %10610 = vmatmul.mubr.f32.gmra.mrb[0].mxu0 %v10479
      %v10611 = vpop.f32.mrb[0].mxu0
      %v10612 = vadd.f32 0.0, %v10611
      %v10613 = vpop.f32.mrb[0].mxu0
      %10614 = vmatprep.mubr.f32.mxu0 0.0
      %10615 = vmatmul.mubr.f32.gmra.mrb[0].mxu0 %v10482
      %v10616 = vpop.f32.mrb[0].mxu0
      %v10617 = vadd.f32 0.0, %v10616
      %v10618 = vpop.f32.mrb[0].mxu0
      %10619 = vmatprep.mubr.f32.mxu0 0.0
      %10620 = vmatmul.mubr.f32.gmra.mrb[0].mxu0 %v10485
      %v10621 = vpop.f32.mrb[0].mxu0
      %v10622 = vadd.f32 0.0, %v10621
      %v10623 = vpop.f32.mrb[0].mxu0
      %10624 = vmatprep.mubr.f32.mxu0 0.0
      %10625 = vmatmul.mubr.f32.gmra.mrb[0].mxu0 %v10488
      %v10626 = vpop.f32.mrb[0].mxu0
      %v10627 = vadd.f32 0.0, %v10626
      %v10628 = vpop.f32.mrb[0].mxu0
      %10629 = vdwg.mxu0
      %v10630 = vadd.f32 %v10345, %v10557
      %v10631 = vadd.f32 %v10350, %v10562
      %v10632 = vadd.f32 %v10355, %v10567
      %v10633 = vadd.f32 %v10360, %v10572
      %v10634 = vadd.f32 %v10365, %v10577
      %v10635 = vadd.f32 %v10370, %v10582
      %v10636 = vadd.f32 %v10375, %v10587
      %v10637 = vadd.f32 %v10380, %v10592
      %v10638 = vadd.f32 %v10385, %v10597
      %v10639 = vadd.f32 %v10390, %v10602
      %v10640 = vadd.f32 %v10395, %v10607
      %v10641 = vadd.f32 %v10400, %v10612
      %v10642 = vadd.f32 %v10405, %v10617
      %v10643 = vadd.f32 %v10410, %v10622
      %v10644 = vadd.f32 %v10415, %v10627
      %v10645 = vmax.f32 %v10630, 0.0
      %v10646 = vmax.f32 %v10631, 0.0
      %v10647 = vmax.f32 %v10632, 0.0
      %v10648 = vmax.f32 %v10633, 0.0
      %v10649 = vmax.f32 %v10634, 0.0
      %v10650 = vmax.f32 %v10635, 0.0
      %v10651 = vmax.f32 %v10636, 0.0
      %v10652 = vmax.f32 %v10637, 0.0
      %v10653 = vmax.f32 %v10638, 0.0
      %v10654 = vmax.f32 %v10639, 0.0
      %v10655 = vmax.f32 %v10640, 0.0
      %v10656 = vmax.f32 %v10641, 0.0
      %v10657 = vmax.f32 %v10642, 0.0
      %v10658 = vmax.f32 %v10643, 0.0
      %v10659 = vmax.f32 %v10644, 0.0
      %v10660 = vld [vmem:[%s1 + $0x4c8] sm:$0xff]
      %v10661 = vld [vmem:[%s1 + $0x4d0] sm:$0xff]
      %v10663 = vsel %vm333, %v10645, 0
      %v10666 = vsel %vm333, %v10646, 0
      %v10669 = vsel %vm333, %v10647, 0
      %v10672 = vsel %vm333, %v10648, 0
      %v10675 = vsel %vm333, %v10649, 0
      %v10678 = vsel %vm333, %v10650, 0
      %v10681 = vsel %vm333, %v10651, 0
      %v10684 = vsel %vm333, %v10652, 0
      %v10687 = vsel %vm333, %v10653, 0
      %v10690 = vsel %vm333, %v10654, 0
      %v10693 = vsel %vm333, %v10655, 0
      %v10696 = vsel %vm333, %v10656, 0
      %v10699 = vsel %vm333, %v10657, 0
      %v10702 = vsel %vm333, %v10658, 0
      %v10705 = vsel %vm333, %v10659, 0
      %10707 = vmatprep.subr.mxu0 0.0
      %10708 = vmatpush1.msra.mxu0 %v10660
      %10709 = vmatprep.subr.mxu0 0.0
      %10710 = vmatpush1.msra.mxu0 %v10661
      %10711 = vmatprep.subr.mxu0 0.0
      %10712 = vmatpush1.msra.mxu0 0.0
      %10713 = vmatprep.subr.mxu0 0.0
      %10714 = vmatpush1.msra.mxu0 0.0
      %10715 = vmatprep.subr.mxu0 0.0
      %10716 = vmatpush1.msra.mxu0 0.0
      %10717 = vmatprep.subr.mxu0 0.0
      %10718 = vmatpush1.msra.mxu0 0.0
      %10719 = vmatprep.subr.mxu0 0.0
      %10720 = vmatpush1.msra.mxu0 0.0
      %10721 = vmatprep.subr.mxu0 0.0
      %10722 = vmatpush1.msra.mxu0 0.0
      %10723 = vmatprep.subr.mxu0 0.0
      %10724 = vmatpush1.msra.mxu0 0.0
      %10725 = vmatprep.subr.mxu0 0.0
      %10726 = vmatpush1.msra.mxu0 0.0
      %10727 = vmatprep.subr.mxu0 0.0
      %10728 = vmatpush1.msra.mxu0 0.0
      %10729 = vmatprep.subr.mxu0 0.0
      %10730 = vmatpush1.msra.mxu0 0.0
      %10731 = vmatprep.subr.mxu0 0.0
      %10732 = vmatpush1.msra.mxu0 0.0
      %10733 = vmatprep.subr.mxu0 0.0
      %10734 = vmatpush1.msra.mxu0 0.0
      %10735 = vmatprep.subr.mxu0 0.0
      %10736 = vmatpush1.msra.mxu0 0.0
      %10737 = vmatprep.subr.mxu0 0.0
      %10738 = vmatpush1.msra.mxu0 0.0
      %10739 = vmatprep.subr.mxu0 0.0
      %10740 = vmatpush1.msra.mxu0 0.0
      %10741 = vmatprep.subr.mxu0 0.0
      %10742 = vmatpush1.msra.mxu0 0.0
      %10743 = vmatprep.subr.mxu0 0.0
      %10744 = vmatpush1.msra.mxu0 0.0
      %10745 = vmatprep.subr.mxu0 0.0
      %10746 = vmatpush1.msra.mxu0 0.0
      %10747 = vmatprep.subr.mxu0 0.0
      %10748 = vmatpush1.msra.mxu0 0.0
      %10749 = vmatprep.subr.mxu0 0.0
      %10750 = vmatpush1.msra.mxu0 0.0
      %10751 = vmatprep.subr.mxu0 0.0
      %10752 = vmatpush1.msra.mxu0 0.0
      %10753 = vmatprep.subr.mxu0 0.0
      %10754 = vmatpush1.msra.mxu0 0.0
      %10755 = vmatprep.subr.mxu0 0.0
      %10756 = vmatpush1.msra.mxu0 0.0
      %10757 = vmatprep.subr.mxu0 0.0
      %10758 = vmatpush1.msra.mxu0 0.0
      %10759 = vmatprep.subr.mxu0 0.0
      %10760 = vmatpush1.msra.mxu0 0.0
      %10761 = vmatprep.subr.mxu0 0.0
      %10762 = vmatpush1.msra.mxu0 0.0
      %10763 = vmatprep.subr.mxu0 0.0
      %10764 = vmatpush1.msra.mxu0 0.0
      %10765 = vmatprep.subr.mxu0 0.0
      %10766 = vmatpush1.msra.mxu0 0.0
      %10767 = vmatprep.subr.mxu0 0.0
      %10768 = vmatpush1.msra.mxu0 0.0
      %10769 = vmatprep.subr.mxu0 0.0
      %10770 = vmatpush1.msra.mxu0 0.0
      %10771 = vmatprep.mubr.f32.mxu0 0.0
      %10772 = vmatmul.mubr.f32.gmra.mrb[0].mxu0 %v10663
      %v10773 = vpop.f32.mrb[0].mxu0
      %v10774 = vadd.f32 0.0, %v10773
      %v10775 = vpop.f32.mrb[0].mxu0
      %10776 = vmatprep.mubr.f32.mxu0 0.0
      %10777 = vmatmul.mubr.f32.gmra.mrb[0].mxu0 %v10666
      %v10778 = vpop.f32.mrb[0].mxu0
      %v10779 = vadd.f32 0.0, %v10778
      %v10780 = vpop.f32.mrb[0].mxu0
      %10781 = vmatprep.mubr.f32.mxu0 0.0
      %10782 = vmatmul.mubr.f32.gmra.mrb[0].mxu0 %v10669
      %v10783 = vpop.f32.mrb[0].mxu0
      %v10784 = vadd.f32 0.0, %v10783
      %v10785 = vpop.f32.mrb[0].mxu0
      %10786 = vmatprep.mubr.f32.mxu0 0.0
      %10787 = vmatmul.mubr.f32.gmra.mrb[0].mxu0 %v10672
      %v10788 = vpop.f32.mrb[0].mxu0
      %v10789 = vadd.f32 0.0, %v10788
      %v10790 = vpop.f32.mrb[0].mxu0
      %10791 = vmatprep.mubr.f32.mxu0 0.0
      %10792 = vmatmul.mubr.f32.gmra.mrb[0].mxu0 %v10675
      %v10793 = vpop.f32.mrb[0].mxu0
      %v10794 = vadd.f32 0.0, %v10793
      %v10795 = vpop.f32.mrb[0].mxu0
      %10796 = vmatprep.mubr.f32.mxu0 0.0
      %10797 = vmatmul.mubr.f32.gmra.mrb[0].mxu0 %v10678
      %v10798 = vpop.f32.mrb[0].mxu0
      %v10799 = vadd.f32 0.0, %v10798
      %v10800 = vpop.f32.mrb[0].mxu0
      %10801 = vmatprep.mubr.f32.mxu0 0.0
      %10802 = vmatmul.mubr.f32.gmra.mrb[0].mxu0 %v10681
      %v10803 = vpop.f32.mrb[0].mxu0
      %v10804 = vadd.f32 0.0, %v10803
      %v10805 = vpop.f32.mrb[0].mxu0
      %10806 = vmatprep.mubr.f32.mxu0 0.0
      %10807 = vmatmul.mubr.f32.gmra.mrb[0].mxu0 %v10684
      %v10808 = vpop.f32.mrb[0].mxu0
      %v10809 = vadd.f32 0.0, %v10808
      %v10810 = vpop.f32.mrb[0].mxu0
      %10811 = vmatprep.mubr.f32.mxu0 0.0
      %10812 = vmatmul.mubr.f32.gmra.mrb[0].mxu0 %v10687
      %v10813 = vpop.f32.mrb[0].mxu0
      %v10814 = vadd.f32 0.0, %v10813
      %v10815 = vpop.f32.mrb[0].mxu0
      %10816 = vmatprep.mubr.f32.mxu0 0.0
      %10817 = vmatmul.mubr.f32.gmra.mrb[0].mxu0 %v10690
      %v10818 = vpop.f32.mrb[0].mxu0
      %v10819 = vadd.f32 0.0, %v10818
      %v10820 = vpop.f32.mrb[0].mxu0
      %10821 = vmatprep.mubr.f32.mxu0 0.0
      %10822 = vmatmul.mubr.f32.gmra.mrb[0].mxu0 %v10693
      %v10823 = vpop.f32.mrb[0].mxu0
      %v10824 = vadd.f32 0.0, %v10823
      %v10825 = vpop.f32.mrb[0].mxu0
      %10826 = vmatprep.mubr.f32.mxu0 0.0
      %10827 = vmatmul.mubr.f32.gmra.mrb[0].mxu0 %v10696
      %v10828 = vpop.f32.mrb[0].mxu0
      %v10829 = vadd.f32 0.0, %v10828
      %v10830 = vpop.f32.mrb[0].mxu0
      %10831 = vmatprep.mubr.f32.mxu0 0.0
      %10832 = vmatmul.mubr.f32.gmra.mrb[0].mxu0 %v10699
      %v10833 = vpop.f32.mrb[0].mxu0
      %v10834 = vadd.f32 0.0, %v10833
      %v10835 = vpop.f32.mrb[0].mxu0
      %10836 = vmatprep.mubr.f32.mxu0 0.0
      %10837 = vmatmul.mubr.f32.gmra.mrb[0].mxu0 %v10702
      %v10838 = vpop.f32.mrb[0].mxu0
      %v10839 = vadd.f32 0.0, %v10838
      %v10840 = vpop.f32.mrb[0].mxu0
      %10841 = vmatprep.mubr.f32.mxu0 0.0
      %10842 = vmatmul.mubr.f32.gmra.mrb[0].mxu0 %v10705
      %v10843 = vpop.f32.mrb[0].mxu0
      %v10844 = vadd.f32 0.0, %v10843
      %v10845 = vpop.f32.mrb[0].mxu0
      %10846 = vdwg.mxu0
      %v10847 = vadd.f32 %v9512, %v10774
      %v10848 = vadd.f32 %v9513, %v10779
      %v10849 = vadd.f32 %v9514, %v10784
      %v10850 = vadd.f32 %v9515, %v10789
      %v10851 = vadd.f32 %v9516, %v10794
      %v10852 = vadd.f32 %v9517, %v10799
      %v10853 = vadd.f32 %v9518, %v10804
      %v10854 = vadd.f32 %v9519, %v10809
      %v10855 = vadd.f32 %v9520, %v10814
      %v10856 = vadd.f32 %v9521, %v10819
      %v10857 = vadd.f32 %v9522, %v10824
      %v10858 = vadd.f32 %v9523, %v10829
      %v10859 = vadd.f32 %v9524, %v10834
      %v10860 = vadd.f32 %v9525, %v10839
      %v10861 = vadd.f32 %v9526, %v10844
      %v10862 = vsel %vm8147, %v10847, 0.0
      %v10863 = vsel %vm8148, %v10848, 0.0
      %v10864 = vsel %vm8149, %v10849, 0.0
      %v10865 = vsel %vm8150, %v10850, 0.0
      %v10866 = vsel %vm8151, %v10851, 0.0
      %v10867 = vsel %vm8152, %v10852, 0.0
      %v10868 = vsel %vm8153, %v10853, 0.0
      %v10869 = vsel %vm8154, %v10854, 0.0
      %v10870 = vsel %vm8155, %v10855, 0.0
      %v10871 = vsel %vm8156, %v10856, 0.0
      %v10872 = vsel %vm8157, %v10857, 0.0
      %v10873 = vsel %vm8158, %v10858, 0.0
      %v10874 = vsel %vm8159, %v10859, 0.0
      %v10875 = vsel %vm8160, %v10860, 0.0
      %v10876 = vsel %vm8161, %v10861, 0.0
      %v10877 = vmax.f32 %v10862, 0.0
      %v10878 = vmax.f32 %v10863, 0.0
      %v10879 = vmax.f32 %v10864, 0.0
      %v10880 = vmax.f32 %v10865, 0.0
      %v10881 = vmax.f32 %v10866, 0.0
      %v10882 = vmax.f32 %v10867, 0.0
      %v10883 = vmax.f32 %v10868, 0.0
      %v10884 = vmax.f32 %v10869, 0.0
      %v10885 = vmax.f32 %v10870, 0.0
      %v10886 = vmax.f32 %v10871, 0.0
      %v10887 = vmax.f32 %v10872, 0.0
      %v10888 = vmax.f32 %v10873, 0.0
      %v10889 = vmax.f32 %v10874, 0.0
      %v10890 = vmax.f32 %v10875, 0.0
      %v10891 = vmax.f32 %v10876, 0.0
      %10892 = vst.msk [vmem:[#allocation6 + $0x8] sm:$0xff] %vm6979, %v10877
      %10893 = vst.msk [vmem:[#allocation6 + $0x10] sm:$0xff] %vm6979, %v10878
      %10894 = vst.msk [vmem:[#allocation6 + $0x18] sm:$0xff] %vm6979, %v10879
      %10895 = vst.msk [vmem:[#allocation6 + $0x20] sm:$0xff] %vm6979, %v10880
      %10896 = vst.msk [vmem:[#allocation6 + $0x28] sm:$0xff] %vm6979, %v10881
      %10897 = vst.msk [vmem:[#allocation6 + $0x30] sm:$0xff] %vm6979, %v10882
      %10898 = vst.msk [vmem:[#allocation6 + $0x38] sm:$0xff] %vm6979, %v10883
      %10899 = vst.msk [vmem:[#allocation6 + $0x40] sm:$0xff] %vm6979, %v10884
      %10900 = vst.msk [vmem:[#allocation6 + $0x48] sm:$0xff] %vm6979, %v10885
      %10901 = vst.msk [vmem:[#allocation6 + $0x50] sm:$0xff] %vm6979, %v10886
      %10902 = vst.msk [vmem:[#allocation6 + $0x58] sm:$0xff] %vm6979, %v10887
      %10903 = vst.msk [vmem:[#allocation6 + $0x60] sm:$0xff] %vm6979, %v10888
      %10904 = vst.msk [vmem:[#allocation6 + $0x68] sm:$0xff] %vm6979, %v10889
      %10905 = vst.msk [vmem:[#allocation6 + $0x70] sm:$0xff] %vm6979, %v10890
      %10906 = vst.msk [vmem:[#allocation6 + $0x78] sm:$0xff] %vm6979, %v10891
      %s10907 = scalar_lea.vmem [#allocation6], 15
      %v10908 = vld [vmem:[%s10907] ss:$6 sm:$0xf]
      %10909 = vst.msk [vmem:[%s145] sm:$0xf] %vm7013, %v10908
      %s10910 = scalar_lea.vmem [#allocation6], 16
      %v10911 = vld [vmem:[%s10910] ss:$6 sm:$0xf]
      %10913 = vrot.lane.b32.xlu0 %v10911, 32
      %v10914 = vpop.permute.xlu0 %10913
      %vm10916 = vcmask 519424
      %10917 = vst.msk [vmem:[%s145] sm:$0xf] %vm10916, %v10914
      %s10918 = scalar_lea.vmem [#allocation6], 17
      %v10919 = vld [vmem:[%s10918] ss:$6 sm:$0xf]
      %10921 = vrot.lane.b32.xlu0 %v10919, 64
      %v10922 = vpop.permute.xlu0 %10921
      %vm10924 = vcmask 781824
      %10925 = vst.msk [vmem:[%s145] sm:$0xf] %vm10924, %v10922
      %s10926 = scalar_lea.vmem [#allocation6], 18
      %v10927 = vld [vmem:[%s10926] ss:$6 sm:$0xf]
      %10929 = vrot.lane.b32.xlu0 %v10927, 96
      %v10930 = vpop.permute.xlu0 %10929
      %vm10932 = vcmask 1044224
      %10933 = vst.msk [vmem:[%s145] sm:$0xf] %vm10932, %v10930
      %s10934 = scalar_lea.vmem [#allocation6], 95
      %v10935 = vld [vmem:[%s10934] ss:$6 sm:$0xf]
      %s10936 = scalar_lea.vmem %s145, 4
      %10937 = vst.msk [vmem:[%s10936] sm:$0xf] %vm7013, %v10935
      %s10938 = scalar_lea.vmem [#allocation6], 96
      %v10939 = vld [vmem:[%s10938] ss:$6 sm:$0xf]
      %10941 = vrot.lane.b32.xlu0 %v10939, 32
      %v10942 = vpop.permute.xlu0 %10941
      %10944 = vst.msk [vmem:[%s10936] sm:$0xf] %vm10916, %v10942
      %s10945 = scalar_lea.vmem [#allocation6], 97
      %v10946 = vld [vmem:[%s10945] ss:$6 sm:$0xf]
      %10948 = vrot.lane.b32.xlu0 %v10946, 64
      %v10949 = vpop.permute.xlu0 %10948
      %10951 = vst.msk [vmem:[%s10936] sm:$0xf] %vm10924, %v10949
      %s10952 = scalar_lea.vmem [#allocation6], 98
      %v10953 = vld [vmem:[%s10952] ss:$6 sm:$0xf]
      %10955 = vrot.lane.b32.xlu0 %v10953, 96
      %v10956 = vpop.permute.xlu0 %10955
      %10958 = vst.msk [vmem:[%s10936] sm:$0xf] %vm10932, %v10956
      %s10959 = smul.u32 2, %s13
      %p10960 = scmp.lt.s32.totalorder %s10959, 3
      %s10961 = scalar_select %p10960, %s10959, 3
      %s10962 = smul.addr %s10961, 4
      %s10963 = scalar_lea.vmem %s2, %s10962
      // Predicated region
      $region29: #{encoder_forward.1} parent=27 // pred_check
        %p10964 = pneg %p78
      $region30: #{encoder_forward.1} parent=27 // pred_check_branch
        %10966 = sbr.rel (%p10964) target = $region32
      $region31: #{encoder_forward.1} parent=27 // pred_region
        %s10967 = smul.u32 2, %s13
      $region32: #{encoder_forward.1} parent=27 // pred_fallthru
        _
    $region28: #{encoder_forward.1} parent=5 // pred_fallthru
      _
    %p10968 = scmp.le.s32.totalorder 2, %s8
    // Predicated region
    $region33: #{encoder_forward.1} parent=5 // pred_check
      %p10969 = pneg %p10968
    $region34: #{encoder_forward.1} parent=5 // pred_check_branch
      %10971 = sbr.rel (%p10969) target = $region36
    $region35: #{encoder_forward.1} parent=5 // pred_region
      %s10972 = ssub.s32 %s8, 2
      // Predicated region
      $region37: #{encoder_forward.1} parent=35 // pred_check
        %p10973 = pneg %p84
      $region38: #{encoder_forward.1} parent=35 // pred_check_branch
        %10975 = sbr.rel (%p10973) target = $region40
      $region39: #{encoder_forward.1} parent=35 // pred_region
        %s10976 = smul.u32 2, %s14
        %p10977 = scmp.lt.s32.totalorder %s10976, 3
        %s10978 = scalar_select %p10977, %s10976, 3
        %s10979 = smul.addr %s10978, 4
        %s10980 = scalar_lea.vmem %s2, %s10979
      $region40: #{encoder_forward.1} parent=35 // pred_fallthru
        _
    $region36: #{encoder_forward.1} parent=5 // pred_fallthru
      _
  $region6: #{encoder_forward.1} parent=0 // loop_footer
    %s12 = sadd.s32 1, %s8
  $region7: #{encoder_forward.1} parent=0 // loop_footer_branch
    %7 = sbr.rel target = $region3
  $region8: #{encoder_forward.1} parent=0 // loop_exit
    _

</llo_original>
